<compile_context>
chip_gen: v5e
topology: v5e:2x2
jax: 0.10.0
libtpu: 0.0.40
codegen_flags: <defaults>
</compile_context>

<pallas_src>
import functools

import jax
import jax.numpy as jnp
from jax import lax
from jax.experimental import pallas as pl
from jax.experimental.pallas import tpu as pltpu


def _round_up(x, m):
    return ((x + m - 1) // m) * m


# ------------------------ fused multi-layer LSTM kernel ------------------------
def lstm_stack_kernel(x_ref, wih_ref, whh_ref, b_ref, out_ref,
                      h_carry, c_carry, h_buf, gx_buf):
    """One time-chunk of the whole LSTM stack.

    x_ref  : (Tc, Bb, E)   time-major input block (compute dtype)
    wih_ref: (L, E, 4H)    transposed input weights (PyTorch gate order i,f,g,o)
    whh_ref: (L, H, 4H)    transposed recurrent weights
    b_ref  : (L, 1, 4H)    b_ih + b_hh (f32)
    out_ref: (Tc, Bb, H)   last-layer output block
    h_carry: (L, Bb, H)    per-layer hidden state carried across time chunks
    c_carry: (L, Bb, H)    per-layer cell state carried across time chunks (f32)
    h_buf  : (Tc, Bb, H)   single inter-layer activation buffer
    gx_buf : (Tc, Bb, 4H)  staged input-projection gates (f32)
    """
    Tc, Bb, _ = x_ref.shape
    L, H, _ = whh_ref.shape
    cdt = out_ref.dtype

    # First chunk of every batch split starts from zero state.
    @pl.when(pl.program_id(1) == 0)
    def _init():
        h_carry[...] = jnp.zeros_like(h_carry)
        c_carry[...] = jnp.zeros_like(c_carry)

    unroll = True if Tc <= 16 else 8

    for l in range(L):                       # static unroll over layers
        in_ref = x_ref if l == 0 else h_buf
        o_ref = out_ref if l == L - 1 else h_buf

        # Hoisted input projection + bias: ONE big MXU matmul (M = Tc*Bb).
        # All of in_ref is read before the recurrence writes h_buf, so a single
        # inter-layer buffer is safe even when in_ref is h_buf.
        x_all = in_ref[...]
        x_all = x_all.reshape(Tc * Bb, x_all.shape[-1])
        gx = jnp.dot(x_all, wih_ref[l],
                     preferred_element_type=jnp.float32) + b_ref[l]
        gx_buf[...] = gx.reshape(Tc, Bb, 4 * H)

        def step(t, carry, l=l, o_ref=o_ref):
            h_prev, c_prev = carry
            # W_hh is read at the dot (not hoisted) to keep its live range short.
            gates = gx_buf[t] + jnp.dot(h_prev, whh_ref[l],
                                        preferred_element_type=jnp.float32)
            i_g = jax.nn.sigmoid(gates[:, 0 * H:1 * H])
            f_g = jax.nn.sigmoid(gates[:, 1 * H:2 * H])
            g_g = jnp.tanh(gates[:, 2 * H:3 * H])
            o_g = jax.nn.sigmoid(gates[:, 3 * H:4 * H])
            c_new = f_g * c_prev + i_g * g_g            # f32 gate/cell math
            h_new = (o_g * jnp.tanh(c_new)).astype(cdt)
            o_ref[t] = h_new
            return (h_new, c_new)

        h_fin, c_fin = lax.fori_loop(0, Tc, step, (h_carry[l], c_carry[l]),
                                     unroll=unroll)
        h_carry[l] = h_fin
        c_carry[l] = c_fin


def lstm_stack(x_tm, w_ih_all, w_hh_all, b_all, *, t_chunk, n_bsplit):
    """x_tm: (T_pad, B_pad, E) -> (T_pad, B_pad, H), all layers fused."""
    T_pad, B_pad, E = x_tm.shape
    L, H, H4 = w_hh_all.shape
    cdt = x_tm.dtype
    n_chunks = T_pad // t_chunk
    Bb = B_pad // n_bsplit

    itemsize = jnp.dtype(cdt).itemsize
    est = (2 * 2 * t_chunk * Bb * (E + H) * itemsize          # streamed blocks
           + (L * (E + H) * H4 + L * H4) * itemsize           # resident weights
           + (2 * L * Bb * H + t_chunk * Bb * (H + H4)) * 4)  # scratch
    vmem_limit = min(64 * 1024 * 1024, max(32 * 1024 * 1024, 2 * est))

    return pl.pallas_call(
        lstm_stack_kernel,
        out_shape=jax.ShapeDtypeStruct((T_pad, B_pad, H), cdt),
        grid=(n_bsplit, n_chunks),
        in_specs=[
            pl.BlockSpec((t_chunk, Bb, E), lambda b, c: (c, b, 0)),
            pl.BlockSpec((L, E, H4), lambda b, c: (0, 0, 0)),    # fetched once
            pl.BlockSpec((L, H, H4), lambda b, c: (0, 0, 0)),    # fetched once
            pl.BlockSpec((L, 1, H4), lambda b, c: (0, 0, 0)),    # fetched once
        ],
        out_specs=pl.BlockSpec((t_chunk, Bb, H), lambda b, c: (c, b, 0)),
        scratch_shapes=[
            pltpu.VMEM((L, Bb, H), cdt),                 # h carry (MXU operand)
            pltpu.VMEM((L, Bb, H), jnp.float32),         # c carry (f32)
            pltpu.VMEM((t_chunk, Bb, H), cdt),           # inter-layer activations
            pltpu.VMEM((t_chunk, Bb, H4), jnp.float32),  # staged gates_x
        ],
        compiler_params=pltpu.CompilerParams(
            dimension_semantics=("parallel", "arbitrary"),
            vmem_limit_bytes=vmem_limit),
    )(x_tm, w_ih_all, w_hh_all, b_all)


# -------------------------- tiled tied-weight FC kernel -------------------------
def fc_kernel(x_ref, w_ref, b_ref, o_ref):
    # (tn, H) @ (H, tv) on the MXU, f32 accumulation, + bias.
    o_ref[...] = (jnp.dot(x_ref[...], w_ref[...],
                          preferred_element_type=jnp.float32)
                  + b_ref[...]).astype(o_ref.dtype)


def fc_layer(x_2d, w_t, b):
    """x_2d: (N, H), w_t: (H, V_pad) pre-transposed tied weight, b: (1, V_pad)."""
    N, H = x_2d.shape
    V_pad = w_t.shape[1]
    tn = 512 if N >= 512 else _round_up(N, 8)
    N_pad = _round_up(N, tn)
    if N_pad != N:
        x_2d = jnp.pad(x_2d, ((0, N_pad - N), (0, 0)))
    tv = next(c for c in (512, 256, 128) if V_pad % c == 0)

    out = pl.pallas_call(
        fc_kernel,
        out_shape=jax.ShapeDtypeStruct((N_pad, V_pad), jnp.float32),
        # Vocab on the OUTER axis: the (H, tv) table block stays put across the
        # inner row sweep, so the big table streams exactly once; only the small
        # activation tile is re-fetched.
        grid=(V_pad // tv, N_pad // tn),
        in_specs=[
            pl.BlockSpec((tn, H), lambda j, i: (i, 0)),
            pl.BlockSpec((H, tv), lambda j, i: (0, j)),
            pl.BlockSpec((1, tv), lambda j, i: (0, j)),
        ],
        out_specs=pl.BlockSpec((tn, tv), lambda j, i: (i, j)),
        compiler_params=pltpu.CompilerParams(
            dimension_semantics=("parallel", "parallel")),
    )(x_2d, w_t, b)
    return out[:N]


# ---------------------------------- parameters ----------------------------------
def init_params(key, vocab_size, embedding_dim, hidden_dim, n_layers):
    assert embedding_dim == hidden_dim, "tied weights require hidden_dim == embedding_dim"
    keys = jax.random.split(key, 2 + 4 * n_layers)
    params = {}
    # Embedding ~ N(0,1) like nn.Embedding default.
    params["embedding"] = jax.random.normal(
        keys[0], (vocab_size, embedding_dim), jnp.float32)
    # LSTM params, PyTorch init: U(-1/sqrt(H), 1/sqrt(H)), gate order (i,f,g,o).
    bound = 1.0 / jnp.sqrt(hidden_dim)
    w_ih_l, w_hh_l, b_l = [], [], []
    for l in range(n_layers):
        d_in = embedding_dim if l == 0 else hidden_dim
        k_ih, k_hh, k_bih, k_bhh = keys[1 + 4 * l: 5 + 4 * l]
        w_ih = jax.random.uniform(k_ih, (4 * hidden_dim, d_in),
                                  jnp.float32, -bound, bound)
        w_hh = jax.random.uniform(k_hh, (4 * hidden_dim, hidden_dim),
                                  jnp.float32, -bound, bound)
        b_ih = jax.random.uniform(k_bih, (4 * hidden_dim,),
                                  jnp.float32, -bound, bound)
        b_hh = jax.random.uniform(k_bhh, (4 * hidden_dim,),
                                  jnp.float32, -bound, bound)
        w_ih_l.append(w_ih.T)                 # (d_in, 4H)
        w_hh_l.append(w_hh.T)                 # (H, 4H)
        b_l.append((b_ih + b_hh)[None, :])    # (1, 4H)
    params["w_ih_all"] = jnp.stack(w_ih_l)    # (L, E, 4H)
    params["w_hh_all"] = jnp.stack(w_hh_l)    # (L, H, 4H)
    params["b_all"] = jnp.stack(b_l)          # (L, 1, 4H)
    # fc: weight tied to embedding; fresh bias.
    params["fc_b"] = jax.random.uniform(
        keys[-1], (1, vocab_size), jnp.float32, -bound, bound)
    return params


# ---------------------------------- forward -------------------------------------
@functools.partial(jax.jit, static_argnames=("compute_dtype", "t_chunk"))
def language_model_forward(params, x_ids, compute_dtype=jnp.float32, t_chunk=None):
    """x_ids: (B, T) int32 -> logits (B, T, V)."""
    B, T = x_ids.shape
    emb = params["embedding"]                       # (V, E) f32
    V, E = emb.shape
    L, H, _ = params["w_hh_all"].shape
    cdt = jnp.dtype(compute_dtype)

    t_chunk = min(t_chunk or 64, T)
    T_pad = _round_up(T, t_chunk)
    B_pad = _round_up(B, 8)
    # Split the batch over two TensorCores (v7x megacore) when each half stays
    # sublane-aligned.
    n_bsplit = 2 if (B_pad >= 16 and B_pad % 16 == 0) else 1

    # Embedding lookup (+ dropout: identity in eval mode).  The gather stays a
    # plain XLA op (data-dependent rows); padding/transposing happens on the
    # tiny int32 id matrix so the gather lands directly in the time-major,
    # batch-padded layout the kernel wants.
    ids_pad = jnp.pad(x_ids, ((0, B_pad - B), (0, T_pad - T)))
    x_tm = jnp.take(emb, ids_pad.T, axis=0).astype(cdt)        # (T_pad, B_pad, E)

    # Fused LSTM stack (inter-layer dropout: identity in eval mode).
    h_tm = lstm_stack(x_tm,
                      params["w_ih_all"].astype(cdt),
                      params["w_hh_all"].astype(cdt),
                      params["b_all"],
                      t_chunk=t_chunk, n_bsplit=n_bsplit)      # (T_pad, B_pad, H)

    # Output dropout: identity in eval mode.
    # Go batch-major BEFORE the projection (H-wide, V/H x cheaper than
    # transposing the logits afterwards) and drop batch/time padding so the FC
    # only computes real rows.
    h_bm = jnp.transpose(h_tm[:T, :B], (1, 0, 2)).reshape(B * T, H)

    # Tied-weight FC: pad V to a lane multiple and pre-transpose ONCE in HBM
    # (no per-tile XLU transpose inside the kernel).
    V_pad = _round_up(V, 128)
    w_t = jnp.pad(emb, ((0, V_pad - V), (0, 0))).T.astype(cdt)     # (H, V_pad)
    b_fc = jnp.pad(params["fc_b"], ((0, 0), (0, V_pad - V)))       # (1, V_pad)

    logits = fc_layer(h_bm.astype(cdt), w_t, b_fc)[:, :V]          # (B*T, V)
    return logits.reshape(B, T, V)


# --------------------------- pure-JAX reference check ----------------------------
def reference_forward(params, x_ids):
    emb = params["embedding"]
    h = jnp.take(emb, x_ids, axis=0)                # (B, T, E)
    h = jnp.transpose(h, (1, 0, 2))                 # (T, B, E)
    L, H, _ = params["w_hh_all"].shape
    B = h.shape[1]
    for l in range(L):
        w_ih = params["w_ih_all"][l]
        w_hh = params["w_hh_all"][l]
        b = params["b_all"][l]

        def step(carry, x_t, w_ih=w_ih, w_hh=w_hh, b=b):
            h_prev, c_prev = carry
            gates = x_t @ w_ih + h_prev @ w_hh + b
            i = jax.nn.sigmoid(gates[:, 0 * H:1 * H])
            f = jax.nn.sigmoid(gates[:, 1 * H:2 * H])
            g = jnp.tanh(gates[:, 2 * H:3 * H])
            o = jax.nn.sigmoid(gates[:, 3 * H:4 * H])
            c = f * c_prev + i * g
            hh = o * jnp.tanh(c)
            return (hh, c), hh

        init = (jnp.zeros((B, H), jnp.float32), jnp.zeros((B, H), jnp.float32))
        _, h = jax.lax.scan(step, init, h)
    h = jnp.transpose(h, (1, 0, 2))                 # (B, T, H)
    return h @ emb.T[None] + params["fc_b"][None]


if __name__ == "__main__":
    # Full-precision f32 matmuls for the numerical checks (otherwise the XLA
    # reference itself is bf16-pass rounded on TPU and the comparison is noisy).
    jax.config.update("jax_default_matmul_precision", "highest")

    key = jax.random.PRNGKey(0)
    k_p1, k_d1, k_p2, k_d2 = jax.random.split(key, 4)

    # --- small config: vocab=32, embed=hidden=32, 3 layers, batch=2, seq=8 ---
    V1, H1, L1 = 32, 32, 3
    B1, T1 = 2, 8
    params1 = init_params(k_p1, V1, H1, H1, L1)
    ids1 = jax.random.randint(k_d1, (B1, T1), 0, V1, dtype=jnp.int32)

    out1 = jax.block_until_ready(language_model_forward(params1, ids1))
    ref1 = reference_forward(params1, ids1)
    assert out1.shape == (B1, T1, V1)
    assert jnp.allclose(out1, ref1, rtol=5e-2, atol=5e-2), (
        "f32 mismatch (small config): max|diff|="
        f"{float(jnp.max(jnp.abs(out1 - ref1)))}")

    # --- larger config: exercises time-chunking with carried (h, c), the 2-way
    #     batch split (leading 'parallel' grid axis) and multi-tile FC vocab ---
    V2, H2, L2 = 640, 64, 3
    B2, T2 = 16, 20
    params2 = init_params(k_p2, V2, H2, H2, L2)
    ids2 = jax.random.randint(k_d2, (B2, T2), 0, V2, dtype=jnp.int32)

    out2 = jax.block_until_ready(language_model_forward(params2, ids2, t_chunk=8))
    ref2 = reference_forward(params2, ids2)
    assert out2.shape == (B2, T2, V2)
    assert jnp.allclose(out2, ref2, rtol=5e-2, atol=5e-2), (
        "f32 mismatch (large config): max|diff|="
        f"{float(jnp.max(jnp.abs(out2 - ref2)))}")

    # --- bf16 MXU operands (f32 accumulation + f32 gate math): loose tolerance ---
    out_bf16 = jax.block_until_ready(
        language_model_forward(params2, ids2, compute_dtype=jnp.bfloat16,
                               t_chunk=8))
    assert float(jnp.max(jnp.abs(out_bf16 - ref2))) < 0.5, "bf16 drift too large"

    print("KERNEL_OK")
</pallas_src>

<mosaic_0001>
module attributes {stable_mosaic.version = 11 : i64} {
  func.func @fc_kernel(%arg0: i32, %arg1: i32, %arg2: memref<16x32xf32, #tpu.memory_space<vmem>>, %arg3: memref<32x128xf32, #tpu.memory_space<vmem>>, %arg4: memref<1x128xf32, #tpu.memory_space<vmem>>, %arg5: memref<16x128xf32, #tpu.memory_space<vmem>>) attributes {dimension_semantics = [#tpu.dimension_semantics<parallel>, #tpu.dimension_semantics<parallel>], iteration_bounds = array<i64: 1, 1>, scalar_prefetch = 0 : i64, scratch_operands = 0 : i64, tpu.core_type = #tpu.core_type<tc>, window_params = [{transform_indices = @transform_0, window_bounds = array<i64: 16, 32>}, {transform_indices = @transform_1, window_bounds = array<i64: 32, 128>}, {transform_indices = @transform_2, window_bounds = array<i64: 1, 128>}, {transform_indices = @transform_3, window_bounds = array<i64: 16, 128>}]} {
    %c0 = arith.constant 0 : index
    %c0_0 = arith.constant 0 : index
    %0 = vector.load %arg2[%c0, %c0_0] : memref<16x32xf32, #tpu.memory_space<vmem>>, vector<16x32xf32>
    %c0_1 = arith.constant 0 : index
    %c0_2 = arith.constant 0 : index
    %1 = vector.load %arg3[%c0_1, %c0_2] : memref<32x128xf32, #tpu.memory_space<vmem>>, vector<32x128xf32>
    %cst = arith.constant dense<0.000000e+00> : vector<16x128xf32>
    %2 = tpu.matmul %0, %1, %cst {dimension_numbers = #tpu.dot_dimension_numbers<[1], [0], [0], [1], [0, 0, 1, 1], [], []>, precision = #tpu.contract_precision<fp32>} : vector<16x32xf32>, vector<32x128xf32>, vector<16x128xf32> -> vector<16x128xf32>
    %c0_3 = arith.constant 0 : index
    %c0_4 = arith.constant 0 : index
    %3 = vector.load %arg4[%c0_3, %c0_4] : memref<1x128xf32, #tpu.memory_space<vmem>>, vector<1x128xf32>
    %4 = vector.broadcast %3 : vector<1x128xf32> to vector<16x128xf32>
    %5 = arith.addf %2, %4 : vector<16x128xf32>
    %c0_5 = arith.constant 0 : index
    %c0_6 = arith.constant 0 : index
    %6 = vector.load %arg5[%c0_5, %c0_6] : memref<16x128xf32, #tpu.memory_space<vmem>>, vector<16x128xf32>
    tpu.vector_store %arg5[%c0_5, %c0_6], %5 {strides = array<i32>} : memref<16x128xf32, #tpu.memory_space<vmem>>, vector<16x128xf32>,
    return
  }
  func.func @transform_0(%arg0: i32, %arg1: i32) -> (i32, i32) {
    %c0_i32 = arith.constant 0 : i32
    %c0_i32_0 = arith.constant 0 : i32
    return %arg1, %c0_i32 : i32, i32
  }
  func.func @transform_1(%arg0: i32, %arg1: i32) -> (i32, i32) {
    %c0_i32 = arith.constant 0 : i32
    %c0_i32_0 = arith.constant 0 : i32
    return %c0_i32, %arg0 : i32, i32
  }
  func.func @transform_2(%arg0: i32, %arg1: i32) -> (i32, i32) {
    %c0_i32 = arith.constant 0 : i32
    %c0_i32_0 = arith.constant 0 : i32
    return %c0_i32, %arg0 : i32, i32
  }
  func.func @transform_3(%arg0: i32, %arg1: i32) -> (i32, i32) {
    %c0_i32 = arith.constant 0 : i32
    return %arg1, %arg0 : i32, i32
  }
}

module attributes {stable_mosaic.version = 11 : i64} {
  func.func @lstm_stack_kernel(%arg0: i32, %arg1: i32, %arg2: memref<8x8x32xf32, #tpu.memory_space<vmem>>, %arg3: memref<3x32x128xf32, #tpu.memory_space<vmem>>, %arg4: memref<3x32x128xf32, #tpu.memory_space<vmem>>, %arg5: memref<3x1x128xf32, #tpu.memory_space<vmem>>, %arg6: memref<8x8x32xf32, #tpu.memory_space<vmem>>, %arg7: memref<3x8x32xf32, #tpu.memory_space<vmem>>, %arg8: memref<3x8x32xf32, #tpu.memory_space<vmem>>, %arg9: memref<8x8x32xf32, #tpu.memory_space<vmem>>, %arg10: memref<8x8x128xf32, #tpu.memory_space<vmem>>) attributes {dimension_semantics = [#tpu.dimension_semantics<parallel>, #tpu.dimension_semantics<arbitrary>], iteration_bounds = array<i64: 1, 1>, scalar_prefetch = 0 : i64, scratch_operands = 4 : i64, tpu.core_type = #tpu.core_type<tc>, window_params = [{transform_indices = @transform_0, window_bounds = array<i64: 8, 8, 32>}, {pipeline_mode = #tpu.pipeline_mode<synchronous>, transform_indices = @transform_1, window_bounds = array<i64: 3, 32, 128>}, {pipeline_mode = #tpu.pipeline_mode<synchronous>, transform_indices = @transform_2, window_bounds = array<i64: 3, 32, 128>}, {pipeline_mode = #tpu.pipeline_mode<synchronous>, transform_indices = @transform_3, window_bounds = array<i64: 3, 1, 128>}, {transform_indices = @transform_4, window_bounds = array<i64: 8, 8, 32>}]} {
    %c0_i32 = arith.constant 0 : i32
    %0 = arith.cmpi eq, %arg1, %c0_i32 : i32
    %1 = arith.extui %0 : i1 to i32
    %c0_i32_0 = arith.constant 0 : i32
    %2 = arith.cmpi ne, %1, %c0_i32_0 : i32
    scf.if %2 {
      %cst_355 = arith.constant 0.000000e+00 : f32
      %930 = vector.broadcast %cst_355 : f32 to vector<3x8x32xf32>
      %c0_356 = arith.constant 0 : index
      %c0_357 = arith.constant 0 : index
      %c0_358 = arith.constant 0 : index
      %931 = vector.load %arg7[%c0_356, %c0_357, %c0_358] : memref<3x8x32xf32, #tpu.memory_space<vmem>>, vector<3x8x32xf32>
      tpu.vector_store %arg7[%c0_356, %c0_357, %c0_358], %930 {strides = array<i32>} : memref<3x8x32xf32, #tpu.memory_space<vmem>>, vector<3x8x32xf32>,
      %cst_359 = arith.constant 0.000000e+00 : f32
      %932 = vector.broadcast %cst_359 : f32 to vector<3x8x32xf32>
      %c0_360 = arith.constant 0 : index
      %c0_361 = arith.constant 0 : index
      %c0_362 = arith.constant 0 : index
      %933 = vector.load %arg8[%c0_360, %c0_361, %c0_362] : memref<3x8x32xf32, #tpu.memory_space<vmem>>, vector<3x8x32xf32>
      tpu.vector_store %arg8[%c0_360, %c0_361, %c0_362], %932 {strides = array<i32>} : memref<3x8x32xf32, #tpu.memory_space<vmem>>, vector<3x8x32xf32>,
    } else {
    }
    %c0 = arith.constant 0 : index
    %c0_1 = arith.constant 0 : index
    %c0_2 = arith.constant 0 : index
    %3 = vector.load %arg2[%c0, %c0_1, %c0_2] : memref<8x8x32xf32, #tpu.memory_space<vmem>>, vector<8x8x32xf32>
    %4 = vector.shape_cast %3 : vector<8x8x32xf32> to vector<64x32xf32>
    %c0_3 = arith.constant 0 : index
    %c0_4 = arith.constant 0 : index
    %c0_5 = arith.constant 0 : index
    %5 = vector.load %arg3[%c0_3, %c0_4, %c0_5] : memref<3x32x128xf32, #tpu.memory_space<vmem>>, vector<1x32x128xf32>
    %6 = vector.shape_cast %5 : vector<1x32x128xf32> to vector<32x128xf32>
    %cst = arith.constant dense<0.000000e+00> : vector<64x128xf32>
    %7 = tpu.matmul %4, %6, %cst {dimension_numbers = #tpu.dot_dimension_numbers<[1], [0], [0], [1], [0, 0, 1, 1], [], []>, precision = #tpu.contract_precision<fp32>} : vector<64x32xf32>, vector<32x128xf32>, vector<64x128xf32> -> vector<64x128xf32>
    %c0_6 = arith.constant 0 : index
    %c0_7 = arith.constant 0 : index
    %c0_8 = arith.constant 0 : index
    %8 = vector.load %arg5[%c0_6, %c0_7, %c0_8] : memref<3x1x128xf32, #tpu.memory_space<vmem>>, vector<1x1x128xf32>
    %9 = vector.shape_cast %8 : vector<1x1x128xf32> to vector<1x128xf32>
    %10 = vector.broadcast %9 : vector<1x128xf32> to vector<64x128xf32>
    %11 = arith.addf %7, %10 : vector<64x128xf32>
    %12 = vector.shape_cast %11 : vector<64x128xf32> to vector<8x8x128xf32>
    %c0_9 = arith.constant 0 : index
    %c0_10 = arith.constant 0 : index
    %c0_11 = arith.constant 0 : index
    %13 = vector.load %arg10[%c0_9, %c0_10, %c0_11] : memref<8x8x128xf32, #tpu.memory_space<vmem>>, vector<8x8x128xf32>
    tpu.vector_store %arg10[%c0_9, %c0_10, %c0_11], %12 {strides = array<i32>} : memref<8x8x128xf32, #tpu.memory_space<vmem>>, vector<8x8x128xf32>,
    %c0_12 = arith.constant 0 : index
    %c0_13 = arith.constant 0 : index
    %c0_14 = arith.constant 0 : index
    %14 = vector.load %arg7[%c0_12, %c0_13, %c0_14] : memref<3x8x32xf32, #tpu.memory_space<vmem>>, vector<1x8x32xf32>
    %15 = vector.shape_cast %14 : vector<1x8x32xf32> to vector<8x32xf32>
    %c0_15 = arith.constant 0 : index
    %c0_16 = arith.constant 0 : index
    %c0_17 = arith.constant 0 : index
    %16 = vector.load %arg8[%c0_15, %c0_16, %c0_17] : memref<3x8x32xf32, #tpu.memory_space<vmem>>, vector<1x8x32xf32>
    %17 = vector.shape_cast %16 : vector<1x8x32xf32> to vector<8x32xf32>
    %c0_i32_18 = arith.constant 0 : i32
    %18 = arith.index_cast %c0_i32_18 : i32 to index
    %c0_19 = arith.constant 0 : index
    %c0_20 = arith.constant 0 : index
    %19 = vector.load %arg10[%18, %c0_19, %c0_20] : memref<8x8x128xf32, #tpu.memory_space<vmem>>, vector<1x8x128xf32>
    %20 = vector.shape_cast %19 : vector<1x8x128xf32> to vector<8x128xf32>
    %c0_21 = arith.constant 0 : index
    %c0_22 = arith.constant 0 : index
    %c0_23 = arith.constant 0 : index
    %21 = vector.load %arg4[%c0_21, %c0_22, %c0_23] : memref<3x32x128xf32, #tpu.memory_space<vmem>>, vector<1x32x128xf32>
    %22 = vector.shape_cast %21 : vector<1x32x128xf32> to vector<32x128xf32>
    %cst_24 = arith.constant dense<0.000000e+00> : vector<8x128xf32>
    %23 = tpu.matmul %15, %22, %cst_24 {dimension_numbers = #tpu.dot_dimension_numbers<[1], [0], [0], [1], [0, 0, 1, 1], [], []>, precision = #tpu.contract_precision<fp32>} : vector<8x32xf32>, vector<32x128xf32>, vector<8x128xf32> -> vector<8x128xf32>
    %24 = arith.addf %20, %23 : vector<8x128xf32>
    %25 = vector.extract_strided_slice %24 {offsets = [0, 0], sizes = [8, 32], strides = [1, 1]} : vector<8x128xf32> to vector<8x32xf32>
    %26 = arith.negf %25 : vector<8x32xf32>
    %27 = math.exp %26 : vector<8x32xf32>
    %cst_25 = arith.constant 1.000000e+00 : f32
    %28 = vector.broadcast %cst_25 : f32 to vector<8x32xf32>
    %29 = arith.addf %28, %27 : vector<8x32xf32>
    %30 = arith.divf %28, %29 : vector<8x32xf32>
    %31 = vector.extract_strided_slice %24 {offsets = [0, 32], sizes = [8, 32], strides = [1, 1]} : vector<8x128xf32> to vector<8x32xf32>
    %32 = arith.negf %31 : vector<8x32xf32>
    %33 = math.exp %32 : vector<8x32xf32>
    %cst_26 = arith.constant 1.000000e+00 : f32
    %34 = vector.broadcast %cst_26 : f32 to vector<8x32xf32>
    %35 = arith.addf %34, %33 : vector<8x32xf32>
    %36 = arith.divf %34, %35 : vector<8x32xf32>
    %37 = vector.extract_strided_slice %24 {offsets = [0, 64], sizes = [8, 32], strides = [1, 1]} : vector<8x128xf32> to vector<8x32xf32>
    %38 = math.tanh %37 : vector<8x32xf32>
    %39 = vector.extract_strided_slice %24 {offsets = [0, 96], sizes = [8, 32], strides = [1, 1]} : vector<8x128xf32> to vector<8x32xf32>
    %40 = arith.negf %39 : vector<8x32xf32>
    %41 = math.exp %40 : vector<8x32xf32>
    %cst_27 = arith.constant 1.000000e+00 : f32
    %42 = vector.broadcast %cst_27 : f32 to vector<8x32xf32>
    %43 = arith.addf %42, %41 : vector<8x32xf32>
    %44 = arith.divf %42, %43 : vector<8x32xf32>
    %45 = arith.mulf %36, %17 : vector<8x32xf32>
    %46 = arith.mulf %30, %38 : vector<8x32xf32>
    %47 = arith.addf %45, %46 : vector<8x32xf32>
    %48 = math.tanh %47 : vector<8x32xf32>
    %49 = arith.mulf %44, %48 : vector<8x32xf32>
    %50 = arith.index_cast %c0_i32_18 : i32 to index
    %c0_28 = arith.constant 0 : index
    %c0_29 = arith.constant 0 : index
    %51 = vector.load %arg9[%50, %c0_28, %c0_29] : memref<8x8x32xf32, #tpu.memory_space<vmem>>, vector<1x8x32xf32>
    %52 = vector.shape_cast %51 : vector<1x8x32xf32> to vector<8x32xf32>
    %53 = vector.shape_cast %49 : vector<8x32xf32> to vector<1x8x32xf32>
    tpu.vector_store %arg9[%50, %c0_28, %c0_29], %53 {strides = array<i32>} : memref<8x8x32xf32, #tpu.memory_space<vmem>>, vector<1x8x32xf32>,
    %c1_i32 = arith.constant 1 : i32
    %54 = arith.index_cast %c1_i32 : i32 to index
    %c0_30 = arith.constant 0 : index
    %c0_31 = arith.constant 0 : index
    %55 = vector.load %arg10[%54, %c0_30, %c0_31] : memref<8x8x128xf32, #tpu.memory_space<vmem>>, vector<1x8x128xf32>
    %56 = vector.shape_cast %55 : vector<1x8x128xf32> to vector<8x128xf32>
    %c0_32 = arith.constant 0 : index
    %c0_33 = arith.constant 0 : index
    %c0_34 = arith.constant 0 : index
    %57 = vector.load %arg4[%c0_32, %c0_33, %c0_34] : memref<3x32x128xf32, #tpu.memory_space<vmem>>, vector<1x32x128xf32>
    %58 = vector.shape_cast %57 : vector<1x32x128xf32> to vector<32x128xf32>
    %cst_35 = arith.constant dense<0.000000e+00> : vector<8x128xf32>
    %59 = tpu.matmul %49, %58, %cst_35 {dimension_numbers = #tpu.dot_dimension_numbers<[1], [0], [0], [1], [0, 0, 1, 1], [], []>, precision = #tpu.contract_precision<fp32>} : vector<8x32xf32>, vector<32x128xf32>, vector<8x128xf32> -> vector<8x128xf32>
    %60 = arith.addf %56, %59 : vector<8x128xf32>
    %61 = vector.extract_strided_slice %60 {offsets = [0, 0], sizes = [8, 32], strides = [1, 1]} : vector<8x128xf32> to vector<8x32xf32>
    %62 = arith.negf %61 : vector<8x32xf32>
    %63 = math.exp %62 : vector<8x32xf32>
    %cst_36 = arith.constant 1.000000e+00 : f32
    %64 = vector.broadcast %cst_36 : f32 to vector<8x32xf32>
    %65 = arith.addf %64, %63 : vector<8x32xf32>
    %66 = arith.divf %64, %65 : vector<8x32xf32>
    %67 = vector.extract_strided_slice %60 {offsets = [0, 32], sizes = [8, 32], strides = [1, 1]} : vector<8x128xf32> to vector<8x32xf32>
    %68 = arith.negf %67 : vector<8x32xf32>
    %69 = math.exp %68 : vector<8x32xf32>
    %cst_37 = arith.constant 1.000000e+00 : f32
    %70 = vector.broadcast %cst_37 : f32 to vector<8x32xf32>
    %71 = arith.addf %70, %69 : vector<8x32xf32>
    %72 = arith.divf %70, %71 : vector<8x32xf32>
    %73 = vector.extract_strided_slice %60 {offsets = [0, 64], sizes = [8, 32], strides = [1, 1]} : vector<8x128xf32> to vector<8x32xf32>
    %74 = math.tanh %73 : vector<8x32xf32>
    %75 = vector.extract_strided_slice %60 {offsets = [0, 96], sizes = [8, 32], strides = [1, 1]} : vector<8x128xf32> to vector<8x32xf32>
    %76 = arith.negf %75 : vector<8x32xf32>
    %77 = math.exp %76 : vector<8x32xf32>
    %cst_38 = arith.constant 1.000000e+00 : f32
    %78 = vector.broadcast %cst_38 : f32 to vector<8x32xf32>
    %79 = arith.addf %78, %77 : vector<8x32xf32>
    %80 = arith.divf %78, %79 : vector<8x32xf32>
    %81 = arith.mulf %72, %47 : vector<8x32xf32>
    %82 = arith.mulf %66, %74 : vector<8x32xf32>
    %83 = arith.addf %81, %82 : vector<8x32xf32>
    %84 = math.tanh %83 : vector<8x32xf32>
    %85 = arith.mulf %80, %84 : vector<8x32xf32>
    %86 = arith.index_cast %c1_i32 : i32 to index
    %c0_39 = arith.constant 0 : index
    %c0_40 = arith.constant 0 : index
    %87 = vector.load %arg9[%86, %c0_39, %c0_40] : memref<8x8x32xf32, #tpu.memory_space<vmem>>, vector<1x8x32xf32>
    %88 = vector.shape_cast %87 : vector<1x8x32xf32> to vector<8x32xf32>
    %89 = vector.shape_cast %85 : vector<8x32xf32> to vector<1x8x32xf32>
    tpu.vector_store %arg9[%86, %c0_39, %c0_40], %89 {strides = array<i32>} : memref<8x8x32xf32, #tpu.memory_space<vmem>>, vector<1x8x32xf32>,
    %c2_i32 = arith.constant 2 : i32
    %90 = arith.index_cast %c2_i32 : i32 to index
    %c0_41 = arith.constant 0 : index
    %c0_42 = arith.constant 0 : index
    %91 = vector.load %arg10[%90, %c0_41, %c0_42] : memref<8x8x128xf32, #tpu.memory_space<vmem>>, vector<1x8x128xf32>
    %92 = vector.shape_cast %91 : vector<1x8x128xf32> to vector<8x128xf32>
    %c0_43 = arith.constant 0 : index
    %c0_44 = arith.constant 0 : index
    %c0_45 = arith.constant 0 : index
    %93 = vector.load %arg4[%c0_43, %c0_44, %c0_45] : memref<3x32x128xf32, #tpu.memory_space<vmem>>, vector<1x32x128xf32>
    %94 = vector.shape_cast %93 : vector<1x32x128xf32> to vector<32x128xf32>
    %cst_46 = arith.constant dense<0.000000e+00> : vector<8x128xf32>
    %95 = tpu.matmul %85, %94, %cst_46 {dimension_numbers = #tpu.dot_dimension_numbers<[1], [0], [0], [1], [0, 0, 1, 1], [], []>, precision = #tpu.contract_precision<fp32>} : vector<8x32xf32>, vector<32x128xf32>, vector<8x128xf32> -> vector<8x128xf32>
    %96 = arith.addf %92, %95 : vector<8x128xf32>
    %97 = vector.extract_strided_slice %96 {offsets = [0, 0], sizes = [8, 32], strides = [1, 1]} : vector<8x128xf32> to vector<8x32xf32>
    %98 = arith.negf %97 : vector<8x32xf32>
    %99 = math.exp %98 : vector<8x32xf32>
    %cst_47 = arith.constant 1.000000e+00 : f32
    %100 = vector.broadcast %cst_47 : f32 to vector<8x32xf32>
    %101 = arith.addf %100, %99 : vector<8x32xf32>
    %102 = arith.divf %100, %101 : vector<8x32xf32>
    %103 = vector.extract_strided_slice %96 {offsets = [0, 32], sizes = [8, 32], strides = [1, 1]} : vector<8x128xf32> to vector<8x32xf32>
    %104 = arith.negf %103 : vector<8x32xf32>
    %105 = math.exp %104 : vector<8x32xf32>
    %cst_48 = arith.constant 1.000000e+00 : f32
    %106 = vector.broadcast %cst_48 : f32 to vector<8x32xf32>
    %107 = arith.addf %106, %105 : vector<8x32xf32>
    %108 = arith.divf %106, %107 : vector<8x32xf32>
    %109 = vector.extract_strided_slice %96 {offsets = [0, 64], sizes = [8, 32], strides = [1, 1]} : vector<8x128xf32> to vector<8x32xf32>
    %110 = math.tanh %109 : vector<8x32xf32>
    %111 = vector.extract_strided_slice %96 {offsets = [0, 96], sizes = [8, 32], strides = [1, 1]} : vector<8x128xf32> to vector<8x32xf32>
    %112 = arith.negf %111 : vector<8x32xf32>
    %113 = math.exp %112 : vector<8x32xf32>
    %cst_49 = arith.constant 1.000000e+00 : f32
    %114 = vector.broadcast %cst_49 : f32 to vector<8x32xf32>
    %115 = arith.addf %114, %113 : vector<8x32xf32>
    %116 = arith.divf %114, %115 : vector<8x32xf32>
    %117 = arith.mulf %108, %83 : vector<8x32xf32>
    %118 = arith.mulf %102, %110 : vector<8x32xf32>
    %119 = arith.addf %117, %118 : vector<8x32xf32>
    %120 = math.tanh %119 : vector<8x32xf32>
    %121 = arith.mulf %116, %120 : vector<8x32xf32>
    %122 = arith.index_cast %c2_i32 : i32 to index
    %c0_50 = arith.constant 0 : index
    %c0_51 = arith.constant 0 : index
    %123 = vector.load %arg9[%122, %c0_50, %c0_51] : memref<8x8x32xf32, #tpu.memory_space<vmem>>, vector<1x8x32xf32>
    %124 = vector.shape_cast %123 : vector<1x8x32xf32> to vector<8x32xf32>
    %125 = vector.shape_cast %121 : vector<8x32xf32> to vector<1x8x32xf32>
    tpu.vector_store %arg9[%122, %c0_50, %c0_51], %125 {strides = array<i32>} : memref<8x8x32xf32, #tpu.memory_space<vmem>>, vector<1x8x32xf32>,
    %c3_i32 = arith.constant 3 : i32
    %126 = arith.index_cast %c3_i32 : i32 to index
    %c0_52 = arith.constant 0 : index
    %c0_53 = arith.constant 0 : index
    %127 = vector.load %arg10[%126, %c0_52, %c0_53] : memref<8x8x128xf32, #tpu.memory_space<vmem>>, vector<1x8x128xf32>
    %128 = vector.shape_cast %127 : vector<1x8x128xf32> to vector<8x128xf32>
    %c0_54 = arith.constant 0 : index
    %c0_55 = arith.constant 0 : index
    %c0_56 = arith.constant 0 : index
    %129 = vector.load %arg4[%c0_54, %c0_55, %c0_56] : memref<3x32x128xf32, #tpu.memory_space<vmem>>, vector<1x32x128xf32>
    %130 = vector.shape_cast %129 : vector<1x32x128xf32> to vector<32x128xf32>
    %cst_57 = arith.constant dense<0.000000e+00> : vector<8x128xf32>
    %131 = tpu.matmul %121, %130, %cst_57 {dimension_numbers = #tpu.dot_dimension_numbers<[1], [0], [0], [1], [0, 0, 1, 1], [], []>, precision = #tpu.contract_precision<fp32>} : vector<8x32xf32>, vector<32x128xf32>, vector<8x128xf32> -> vector<8x128xf32>
    %132 = arith.addf %128, %131 : vector<8x128xf32>
    %133 = vector.extract_strided_slice %132 {offsets = [0, 0], sizes = [8, 32], strides = [1, 1]} : vector<8x128xf32> to vector<8x32xf32>
    %134 = arith.negf %133 : vector<8x32xf32>
    %135 = math.exp %134 : vector<8x32xf32>
    %cst_58 = arith.constant 1.000000e+00 : f32
    %136 = vector.broadcast %cst_58 : f32 to vector<8x32xf32>
    %137 = arith.addf %136, %135 : vector<8x32xf32>
    %138 = arith.divf %136, %137 : vector<8x32xf32>
    %139 = vector.extract_strided_slice %132 {offsets = [0, 32], sizes = [8, 32], strides = [1, 1]} : vector<8x128xf32> to vector<8x32xf32>
    %140 = arith.negf %139 : vector<8x32xf32>
    %141 = math.exp %140 : vector<8x32xf32>
    %cst_59 = arith.constant 1.000000e+00 : f32
    %142 = vector.broadcast %cst_59 : f32 to vector<8x32xf32>
    %143 = arith.addf %142, %141 : vector<8x32xf32>
    %144 = arith.divf %142, %143 : vector<8x32xf32>
    %145 = vector.extract_strided_slice %132 {offsets = [0, 64], sizes = [8, 32], strides = [1, 1]} : vector<8x128xf32> to vector<8x32xf32>
    %146 = math.tanh %145 : vector<8x32xf32>
    %147 = vector.extract_strided_slice %132 {offsets = [0, 96], sizes = [8, 32], strides = [1, 1]} : vector<8x128xf32> to vector<8x32xf32>
    %148 = arith.negf %147 : vector<8x32xf32>
    %149 = math.exp %148 : vector<8x32xf32>
    %cst_60 = arith.constant 1.000000e+00 : f32
    %150 = vector.broadcast %cst_60 : f32 to vector<8x32xf32>
    %151 = arith.addf %150, %149 : vector<8x32xf32>
    %152 = arith.divf %150, %151 : vector<8x32xf32>
    %153 = arith.mulf %144, %119 : vector<8x32xf32>
    %154 = arith.mulf %138, %146 : vector<8x32xf32>
    %155 = arith.addf %153, %154 : vector<8x32xf32>
    %156 = math.tanh %155 : vector<8x32xf32>
    %157 = arith.mulf %152, %156 : vector<8x32xf32>
    %158 = arith.index_cast %c3_i32 : i32 to index
    %c0_61 = arith.constant 0 : index
    %c0_62 = arith.constant 0 : index
    %159 = vector.load %arg9[%158, %c0_61, %c0_62] : memref<8x8x32xf32, #tpu.memory_space<vmem>>, vector<1x8x32xf32>
    %160 = vector.shape_cast %159 : vector<1x8x32xf32> to vector<8x32xf32>
    %161 = vector.shape_cast %157 : vector<8x32xf32> to vector<1x8x32xf32>
    tpu.vector_store %arg9[%158, %c0_61, %c0_62], %161 {strides = array<i32>} : memref<8x8x32xf32, #tpu.memory_space<vmem>>, vector<1x8x32xf32>,
    %c4_i32 = arith.constant 4 : i32
    %162 = arith.index_cast %c4_i32 : i32 to index
    %c0_63 = arith.constant 0 : index
    %c0_64 = arith.constant 0 : index
    %163 = vector.load %arg10[%162, %c0_63, %c0_64] : memref<8x8x128xf32, #tpu.memory_space<vmem>>, vector<1x8x128xf32>
    %164 = vector.shape_cast %163 : vector<1x8x128xf32> to vector<8x128xf32>
    %c0_65 = arith.constant 0 : index
    %c0_66 = arith.constant 0 : index
    %c0_67 = arith.constant 0 : index
    %165 = vector.load %arg4[%c0_65, %c0_66, %c0_67] : memref<3x32x128xf32, #tpu.memory_space<vmem>>, vector<1x32x128xf32>
    %166 = vector.shape_cast %165 : vector<1x32x128xf32> to vector<32x128xf32>
    %cst_68 = arith.constant dense<0.000000e+00> : vector<8x128xf32>
    %167 = tpu.matmul %157, %166, %cst_68 {dimension_numbers = #tpu.dot_dimension_numbers<[1], [0], [0], [1], [0, 0, 1, 1], [], []>, precision = #tpu.contract_precision<fp32>} : vector<8x32xf32>, vector<32x128xf32>, vector<8x128xf32> -> vector<8x128xf32>
    %168 = arith.addf %164, %167 : vector<8x128xf32>
    %169 = vector.extract_strided_slice %168 {offsets = [0, 0], sizes = [8, 32], strides = [1, 1]} : vector<8x128xf32> to vector<8x32xf32>
    %170 = arith.negf %169 : vector<8x32xf32>
    %171 = math.exp %170 : vector<8x32xf32>
    %cst_69 = arith.constant 1.000000e+00 : f32
    %172 = vector.broadcast %cst_69 : f32 to vector<8x32xf32>
    %173 = arith.addf %172, %171 : vector<8x32xf32>
    %174 = arith.divf %172, %173 : vector<8x32xf32>
    %175 = vector.extract_strided_slice %168 {offsets = [0, 32], sizes = [8, 32], strides = [1, 1]} : vector<8x128xf32> to vector<8x32xf32>
    %176 = arith.negf %175 : vector<8x32xf32>
    %177 = math.exp %176 : vector<8x32xf32>
    %cst_70 = arith.constant 1.000000e+00 : f32
    %178 = vector.broadcast %cst_70 : f32 to vector<8x32xf32>
    %179 = arith.addf %178, %177 : vector<8x32xf32>
    %180 = arith.divf %178, %179 : vector<8x32xf32>
    %181 = vector.extract_strided_slice %168 {offsets = [0, 64], sizes = [8, 32], strides = [1, 1]} : vector<8x128xf32> to vector<8x32xf32>
    %182 = math.tanh %181 : vector<8x32xf32>
    %183 = vector.extract_strided_slice %168 {offsets = [0, 96], sizes = [8, 32], strides = [1, 1]} : vector<8x128xf32> to vector<8x32xf32>
    %184 = arith.negf %183 : vector<8x32xf32>
    %185 = math.exp %184 : vector<8x32xf32>
    %cst_71 = arith.constant 1.000000e+00 : f32
    %186 = vector.broadcast %cst_71 : f32 to vector<8x32xf32>
    %187 = arith.addf %186, %185 : vector<8x32xf32>
    %188 = arith.divf %186, %187 : vector<8x32xf32>
    %189 = arith.mulf %180, %155 : vector<8x32xf32>
    %190 = arith.mulf %174, %182 : vector<8x32xf32>
    %191 = arith.addf %189, %190 : vector<8x32xf32>
    %192 = math.tanh %191 : vector<8x32xf32>
    %193 = arith.mulf %188, %192 : vector<8x32xf32>
    %194 = arith.index_cast %c4_i32 : i32 to index
    %c0_72 = arith.constant 0 : index
    %c0_73 = arith.constant 0 : index
    %195 = vector.load %arg9[%194, %c0_72, %c0_73] : memref<8x8x32xf32, #tpu.memory_space<vmem>>, vector<1x8x32xf32>
    %196 = vector.shape_cast %195 : vector<1x8x32xf32> to vector<8x32xf32>
    %197 = vector.shape_cast %193 : vector<8x32xf32> to vector<1x8x32xf32>
    tpu.vector_store %arg9[%194, %c0_72, %c0_73], %197 {strides = array<i32>} : memref<8x8x32xf32, #tpu.memory_space<vmem>>, vector<1x8x32xf32>,
    %c5_i32 = arith.constant 5 : i32
    %198 = arith.index_cast %c5_i32 : i32 to index
    %c0_74 = arith.constant 0 : index
    %c0_75 = arith.constant 0 : index
    %199 = vector.load %arg10[%198, %c0_74, %c0_75] : memref<8x8x128xf32, #tpu.memory_space<vmem>>, vector<1x8x128xf32>
    %200 = vector.shape_cast %199 : vector<1x8x128xf32> to vector<8x128xf32>
    %c0_76 = arith.constant 0 : index
    %c0_77 = arith.constant 0 : index
    %c0_78 = arith.constant 0 : index
    %201 = vector.load %arg4[%c0_76, %c0_77, %c0_78] : memref<3x32x128xf32, #tpu.memory_space<vmem>>, vector<1x32x128xf32>
    %202 = vector.shape_cast %201 : vector<1x32x128xf32> to vector<32x128xf32>
    %cst_79 = arith.constant dense<0.000000e+00> : vector<8x128xf32>
    %203 = tpu.matmul %193, %202, %cst_79 {dimension_numbers = #tpu.dot_dimension_numbers<[1], [0], [0], [1], [0, 0, 1, 1], [], []>, precision = #tpu.contract_precision<fp32>} : vector<8x32xf32>, vector<32x128xf32>, vector<8x128xf32> -> vector<8x128xf32>
    %204 = arith.addf %200, %203 : vector<8x128xf32>
    %205 = vector.extract_strided_slice %204 {offsets = [0, 0], sizes = [8, 32], strides = [1, 1]} : vector<8x128xf32> to vector<8x32xf32>
    %206 = arith.negf %205 : vector<8x32xf32>
    %207 = math.exp %206 : vector<8x32xf32>
    %cst_80 = arith.constant 1.000000e+00 : f32
    %208 = vector.broadcast %cst_80 : f32 to vector<8x32xf32>
    %209 = arith.addf %208, %207 : vector<8x32xf32>
    %210 = arith.divf %208, %209 : vector<8x32xf32>
    %211 = vector.extract_strided_slice %204 {offsets = [0, 32], sizes = [8, 32], strides = [1, 1]} : vector<8x128xf32> to vector<8x32xf32>
    %212 = arith.negf %211 : vector<8x32xf32>
    %213 = math.exp %212 : vector<8x32xf32>
    %cst_81 = arith.constant 1.000000e+00 : f32
    %214 = vector.broadcast %cst_81 : f32 to vector<8x32xf32>
    %215 = arith.addf %214, %213 : vector<8x32xf32>
    %216 = arith.divf %214, %215 : vector<8x32xf32>
    %217 = vector.extract_strided_slice %204 {offsets = [0, 64], sizes = [8, 32], strides = [1, 1]} : vector<8x128xf32> to vector<8x32xf32>
    %218 = math.tanh %217 : vector<8x32xf32>
    %219 = vector.extract_strided_slice %204 {offsets = [0, 96], sizes = [8, 32], strides = [1, 1]} : vector<8x128xf32> to vector<8x32xf32>
    %220 = arith.negf %219 : vector<8x32xf32>
    %221 = math.exp %220 : vector<8x32xf32>
    %cst_82 = arith.constant 1.000000e+00 : f32
    %222 = vector.broadcast %cst_82 : f32 to vector<8x32xf32>
    %223 = arith.addf %222, %221 : vector<8x32xf32>
    %224 = arith.divf %222, %223 : vector<8x32xf32>
    %225 = arith.mulf %216, %191 : vector<8x32xf32>
    %226 = arith.mulf %210, %218 : vector<8x32xf32>
    %227 = arith.addf %225, %226 : vector<8x32xf32>
    %228 = math.tanh %227 : vector<8x32xf32>
    %229 = arith.mulf %224, %228 : vector<8x32xf32>
    %230 = arith.index_cast %c5_i32 : i32 to index
    %c0_83 = arith.constant 0 : index
    %c0_84 = arith.constant 0 : index
    %231 = vector.load %arg9[%230, %c0_83, %c0_84] : memref<8x8x32xf32, #tpu.memory_space<vmem>>, vector<1x8x32xf32>
    %232 = vector.shape_cast %231 : vector<1x8x32xf32> to vector<8x32xf32>
    %233 = vector.shape_cast %229 : vector<8x32xf32> to vector<1x8x32xf32>
    tpu.vector_store %arg9[%230, %c0_83, %c0_84], %233 {strides = array<i32>} : memref<8x8x32xf32, #tpu.memory_space<vmem>>, vector<1x8x32xf32>,
    %c6_i32 = arith.constant 6 : i32
    %234 = arith.index_cast %c6_i32 : i32 to index
    %c0_85 = arith.constant 0 : index
    %c0_86 = arith.constant 0 : index
    %235 = vector.load %arg10[%234, %c0_85, %c0_86] : memref<8x8x128xf32, #tpu.memory_space<vmem>>, vector<1x8x128xf32>
    %236 = vector.shape_cast %235 : vector<1x8x128xf32> to vector<8x128xf32>
    %c0_87 = arith.constant 0 : index
    %c0_88 = arith.constant 0 : index
    %c0_89 = arith.constant 0 : index
    %237 = vector.load %arg4[%c0_87, %c0_88, %c0_89] : memref<3x32x128xf32, #tpu.memory_space<vmem>>, vector<1x32x128xf32>
    %238 = vector.shape_cast %237 : vector<1x32x128xf32> to vector<32x128xf32>
    %cst_90 = arith.constant dense<0.000000e+00> : vector<8x128xf32>
    %239 = tpu.matmul %229, %238, %cst_90 {dimension_numbers = #tpu.dot_dimension_numbers<[1], [0], [0], [1], [0, 0, 1, 1], [], []>, precision = #tpu.contract_precision<fp32>} : vector<8x32xf32>, vector<32x128xf32>, vector<8x128xf32> -> vector<8x128xf32>
    %240 = arith.addf %236, %239 : vector<8x128xf32>
    %241 = vector.extract_strided_slice %240 {offsets = [0, 0], sizes = [8, 32], strides = [1, 1]} : vector<8x128xf32> to vector<8x32xf32>
    %242 = arith.negf %241 : vector<8x32xf32>
    %243 = math.exp %242 : vector<8x32xf32>
    %cst_91 = arith.constant 1.000000e+00 : f32
    %244 = vector.broadcast %cst_91 : f32 to vector<8x32xf32>
    %245 = arith.addf %244, %243 : vector<8x32xf32>
    %246 = arith.divf %244, %245 : vector<8x32xf32>
    %247 = vector.extract_strided_slice %240 {offsets = [0, 32], sizes = [8, 32], strides = [1, 1]} : vector<8x128xf32> to vector<8x32xf32>
    %248 = arith.negf %247 : vector<8x32xf32>
    %249 = math.exp %248 : vector<8x32xf32>
    %cst_92 = arith.constant 1.000000e+00 : f32
    %250 = vector.broadcast %cst_92 : f32 to vector<8x32xf32>
    %251 = arith.addf %250, %249 : vector<8x32xf32>
    %252 = arith.divf %250, %251 : vector<8x32xf32>
    %253 = vector.extract_strided_slice %240 {offsets = [0, 64], sizes = [8, 32], strides = [1, 1]} : vector<8x128xf32> to vector<8x32xf32>
    %254 = math.tanh %253 : vector<8x32xf32>
    %255 = vector.extract_strided_slice %240 {offsets = [0, 96], sizes = [8, 32], strides = [1, 1]} : vector<8x128xf32> to vector<8x32xf32>
    %256 = arith.negf %255 : vector<8x32xf32>
    %257 = math.exp %256 : vector<8x32xf32>
    %cst_93 = arith.constant 1.000000e+00 : f32
    %258 = vector.broadcast %cst_93 : f32 to vector<8x32xf32>
    %259 = arith.addf %258, %257 : vector<8x32xf32>
    %260 = arith.divf %258, %259 : vector<8x32xf32>
    %261 = arith.mulf %252, %227 : vector<8x32xf32>
    %262 = arith.mulf %246, %254 : vector<8x32xf32>
    %263 = arith.addf %261, %262 : vector<8x32xf32>
    %264 = math.tanh %263 : vector<8x32xf32>
    %265 = arith.mulf %260, %264 : vector<8x32xf32>
    %266 = arith.index_cast %c6_i32 : i32 to index
    %c0_94 = arith.constant 0 : index
    %c0_95 = arith.constant 0 : index
    %267 = vector.load %arg9[%266, %c0_94, %c0_95] : memref<8x8x32xf32, #tpu.memory_space<vmem>>, vector<1x8x32xf32>
    %268 = vector.shape_cast %267 : vector<1x8x32xf32> to vector<8x32xf32>
    %269 = vector.shape_cast %265 : vector<8x32xf32> to vector<1x8x32xf32>
    tpu.vector_store %arg9[%266, %c0_94, %c0_95], %269 {strides = array<i32>} : memref<8x8x32xf32, #tpu.memory_space<vmem>>, vector<1x8x32xf32>,
    %c7_i32 = arith.constant 7 : i32
    %270 = arith.index_cast %c7_i32 : i32 to index
    %c0_96 = arith.constant 0 : index
    %c0_97 = arith.constant 0 : index
    %271 = vector.load %arg10[%270, %c0_96, %c0_97] : memref<8x8x128xf32, #tpu.memory_space<vmem>>, vector<1x8x128xf32>
    %272 = vector.shape_cast %271 : vector<1x8x128xf32> to vector<8x128xf32>
    %c0_98 = arith.constant 0 : index
    %c0_99 = arith.constant 0 : index
    %c0_100 = arith.constant 0 : index
    %273 = vector.load %arg4[%c0_98, %c0_99, %c0_100] : memref<3x32x128xf32, #tpu.memory_space<vmem>>, vector<1x32x128xf32>
    %274 = vector.shape_cast %273 : vector<1x32x128xf32> to vector<32x128xf32>
    %cst_101 = arith.constant dense<0.000000e+00> : vector<8x128xf32>
    %275 = tpu.matmul %265, %274, %cst_101 {dimension_numbers = #tpu.dot_dimension_numbers<[1], [0], [0], [1], [0, 0, 1, 1], [], []>, precision = #tpu.contract_precision<fp32>} : vector<8x32xf32>, vector<32x128xf32>, vector<8x128xf32> -> vector<8x128xf32>
    %276 = arith.addf %272, %275 : vector<8x128xf32>
    %277 = vector.extract_strided_slice %276 {offsets = [0, 0], sizes = [8, 32], strides = [1, 1]} : vector<8x128xf32> to vector<8x32xf32>
    %278 = arith.negf %277 : vector<8x32xf32>
    %279 = math.exp %278 : vector<8x32xf32>
    %cst_102 = arith.constant 1.000000e+00 : f32
    %280 = vector.broadcast %cst_102 : f32 to vector<8x32xf32>
    %281 = arith.addf %280, %279 : vector<8x32xf32>
    %282 = arith.divf %280, %281 : vector<8x32xf32>
    %283 = vector.extract_strided_slice %276 {offsets = [0, 32], sizes = [8, 32], strides = [1, 1]} : vector<8x128xf32> to vector<8x32xf32>
    %284 = arith.negf %283 : vector<8x32xf32>
    %285 = math.exp %284 : vector<8x32xf32>
    %cst_103 = arith.constant 1.000000e+00 : f32
    %286 = vector.broadcast %cst_103 : f32 to vector<8x32xf32>
    %287 = arith.addf %286, %285 : vector<8x32xf32>
    %288 = arith.divf %286, %287 : vector<8x32xf32>
    %289 = vector.extract_strided_slice %276 {offsets = [0, 64], sizes = [8, 32], strides = [1, 1]} : vector<8x128xf32> to vector<8x32xf32>
    %290 = math.tanh %289 : vector<8x32xf32>
    %291 = vector.extract_strided_slice %276 {offsets = [0, 96], sizes = [8, 32], strides = [1, 1]} : vector<8x128xf32> to vector<8x32xf32>
    %292 = arith.negf %291 : vector<8x32xf32>
    %293 = math.exp %292 : vector<8x32xf32>
    %cst_104 = arith.constant 1.000000e+00 : f32
    %294 = vector.broadcast %cst_104 : f32 to vector<8x32xf32>
    %295 = arith.addf %294, %293 : vector<8x32xf32>
    %296 = arith.divf %294, %295 : vector<8x32xf32>
    %297 = arith.mulf %288, %263 : vector<8x32xf32>
    %298 = arith.mulf %282, %290 : vector<8x32xf32>
    %299 = arith.addf %297, %298 : vector<8x32xf32>
    %300 = math.tanh %299 : vector<8x32xf32>
    %301 = arith.mulf %296, %300 : vector<8x32xf32>
    %302 = arith.index_cast %c7_i32 : i32 to index
    %c0_105 = arith.constant 0 : index
    %c0_106 = arith.constant 0 : index
    %303 = vector.load %arg9[%302, %c0_105, %c0_106] : memref<8x8x32xf32, #tpu.memory_space<vmem>>, vector<1x8x32xf32>
    %304 = vector.shape_cast %303 : vector<1x8x32xf32> to vector<8x32xf32>
    %305 = vector.shape_cast %301 : vector<8x32xf32> to vector<1x8x32xf32>
    tpu.vector_store %arg9[%302, %c0_105, %c0_106], %305 {strides = array<i32>} : memref<8x8x32xf32, #tpu.memory_space<vmem>>, vector<1x8x32xf32>,
    %c8_i32 = arith.constant 8 : i32
    %c0_107 = arith.constant 0 : index
    %c0_108 = arith.constant 0 : index
    %c0_109 = arith.constant 0 : index
    %306 = vector.load %arg7[%c0_107, %c0_108, %c0_109] : memref<3x8x32xf32, #tpu.memory_space<vmem>>, vector<1x8x32xf32>
    %307 = vector.shape_cast %306 : vector<1x8x32xf32> to vector<8x32xf32>
    %308 = vector.shape_cast %301 : vector<8x32xf32> to vector<1x8x32xf32>
    tpu.vector_store %arg7[%c0_107, %c0_108, %c0_109], %308 {strides = array<i32>} : memref<3x8x32xf32, #tpu.memory_space<vmem>>, vector<1x8x32xf32>,
    %c0_110 = arith.constant 0 : index
    %c0_111 = arith.constant 0 : index
    %c0_112 = arith.constant 0 : index
    %309 = vector.load %arg8[%c0_110, %c0_111, %c0_112] : memref<3x8x32xf32, #tpu.memory_space<vmem>>, vector<1x8x32xf32>
    %310 = vector.shape_cast %309 : vector<1x8x32xf32> to vector<8x32xf32>
    %311 = vector.shape_cast %299 : vector<8x32xf32> to vector<1x8x32xf32>
    tpu.vector_store %arg8[%c0_110, %c0_111, %c0_112], %311 {strides = array<i32>} : memref<3x8x32xf32, #tpu.memory_space<vmem>>, vector<1x8x32xf32>,
    %c0_113 = arith.constant 0 : index
    %c0_114 = arith.constant 0 : index
    %c0_115 = arith.constant 0 : index
    %312 = vector.load %arg9[%c0_113, %c0_114, %c0_115] : memref<8x8x32xf32, #tpu.memory_space<vmem>>, vector<8x8x32xf32>
    %313 = vector.shape_cast %312 : vector<8x8x32xf32> to vector<64x32xf32>
    %c1 = arith.constant 1 : index
    %c0_116 = arith.constant 0 : index
    %c0_117 = arith.constant 0 : index
    %314 = vector.load %arg3[%c1, %c0_116, %c0_117] : memref<3x32x128xf32, #tpu.memory_space<vmem>>, vector<1x32x128xf32>
    %315 = vector.shape_cast %314 : vector<1x32x128xf32> to vector<32x128xf32>
    %cst_118 = arith.constant dense<0.000000e+00> : vector<64x128xf32>
    %316 = tpu.matmul %313, %315, %cst_118 {dimension_numbers = #tpu.dot_dimension_numbers<[1], [0], [0], [1], [0, 0, 1, 1], [], []>, precision = #tpu.contract_precision<fp32>} : vector<64x32xf32>, vector<32x128xf32>, vector<64x128xf32> -> vector<64x128xf32>
    %c1_119 = arith.constant 1 : index
    %c0_120 = arith.constant 0 : index
    %c0_121 = arith.constant 0 : index
    %317 = vector.load %arg5[%c1_119, %c0_120, %c0_121] : memref<3x1x128xf32, #tpu.memory_space<vmem>>, vector<1x1x128xf32>
    %318 = vector.shape_cast %317 : vector<1x1x128xf32> to vector<1x128xf32>
    %319 = vector.broadcast %318 : vector<1x128xf32> to vector<64x128xf32>
    %320 = arith.addf %316, %319 : vector<64x128xf32>
    %321 = vector.shape_cast %320 : vector<64x128xf32> to vector<8x8x128xf32>
    %c0_122 = arith.constant 0 : index
    %c0_123 = arith.constant 0 : index
    %c0_124 = arith.constant 0 : index
    %322 = vector.load %arg10[%c0_122, %c0_123, %c0_124] : memref<8x8x128xf32, #tpu.memory_space<vmem>>, vector<8x8x128xf32>
    tpu.vector_store %arg10[%c0_122, %c0_123, %c0_124], %321 {strides = array<i32>} : memref<8x8x128xf32, #tpu.memory_space<vmem>>, vector<8x8x128xf32>,
    %c1_125 = arith.constant 1 : index
    %c0_126 = arith.constant 0 : index
    %c0_127 = arith.constant 0 : index
    %323 = vector.load %arg7[%c1_125, %c0_126, %c0_127] : memref<3x8x32xf32, #tpu.memory_space<vmem>>, vector<1x8x32xf32>
    %324 = vector.shape_cast %323 : vector<1x8x32xf32> to vector<8x32xf32>
    %c1_128 = arith.constant 1 : index
    %c0_129 = arith.constant 0 : index
    %c0_130 = arith.constant 0 : index
    %325 = vector.load %arg8[%c1_128, %c0_129, %c0_130] : memref<3x8x32xf32, #tpu.memory_space<vmem>>, vector<1x8x32xf32>
    %326 = vector.shape_cast %325 : vector<1x8x32xf32> to vector<8x32xf32>
    %c0_i32_131 = arith.constant 0 : i32
    %327 = arith.index_cast %c0_i32_131 : i32 to index
    %c0_132 = arith.constant 0 : index
    %c0_133 = arith.constant 0 : index
    %328 = vector.load %arg10[%327, %c0_132, %c0_133] : memref<8x8x128xf32, #tpu.memory_space<vmem>>, vector<1x8x128xf32>
    %329 = vector.shape_cast %328 : vector<1x8x128xf32> to vector<8x128xf32>
    %c1_134 = arith.constant 1 : index
    %c0_135 = arith.constant 0 : index
    %c0_136 = arith.constant 0 : index
    %330 = vector.load %arg4[%c1_134, %c0_135, %c0_136] : memref<3x32x128xf32, #tpu.memory_space<vmem>>, vector<1x32x128xf32>
    %331 = vector.shape_cast %330 : vector<1x32x128xf32> to vector<32x128xf32>
    %cst_137 = arith.constant dense<0.000000e+00> : vector<8x128xf32>
    %332 = tpu.matmul %324, %331, %cst_137 {dimension_numbers = #tpu.dot_dimension_numbers<[1], [0], [0], [1], [0, 0, 1, 1], [], []>, precision = #tpu.contract_precision<fp32>} : vector<8x32xf32>, vector<32x128xf32>, vector<8x128xf32> -> vector<8x128xf32>
    %333 = arith.addf %329, %332 : vector<8x128xf32>
    %334 = vector.extract_strided_slice %333 {offsets = [0, 0], sizes = [8, 32], strides = [1, 1]} : vector<8x128xf32> to vector<8x32xf32>
    %335 = arith.negf %334 : vector<8x32xf32>
    %336 = math.exp %335 : vector<8x32xf32>
    %cst_138 = arith.constant 1.000000e+00 : f32
    %337 = vector.broadcast %cst_138 : f32 to vector<8x32xf32>
    %338 = arith.addf %337, %336 : vector<8x32xf32>
    %339 = arith.divf %337, %338 : vector<8x32xf32>
    %340 = vector.extract_strided_slice %333 {offsets = [0, 32], sizes = [8, 32], strides = [1, 1]} : vector<8x128xf32> to vector<8x32xf32>
    %341 = arith.negf %340 : vector<8x32xf32>
    %342 = math.exp %341 : vector<8x32xf32>
    %cst_139 = arith.constant 1.000000e+00 : f32
    %343 = vector.broadcast %cst_139 : f32 to vector<8x32xf32>
    %344 = arith.addf %343, %342 : vector<8x32xf32>
    %345 = arith.divf %343, %344 : vector<8x32xf32>
    %346 = vector.extract_strided_slice %333 {offsets = [0, 64], sizes = [8, 32], strides = [1, 1]} : vector<8x128xf32> to vector<8x32xf32>
    %347 = math.tanh %346 : vector<8x32xf32>
    %348 = vector.extract_strided_slice %333 {offsets = [0, 96], sizes = [8, 32], strides = [1, 1]} : vector<8x128xf32> to vector<8x32xf32>
    %349 = arith.negf %348 : vector<8x32xf32>
    %350 = math.exp %349 : vector<8x32xf32>
    %cst_140 = arith.constant 1.000000e+00 : f32
    %351 = vector.broadcast %cst_140 : f32 to vector<8x32xf32>
    %352 = arith.addf %351, %350 : vector<8x32xf32>
    %353 = arith.divf %351, %352 : vector<8x32xf32>
    %354 = arith.mulf %345, %326 : vector<8x32xf32>
    %355 = arith.mulf %339, %347 : vector<8x32xf32>
    %356 = arith.addf %354, %355 : vector<8x32xf32>
    %357 = math.tanh %356 : vector<8x32xf32>
    %358 = arith.mulf %353, %357 : vector<8x32xf32>
    %359 = arith.index_cast %c0_i32_131 : i32 to index
    %c0_141 = arith.constant 0 : index
    %c0_142 = arith.constant 0 : index
    %360 = vector.load %arg9[%359, %c0_141, %c0_142] : memref<8x8x32xf32, #tpu.memory_space<vmem>>, vector<1x8x32xf32>
    %361 = vector.shape_cast %360 : vector<1x8x32xf32> to vector<8x32xf32>
    %362 = vector.shape_cast %358 : vector<8x32xf32> to vector<1x8x32xf32>
    tpu.vector_store %arg9[%359, %c0_141, %c0_142], %362 {strides = array<i32>} : memref<8x8x32xf32, #tpu.memory_space<vmem>>, vector<1x8x32xf32>,
    %c1_i32_143 = arith.constant 1 : i32
    %363 = arith.index_cast %c1_i32_143 : i32 to index
    %c0_144 = arith.constant 0 : index
    %c0_145 = arith.constant 0 : index
    %364 = vector.load %arg10[%363, %c0_144, %c0_145] : memref<8x8x128xf32, #tpu.memory_space<vmem>>, vector<1x8x128xf32>
    %365 = vector.shape_cast %364 : vector<1x8x128xf32> to vector<8x128xf32>
    %c1_146 = arith.constant 1 : index
    %c0_147 = arith.constant 0 : index
    %c0_148 = arith.constant 0 : index
    %366 = vector.load %arg4[%c1_146, %c0_147, %c0_148] : memref<3x32x128xf32, #tpu.memory_space<vmem>>, vector<1x32x128xf32>
    %367 = vector.shape_cast %366 : vector<1x32x128xf32> to vector<32x128xf32>
    %cst_149 = arith.constant dense<0.000000e+00> : vector<8x128xf32>
    %368 = tpu.matmul %358, %367, %cst_149 {dimension_numbers = #tpu.dot_dimension_numbers<[1], [0], [0], [1], [0, 0, 1, 1], [], []>, precision = #tpu.contract_precision<fp32>} : vector<8x32xf32>, vector<32x128xf32>, vector<8x128xf32> -> vector<8x128xf32>
    %369 = arith.addf %365, %368 : vector<8x128xf32>
    %370 = vector.extract_strided_slice %369 {offsets = [0, 0], sizes = [8, 32], strides = [1, 1]} : vector<8x128xf32> to vector<8x32xf32>
    %371 = arith.negf %370 : vector<8x32xf32>
    %372 = math.exp %371 : vector<8x32xf32>
    %cst_150 = arith.constant 1.000000e+00 : f32
    %373 = vector.broadcast %cst_150 : f32 to vector<8x32xf32>
    %374 = arith.addf %373, %372 : vector<8x32xf32>
    %375 = arith.divf %373, %374 : vector<8x32xf32>
    %376 = vector.extract_strided_slice %369 {offsets = [0, 32], sizes = [8, 32], strides = [1, 1]} : vector<8x128xf32> to vector<8x32xf32>
    %377 = arith.negf %376 : vector<8x32xf32>
    %378 = math.exp %377 : vector<8x32xf32>
    %cst_151 = arith.constant 1.000000e+00 : f32
    %379 = vector.broadcast %cst_151 : f32 to vector<8x32xf32>
    %380 = arith.addf %379, %378 : vector<8x32xf32>
    %381 = arith.divf %379, %380 : vector<8x32xf32>
    %382 = vector.extract_strided_slice %369 {offsets = [0, 64], sizes = [8, 32], strides = [1, 1]} : vector<8x128xf32> to vector<8x32xf32>
    %383 = math.tanh %382 : vector<8x32xf32>
    %384 = vector.extract_strided_slice %369 {offsets = [0, 96], sizes = [8, 32], strides = [1, 1]} : vector<8x128xf32> to vector<8x32xf32>
    %385 = arith.negf %384 : vector<8x32xf32>
    %386 = math.exp %385 : vector<8x32xf32>
    %cst_152 = arith.constant 1.000000e+00 : f32
    %387 = vector.broadcast %cst_152 : f32 to vector<8x32xf32>
    %388 = arith.addf %387, %386 : vector<8x32xf32>
    %389 = arith.divf %387, %388 : vector<8x32xf32>
    %390 = arith.mulf %381, %356 : vector<8x32xf32>
    %391 = arith.mulf %375, %383 : vector<8x32xf32>
    %392 = arith.addf %390, %391 : vector<8x32xf32>
    %393 = math.tanh %392 : vector<8x32xf32>
    %394 = arith.mulf %389, %393 : vector<8x32xf32>
    %395 = arith.index_cast %c1_i32_143 : i32 to index
    %c0_153 = arith.constant 0 : index
    %c0_154 = arith.constant 0 : index
    %396 = vector.load %arg9[%395, %c0_153, %c0_154] : memref<8x8x32xf32, #tpu.memory_space<vmem>>, vector<1x8x32xf32>
    %397 = vector.shape_cast %396 : vector<1x8x32xf32> to vector<8x32xf32>
    %398 = vector.shape_cast %394 : vector<8x32xf32> to vector<1x8x32xf32>
    tpu.vector_store %arg9[%395, %c0_153, %c0_154], %398 {strides = array<i32>} : memref<8x8x32xf32, #tpu.memory_space<vmem>>, vector<1x8x32xf32>,
    %c2_i32_155 = arith.constant 2 : i32
    %399 = arith.index_cast %c2_i32_155 : i32 to index
    %c0_156 = arith.constant 0 : index
    %c0_157 = arith.constant 0 : index
    %400 = vector.load %arg10[%399, %c0_156, %c0_157] : memref<8x8x128xf32, #tpu.memory_space<vmem>>, vector<1x8x128xf32>
    %401 = vector.shape_cast %400 : vector<1x8x128xf32> to vector<8x128xf32>
    %c1_158 = arith.constant 1 : index
    %c0_159 = arith.constant 0 : index
    %c0_160 = arith.constant 0 : index
    %402 = vector.load %arg4[%c1_158, %c0_159, %c0_160] : memref<3x32x128xf32, #tpu.memory_space<vmem>>, vector<1x32x128xf32>
    %403 = vector.shape_cast %402 : vector<1x32x128xf32> to vector<32x128xf32>
    %cst_161 = arith.constant dense<0.000000e+00> : vector<8x128xf32>
    %404 = tpu.matmul %394, %403, %cst_161 {dimension_numbers = #tpu.dot_dimension_numbers<[1], [0], [0], [1], [0, 0, 1, 1], [], []>, precision = #tpu.contract_precision<fp32>} : vector<8x32xf32>, vector<32x128xf32>, vector<8x128xf32> -> vector<8x128xf32>
    %405 = arith.addf %401, %404 : vector<8x128xf32>
    %406 = vector.extract_strided_slice %405 {offsets = [0, 0], sizes = [8, 32], strides = [1, 1]} : vector<8x128xf32> to vector<8x32xf32>
    %407 = arith.negf %406 : vector<8x32xf32>
    %408 = math.exp %407 : vector<8x32xf32>
    %cst_162 = arith.constant 1.000000e+00 : f32
    %409 = vector.broadcast %cst_162 : f32 to vector<8x32xf32>
    %410 = arith.addf %409, %408 : vector<8x32xf32>
    %411 = arith.divf %409, %410 : vector<8x32xf32>
    %412 = vector.extract_strided_slice %405 {offsets = [0, 32], sizes = [8, 32], strides = [1, 1]} : vector<8x128xf32> to vector<8x32xf32>
    %413 = arith.negf %412 : vector<8x32xf32>
    %414 = math.exp %413 : vector<8x32xf32>
    %cst_163 = arith.constant 1.000000e+00 : f32
    %415 = vector.broadcast %cst_163 : f32 to vector<8x32xf32>
    %416 = arith.addf %415, %414 : vector<8x32xf32>
    %417 = arith.divf %415, %416 : vector<8x32xf32>
    %418 = vector.extract_strided_slice %405 {offsets = [0, 64], sizes = [8, 32], strides = [1, 1]} : vector<8x128xf32> to vector<8x32xf32>
    %419 = math.tanh %418 : vector<8x32xf32>
    %420 = vector.extract_strided_slice %405 {offsets = [0, 96], sizes = [8, 32], strides = [1, 1]} : vector<8x128xf32> to vector<8x32xf32>
    %421 = arith.negf %420 : vector<8x32xf32>
    %422 = math.exp %421 : vector<8x32xf32>
    %cst_164 = arith.constant 1.000000e+00 : f32
    %423 = vector.broadcast %cst_164 : f32 to vector<8x32xf32>
    %424 = arith.addf %423, %422 : vector<8x32xf32>
    %425 = arith.divf %423, %424 : vector<8x32xf32>
    %426 = arith.mulf %417, %392 : vector<8x32xf32>
    %427 = arith.mulf %411, %419 : vector<8x32xf32>
    %428 = arith.addf %426, %427 : vector<8x32xf32>
    %429 = math.tanh %428 : vector<8x32xf32>
    %430 = arith.mulf %425, %429 : vector<8x32xf32>
    %431 = arith.index_cast %c2_i32_155 : i32 to index
    %c0_165 = arith.constant 0 : index
    %c0_166 = arith.constant 0 : index
    %432 = vector.load %arg9[%431, %c0_165, %c0_166] : memref<8x8x32xf32, #tpu.memory_space<vmem>>, vector<1x8x32xf32>
    %433 = vector.shape_cast %432 : vector<1x8x32xf32> to vector<8x32xf32>
    %434 = vector.shape_cast %430 : vector<8x32xf32> to vector<1x8x32xf32>
    tpu.vector_store %arg9[%431, %c0_165, %c0_166], %434 {strides = array<i32>} : memref<8x8x32xf32, #tpu.memory_space<vmem>>, vector<1x8x32xf32>,
    %c3_i32_167 = arith.constant 3 : i32
    %435 = arith.index_cast %c3_i32_167 : i32 to index
    %c0_168 = arith.constant 0 : index
    %c0_169 = arith.constant 0 : index
    %436 = vector.load %arg10[%435, %c0_168, %c0_169] : memref<8x8x128xf32, #tpu.memory_space<vmem>>, vector<1x8x128xf32>
    %437 = vector.shape_cast %436 : vector<1x8x128xf32> to vector<8x128xf32>
    %c1_170 = arith.constant 1 : index
    %c0_171 = arith.constant 0 : index
    %c0_172 = arith.constant 0 : index
    %438 = vector.load %arg4[%c1_170, %c0_171, %c0_172] : memref<3x32x128xf32, #tpu.memory_space<vmem>>, vector<1x32x128xf32>
    %439 = vector.shape_cast %438 : vector<1x32x128xf32> to vector<32x128xf32>
    %cst_173 = arith.constant dense<0.000000e+00> : vector<8x128xf32>
    %440 = tpu.matmul %430, %439, %cst_173 {dimension_numbers = #tpu.dot_dimension_numbers<[1], [0], [0], [1], [0, 0, 1, 1], [], []>, precision = #tpu.contract_precision<fp32>} : vector<8x32xf32>, vector<32x128xf32>, vector<8x128xf32> -> vector<8x128xf32>
    %441 = arith.addf %437, %440 : vector<8x128xf32>
    %442 = vector.extract_strided_slice %441 {offsets = [0, 0], sizes = [8, 32], strides = [1, 1]} : vector<8x128xf32> to vector<8x32xf32>
    %443 = arith.negf %442 : vector<8x32xf32>
    %444 = math.exp %443 : vector<8x32xf32>
    %cst_174 = arith.constant 1.000000e+00 : f32
    %445 = vector.broadcast %cst_174 : f32 to vector<8x32xf32>
    %446 = arith.addf %445, %444 : vector<8x32xf32>
    %447 = arith.divf %445, %446 : vector<8x32xf32>
    %448 = vector.extract_strided_slice %441 {offsets = [0, 32], sizes = [8, 32], strides = [1, 1]} : vector<8x128xf32> to vector<8x32xf32>
    %449 = arith.negf %448 : vector<8x32xf32>
    %450 = math.exp %449 : vector<8x32xf32>
    %cst_175 = arith.constant 1.000000e+00 : f32
    %451 = vector.broadcast %cst_175 : f32 to vector<8x32xf32>
    %452 = arith.addf %451, %450 : vector<8x32xf32>
    %453 = arith.divf %451, %452 : vector<8x32xf32>
    %454 = vector.extract_strided_slice %441 {offsets = [0, 64], sizes = [8, 32], strides = [1, 1]} : vector<8x128xf32> to vector<8x32xf32>
    %455 = math.tanh %454 : vector<8x32xf32>
    %456 = vector.extract_strided_slice %441 {offsets = [0, 96], sizes = [8, 32], strides = [1, 1]} : vector<8x128xf32> to vector<8x32xf32>
    %457 = arith.negf %456 : vector<8x32xf32>
    %458 = math.exp %457 : vector<8x32xf32>
    %cst_176 = arith.constant 1.000000e+00 : f32
    %459 = vector.broadcast %cst_176 : f32 to vector<8x32xf32>
    %460 = arith.addf %459, %458 : vector<8x32xf32>
    %461 = arith.divf %459, %460 : vector<8x32xf32>
    %462 = arith.mulf %453, %428 : vector<8x32xf32>
    %463 = arith.mulf %447, %455 : vector<8x32xf32>
    %464 = arith.addf %462, %463 : vector<8x32xf32>
    %465 = math.tanh %464 : vector<8x32xf32>
    %466 = arith.mulf %461, %465 : vector<8x32xf32>
    %467 = arith.index_cast %c3_i32_167 : i32 to index
    %c0_177 = arith.constant 0 : index
    %c0_178 = arith.constant 0 : index
    %468 = vector.load %arg9[%467, %c0_177, %c0_178] : memref<8x8x32xf32, #tpu.memory_space<vmem>>, vector<1x8x32xf32>
    %469 = vector.shape_cast %468 : vector<1x8x32xf32> to vector<8x32xf32>
    %470 = vector.shape_cast %466 : vector<8x32xf32> to vector<1x8x32xf32>
    tpu.vector_store %arg9[%467, %c0_177, %c0_178], %470 {strides = array<i32>} : memref<8x8x32xf32, #tpu.memory_space<vmem>>, vector<1x8x32xf32>,
    %c4_i32_179 = arith.constant 4 : i32
    %471 = arith.index_cast %c4_i32_179 : i32 to index
    %c0_180 = arith.constant 0 : index
    %c0_181 = arith.constant 0 : index
    %472 = vector.load %arg10[%471, %c0_180, %c0_181] : memref<8x8x128xf32, #tpu.memory_space<vmem>>, vector<1x8x128xf32>
    %473 = vector.shape_cast %472 : vector<1x8x128xf32> to vector<8x128xf32>
    %c1_182 = arith.constant 1 : index
    %c0_183 = arith.constant 0 : index
    %c0_184 = arith.constant 0 : index
    %474 = vector.load %arg4[%c1_182, %c0_183, %c0_184] : memref<3x32x128xf32, #tpu.memory_space<vmem>>, vector<1x32x128xf32>
    %475 = vector.shape_cast %474 : vector<1x32x128xf32> to vector<32x128xf32>
    %cst_185 = arith.constant dense<0.000000e+00> : vector<8x128xf32>
    %476 = tpu.matmul %466, %475, %cst_185 {dimension_numbers = #tpu.dot_dimension_numbers<[1], [0], [0], [1], [0, 0, 1, 1], [], []>, precision = #tpu.contract_precision<fp32>} : vector<8x32xf32>, vector<32x128xf32>, vector<8x128xf32> -> vector<8x128xf32>
    %477 = arith.addf %473, %476 : vector<8x128xf32>
    %478 = vector.extract_strided_slice %477 {offsets = [0, 0], sizes = [8, 32], strides = [1, 1]} : vector<8x128xf32> to vector<8x32xf32>
    %479 = arith.negf %478 : vector<8x32xf32>
    %480 = math.exp %479 : vector<8x32xf32>
    %cst_186 = arith.constant 1.000000e+00 : f32
    %481 = vector.broadcast %cst_186 : f32 to vector<8x32xf32>
    %482 = arith.addf %481, %480 : vector<8x32xf32>
    %483 = arith.divf %481, %482 : vector<8x32xf32>
    %484 = vector.extract_strided_slice %477 {offsets = [0, 32], sizes = [8, 32], strides = [1, 1]} : vector<8x128xf32> to vector<8x32xf32>
    %485 = arith.negf %484 : vector<8x32xf32>
    %486 = math.exp %485 : vector<8x32xf32>
    %cst_187 = arith.constant 1.000000e+00 : f32
    %487 = vector.broadcast %cst_187 : f32 to vector<8x32xf32>
    %488 = arith.addf %487, %486 : vector<8x32xf32>
    %489 = arith.divf %487, %488 : vector<8x32xf32>
    %490 = vector.extract_strided_slice %477 {offsets = [0, 64], sizes = [8, 32], strides = [1, 1]} : vector<8x128xf32> to vector<8x32xf32>
    %491 = math.tanh %490 : vector<8x32xf32>
    %492 = vector.extract_strided_slice %477 {offsets = [0, 96], sizes = [8, 32], strides = [1, 1]} : vector<8x128xf32> to vector<8x32xf32>
    %493 = arith.negf %492 : vector<8x32xf32>
    %494 = math.exp %493 : vector<8x32xf32>
    %cst_188 = arith.constant 1.000000e+00 : f32
    %495 = vector.broadcast %cst_188 : f32 to vector<8x32xf32>
    %496 = arith.addf %495, %494 : vector<8x32xf32>
    %497 = arith.divf %495, %496 : vector<8x32xf32>
    %498 = arith.mulf %489, %464 : vector<8x32xf32>
    %499 = arith.mulf %483, %491 : vector<8x32xf32>
    %500 = arith.addf %498, %499 : vector<8x32xf32>
    %501 = math.tanh %500 : vector<8x32xf32>
    %502 = arith.mulf %497, %501 : vector<8x32xf32>
    %503 = arith.index_cast %c4_i32_179 : i32 to index
    %c0_189 = arith.constant 0 : index
    %c0_190 = arith.constant 0 : index
    %504 = vector.load %arg9[%503, %c0_189, %c0_190] : memref<8x8x32xf32, #tpu.memory_space<vmem>>, vector<1x8x32xf32>
    %505 = vector.shape_cast %504 : vector<1x8x32xf32> to vector<8x32xf32>
    %506 = vector.shape_cast %502 : vector<8x32xf32> to vector<1x8x32xf32>
    tpu.vector_store %arg9[%503, %c0_189, %c0_190], %506 {strides = array<i32>} : memref<8x8x32xf32, #tpu.memory_space<vmem>>, vector<1x8x32xf32>,
    %c5_i32_191 = arith.constant 5 : i32
    %507 = arith.index_cast %c5_i32_191 : i32 to index
    %c0_192 = arith.constant 0 : index
    %c0_193 = arith.constant 0 : index
    %508 = vector.load %arg10[%507, %c0_192, %c0_193] : memref<8x8x128xf32, #tpu.memory_space<vmem>>, vector<1x8x128xf32>
    %509 = vector.shape_cast %508 : vector<1x8x128xf32> to vector<8x128xf32>
    %c1_194 = arith.constant 1 : index
    %c0_195 = arith.constant 0 : index
    %c0_196 = arith.constant 0 : index
    %510 = vector.load %arg4[%c1_194, %c0_195, %c0_196] : memref<3x32x128xf32, #tpu.memory_space<vmem>>, vector<1x32x128xf32>
    %511 = vector.shape_cast %510 : vector<1x32x128xf32> to vector<32x128xf32>
    %cst_197 = arith.constant dense<0.000000e+00> : vector<8x128xf32>
    %512 = tpu.matmul %502, %511, %cst_197 {dimension_numbers = #tpu.dot_dimension_numbers<[1], [0], [0], [1], [0, 0, 1, 1], [], []>, precision = #tpu.contract_precision<fp32>} : vector<8x32xf32>, vector<32x128xf32>, vector<8x128xf32> -> vector<8x128xf32>
    %513 = arith.addf %509, %512 : vector<8x128xf32>
    %514 = vector.extract_strided_slice %513 {offsets = [0, 0], sizes = [8, 32], strides = [1, 1]} : vector<8x128xf32> to vector<8x32xf32>
    %515 = arith.negf %514 : vector<8x32xf32>
    %516 = math.exp %515 : vector<8x32xf32>
    %cst_198 = arith.constant 1.000000e+00 : f32
    %517 = vector.broadcast %cst_198 : f32 to vector<8x32xf32>
    %518 = arith.addf %517, %516 : vector<8x32xf32>
    %519 = arith.divf %517, %518 : vector<8x32xf32>
    %520 = vector.extract_strided_slice %513 {offsets = [0, 32], sizes = [8, 32], strides = [1, 1]} : vector<8x128xf32> to vector<8x32xf32>
    %521 = arith.negf %520 : vector<8x32xf32>
    %522 = math.exp %521 : vector<8x32xf32>
    %cst_199 = arith.constant 1.000000e+00 : f32
    %523 = vector.broadcast %cst_199 : f32 to vector<8x32xf32>
    %524 = arith.addf %523, %522 : vector<8x32xf32>
    %525 = arith.divf %523, %524 : vector<8x32xf32>
    %526 = vector.extract_strided_slice %513 {offsets = [0, 64], sizes = [8, 32], strides = [1, 1]} : vector<8x128xf32> to vector<8x32xf32>
    %527 = math.tanh %526 : vector<8x32xf32>
    %528 = vector.extract_strided_slice %513 {offsets = [0, 96], sizes = [8, 32], strides = [1, 1]} : vector<8x128xf32> to vector<8x32xf32>
    %529 = arith.negf %528 : vector<8x32xf32>
    %530 = math.exp %529 : vector<8x32xf32>
    %cst_200 = arith.constant 1.000000e+00 : f32
    %531 = vector.broadcast %cst_200 : f32 to vector<8x32xf32>
    %532 = arith.addf %531, %530 : vector<8x32xf32>
    %533 = arith.divf %531, %532 : vector<8x32xf32>
    %534 = arith.mulf %525, %500 : vector<8x32xf32>
    %535 = arith.mulf %519, %527 : vector<8x32xf32>
    %536 = arith.addf %534, %535 : vector<8x32xf32>
    %537 = math.tanh %536 : vector<8x32xf32>
    %538 = arith.mulf %533, %537 : vector<8x32xf32>
    %539 = arith.index_cast %c5_i32_191 : i32 to index
    %c0_201 = arith.constant 0 : index
    %c0_202 = arith.constant 0 : index
    %540 = vector.load %arg9[%539, %c0_201, %c0_202] : memref<8x8x32xf32, #tpu.memory_space<vmem>>, vector<1x8x32xf32>
    %541 = vector.shape_cast %540 : vector<1x8x32xf32> to vector<8x32xf32>
    %542 = vector.shape_cast %538 : vector<8x32xf32> to vector<1x8x32xf32>
    tpu.vector_store %arg9[%539, %c0_201, %c0_202], %542 {strides = array<i32>} : memref<8x8x32xf32, #tpu.memory_space<vmem>>, vector<1x8x32xf32>,
    %c6_i32_203 = arith.constant 6 : i32
    %543 = arith.index_cast %c6_i32_203 : i32 to index
    %c0_204 = arith.constant 0 : index
    %c0_205 = arith.constant 0 : index
    %544 = vector.load %arg10[%543, %c0_204, %c0_205] : memref<8x8x128xf32, #tpu.memory_space<vmem>>, vector<1x8x128xf32>
    %545 = vector.shape_cast %544 : vector<1x8x128xf32> to vector<8x128xf32>
    %c1_206 = arith.constant 1 : index
    %c0_207 = arith.constant 0 : index
    %c0_208 = arith.constant 0 : index
    %546 = vector.load %arg4[%c1_206, %c0_207, %c0_208] : memref<3x32x128xf32, #tpu.memory_space<vmem>>, vector<1x32x128xf32>
    %547 = vector.shape_cast %546 : vector<1x32x128xf32> to vector<32x128xf32>
    %cst_209 = arith.constant dense<0.000000e+00> : vector<8x128xf32>
    %548 = tpu.matmul %538, %547, %cst_209 {dimension_numbers = #tpu.dot_dimension_numbers<[1], [0], [0], [1], [0, 0, 1, 1], [], []>, precision = #tpu.contract_precision<fp32>} : vector<8x32xf32>, vector<32x128xf32>, vector<8x128xf32> -> vector<8x128xf32>
    %549 = arith.addf %545, %548 : vector<8x128xf32>
    %550 = vector.extract_strided_slice %549 {offsets = [0, 0], sizes = [8, 32], strides = [1, 1]} : vector<8x128xf32> to vector<8x32xf32>
    %551 = arith.negf %550 : vector<8x32xf32>
    %552 = math.exp %551 : vector<8x32xf32>
    %cst_210 = arith.constant 1.000000e+00 : f32
    %553 = vector.broadcast %cst_210 : f32 to vector<8x32xf32>
    %554 = arith.addf %553, %552 : vector<8x32xf32>
    %555 = arith.divf %553, %554 : vector<8x32xf32>
    %556 = vector.extract_strided_slice %549 {offsets = [0, 32], sizes = [8, 32], strides = [1, 1]} : vector<8x128xf32> to vector<8x32xf32>
    %557 = arith.negf %556 : vector<8x32xf32>
    %558 = math.exp %557 : vector<8x32xf32>
    %cst_211 = arith.constant 1.000000e+00 : f32
    %559 = vector.broadcast %cst_211 : f32 to vector<8x32xf32>
    %560 = arith.addf %559, %558 : vector<8x32xf32>
    %561 = arith.divf %559, %560 : vector<8x32xf32>
    %562 = vector.extract_strided_slice %549 {offsets = [0, 64], sizes = [8, 32], strides = [1, 1]} : vector<8x128xf32> to vector<8x32xf32>
    %563 = math.tanh %562 : vector<8x32xf32>
    %564 = vector.extract_strided_slice %549 {offsets = [0, 96], sizes = [8, 32], strides = [1, 1]} : vector<8x128xf32> to vector<8x32xf32>
    %565 = arith.negf %564 : vector<8x32xf32>
    %566 = math.exp %565 : vector<8x32xf32>
    %cst_212 = arith.constant 1.000000e+00 : f32
    %567 = vector.broadcast %cst_212 : f32 to vector<8x32xf32>
    %568 = arith.addf %567, %566 : vector<8x32xf32>
    %569 = arith.divf %567, %568 : vector<8x32xf32>
    %570 = arith.mulf %561, %536 : vector<8x32xf32>
    %571 = arith.mulf %555, %563 : vector<8x32xf32>
    %572 = arith.addf %570, %571 : vector<8x32xf32>
    %573 = math.tanh %572 : vector<8x32xf32>
    %574 = arith.mulf %569, %573 : vector<8x32xf32>
    %575 = arith.index_cast %c6_i32_203 : i32 to index
    %c0_213 = arith.constant 0 : index
    %c0_214 = arith.constant 0 : index
    %576 = vector.load %arg9[%575, %c0_213, %c0_214] : memref<8x8x32xf32, #tpu.memory_space<vmem>>, vector<1x8x32xf32>
    %577 = vector.shape_cast %576 : vector<1x8x32xf32> to vector<8x32xf32>
    %578 = vector.shape_cast %574 : vector<8x32xf32> to vector<1x8x32xf32>
    tpu.vector_store %arg9[%575, %c0_213, %c0_214], %578 {strides = array<i32>} : memref<8x8x32xf32, #tpu.memory_space<vmem>>, vector<1x8x32xf32>,
    %c7_i32_215 = arith.constant 7 : i32
    %579 = arith.index_cast %c7_i32_215 : i32 to index
    %c0_216 = arith.constant 0 : index
    %c0_217 = arith.constant 0 : index
    %580 = vector.load %arg10[%579, %c0_216, %c0_217] : memref<8x8x128xf32, #tpu.memory_space<vmem>>, vector<1x8x128xf32>
    %581 = vector.shape_cast %580 : vector<1x8x128xf32> to vector<8x128xf32>
    %c1_218 = arith.constant 1 : index
    %c0_219 = arith.constant 0 : index
    %c0_220 = arith.constant 0 : index
    %582 = vector.load %arg4[%c1_218, %c0_219, %c0_220] : memref<3x32x128xf32, #tpu.memory_space<vmem>>, vector<1x32x128xf32>
    %583 = vector.shape_cast %582 : vector<1x32x128xf32> to vector<32x128xf32>
    %cst_221 = arith.constant dense<0.000000e+00> : vector<8x128xf32>
    %584 = tpu.matmul %574, %583, %cst_221 {dimension_numbers = #tpu.dot_dimension_numbers<[1], [0], [0], [1], [0, 0, 1, 1], [], []>, precision = #tpu.contract_precision<fp32>} : vector<8x32xf32>, vector<32x128xf32>, vector<8x128xf32> -> vector<8x128xf32>
    %585 = arith.addf %581, %584 : vector<8x128xf32>
    %586 = vector.extract_strided_slice %585 {offsets = [0, 0], sizes = [8, 32], strides = [1, 1]} : vector<8x128xf32> to vector<8x32xf32>
    %587 = arith.negf %586 : vector<8x32xf32>
    %588 = math.exp %587 : vector<8x32xf32>
    %cst_222 = arith.constant 1.000000e+00 : f32
    %589 = vector.broadcast %cst_222 : f32 to vector<8x32xf32>
    %590 = arith.addf %589, %588 : vector<8x32xf32>
    %591 = arith.divf %589, %590 : vector<8x32xf32>
    %592 = vector.extract_strided_slice %585 {offsets = [0, 32], sizes = [8, 32], strides = [1, 1]} : vector<8x128xf32> to vector<8x32xf32>
    %593 = arith.negf %592 : vector<8x32xf32>
    %594 = math.exp %593 : vector<8x32xf32>
    %cst_223 = arith.constant 1.000000e+00 : f32
    %595 = vector.broadcast %cst_223 : f32 to vector<8x32xf32>
    %596 = arith.addf %595, %594 : vector<8x32xf32>
    %597 = arith.divf %595, %596 : vector<8x32xf32>
    %598 = vector.extract_strided_slice %585 {offsets = [0, 64], sizes = [8, 32], strides = [1, 1]} : vector<8x128xf32> to vector<8x32xf32>
    %599 = math.tanh %598 : vector<8x32xf32>
    %600 = vector.extract_strided_slice %585 {offsets = [0, 96], sizes = [8, 32], strides = [1, 1]} : vector<8x128xf32> to vector<8x32xf32>
    %601 = arith.negf %600 : vector<8x32xf32>
    %602 = math.exp %601 : vector<8x32xf32>
    %cst_224 = arith.constant 1.000000e+00 : f32
    %603 = vector.broadcast %cst_224 : f32 to vector<8x32xf32>
    %604 = arith.addf %603, %602 : vector<8x32xf32>
    %605 = arith.divf %603, %604 : vector<8x32xf32>
    %606 = arith.mulf %597, %572 : vector<8x32xf32>
    %607 = arith.mulf %591, %599 : vector<8x32xf32>
    %608 = arith.addf %606, %607 : vector<8x32xf32>
    %609 = math.tanh %608 : vector<8x32xf32>
    %610 = arith.mulf %605, %609 : vector<8x32xf32>
    %611 = arith.index_cast %c7_i32_215 : i32 to index
    %c0_225 = arith.constant 0 : index
    %c0_226 = arith.constant 0 : index
    %612 = vector.load %arg9[%611, %c0_225, %c0_226] : memref<8x8x32xf32, #tpu.memory_space<vmem>>, vector<1x8x32xf32>
    %613 = vector.shape_cast %612 : vector<1x8x32xf32> to vector<8x32xf32>
    %614 = vector.shape_cast %610 : vector<8x32xf32> to vector<1x8x32xf32>
    tpu.vector_store %arg9[%611, %c0_225, %c0_226], %614 {strides = array<i32>} : memref<8x8x32xf32, #tpu.memory_space<vmem>>, vector<1x8x32xf32>,
    %c8_i32_227 = arith.constant 8 : i32
    %c1_228 = arith.constant 1 : index
    %c0_229 = arith.constant 0 : index
    %c0_230 = arith.constant 0 : index
    %615 = vector.load %arg7[%c1_228, %c0_229, %c0_230] : memref<3x8x32xf32, #tpu.memory_space<vmem>>, vector<1x8x32xf32>
    %616 = vector.shape_cast %615 : vector<1x8x32xf32> to vector<8x32xf32>
    %617 = vector.shape_cast %610 : vector<8x32xf32> to vector<1x8x32xf32>
    tpu.vector_store %arg7[%c1_228, %c0_229, %c0_230], %617 {strides = array<i32>} : memref<3x8x32xf32, #tpu.memory_space<vmem>>, vector<1x8x32xf32>,
    %c1_231 = arith.constant 1 : index
    %c0_232 = arith.constant 0 : index
    %c0_233 = arith.constant 0 : index
    %618 = vector.load %arg8[%c1_231, %c0_232, %c0_233] : memref<3x8x32xf32, #tpu.memory_space<vmem>>, vector<1x8x32xf32>
    %619 = vector.shape_cast %618 : vector<1x8x32xf32> to vector<8x32xf32>
    %620 = vector.shape_cast %608 : vector<8x32xf32> to vector<1x8x32xf32>
    tpu.vector_store %arg8[%c1_231, %c0_232, %c0_233], %620 {strides = array<i32>} : memref<3x8x32xf32, #tpu.memory_space<vmem>>, vector<1x8x32xf32>,
    %c0_234 = arith.constant 0 : index
    %c0_235 = arith.constant 0 : index
    %c0_236 = arith.constant 0 : index
    %621 = vector.load %arg9[%c0_234, %c0_235, %c0_236] : memref<8x8x32xf32, #tpu.memory_space<vmem>>, vector<8x8x32xf32>
    %622 = vector.shape_cast %621 : vector<8x8x32xf32> to vector<64x32xf32>
    %c2 = arith.constant 2 : index
    %c0_237 = arith.constant 0 : index
    %c0_238 = arith.constant 0 : index
    %623 = vector.load %arg3[%c2, %c0_237, %c0_238] : memref<3x32x128xf32, #tpu.memory_space<vmem>>, vector<1x32x128xf32>
    %624 = vector.shape_cast %623 : vector<1x32x128xf32> to vector<32x128xf32>
    %cst_239 = arith.constant dense<0.000000e+00> : vector<64x128xf32>
    %625 = tpu.matmul %622, %624, %cst_239 {dimension_numbers = #tpu.dot_dimension_numbers<[1], [0], [0], [1], [0, 0, 1, 1], [], []>, precision = #tpu.contract_precision<fp32>} : vector<64x32xf32>, vector<32x128xf32>, vector<64x128xf32> -> vector<64x128xf32>
    %c2_240 = arith.constant 2 : index
    %c0_241 = arith.constant 0 : index
    %c0_242 = arith.constant 0 : index
    %626 = vector.load %arg5[%c2_240, %c0_241, %c0_242] : memref<3x1x128xf32, #tpu.memory_space<vmem>>, vector<1x1x128xf32>
    %627 = vector.shape_cast %626 : vector<1x1x128xf32> to vector<1x128xf32>
    %628 = vector.broadcast %627 : vector<1x128xf32> to vector<64x128xf32>
    %629 = arith.addf %625, %628 : vector<64x128xf32>
    %630 = vector.shape_cast %629 : vector<64x128xf32> to vector<8x8x128xf32>
    %c0_243 = arith.constant 0 : index
    %c0_244 = arith.constant 0 : index
    %c0_245 = arith.constant 0 : index
    %631 = vector.load %arg10[%c0_243, %c0_244, %c0_245] : memref<8x8x128xf32, #tpu.memory_space<vmem>>, vector<8x8x128xf32>
    tpu.vector_store %arg10[%c0_243, %c0_244, %c0_245], %630 {strides = array<i32>} : memref<8x8x128xf32, #tpu.memory_space<vmem>>, vector<8x8x128xf32>,
    %c2_246 = arith.constant 2 : index
    %c0_247 = arith.constant 0 : index
    %c0_248 = arith.constant 0 : index
    %632 = vector.load %arg7[%c2_246, %c0_247, %c0_248] : memref<3x8x32xf32, #tpu.memory_space<vmem>>, vector<1x8x32xf32>
    %633 = vector.shape_cast %632 : vector<1x8x32xf32> to vector<8x32xf32>
    %c2_249 = arith.constant 2 : index
    %c0_250 = arith.constant 0 : index
    %c0_251 = arith.constant 0 : index
    %634 = vector.load %arg8[%c2_249, %c0_250, %c0_251] : memref<3x8x32xf32, #tpu.memory_space<vmem>>, vector<1x8x32xf32>
    %635 = vector.shape_cast %634 : vector<1x8x32xf32> to vector<8x32xf32>
    %c0_i32_252 = arith.constant 0 : i32
    %636 = arith.index_cast %c0_i32_252 : i32 to index
    %c0_253 = arith.constant 0 : index
    %c0_254 = arith.constant 0 : index
    %637 = vector.load %arg10[%636, %c0_253, %c0_254] : memref<8x8x128xf32, #tpu.memory_space<vmem>>, vector<1x8x128xf32>
    %638 = vector.shape_cast %637 : vector<1x8x128xf32> to vector<8x128xf32>
    %c2_255 = arith.constant 2 : index
    %c0_256 = arith.constant 0 : index
    %c0_257 = arith.constant 0 : index
    %639 = vector.load %arg4[%c2_255, %c0_256, %c0_257] : memref<3x32x128xf32, #tpu.memory_space<vmem>>, vector<1x32x128xf32>
    %640 = vector.shape_cast %639 : vector<1x32x128xf32> to vector<32x128xf32>
    %cst_258 = arith.constant dense<0.000000e+00> : vector<8x128xf32>
    %641 = tpu.matmul %633, %640, %cst_258 {dimension_numbers = #tpu.dot_dimension_numbers<[1], [0], [0], [1], [0, 0, 1, 1], [], []>, precision = #tpu.contract_precision<fp32>} : vector<8x32xf32>, vector<32x128xf32>, vector<8x128xf32> -> vector<8x128xf32>
    %642 = arith.addf %638, %641 : vector<8x128xf32>
    %643 = vector.extract_strided_slice %642 {offsets = [0, 0], sizes = [8, 32], strides = [1, 1]} : vector<8x128xf32> to vector<8x32xf32>
    %644 = arith.negf %643 : vector<8x32xf32>
    %645 = math.exp %644 : vector<8x32xf32>
    %cst_259 = arith.constant 1.000000e+00 : f32
    %646 = vector.broadcast %cst_259 : f32 to vector<8x32xf32>
    %647 = arith.addf %646, %645 : vector<8x32xf32>
    %648 = arith.divf %646, %647 : vector<8x32xf32>
    %649 = vector.extract_strided_slice %642 {offsets = [0, 32], sizes = [8, 32], strides = [1, 1]} : vector<8x128xf32> to vector<8x32xf32>
    %650 = arith.negf %649 : vector<8x32xf32>
    %651 = math.exp %650 : vector<8x32xf32>
    %cst_260 = arith.constant 1.000000e+00 : f32
    %652 = vector.broadcast %cst_260 : f32 to vector<8x32xf32>
    %653 = arith.addf %652, %651 : vector<8x32xf32>
    %654 = arith.divf %652, %653 : vector<8x32xf32>
    %655 = vector.extract_strided_slice %642 {offsets = [0, 64], sizes = [8, 32], strides = [1, 1]} : vector<8x128xf32> to vector<8x32xf32>
    %656 = math.tanh %655 : vector<8x32xf32>
    %657 = vector.extract_strided_slice %642 {offsets = [0, 96], sizes = [8, 32], strides = [1, 1]} : vector<8x128xf32> to vector<8x32xf32>
    %658 = arith.negf %657 : vector<8x32xf32>
    %659 = math.exp %658 : vector<8x32xf32>
    %cst_261 = arith.constant 1.000000e+00 : f32
    %660 = vector.broadcast %cst_261 : f32 to vector<8x32xf32>
    %661 = arith.addf %660, %659 : vector<8x32xf32>
    %662 = arith.divf %660, %661 : vector<8x32xf32>
    %663 = arith.mulf %654, %635 : vector<8x32xf32>
    %664 = arith.mulf %648, %656 : vector<8x32xf32>
    %665 = arith.addf %663, %664 : vector<8x32xf32>
    %666 = math.tanh %665 : vector<8x32xf32>
    %667 = arith.mulf %662, %666 : vector<8x32xf32>
    %668 = arith.index_cast %c0_i32_252 : i32 to index
    %c0_262 = arith.constant 0 : index
    %c0_263 = arith.constant 0 : index
    %669 = vector.load %arg6[%668, %c0_262, %c0_263] : memref<8x8x32xf32, #tpu.memory_space<vmem>>, vector<1x8x32xf32>
    %670 = vector.shape_cast %669 : vector<1x8x32xf32> to vector<8x32xf32>
    %671 = vector.shape_cast %667 : vector<8x32xf32> to vector<1x8x32xf32>
    tpu.vector_store %arg6[%668, %c0_262, %c0_263], %671 {strides = array<i32>} : memref<8x8x32xf32, #tpu.memory_space<vmem>>, vector<1x8x32xf32>,
    %c1_i32_264 = arith.constant 1 : i32
    %672 = arith.index_cast %c1_i32_264 : i32 to index
    %c0_265 = arith.constant 0 : index
    %c0_266 = arith.constant 0 : index
    %673 = vector.load %arg10[%672, %c0_265, %c0_266] : memref<8x8x128xf32, #tpu.memory_space<vmem>>, vector<1x8x128xf32>
    %674 = vector.shape_cast %673 : vector<1x8x128xf32> to vector<8x128xf32>
    %c2_267 = arith.constant 2 : index
    %c0_268 = arith.constant 0 : index
    %c0_269 = arith.constant 0 : index
    %675 = vector.load %arg4[%c2_267, %c0_268, %c0_269] : memref<3x32x128xf32, #tpu.memory_space<vmem>>, vector<1x32x128xf32>
    %676 = vector.shape_cast %675 : vector<1x32x128xf32> to vector<32x128xf32>
    %cst_270 = arith.constant dense<0.000000e+00> : vector<8x128xf32>
    %677 = tpu.matmul %667, %676, %cst_270 {dimension_numbers = #tpu.dot_dimension_numbers<[1], [0], [0], [1], [0, 0, 1, 1], [], []>, precision = #tpu.contract_precision<fp32>} : vector<8x32xf32>, vector<32x128xf32>, vector<8x128xf32> -> vector<8x128xf32>
    %678 = arith.addf %674, %677 : vector<8x128xf32>
    %679 = vector.extract_strided_slice %678 {offsets = [0, 0], sizes = [8, 32], strides = [1, 1]} : vector<8x128xf32> to vector<8x32xf32>
    %680 = arith.negf %679 : vector<8x32xf32>
    %681 = math.exp %680 : vector<8x32xf32>
    %cst_271 = arith.constant 1.000000e+00 : f32
    %682 = vector.broadcast %cst_271 : f32 to vector<8x32xf32>
    %683 = arith.addf %682, %681 : vector<8x32xf32>
    %684 = arith.divf %682, %683 : vector<8x32xf32>
    %685 = vector.extract_strided_slice %678 {offsets = [0, 32], sizes = [8, 32], strides = [1, 1]} : vector<8x128xf32> to vector<8x32xf32>
    %686 = arith.negf %685 : vector<8x32xf32>
    %687 = math.exp %686 : vector<8x32xf32>
    %cst_272 = arith.constant 1.000000e+00 : f32
    %688 = vector.broadcast %cst_272 : f32 to vector<8x32xf32>
    %689 = arith.addf %688, %687 : vector<8x32xf32>
    %690 = arith.divf %688, %689 : vector<8x32xf32>
    %691 = vector.extract_strided_slice %678 {offsets = [0, 64], sizes = [8, 32], strides = [1, 1]} : vector<8x128xf32> to vector<8x32xf32>
    %692 = math.tanh %691 : vector<8x32xf32>
    %693 = vector.extract_strided_slice %678 {offsets = [0, 96], sizes = [8, 32], strides = [1, 1]} : vector<8x128xf32> to vector<8x32xf32>
    %694 = arith.negf %693 : vector<8x32xf32>
    %695 = math.exp %694 : vector<8x32xf32>
    %cst_273 = arith.constant 1.000000e+00 : f32
    %696 = vector.broadcast %cst_273 : f32 to vector<8x32xf32>
    %697 = arith.addf %696, %695 : vector<8x32xf32>
    %698 = arith.divf %696, %697 : vector<8x32xf32>
    %699 = arith.mulf %690, %665 : vector<8x32xf32>
    %700 = arith.mulf %684, %692 : vector<8x32xf32>
    %701 = arith.addf %699, %700 : vector<8x32xf32>
    %702 = math.tanh %701 : vector<8x32xf32>
    %703 = arith.mulf %698, %702 : vector<8x32xf32>
    %704 = arith.index_cast %c1_i32_264 : i32 to index
    %c0_274 = arith.constant 0 : index
    %c0_275 = arith.constant 0 : index
    %705 = vector.load %arg6[%704, %c0_274, %c0_275] : memref<8x8x32xf32, #tpu.memory_space<vmem>>, vector<1x8x32xf32>
    %706 = vector.shape_cast %705 : vector<1x8x32xf32> to vector<8x32xf32>
    %707 = vector.shape_cast %703 : vector<8x32xf32> to vector<1x8x32xf32>
    tpu.vector_store %arg6[%704, %c0_274, %c0_275], %707 {strides = array<i32>} : memref<8x8x32xf32, #tpu.memory_space<vmem>>, vector<1x8x32xf32>,
    %c2_i32_276 = arith.constant 2 : i32
    %708 = arith.index_cast %c2_i32_276 : i32 to index
    %c0_277 = arith.constant 0 : index
    %c0_278 = arith.constant 0 : index
    %709 = vector.load %arg10[%708, %c0_277, %c0_278] : memref<8x8x128xf32, #tpu.memory_space<vmem>>, vector<1x8x128xf32>
    %710 = vector.shape_cast %709 : vector<1x8x128xf32> to vector<8x128xf32>
    %c2_279 = arith.constant 2 : index
    %c0_280 = arith.constant 0 : index
    %c0_281 = arith.constant 0 : index
    %711 = vector.load %arg4[%c2_279, %c0_280, %c0_281] : memref<3x32x128xf32, #tpu.memory_space<vmem>>, vector<1x32x128xf32>
    %712 = vector.shape_cast %711 : vector<1x32x128xf32> to vector<32x128xf32>
    %cst_282 = arith.constant dense<0.000000e+00> : vector<8x128xf32>
    %713 = tpu.matmul %703, %712, %cst_282 {dimension_numbers = #tpu.dot_dimension_numbers<[1], [0], [0], [1], [0, 0, 1, 1], [], []>, precision = #tpu.contract_precision<fp32>} : vector<8x32xf32>, vector<32x128xf32>, vector<8x128xf32> -> vector<8x128xf32>
    %714 = arith.addf %710, %713 : vector<8x128xf32>
    %715 = vector.extract_strided_slice %714 {offsets = [0, 0], sizes = [8, 32], strides = [1, 1]} : vector<8x128xf32> to vector<8x32xf32>
    %716 = arith.negf %715 : vector<8x32xf32>
    %717 = math.exp %716 : vector<8x32xf32>
    %cst_283 = arith.constant 1.000000e+00 : f32
    %718 = vector.broadcast %cst_283 : f32 to vector<8x32xf32>
    %719 = arith.addf %718, %717 : vector<8x32xf32>
    %720 = arith.divf %718, %719 : vector<8x32xf32>
    %721 = vector.extract_strided_slice %714 {offsets = [0, 32], sizes = [8, 32], strides = [1, 1]} : vector<8x128xf32> to vector<8x32xf32>
    %722 = arith.negf %721 : vector<8x32xf32>
    %723 = math.exp %722 : vector<8x32xf32>
    %cst_284 = arith.constant 1.000000e+00 : f32
    %724 = vector.broadcast %cst_284 : f32 to vector<8x32xf32>
    %725 = arith.addf %724, %723 : vector<8x32xf32>
    %726 = arith.divf %724, %725 : vector<8x32xf32>
    %727 = vector.extract_strided_slice %714 {offsets = [0, 64], sizes = [8, 32], strides = [1, 1]} : vector<8x128xf32> to vector<8x32xf32>
    %728 = math.tanh %727 : vector<8x32xf32>
    %729 = vector.extract_strided_slice %714 {offsets = [0, 96], sizes = [8, 32], strides = [1, 1]} : vector<8x128xf32> to vector<8x32xf32>
    %730 = arith.negf %729 : vector<8x32xf32>
    %731 = math.exp %730 : vector<8x32xf32>
    %cst_285 = arith.constant 1.000000e+00 : f32
    %732 = vector.broadcast %cst_285 : f32 to vector<8x32xf32>
    %733 = arith.addf %732, %731 : vector<8x32xf32>
    %734 = arith.divf %732, %733 : vector<8x32xf32>
    %735 = arith.mulf %726, %701 : vector<8x32xf32>
    %736 = arith.mulf %720, %728 : vector<8x32xf32>
    %737 = arith.addf %735, %736 : vector<8x32xf32>
    %738 = math.tanh %737 : vector<8x32xf32>
    %739 = arith.mulf %734, %738 : vector<8x32xf32>
    %740 = arith.index_cast %c2_i32_276 : i32 to index
    %c0_286 = arith.constant 0 : index
    %c0_287 = arith.constant 0 : index
    %741 = vector.load %arg6[%740, %c0_286, %c0_287] : memref<8x8x32xf32, #tpu.memory_space<vmem>>, vector<1x8x32xf32>
    %742 = vector.shape_cast %741 : vector<1x8x32xf32> to vector<8x32xf32>
    %743 = vector.shape_cast %739 : vector<8x32xf32> to vector<1x8x32xf32>
    tpu.vector_store %arg6[%740, %c0_286, %c0_287], %743 {strides = array<i32>} : memref<8x8x32xf32, #tpu.memory_space<vmem>>, vector<1x8x32xf32>,
    %c3_i32_288 = arith.constant 3 : i32
    %744 = arith.index_cast %c3_i32_288 : i32 to index
    %c0_289 = arith.constant 0 : index
    %c0_290 = arith.constant 0 : index
    %745 = vector.load %arg10[%744, %c0_289, %c0_290] : memref<8x8x128xf32, #tpu.memory_space<vmem>>, vector<1x8x128xf32>
    %746 = vector.shape_cast %745 : vector<1x8x128xf32> to vector<8x128xf32>
    %c2_291 = arith.constant 2 : index
    %c0_292 = arith.constant 0 : index
    %c0_293 = arith.constant 0 : index
    %747 = vector.load %arg4[%c2_291, %c0_292, %c0_293] : memref<3x32x128xf32, #tpu.memory_space<vmem>>, vector<1x32x128xf32>
    %748 = vector.shape_cast %747 : vector<1x32x128xf32> to vector<32x128xf32>
    %cst_294 = arith.constant dense<0.000000e+00> : vector<8x128xf32>
    %749 = tpu.matmul %739, %748, %cst_294 {dimension_numbers = #tpu.dot_dimension_numbers<[1], [0], [0], [1], [0, 0, 1, 1], [], []>, precision = #tpu.contract_precision<fp32>} : vector<8x32xf32>, vector<32x128xf32>, vector<8x128xf32> -> vector<8x128xf32>
    %750 = arith.addf %746, %749 : vector<8x128xf32>
    %751 = vector.extract_strided_slice %750 {offsets = [0, 0], sizes = [8, 32], strides = [1, 1]} : vector<8x128xf32> to vector<8x32xf32>
    %752 = arith.negf %751 : vector<8x32xf32>
    %753 = math.exp %752 : vector<8x32xf32>
    %cst_295 = arith.constant 1.000000e+00 : f32
    %754 = vector.broadcast %cst_295 : f32 to vector<8x32xf32>
    %755 = arith.addf %754, %753 : vector<8x32xf32>
    %756 = arith.divf %754, %755 : vector<8x32xf32>
    %757 = vector.extract_strided_slice %750 {offsets = [0, 32], sizes = [8, 32], strides = [1, 1]} : vector<8x128xf32> to vector<8x32xf32>
    %758 = arith.negf %757 : vector<8x32xf32>
    %759 = math.exp %758 : vector<8x32xf32>
    %cst_296 = arith.constant 1.000000e+00 : f32
    %760 = vector.broadcast %cst_296 : f32 to vector<8x32xf32>
    %761 = arith.addf %760, %759 : vector<8x32xf32>
    %762 = arith.divf %760, %761 : vector<8x32xf32>
    %763 = vector.extract_strided_slice %750 {offsets = [0, 64], sizes = [8, 32], strides = [1, 1]} : vector<8x128xf32> to vector<8x32xf32>
    %764 = math.tanh %763 : vector<8x32xf32>
    %765 = vector.extract_strided_slice %750 {offsets = [0, 96], sizes = [8, 32], strides = [1, 1]} : vector<8x128xf32> to vector<8x32xf32>
    %766 = arith.negf %765 : vector<8x32xf32>
    %767 = math.exp %766 : vector<8x32xf32>
    %cst_297 = arith.constant 1.000000e+00 : f32
    %768 = vector.broadcast %cst_297 : f32 to vector<8x32xf32>
    %769 = arith.addf %768, %767 : vector<8x32xf32>
    %770 = arith.divf %768, %769 : vector<8x32xf32>
    %771 = arith.mulf %762, %737 : vector<8x32xf32>
    %772 = arith.mulf %756, %764 : vector<8x32xf32>
    %773 = arith.addf %771, %772 : vector<8x32xf32>
    %774 = math.tanh %773 : vector<8x32xf32>
    %775 = arith.mulf %770, %774 : vector<8x32xf32>
    %776 = arith.index_cast %c3_i32_288 : i32 to index
    %c0_298 = arith.constant 0 : index
    %c0_299 = arith.constant 0 : index
    %777 = vector.load %arg6[%776, %c0_298, %c0_299] : memref<8x8x32xf32, #tpu.memory_space<vmem>>, vector<1x8x32xf32>
    %778 = vector.shape_cast %777 : vector<1x8x32xf32> to vector<8x32xf32>
    %779 = vector.shape_cast %775 : vector<8x32xf32> to vector<1x8x32xf32>
    tpu.vector_store %arg6[%776, %c0_298, %c0_299], %779 {strides = array<i32>} : memref<8x8x32xf32, #tpu.memory_space<vmem>>, vector<1x8x32xf32>,
    %c4_i32_300 = arith.constant 4 : i32
    %780 = arith.index_cast %c4_i32_300 : i32 to index
    %c0_301 = arith.constant 0 : index
    %c0_302 = arith.constant 0 : index
    %781 = vector.load %arg10[%780, %c0_301, %c0_302] : memref<8x8x128xf32, #tpu.memory_space<vmem>>, vector<1x8x128xf32>
    %782 = vector.shape_cast %781 : vector<1x8x128xf32> to vector<8x128xf32>
    %c2_303 = arith.constant 2 : index
    %c0_304 = arith.constant 0 : index
    %c0_305 = arith.constant 0 : index
    %783 = vector.load %arg4[%c2_303, %c0_304, %c0_305] : memref<3x32x128xf32, #tpu.memory_space<vmem>>, vector<1x32x128xf32>
    %784 = vector.shape_cast %783 : vector<1x32x128xf32> to vector<32x128xf32>
    %cst_306 = arith.constant dense<0.000000e+00> : vector<8x128xf32>
    %785 = tpu.matmul %775, %784, %cst_306 {dimension_numbers = #tpu.dot_dimension_numbers<[1], [0], [0], [1], [0, 0, 1, 1], [], []>, precision = #tpu.contract_precision<fp32>} : vector<8x32xf32>, vector<32x128xf32>, vector<8x128xf32> -> vector<8x128xf32>
    %786 = arith.addf %782, %785 : vector<8x128xf32>
    %787 = vector.extract_strided_slice %786 {offsets = [0, 0], sizes = [8, 32], strides = [1, 1]} : vector<8x128xf32> to vector<8x32xf32>
    %788 = arith.negf %787 : vector<8x32xf32>
    %789 = math.exp %788 : vector<8x32xf32>
    %cst_307 = arith.constant 1.000000e+00 : f32
    %790 = vector.broadcast %cst_307 : f32 to vector<8x32xf32>
    %791 = arith.addf %790, %789 : vector<8x32xf32>
    %792 = arith.divf %790, %791 : vector<8x32xf32>
    %793 = vector.extract_strided_slice %786 {offsets = [0, 32], sizes = [8, 32], strides = [1, 1]} : vector<8x128xf32> to vector<8x32xf32>
    %794 = arith.negf %793 : vector<8x32xf32>
    %795 = math.exp %794 : vector<8x32xf32>
    %cst_308 = arith.constant 1.000000e+00 : f32
    %796 = vector.broadcast %cst_308 : f32 to vector<8x32xf32>
    %797 = arith.addf %796, %795 : vector<8x32xf32>
    %798 = arith.divf %796, %797 : vector<8x32xf32>
    %799 = vector.extract_strided_slice %786 {offsets = [0, 64], sizes = [8, 32], strides = [1, 1]} : vector<8x128xf32> to vector<8x32xf32>
    %800 = math.tanh %799 : vector<8x32xf32>
    %801 = vector.extract_strided_slice %786 {offsets = [0, 96], sizes = [8, 32], strides = [1, 1]} : vector<8x128xf32> to vector<8x32xf32>
    %802 = arith.negf %801 : vector<8x32xf32>
    %803 = math.exp %802 : vector<8x32xf32>
    %cst_309 = arith.constant 1.000000e+00 : f32
    %804 = vector.broadcast %cst_309 : f32 to vector<8x32xf32>
    %805 = arith.addf %804, %803 : vector<8x32xf32>
    %806 = arith.divf %804, %805 : vector<8x32xf32>
    %807 = arith.mulf %798, %773 : vector<8x32xf32>
    %808 = arith.mulf %792, %800 : vector<8x32xf32>
    %809 = arith.addf %807, %808 : vector<8x32xf32>
    %810 = math.tanh %809 : vector<8x32xf32>
    %811 = arith.mulf %806, %810 : vector<8x32xf32>
    %812 = arith.index_cast %c4_i32_300 : i32 to index
    %c0_310 = arith.constant 0 : index
    %c0_311 = arith.constant 0 : index
    %813 = vector.load %arg6[%812, %c0_310, %c0_311] : memref<8x8x32xf32, #tpu.memory_space<vmem>>, vector<1x8x32xf32>
    %814 = vector.shape_cast %813 : vector<1x8x32xf32> to vector<8x32xf32>
    %815 = vector.shape_cast %811 : vector<8x32xf32> to vector<1x8x32xf32>
    tpu.vector_store %arg6[%812, %c0_310, %c0_311], %815 {strides = array<i32>} : memref<8x8x32xf32, #tpu.memory_space<vmem>>, vector<1x8x32xf32>,
    %c5_i32_312 = arith.constant 5 : i32
    %816 = arith.index_cast %c5_i32_312 : i32 to index
    %c0_313 = arith.constant 0 : index
    %c0_314 = arith.constant 0 : index
    %817 = vector.load %arg10[%816, %c0_313, %c0_314] : memref<8x8x128xf32, #tpu.memory_space<vmem>>, vector<1x8x128xf32>
    %818 = vector.shape_cast %817 : vector<1x8x128xf32> to vector<8x128xf32>
    %c2_315 = arith.constant 2 : index
    %c0_316 = arith.constant 0 : index
    %c0_317 = arith.constant 0 : index
    %819 = vector.load %arg4[%c2_315, %c0_316, %c0_317] : memref<3x32x128xf32, #tpu.memory_space<vmem>>, vector<1x32x128xf32>
    %820 = vector.shape_cast %819 : vector<1x32x128xf32> to vector<32x128xf32>
    %cst_318 = arith.constant dense<0.000000e+00> : vector<8x128xf32>
    %821 = tpu.matmul %811, %820, %cst_318 {dimension_numbers = #tpu.dot_dimension_numbers<[1], [0], [0], [1], [0, 0, 1, 1], [], []>, precision = #tpu.contract_precision<fp32>} : vector<8x32xf32>, vector<32x128xf32>, vector<8x128xf32> -> vector<8x128xf32>
    %822 = arith.addf %818, %821 : vector<8x128xf32>
    %823 = vector.extract_strided_slice %822 {offsets = [0, 0], sizes = [8, 32], strides = [1, 1]} : vector<8x128xf32> to vector<8x32xf32>
    %824 = arith.negf %823 : vector<8x32xf32>
    %825 = math.exp %824 : vector<8x32xf32>
    %cst_319 = arith.constant 1.000000e+00 : f32
    %826 = vector.broadcast %cst_319 : f32 to vector<8x32xf32>
    %827 = arith.addf %826, %825 : vector<8x32xf32>
    %828 = arith.divf %826, %827 : vector<8x32xf32>
    %829 = vector.extract_strided_slice %822 {offsets = [0, 32], sizes = [8, 32], strides = [1, 1]} : vector<8x128xf32> to vector<8x32xf32>
    %830 = arith.negf %829 : vector<8x32xf32>
    %831 = math.exp %830 : vector<8x32xf32>
    %cst_320 = arith.constant 1.000000e+00 : f32
    %832 = vector.broadcast %cst_320 : f32 to vector<8x32xf32>
    %833 = arith.addf %832, %831 : vector<8x32xf32>
    %834 = arith.divf %832, %833 : vector<8x32xf32>
    %835 = vector.extract_strided_slice %822 {offsets = [0, 64], sizes = [8, 32], strides = [1, 1]} : vector<8x128xf32> to vector<8x32xf32>
    %836 = math.tanh %835 : vector<8x32xf32>
    %837 = vector.extract_strided_slice %822 {offsets = [0, 96], sizes = [8, 32], strides = [1, 1]} : vector<8x128xf32> to vector<8x32xf32>
    %838 = arith.negf %837 : vector<8x32xf32>
    %839 = math.exp %838 : vector<8x32xf32>
    %cst_321 = arith.constant 1.000000e+00 : f32
    %840 = vector.broadcast %cst_321 : f32 to vector<8x32xf32>
    %841 = arith.addf %840, %839 : vector<8x32xf32>
    %842 = arith.divf %840, %841 : vector<8x32xf32>
    %843 = arith.mulf %834, %809 : vector<8x32xf32>
    %844 = arith.mulf %828, %836 : vector<8x32xf32>
    %845 = arith.addf %843, %844 : vector<8x32xf32>
    %846 = math.tanh %845 : vector<8x32xf32>
    %847 = arith.mulf %842, %846 : vector<8x32xf32>
    %848 = arith.index_cast %c5_i32_312 : i32 to index
    %c0_322 = arith.constant 0 : index
    %c0_323 = arith.constant 0 : index
    %849 = vector.load %arg6[%848, %c0_322, %c0_323] : memref<8x8x32xf32, #tpu.memory_space<vmem>>, vector<1x8x32xf32>
    %850 = vector.shape_cast %849 : vector<1x8x32xf32> to vector<8x32xf32>
    %851 = vector.shape_cast %847 : vector<8x32xf32> to vector<1x8x32xf32>
    tpu.vector_store %arg6[%848, %c0_322, %c0_323], %851 {strides = array<i32>} : memref<8x8x32xf32, #tpu.memory_space<vmem>>, vector<1x8x32xf32>,
    %c6_i32_324 = arith.constant 6 : i32
    %852 = arith.index_cast %c6_i32_324 : i32 to index
    %c0_325 = arith.constant 0 : index
    %c0_326 = arith.constant 0 : index
    %853 = vector.load %arg10[%852, %c0_325, %c0_326] : memref<8x8x128xf32, #tpu.memory_space<vmem>>, vector<1x8x128xf32>
    %854 = vector.shape_cast %853 : vector<1x8x128xf32> to vector<8x128xf32>
    %c2_327 = arith.constant 2 : index
    %c0_328 = arith.constant 0 : index
    %c0_329 = arith.constant 0 : index
    %855 = vector.load %arg4[%c2_327, %c0_328, %c0_329] : memref<3x32x128xf32, #tpu.memory_space<vmem>>, vector<1x32x128xf32>
    %856 = vector.shape_cast %855 : vector<1x32x128xf32> to vector<32x128xf32>
    %cst_330 = arith.constant dense<0.000000e+00> : vector<8x128xf32>
    %857 = tpu.matmul %847, %856, %cst_330 {dimension_numbers = #tpu.dot_dimension_numbers<[1], [0], [0], [1], [0, 0, 1, 1], [], []>, precision = #tpu.contract_precision<fp32>} : vector<8x32xf32>, vector<32x128xf32>, vector<8x128xf32> -> vector<8x128xf32>
    %858 = arith.addf %854, %857 : vector<8x128xf32>
    %859 = vector.extract_strided_slice %858 {offsets = [0, 0], sizes = [8, 32], strides = [1, 1]} : vector<8x128xf32> to vector<8x32xf32>
    %860 = arith.negf %859 : vector<8x32xf32>
    %861 = math.exp %860 : vector<8x32xf32>
    %cst_331 = arith.constant 1.000000e+00 : f32
    %862 = vector.broadcast %cst_331 : f32 to vector<8x32xf32>
    %863 = arith.addf %862, %861 : vector<8x32xf32>
    %864 = arith.divf %862, %863 : vector<8x32xf32>
    %865 = vector.extract_strided_slice %858 {offsets = [0, 32], sizes = [8, 32], strides = [1, 1]} : vector<8x128xf32> to vector<8x32xf32>
    %866 = arith.negf %865 : vector<8x32xf32>
    %867 = math.exp %866 : vector<8x32xf32>
    %cst_332 = arith.constant 1.000000e+00 : f32
    %868 = vector.broadcast %cst_332 : f32 to vector<8x32xf32>
    %869 = arith.addf %868, %867 : vector<8x32xf32>
    %870 = arith.divf %868, %869 : vector<8x32xf32>
    %871 = vector.extract_strided_slice %858 {offsets = [0, 64], sizes = [8, 32], strides = [1, 1]} : vector<8x128xf32> to vector<8x32xf32>
    %872 = math.tanh %871 : vector<8x32xf32>
    %873 = vector.extract_strided_slice %858 {offsets = [0, 96], sizes = [8, 32], strides = [1, 1]} : vector<8x128xf32> to vector<8x32xf32>
    %874 = arith.negf %873 : vector<8x32xf32>
    %875 = math.exp %874 : vector<8x32xf32>
    %cst_333 = arith.constant 1.000000e+00 : f32
    %876 = vector.broadcast %cst_333 : f32 to vector<8x32xf32>
    %877 = arith.addf %876, %875 : vector<8x32xf32>
    %878 = arith.divf %876, %877 : vector<8x32xf32>
    %879 = arith.mulf %870, %845 : vector<8x32xf32>
    %880 = arith.mulf %864, %872 : vector<8x32xf32>
    %881 = arith.addf %879, %880 : vector<8x32xf32>
    %882 = math.tanh %881 : vector<8x32xf32>
    %883 = arith.mulf %878, %882 : vector<8x32xf32>
    %884 = arith.index_cast %c6_i32_324 : i32 to index
    %c0_334 = arith.constant 0 : index
    %c0_335 = arith.constant 0 : index
    %885 = vector.load %arg6[%884, %c0_334, %c0_335] : memref<8x8x32xf32, #tpu.memory_space<vmem>>, vector<1x8x32xf32>
    %886 = vector.shape_cast %885 : vector<1x8x32xf32> to vector<8x32xf32>
    %887 = vector.shape_cast %883 : vector<8x32xf32> to vector<1x8x32xf32>
    tpu.vector_store %arg6[%884, %c0_334, %c0_335], %887 {strides = array<i32>} : memref<8x8x32xf32, #tpu.memory_space<vmem>>, vector<1x8x32xf32>,
    %c7_i32_336 = arith.constant 7 : i32
    %888 = arith.index_cast %c7_i32_336 : i32 to index
    %c0_337 = arith.constant 0 : index
    %c0_338 = arith.constant 0 : index
    %889 = vector.load %arg10[%888, %c0_337, %c0_338] : memref<8x8x128xf32, #tpu.memory_space<vmem>>, vector<1x8x128xf32>
    %890 = vector.shape_cast %889 : vector<1x8x128xf32> to vector<8x128xf32>
    %c2_339 = arith.constant 2 : index
    %c0_340 = arith.constant 0 : index
    %c0_341 = arith.constant 0 : index
    %891 = vector.load %arg4[%c2_339, %c0_340, %c0_341] : memref<3x32x128xf32, #tpu.memory_space<vmem>>, vector<1x32x128xf32>
    %892 = vector.shape_cast %891 : vector<1x32x128xf32> to vector<32x128xf32>
    %cst_342 = arith.constant dense<0.000000e+00> : vector<8x128xf32>
    %893 = tpu.matmul %883, %892, %cst_342 {dimension_numbers = #tpu.dot_dimension_numbers<[1], [0], [0], [1], [0, 0, 1, 1], [], []>, precision = #tpu.contract_precision<fp32>} : vector<8x32xf32>, vector<32x128xf32>, vector<8x128xf32> -> vector<8x128xf32>
    %894 = arith.addf %890, %893 : vector<8x128xf32>
    %895 = vector.extract_strided_slice %894 {offsets = [0, 0], sizes = [8, 32], strides = [1, 1]} : vector<8x128xf32> to vector<8x32xf32>
    %896 = arith.negf %895 : vector<8x32xf32>
    %897 = math.exp %896 : vector<8x32xf32>
    %cst_343 = arith.constant 1.000000e+00 : f32
    %898 = vector.broadcast %cst_343 : f32 to vector<8x32xf32>
    %899 = arith.addf %898, %897 : vector<8x32xf32>
    %900 = arith.divf %898, %899 : vector<8x32xf32>
    %901 = vector.extract_strided_slice %894 {offsets = [0, 32], sizes = [8, 32], strides = [1, 1]} : vector<8x128xf32> to vector<8x32xf32>
    %902 = arith.negf %901 : vector<8x32xf32>
    %903 = math.exp %902 : vector<8x32xf32>
    %cst_344 = arith.constant 1.000000e+00 : f32
    %904 = vector.broadcast %cst_344 : f32 to vector<8x32xf32>
    %905 = arith.addf %904, %903 : vector<8x32xf32>
    %906 = arith.divf %904, %905 : vector<8x32xf32>
    %907 = vector.extract_strided_slice %894 {offsets = [0, 64], sizes = [8, 32], strides = [1, 1]} : vector<8x128xf32> to vector<8x32xf32>
    %908 = math.tanh %907 : vector<8x32xf32>
    %909 = vector.extract_strided_slice %894 {offsets = [0, 96], sizes = [8, 32], strides = [1, 1]} : vector<8x128xf32> to vector<8x32xf32>
    %910 = arith.negf %909 : vector<8x32xf32>
    %911 = math.exp %910 : vector<8x32xf32>
    %cst_345 = arith.constant 1.000000e+00 : f32
    %912 = vector.broadcast %cst_345 : f32 to vector<8x32xf32>
    %913 = arith.addf %912, %911 : vector<8x32xf32>
    %914 = arith.divf %912, %913 : vector<8x32xf32>
    %915 = arith.mulf %906, %881 : vector<8x32xf32>
    %916 = arith.mulf %900, %908 : vector<8x32xf32>
    %917 = arith.addf %915, %916 : vector<8x32xf32>
    %918 = math.tanh %917 : vector<8x32xf32>
    %919 = arith.mulf %914, %918 : vector<8x32xf32>
    %920 = arith.index_cast %c7_i32_336 : i32 to index
    %c0_346 = arith.constant 0 : index
    %c0_347 = arith.constant 0 : index
    %921 = vector.load %arg6[%920, %c0_346, %c0_347] : memref<8x8x32xf32, #tpu.memory_space<vmem>>, vector<1x8x32xf32>
    %922 = vector.shape_cast %921 : vector<1x8x32xf32> to vector<8x32xf32>
    %923 = vector.shape_cast %919 : vector<8x32xf32> to vector<1x8x32xf32>
    tpu.vector_store %arg6[%920, %c0_346, %c0_347], %923 {strides = array<i32>} : memref<8x8x32xf32, #tpu.memory_space<vmem>>, vector<1x8x32xf32>,
    %c8_i32_348 = arith.constant 8 : i32
    %c2_349 = arith.constant 2 : index
    %c0_350 = arith.constant 0 : index
    %c0_351 = arith.constant 0 : index
    %924 = vector.load %arg7[%c2_349, %c0_350, %c0_351] : memref<3x8x32xf32, #tpu.memory_space<vmem>>, vector<1x8x32xf32>
    %925 = vector.shape_cast %924 : vector<1x8x32xf32> to vector<8x32xf32>
    %926 = vector.shape_cast %919 : vector<8x32xf32> to vector<1x8x32xf32>
    tpu.vector_store %arg7[%c2_349, %c0_350, %c0_351], %926 {strides = array<i32>} : memref<3x8x32xf32, #tpu.memory_space<vmem>>, vector<1x8x32xf32>,
    %c2_352 = arith.constant 2 : index
    %c0_353 = arith.constant 0 : index
    %c0_354 = arith.constant 0 : index
    %927 = vector.load %arg8[%c2_352, %c0_353, %c0_354] : memref<3x8x32xf32, #tpu.memory_space<vmem>>, vector<1x8x32xf32>
    %928 = vector.shape_cast %927 : vector<1x8x32xf32> to vector<8x32xf32>
    %929 = vector.shape_cast %917 : vector<8x32xf32> to vector<1x8x32xf32>
    tpu.vector_store %arg8[%c2_352, %c0_353, %c0_354], %929 {strides = array<i32>} : memref<3x8x32xf32, #tpu.memory_space<vmem>>, vector<1x8x32xf32>,
    return
  }
  func.func @transform_0(%arg0: i32, %arg1: i32) -> (i32, i32, i32) {
    %c0_i32 = arith.constant 0 : i32
    %c0_i32_0 = arith.constant 0 : i32
    return %arg1, %arg0, %c0_i32 : i32, i32, i32
  }
  func.func @transform_1(%arg0: i32, %arg1: i32) -> (i32, i32, i32) {
    %c0_i32 = arith.constant 0 : i32
    %c0_i32_0 = arith.constant 0 : i32
    %c0_i32_1 = arith.constant 0 : i32
    %c0_i32_2 = arith.constant 0 : i32
    return %c0_i32, %c0_i32_0, %c0_i32_1 : i32, i32, i32
  }
  func.func @transform_2(%arg0: i32, %arg1: i32) -> (i32, i32, i32) {
    %c0_i32 = arith.constant 0 : i32
    %c0_i32_0 = arith.constant 0 : i32
    %c0_i32_1 = arith.constant 0 : i32
    %c0_i32_2 = arith.constant 0 : i32
    return %c0_i32, %c0_i32_0, %c0_i32_1 : i32, i32, i32
  }
  func.func @transform_3(%arg0: i32, %arg1: i32) -> (i32, i32, i32) {
    %c0_i32 = arith.constant 0 : i32
    %c0_i32_0 = arith.constant 0 : i32
    %c0_i32_1 = arith.constant 0 : i32
    %c0_i32_2 = arith.constant 0 : i32
    return %c0_i32, %c0_i32_0, %c0_i32_1 : i32, i32, i32
  }
  func.func @transform_4(%arg0: i32, %arg1: i32) -> (i32, i32, i32) {
    %c0_i32 = arith.constant 0 : i32
    %c0_i32_0 = arith.constant 0 : i32
    return %arg1, %arg0, %c0_i32 : i32, i32, i32
  }
}

</mosaic_0001>

<llo_original>
// kernel: language_model_forward.3
$region0: #{language_model_forward.3}
  #allocation0 [shape = 'u32[]', space=smem, size = 0x4, offset = 0x4, fixed_abs, tag = 'smem constant byte address 0x4 - core index']
  #allocation1 [shape = 'u32[72,128]{1,0:T(1,128)}', space=vmem, size = 0x9000, scoped, tag = 'internal scratch']
  %s0 = inlined_call_operand.vmem [shape: f32[16,32], index: 0, kind: input, shape index: {}]
  %s1 = inlined_call_operand.vmem [shape: f32[32,128], index: 1, kind: input, shape index: {}]
  %s2 = inlined_call_operand.vmem [shape: f32[1,128], index: 2, kind: input, shape index: {}]
  %s3 = inlined_call_operand.vmem [shape: f32[16,128], index: 3, kind: output, shape index: {}]
  %s4 = sld [smem:[#allocation0]]
  $region22: #{language_model_forward.3} parent=0
    _
  %s6 = ssub.s32 1, %s4
  %s7 = scalar_select 0, %s6, %s4
  // Predicated region
  $region2: #{language_model_forward.3} parent=0 // pred_check
    _
  $region3: #{language_model_forward.3} parent=0 // pred_check_branch
    %9 = sbr.rel (0) target = $region5
  $region4: #{language_model_forward.3} parent=0 // pred_region
    _
  $region5: #{language_model_forward.3} parent=0 // pred_fallthru
    _
  // Predicated region
  $region6: #{language_model_forward.3} parent=0 // pred_check
    _
  $region7: #{language_model_forward.3} parent=0 // pred_check_branch
    %11 = sbr.rel (0) target = $region9
  $region8: #{language_model_forward.3} parent=0 // pred_region
    _
  $region9: #{language_model_forward.3} parent=0 // pred_fallthru
    _
  // Predicated region
  $region10: #{language_model_forward.3} parent=0 // pred_check
    _
  $region11: #{language_model_forward.3} parent=0 // pred_check_branch
    %13 = sbr.rel (0) target = $region13
  $region12: #{language_model_forward.3} parent=0 // pred_region
    _
  $region13: #{language_model_forward.3} parent=0 // pred_fallthru
    _
  %v14 = vld [vmem:[%s0] sm:$0xff]
  %v15 = vld [vmem:[%s0 + $0x8] sm:$0xff]
  %v16 = vld [vmem:[%s1] sm:$0xff]
  %v17 = vld [vmem:[%s1 + $0x8] sm:$0xff]
  %v18 = vld [vmem:[%s1 + $0x10] sm:$0xff]
  %v19 = vld [vmem:[%s1 + $0x18] sm:$0xff]
  %v20 = vld [vmem:[%s2] sm:$0x1]
  %v22 = vperm.slane %v20, 0
  %vm24 = vcmask 261120
  %v26 = vsel %vm24, %v14, 0
  %v29 = vsel %vm24, %v15, 0
  %31 = vmatpush.msra.mxu0 0.0
  %32 = vmatpush.msra.mxu0 0.0
  %33 = vmatpush.msra.mxu0 0.0
  %34 = vmatpush.msra.mxu0 0.0
  %35 = vmatpush.msra.mxu0 0.0
  %36 = vmatpush.msra.mxu0 0.0
  %37 = vmatpush.msra.mxu0 0.0
  %38 = vmatpush.msra.mxu0 0.0
  %39 = vmatpush.msra.mxu0 0.0
  %40 = vmatpush.msra.mxu0 0.0
  %41 = vmatpush.msra.mxu0 0.0
  %42 = vmatpush.msra.mxu0 0.0
  %v43 = vand.u32 %v19, 4294901760
  %44 = vmatpush.msra.mxu0 %v43
  %v45 = vand.u32 %v18, 4294901760
  %46 = vmatpush.msra.mxu0 %v45
  %v47 = vand.u32 %v17, 4294901760
  %48 = vmatpush.msra.mxu0 %v47
  %v49 = vand.u32 %v16, 4294901760
  %50 = vmatpush.msra.mxu0 %v49
  %v51 = vand.u32 %v26, 4294901760
  %v52 = vsub.f32 %v26, %v51
  %v53 = vand.u32 %v52, 4294901760
  %v54 = vsub.f32 %v52, %v53
  %v55 = vand.u32 %v54, 4294901760
  %56 = vmatmul.f32.gmra.mxu0 %v55
  %v57 = vpop.f32.mrf.mxu0
  %v58 = vadd.f32 %v22, %v57
  %v59 = vand.u32 %v29, 4294901760
  %v60 = vsub.f32 %v29, %v59
  %v61 = vand.u32 %v60, 4294901760
  %v62 = vsub.f32 %v60, %v61
  %v63 = vand.u32 %v62, 4294901760
  %64 = vmatmul.f32.gmra.mxu0 %v63
  %v65 = vpop.f32.mrf.mxu0
  %v66 = vadd.f32 %v22, %v65
  %67 = vdwg.mxu0
  %68 = vmatpush.msra.mxu0 0.0
  %69 = vmatpush.msra.mxu0 0.0
  %70 = vmatpush.msra.mxu0 0.0
  %71 = vmatpush.msra.mxu0 0.0
  %72 = vmatpush.msra.mxu0 0.0
  %73 = vmatpush.msra.mxu0 0.0
  %74 = vmatpush.msra.mxu0 0.0
  %75 = vmatpush.msra.mxu0 0.0
  %76 = vmatpush.msra.mxu0 0.0
  %77 = vmatpush.msra.mxu0 0.0
  %78 = vmatpush.msra.mxu0 0.0
  %79 = vmatpush.msra.mxu0 0.0
  %v80 = vand.u32 %v19, 4294901760
  %v81 = vsub.f32 %v19, %v80
  %v82 = vand.u32 %v81, 4294901760
  %v83 = vsub.f32 %v81, %v82
  %v84 = vand.u32 %v83, 4294901760
  %85 = vmatpush.msra.mxu0 %v84
  %v86 = vand.u32 %v18, 4294901760
  %v87 = vsub.f32 %v18, %v86
  %v88 = vand.u32 %v87, 4294901760
  %v89 = vsub.f32 %v87, %v88
  %v90 = vand.u32 %v89, 4294901760
  %91 = vmatpush.msra.mxu0 %v90
  %v92 = vand.u32 %v17, 4294901760
  %v93 = vsub.f32 %v17, %v92
  %v94 = vand.u32 %v93, 4294901760
  %v95 = vsub.f32 %v93, %v94
  %v96 = vand.u32 %v95, 4294901760
  %97 = vmatpush.msra.mxu0 %v96
  %v98 = vand.u32 %v16, 4294901760
  %v99 = vsub.f32 %v16, %v98
  %v100 = vand.u32 %v99, 4294901760
  %v101 = vsub.f32 %v99, %v100
  %v102 = vand.u32 %v101, 4294901760
  %103 = vmatpush.msra.mxu0 %v102
  %v104 = vand.u32 %v26, 4294901760
  %105 = vmatmul.f32.gmra.mxu0 %v104
  %v106 = vpop.f32.mrf.mxu0
  %v107 = vadd.f32 %v58, %v106
  %v108 = vand.u32 %v29, 4294901760
  %109 = vmatmul.f32.gmra.mxu0 %v108
  %v110 = vpop.f32.mrf.mxu0
  %v111 = vadd.f32 %v66, %v110
  %112 = vdwg.mxu0
  %113 = vmatpush.msra.mxu0 0.0
  %114 = vmatpush.msra.mxu0 0.0
  %115 = vmatpush.msra.mxu0 0.0
  %116 = vmatpush.msra.mxu0 0.0
  %117 = vmatpush.msra.mxu0 0.0
  %118 = vmatpush.msra.mxu0 0.0
  %119 = vmatpush.msra.mxu0 0.0
  %120 = vmatpush.msra.mxu0 0.0
  %121 = vmatpush.msra.mxu0 0.0
  %122 = vmatpush.msra.mxu0 0.0
  %123 = vmatpush.msra.mxu0 0.0
  %124 = vmatpush.msra.mxu0 0.0
  %v125 = vand.u32 %v19, 4294901760
  %v126 = vsub.f32 %v19, %v125
  %127 = vmatpush.msra.mxu0 %v126
  %v128 = vand.u32 %v18, 4294901760
  %v129 = vsub.f32 %v18, %v128
  %130 = vmatpush.msra.mxu0 %v129
  %v131 = vand.u32 %v17, 4294901760
  %v132 = vsub.f32 %v17, %v131
  %133 = vmatpush.msra.mxu0 %v132
  %v134 = vand.u32 %v16, 4294901760
  %v135 = vsub.f32 %v16, %v134
  %136 = vmatpush.msra.mxu0 %v135
  %v137 = vand.u32 %v26, 4294901760
  %v138 = vsub.f32 %v26, %v137
  %139 = vmatmul.f32.gmra.mxu0 %v138
  %v140 = vpop.f32.mrf.mxu0
  %v141 = vadd.f32 %v107, %v140
  %v142 = vand.u32 %v29, 4294901760
  %v143 = vsub.f32 %v29, %v142
  %144 = vmatmul.f32.gmra.mxu0 %v143
  %v145 = vpop.f32.mrf.mxu0
  %v146 = vadd.f32 %v111, %v145
  %147 = vdwg.mxu0
  %148 = vmatpush.msra.mxu0 0.0
  %149 = vmatpush.msra.mxu0 0.0
  %150 = vmatpush.msra.mxu0 0.0
  %151 = vmatpush.msra.mxu0 0.0
  %152 = vmatpush.msra.mxu0 0.0
  %153 = vmatpush.msra.mxu0 0.0
  %154 = vmatpush.msra.mxu0 0.0
  %155 = vmatpush.msra.mxu0 0.0
  %156 = vmatpush.msra.mxu0 0.0
  %157 = vmatpush.msra.mxu0 0.0
  %158 = vmatpush.msra.mxu0 0.0
  %159 = vmatpush.msra.mxu0 0.0
  %v160 = vand.u32 %v19, 4294901760
  %161 = vmatpush.msra.mxu0 %v160
  %v162 = vand.u32 %v18, 4294901760
  %163 = vmatpush.msra.mxu0 %v162
  %v164 = vand.u32 %v17, 4294901760
  %165 = vmatpush.msra.mxu0 %v164
  %v166 = vand.u32 %v16, 4294901760
  %167 = vmatpush.msra.mxu0 %v166
  %v168 = vand.u32 %v26, 4294901760
  %v169 = vsub.f32 %v26, %v168
  %v170 = vand.u32 %v169, 4294901760
  %171 = vmatmul.f32.gmra.mxu0 %v170
  %v172 = vpop.f32.mrf.mxu0
  %v173 = vadd.f32 %v141, %v172
  %v174 = vand.u32 %v29, 4294901760
  %v175 = vsub.f32 %v29, %v174
  %v176 = vand.u32 %v175, 4294901760
  %177 = vmatmul.f32.gmra.mxu0 %v176
  %v178 = vpop.f32.mrf.mxu0
  %v179 = vadd.f32 %v146, %v178
  %180 = vdwg.mxu0
  %181 = vmatpush.msra.mxu0 0.0
  %182 = vmatpush.msra.mxu0 0.0
  %183 = vmatpush.msra.mxu0 0.0
  %184 = vmatpush.msra.mxu0 0.0
  %185 = vmatpush.msra.mxu0 0.0
  %186 = vmatpush.msra.mxu0 0.0
  %187 = vmatpush.msra.mxu0 0.0
  %188 = vmatpush.msra.mxu0 0.0
  %189 = vmatpush.msra.mxu0 0.0
  %190 = vmatpush.msra.mxu0 0.0
  %191 = vmatpush.msra.mxu0 0.0
  %192 = vmatpush.msra.mxu0 0.0
  %v193 = vand.u32 %v19, 4294901760
  %v194 = vsub.f32 %v19, %v193
  %v195 = vand.u32 %v194, 4294901760
  %196 = vmatpush.msra.mxu0 %v195
  %v197 = vand.u32 %v18, 4294901760
  %v198 = vsub.f32 %v18, %v197
  %v199 = vand.u32 %v198, 4294901760
  %200 = vmatpush.msra.mxu0 %v199
  %v201 = vand.u32 %v17, 4294901760
  %v202 = vsub.f32 %v17, %v201
  %v203 = vand.u32 %v202, 4294901760
  %204 = vmatpush.msra.mxu0 %v203
  %v205 = vand.u32 %v16, 4294901760
  %v206 = vsub.f32 %v16, %v205
  %v207 = vand.u32 %v206, 4294901760
  %208 = vmatpush.msra.mxu0 %v207
  %v209 = vand.u32 %v26, 4294901760
  %210 = vmatmul.f32.gmra.mxu0 %v209
  %v211 = vpop.f32.mrf.mxu0
  %v212 = vadd.f32 %v173, %v211
  %v213 = vand.u32 %v29, 4294901760
  %214 = vmatmul.f32.gmra.mxu0 %v213
  %v215 = vpop.f32.mrf.mxu0
  %v216 = vadd.f32 %v179, %v215
  %217 = vdwg.mxu0
  %218 = vmatpush.msra.mxu0 0.0
  %219 = vmatpush.msra.mxu0 0.0
  %220 = vmatpush.msra.mxu0 0.0
  %221 = vmatpush.msra.mxu0 0.0
  %222 = vmatpush.msra.mxu0 0.0
  %223 = vmatpush.msra.mxu0 0.0
  %224 = vmatpush.msra.mxu0 0.0
  %225 = vmatpush.msra.mxu0 0.0
  %226 = vmatpush.msra.mxu0 0.0
  %227 = vmatpush.msra.mxu0 0.0
  %228 = vmatpush.msra.mxu0 0.0
  %229 = vmatpush.msra.mxu0 0.0
  %v230 = vand.u32 %v19, 4294901760
  %231 = vmatpush.msra.mxu0 %v230
  %v232 = vand.u32 %v18, 4294901760
  %233 = vmatpush.msra.mxu0 %v232
  %v234 = vand.u32 %v17, 4294901760
  %235 = vmatpush.msra.mxu0 %v234
  %v236 = vand.u32 %v16, 4294901760
  %237 = vmatpush.msra.mxu0 %v236
  %v238 = vand.u32 %v26, 4294901760
  %239 = vmatmul.f32.gmra.mxu0 %v238
  %v240 = vpop.f32.mrf.mxu0
  %v241 = vadd.f32 %v212, %v240
  %v242 = vand.u32 %v29, 4294901760
  %243 = vmatmul.f32.gmra.mxu0 %v242
  %v244 = vpop.f32.mrf.mxu0
  %v245 = vadd.f32 %v216, %v244
  %246 = vdwg.mxu0
  %247 = vst [vmem:[%s3] sm:$0xff] %v241
  %248 = vst [vmem:[%s3 + $0x8] sm:$0xff] %v245
  // Predicated region
  $region14: #{language_model_forward.3} parent=0 // pred_check
    _
  $region15: #{language_model_forward.3} parent=0 // pred_check_branch
    %250 = sbr.rel (0) target = $region17
  $region16: #{language_model_forward.3} parent=0 // pred_region
    _
  $region17: #{language_model_forward.3} parent=0 // pred_fallthru
    _
  // Predicated region
  $region18: #{language_model_forward.3} parent=0 // pred_check
    _
  $region19: #{language_model_forward.3} parent=0 // pred_check_branch
    %252 = sbr.rel (0) target = $region21
  $region20: #{language_model_forward.3} parent=0 // pred_region
    _
  $region21: #{language_model_forward.3} parent=0 // pred_fallthru
    _

// kernel: language_model_forward.2
$region0: #{language_model_forward.2}
  #allocation0 [shape = 'u32[]', space=smem, size = 0x4, offset = 0x4, fixed_abs, tag = 'smem constant byte address 0x4 - core index']
  #allocation1 [shape = 'u32[72,128]{1,0:T(1,128)}', space=vmem, size = 0x9000, scoped, tag = 'internal scratch']
  #allocation2 [shape = 'f32[3,8,32]{2,1,0:T(8,128)}', space=vmem, size = 0x3000, scoped, tag = 'scratch operand']
  #allocation3 [shape = 'f32[3,8,32]{2,1,0:T(8,128)}', space=vmem, size = 0x3000, scoped, tag = 'scratch operand']
  #allocation4 [shape = 'f32[8,8,32]{2,1,0:T(8,128)}', space=vmem, size = 0x8000, scoped, tag = 'scratch operand']
  #allocation5 [shape = 'f32[8,8,128]{2,1,0:T(8,128)}', space=vmem, size = 0x8000, scoped, tag = 'scratch operand']
  %s0 = inlined_call_operand.vmem [shape: f32[8,8,32], index: 0, kind: input, shape index: {}]
  %s1 = inlined_call_operand.vmem [shape: f32[3,32,128], index: 1, kind: input, shape index: {}]
  %s2 = inlined_call_operand.vmem [shape: f32[3,32,128], index: 2, kind: input, shape index: {}]
  %s3 = inlined_call_operand.vmem [shape: f32[3,1,128], index: 3, kind: input, shape index: {}]
  %s4 = inlined_call_operand.vmem [shape: f32[8,8,32], index: 4, kind: output, shape index: {}]
  %s5 = sld [smem:[#allocation0]]
  $region30: #{language_model_forward.2} parent=0
    _
  %s7 = ssub.s32 1, %s5
  %s8 = scalar_select 0, %s7, %s5
  // Predicated region
  $region2: #{language_model_forward.2} parent=0 // pred_check
    _
  $region3: #{language_model_forward.2} parent=0 // pred_check_branch
    %10 = sbr.rel (0) target = $region5
  $region4: #{language_model_forward.2} parent=0 // pred_region
    _
  $region5: #{language_model_forward.2} parent=0 // pred_fallthru
    _
  // Predicated region
  $region6: #{language_model_forward.2} parent=0 // pred_check
    _
  $region7: #{language_model_forward.2} parent=0 // pred_check_branch
    %12 = sbr.rel (0) target = $region9
  $region8: #{language_model_forward.2} parent=0 // pred_region
    _
  $region9: #{language_model_forward.2} parent=0 // pred_fallthru
    _
  // Predicated region
  $region10: #{language_model_forward.2} parent=0 // pred_check
    _
  $region11: #{language_model_forward.2} parent=0 // pred_check_branch
    %14 = sbr.rel (0) target = $region13
  $region12: #{language_model_forward.2} parent=0 // pred_region
    _
  $region13: #{language_model_forward.2} parent=0 // pred_fallthru
    _
  // Predicated region
  $region14: #{language_model_forward.2} parent=0 // pred_check
    _
  $region15: #{language_model_forward.2} parent=0 // pred_check_branch
    %16 = sbr.rel (0) target = $region17
  $region16: #{language_model_forward.2} parent=0 // pred_region
    _
  $region17: #{language_model_forward.2} parent=0 // pred_fallthru
    _
  %p17 = scmp.eq.s32.totalorder 0, 0
  // Predicated region
  $region18: #{language_model_forward.2} parent=0 // pred_check
    %p18 = pneg %p17
  $region19: #{language_model_forward.2} parent=0 // pred_check_branch
    %20 = sbr.rel (%p18) target = $region21
  $region20: #{language_model_forward.2} parent=0 // pred_region
    %vm21 = vcmask 261120
    %22 = vst.msk [vmem:[#allocation2] sm:$0xff] %vm21, 0.0
    %23 = vst.msk [vmem:[#allocation2 + $0x8] sm:$0xff] %vm21, 0.0
    %24 = vst.msk [vmem:[#allocation2 + $0x10] sm:$0xff] %vm21, 0.0
    %25 = vst.msk [vmem:[#allocation3] sm:$0xff] %vm21, 0.0
    %26 = vst.msk [vmem:[#allocation3 + $0x8] sm:$0xff] %vm21, 0.0
    %27 = vst.msk [vmem:[#allocation3 + $0x10] sm:$0xff] %vm21, 0.0
  $region21: #{language_model_forward.2} parent=0 // pred_fallthru
    _
  %v28 = vld [vmem:[%s0] sm:$0xff]
  %v29 = vld [vmem:[%s0 + $0x8] sm:$0xff]
  %v30 = vld [vmem:[%s0 + $0x10] sm:$0xff]
  %v31 = vld [vmem:[%s0 + $0x18] sm:$0xff]
  %v32 = vld [vmem:[%s0 + $0x20] sm:$0xff]
  %v33 = vld [vmem:[%s0 + $0x28] sm:$0xff]
  %v34 = vld [vmem:[%s0 + $0x30] sm:$0xff]
  %v35 = vld [vmem:[%s0 + $0x38] sm:$0xff]
  %v36 = vld [vmem:[%s1] sm:$0xff]
  %v37 = vld [vmem:[%s1 + $0x8] sm:$0xff]
  %v38 = vld [vmem:[%s1 + $0x10] sm:$0xff]
  %v39 = vld [vmem:[%s1 + $0x18] sm:$0xff]
  %v40 = vld [vmem:[%s3] sm:$0x1]
  %v42 = vperm.slane %v40, 0
  %vm44 = vcmask 261120
  %v46 = vsel %vm44, %v28, 0
  %v49 = vsel %vm44, %v29, 0
  %v52 = vsel %vm44, %v30, 0
  %v55 = vsel %vm44, %v31, 0
  %v58 = vsel %vm44, %v32, 0
  %v61 = vsel %vm44, %v33, 0
  %v64 = vsel %vm44, %v34, 0
  %v67 = vsel %vm44, %v35, 0
  %69 = vmatpush.msra.mxu0 0.0
  %70 = vmatpush.msra.mxu0 0.0
  %71 = vmatpush.msra.mxu0 0.0
  %72 = vmatpush.msra.mxu0 0.0
  %73 = vmatpush.msra.mxu0 0.0
  %74 = vmatpush.msra.mxu0 0.0
  %75 = vmatpush.msra.mxu0 0.0
  %76 = vmatpush.msra.mxu0 0.0
  %77 = vmatpush.msra.mxu0 0.0
  %78 = vmatpush.msra.mxu0 0.0
  %79 = vmatpush.msra.mxu0 0.0
  %80 = vmatpush.msra.mxu0 0.0
  %v81 = vand.u32 %v39, 4294901760
  %82 = vmatpush.msra.mxu0 %v81
  %v83 = vand.u32 %v38, 4294901760
  %84 = vmatpush.msra.mxu0 %v83
  %v85 = vand.u32 %v37, 4294901760
  %86 = vmatpush.msra.mxu0 %v85
  %v87 = vand.u32 %v36, 4294901760
  %88 = vmatpush.msra.mxu0 %v87
  %v89 = vand.u32 %v46, 4294901760
  %v90 = vsub.f32 %v46, %v89
  %v91 = vand.u32 %v90, 4294901760
  %v92 = vsub.f32 %v90, %v91
  %v93 = vand.u32 %v92, 4294901760
  %94 = vmatmul.f32.gmra.mxu0 %v93
  %v95 = vpop.f32.mrf.mxu0
  %v96 = vadd.f32 %v42, %v95
  %v97 = vand.u32 %v49, 4294901760
  %v98 = vsub.f32 %v49, %v97
  %v99 = vand.u32 %v98, 4294901760
  %v100 = vsub.f32 %v98, %v99
  %v101 = vand.u32 %v100, 4294901760
  %102 = vmatmul.f32.gmra.mxu0 %v101
  %v103 = vpop.f32.mrf.mxu0
  %v104 = vadd.f32 %v42, %v103
  %v105 = vand.u32 %v52, 4294901760
  %v106 = vsub.f32 %v52, %v105
  %v107 = vand.u32 %v106, 4294901760
  %v108 = vsub.f32 %v106, %v107
  %v109 = vand.u32 %v108, 4294901760
  %110 = vmatmul.f32.gmra.mxu0 %v109
  %v111 = vpop.f32.mrf.mxu0
  %v112 = vadd.f32 %v42, %v111
  %v113 = vand.u32 %v55, 4294901760
  %v114 = vsub.f32 %v55, %v113
  %v115 = vand.u32 %v114, 4294901760
  %v116 = vsub.f32 %v114, %v115
  %v117 = vand.u32 %v116, 4294901760
  %118 = vmatmul.f32.gmra.mxu0 %v117
  %v119 = vpop.f32.mrf.mxu0
  %v120 = vadd.f32 %v42, %v119
  %v121 = vand.u32 %v58, 4294901760
  %v122 = vsub.f32 %v58, %v121
  %v123 = vand.u32 %v122, 4294901760
  %v124 = vsub.f32 %v122, %v123
  %v125 = vand.u32 %v124, 4294901760
  %126 = vmatmul.f32.gmra.mxu0 %v125
  %v127 = vpop.f32.mrf.mxu0
  %v128 = vadd.f32 %v42, %v127
  %v129 = vand.u32 %v61, 4294901760
  %v130 = vsub.f32 %v61, %v129
  %v131 = vand.u32 %v130, 4294901760
  %v132 = vsub.f32 %v130, %v131
  %v133 = vand.u32 %v132, 4294901760
  %134 = vmatmul.f32.gmra.mxu0 %v133
  %v135 = vpop.f32.mrf.mxu0
  %v136 = vadd.f32 %v42, %v135
  %v137 = vand.u32 %v64, 4294901760
  %v138 = vsub.f32 %v64, %v137
  %v139 = vand.u32 %v138, 4294901760
  %v140 = vsub.f32 %v138, %v139
  %v141 = vand.u32 %v140, 4294901760
  %142 = vmatmul.f32.gmra.mxu0 %v141
  %v143 = vpop.f32.mrf.mxu0
  %v144 = vadd.f32 %v42, %v143
  %v145 = vand.u32 %v67, 4294901760
  %v146 = vsub.f32 %v67, %v145
  %v147 = vand.u32 %v146, 4294901760
  %v148 = vsub.f32 %v146, %v147
  %v149 = vand.u32 %v148, 4294901760
  %150 = vmatmul.f32.gmra.mxu0 %v149
  %v151 = vpop.f32.mrf.mxu0
  %v152 = vadd.f32 %v42, %v151
  %153 = vdwg.mxu0
  %154 = vmatpush.msra.mxu0 0.0
  %155 = vmatpush.msra.mxu0 0.0
  %156 = vmatpush.msra.mxu0 0.0
  %157 = vmatpush.msra.mxu0 0.0
  %158 = vmatpush.msra.mxu0 0.0
  %159 = vmatpush.msra.mxu0 0.0
  %160 = vmatpush.msra.mxu0 0.0
  %161 = vmatpush.msra.mxu0 0.0
  %162 = vmatpush.msra.mxu0 0.0
  %163 = vmatpush.msra.mxu0 0.0
  %164 = vmatpush.msra.mxu0 0.0
  %165 = vmatpush.msra.mxu0 0.0
  %v166 = vand.u32 %v39, 4294901760
  %v167 = vsub.f32 %v39, %v166
  %v168 = vand.u32 %v167, 4294901760
  %v169 = vsub.f32 %v167, %v168
  %v170 = vand.u32 %v169, 4294901760
  %171 = vmatpush.msra.mxu0 %v170
  %v172 = vand.u32 %v38, 4294901760
  %v173 = vsub.f32 %v38, %v172
  %v174 = vand.u32 %v173, 4294901760
  %v175 = vsub.f32 %v173, %v174
  %v176 = vand.u32 %v175, 4294901760
  %177 = vmatpush.msra.mxu0 %v176
  %v178 = vand.u32 %v37, 4294901760
  %v179 = vsub.f32 %v37, %v178
  %v180 = vand.u32 %v179, 4294901760
  %v181 = vsub.f32 %v179, %v180
  %v182 = vand.u32 %v181, 4294901760
  %183 = vmatpush.msra.mxu0 %v182
  %v184 = vand.u32 %v36, 4294901760
  %v185 = vsub.f32 %v36, %v184
  %v186 = vand.u32 %v185, 4294901760
  %v187 = vsub.f32 %v185, %v186
  %v188 = vand.u32 %v187, 4294901760
  %189 = vmatpush.msra.mxu0 %v188
  %v190 = vand.u32 %v46, 4294901760
  %191 = vmatmul.f32.gmra.mxu0 %v190
  %v192 = vpop.f32.mrf.mxu0
  %v193 = vadd.f32 %v96, %v192
  %v194 = vand.u32 %v49, 4294901760
  %195 = vmatmul.f32.gmra.mxu0 %v194
  %v196 = vpop.f32.mrf.mxu0
  %v197 = vadd.f32 %v104, %v196
  %v198 = vand.u32 %v52, 4294901760
  %199 = vmatmul.f32.gmra.mxu0 %v198
  %v200 = vpop.f32.mrf.mxu0
  %v201 = vadd.f32 %v112, %v200
  %v202 = vand.u32 %v55, 4294901760
  %203 = vmatmul.f32.gmra.mxu0 %v202
  %v204 = vpop.f32.mrf.mxu0
  %v205 = vadd.f32 %v120, %v204
  %v206 = vand.u32 %v58, 4294901760
  %207 = vmatmul.f32.gmra.mxu0 %v206
  %v208 = vpop.f32.mrf.mxu0
  %v209 = vadd.f32 %v128, %v208
  %v210 = vand.u32 %v61, 4294901760
  %211 = vmatmul.f32.gmra.mxu0 %v210
  %v212 = vpop.f32.mrf.mxu0
  %v213 = vadd.f32 %v136, %v212
  %v214 = vand.u32 %v64, 4294901760
  %215 = vmatmul.f32.gmra.mxu0 %v214
  %v216 = vpop.f32.mrf.mxu0
  %v217 = vadd.f32 %v144, %v216
  %v218 = vand.u32 %v67, 4294901760
  %219 = vmatmul.f32.gmra.mxu0 %v218
  %v220 = vpop.f32.mrf.mxu0
  %v221 = vadd.f32 %v152, %v220
  %222 = vdwg.mxu0
  %223 = vmatpush.msra.mxu0 0.0
  %224 = vmatpush.msra.mxu0 0.0
  %225 = vmatpush.msra.mxu0 0.0
  %226 = vmatpush.msra.mxu0 0.0
  %227 = vmatpush.msra.mxu0 0.0
  %228 = vmatpush.msra.mxu0 0.0
  %229 = vmatpush.msra.mxu0 0.0
  %230 = vmatpush.msra.mxu0 0.0
  %231 = vmatpush.msra.mxu0 0.0
  %232 = vmatpush.msra.mxu0 0.0
  %233 = vmatpush.msra.mxu0 0.0
  %234 = vmatpush.msra.mxu0 0.0
  %v235 = vand.u32 %v39, 4294901760
  %v236 = vsub.f32 %v39, %v235
  %237 = vmatpush.msra.mxu0 %v236
  %v238 = vand.u32 %v38, 4294901760
  %v239 = vsub.f32 %v38, %v238
  %240 = vmatpush.msra.mxu0 %v239
  %v241 = vand.u32 %v37, 4294901760
  %v242 = vsub.f32 %v37, %v241
  %243 = vmatpush.msra.mxu0 %v242
  %v244 = vand.u32 %v36, 4294901760
  %v245 = vsub.f32 %v36, %v244
  %246 = vmatpush.msra.mxu0 %v245
  %v247 = vand.u32 %v46, 4294901760
  %v248 = vsub.f32 %v46, %v247
  %249 = vmatmul.f32.gmra.mxu0 %v248
  %v250 = vpop.f32.mrf.mxu0
  %v251 = vadd.f32 %v193, %v250
  %v252 = vand.u32 %v49, 4294901760
  %v253 = vsub.f32 %v49, %v252
  %254 = vmatmul.f32.gmra.mxu0 %v253
  %v255 = vpop.f32.mrf.mxu0
  %v256 = vadd.f32 %v197, %v255
  %v257 = vand.u32 %v52, 4294901760
  %v258 = vsub.f32 %v52, %v257
  %259 = vmatmul.f32.gmra.mxu0 %v258
  %v260 = vpop.f32.mrf.mxu0
  %v261 = vadd.f32 %v201, %v260
  %v262 = vand.u32 %v55, 4294901760
  %v263 = vsub.f32 %v55, %v262
  %264 = vmatmul.f32.gmra.mxu0 %v263
  %v265 = vpop.f32.mrf.mxu0
  %v266 = vadd.f32 %v205, %v265
  %v267 = vand.u32 %v58, 4294901760
  %v268 = vsub.f32 %v58, %v267
  %269 = vmatmul.f32.gmra.mxu0 %v268
  %v270 = vpop.f32.mrf.mxu0
  %v271 = vadd.f32 %v209, %v270
  %v272 = vand.u32 %v61, 4294901760
  %v273 = vsub.f32 %v61, %v272
  %274 = vmatmul.f32.gmra.mxu0 %v273
  %v275 = vpop.f32.mrf.mxu0
  %v276 = vadd.f32 %v213, %v275
  %v277 = vand.u32 %v64, 4294901760
  %v278 = vsub.f32 %v64, %v277
  %279 = vmatmul.f32.gmra.mxu0 %v278
  %v280 = vpop.f32.mrf.mxu0
  %v281 = vadd.f32 %v217, %v280
  %v282 = vand.u32 %v67, 4294901760
  %v283 = vsub.f32 %v67, %v282
  %284 = vmatmul.f32.gmra.mxu0 %v283
  %v285 = vpop.f32.mrf.mxu0
  %v286 = vadd.f32 %v221, %v285
  %287 = vdwg.mxu0
  %288 = vmatpush.msra.mxu0 0.0
  %289 = vmatpush.msra.mxu0 0.0
  %290 = vmatpush.msra.mxu0 0.0
  %291 = vmatpush.msra.mxu0 0.0
  %292 = vmatpush.msra.mxu0 0.0
  %293 = vmatpush.msra.mxu0 0.0
  %294 = vmatpush.msra.mxu0 0.0
  %295 = vmatpush.msra.mxu0 0.0
  %296 = vmatpush.msra.mxu0 0.0
  %297 = vmatpush.msra.mxu0 0.0
  %298 = vmatpush.msra.mxu0 0.0
  %299 = vmatpush.msra.mxu0 0.0
  %v300 = vand.u32 %v39, 4294901760
  %301 = vmatpush.msra.mxu0 %v300
  %v302 = vand.u32 %v38, 4294901760
  %303 = vmatpush.msra.mxu0 %v302
  %v304 = vand.u32 %v37, 4294901760
  %305 = vmatpush.msra.mxu0 %v304
  %v306 = vand.u32 %v36, 4294901760
  %307 = vmatpush.msra.mxu0 %v306
  %v308 = vand.u32 %v46, 4294901760
  %v309 = vsub.f32 %v46, %v308
  %v310 = vand.u32 %v309, 4294901760
  %311 = vmatmul.f32.gmra.mxu0 %v310
  %v312 = vpop.f32.mrf.mxu0
  %v313 = vadd.f32 %v251, %v312
  %v314 = vand.u32 %v49, 4294901760
  %v315 = vsub.f32 %v49, %v314
  %v316 = vand.u32 %v315, 4294901760
  %317 = vmatmul.f32.gmra.mxu0 %v316
  %v318 = vpop.f32.mrf.mxu0
  %v319 = vadd.f32 %v256, %v318
  %v320 = vand.u32 %v52, 4294901760
  %v321 = vsub.f32 %v52, %v320
  %v322 = vand.u32 %v321, 4294901760
  %323 = vmatmul.f32.gmra.mxu0 %v322
  %v324 = vpop.f32.mrf.mxu0
  %v325 = vadd.f32 %v261, %v324
  %v326 = vand.u32 %v55, 4294901760
  %v327 = vsub.f32 %v55, %v326
  %v328 = vand.u32 %v327, 4294901760
  %329 = vmatmul.f32.gmra.mxu0 %v328
  %v330 = vpop.f32.mrf.mxu0
  %v331 = vadd.f32 %v266, %v330
  %v332 = vand.u32 %v58, 4294901760
  %v333 = vsub.f32 %v58, %v332
  %v334 = vand.u32 %v333, 4294901760
  %335 = vmatmul.f32.gmra.mxu0 %v334
  %v336 = vpop.f32.mrf.mxu0
  %v337 = vadd.f32 %v271, %v336
  %v338 = vand.u32 %v61, 4294901760
  %v339 = vsub.f32 %v61, %v338
  %v340 = vand.u32 %v339, 4294901760
  %341 = vmatmul.f32.gmra.mxu0 %v340
  %v342 = vpop.f32.mrf.mxu0
  %v343 = vadd.f32 %v276, %v342
  %v344 = vand.u32 %v64, 4294901760
  %v345 = vsub.f32 %v64, %v344
  %v346 = vand.u32 %v345, 4294901760
  %347 = vmatmul.f32.gmra.mxu0 %v346
  %v348 = vpop.f32.mrf.mxu0
  %v349 = vadd.f32 %v281, %v348
  %v350 = vand.u32 %v67, 4294901760
  %v351 = vsub.f32 %v67, %v350
  %v352 = vand.u32 %v351, 4294901760
  %353 = vmatmul.f32.gmra.mxu0 %v352
  %v354 = vpop.f32.mrf.mxu0
  %v355 = vadd.f32 %v286, %v354
  %356 = vdwg.mxu0
  %357 = vmatpush.msra.mxu0 0.0
  %358 = vmatpush.msra.mxu0 0.0
  %359 = vmatpush.msra.mxu0 0.0
  %360 = vmatpush.msra.mxu0 0.0
  %361 = vmatpush.msra.mxu0 0.0
  %362 = vmatpush.msra.mxu0 0.0
  %363 = vmatpush.msra.mxu0 0.0
  %364 = vmatpush.msra.mxu0 0.0
  %365 = vmatpush.msra.mxu0 0.0
  %366 = vmatpush.msra.mxu0 0.0
  %367 = vmatpush.msra.mxu0 0.0
  %368 = vmatpush.msra.mxu0 0.0
  %v369 = vand.u32 %v39, 4294901760
  %v370 = vsub.f32 %v39, %v369
  %v371 = vand.u32 %v370, 4294901760
  %372 = vmatpush.msra.mxu0 %v371
  %v373 = vand.u32 %v38, 4294901760
  %v374 = vsub.f32 %v38, %v373
  %v375 = vand.u32 %v374, 4294901760
  %376 = vmatpush.msra.mxu0 %v375
  %v377 = vand.u32 %v37, 4294901760
  %v378 = vsub.f32 %v37, %v377
  %v379 = vand.u32 %v378, 4294901760
  %380 = vmatpush.msra.mxu0 %v379
  %v381 = vand.u32 %v36, 4294901760
  %v382 = vsub.f32 %v36, %v381
  %v383 = vand.u32 %v382, 4294901760
  %384 = vmatpush.msra.mxu0 %v383
  %v385 = vand.u32 %v46, 4294901760
  %386 = vmatmul.f32.gmra.mxu0 %v385
  %v387 = vpop.f32.mrf.mxu0
  %v388 = vadd.f32 %v313, %v387
  %v389 = vand.u32 %v49, 4294901760
  %390 = vmatmul.f32.gmra.mxu0 %v389
  %v391 = vpop.f32.mrf.mxu0
  %v392 = vadd.f32 %v319, %v391
  %v393 = vand.u32 %v52, 4294901760
  %394 = vmatmul.f32.gmra.mxu0 %v393
  %v395 = vpop.f32.mrf.mxu0
  %v396 = vadd.f32 %v325, %v395
  %v397 = vand.u32 %v55, 4294901760
  %398 = vmatmul.f32.gmra.mxu0 %v397
  %v399 = vpop.f32.mrf.mxu0
  %v400 = vadd.f32 %v331, %v399
  %v401 = vand.u32 %v58, 4294901760
  %402 = vmatmul.f32.gmra.mxu0 %v401
  %v403 = vpop.f32.mrf.mxu0
  %v404 = vadd.f32 %v337, %v403
  %v405 = vand.u32 %v61, 4294901760
  %406 = vmatmul.f32.gmra.mxu0 %v405
  %v407 = vpop.f32.mrf.mxu0
  %v408 = vadd.f32 %v343, %v407
  %v409 = vand.u32 %v64, 4294901760
  %410 = vmatmul.f32.gmra.mxu0 %v409
  %v411 = vpop.f32.mrf.mxu0
  %v412 = vadd.f32 %v349, %v411
  %v413 = vand.u32 %v67, 4294901760
  %414 = vmatmul.f32.gmra.mxu0 %v413
  %v415 = vpop.f32.mrf.mxu0
  %v416 = vadd.f32 %v355, %v415
  %417 = vdwg.mxu0
  %418 = vmatpush.msra.mxu0 0.0
  %419 = vmatpush.msra.mxu0 0.0
  %420 = vmatpush.msra.mxu0 0.0
  %421 = vmatpush.msra.mxu0 0.0
  %422 = vmatpush.msra.mxu0 0.0
  %423 = vmatpush.msra.mxu0 0.0
  %424 = vmatpush.msra.mxu0 0.0
  %425 = vmatpush.msra.mxu0 0.0
  %426 = vmatpush.msra.mxu0 0.0
  %427 = vmatpush.msra.mxu0 0.0
  %428 = vmatpush.msra.mxu0 0.0
  %429 = vmatpush.msra.mxu0 0.0
  %v430 = vand.u32 %v39, 4294901760
  %431 = vmatpush.msra.mxu0 %v430
  %v432 = vand.u32 %v38, 4294901760
  %433 = vmatpush.msra.mxu0 %v432
  %v434 = vand.u32 %v37, 4294901760
  %435 = vmatpush.msra.mxu0 %v434
  %v436 = vand.u32 %v36, 4294901760
  %437 = vmatpush.msra.mxu0 %v436
  %v438 = vand.u32 %v46, 4294901760
  %439 = vmatmul.f32.gmra.mxu0 %v438
  %v440 = vpop.f32.mrf.mxu0
  %v441 = vadd.f32 %v388, %v440
  %v442 = vand.u32 %v49, 4294901760
  %443 = vmatmul.f32.gmra.mxu0 %v442
  %v444 = vpop.f32.mrf.mxu0
  %v445 = vadd.f32 %v392, %v444
  %v446 = vand.u32 %v52, 4294901760
  %447 = vmatmul.f32.gmra.mxu0 %v446
  %v448 = vpop.f32.mrf.mxu0
  %v449 = vadd.f32 %v396, %v448
  %v450 = vand.u32 %v55, 4294901760
  %451 = vmatmul.f32.gmra.mxu0 %v450
  %v452 = vpop.f32.mrf.mxu0
  %v453 = vadd.f32 %v400, %v452
  %v454 = vand.u32 %v58, 4294901760
  %455 = vmatmul.f32.gmra.mxu0 %v454
  %v456 = vpop.f32.mrf.mxu0
  %v457 = vadd.f32 %v404, %v456
  %v458 = vand.u32 %v61, 4294901760
  %459 = vmatmul.f32.gmra.mxu0 %v458
  %v460 = vpop.f32.mrf.mxu0
  %v461 = vadd.f32 %v408, %v460
  %v462 = vand.u32 %v64, 4294901760
  %463 = vmatmul.f32.gmra.mxu0 %v462
  %v464 = vpop.f32.mrf.mxu0
  %v465 = vadd.f32 %v412, %v464
  %v466 = vand.u32 %v67, 4294901760
  %467 = vmatmul.f32.gmra.mxu0 %v466
  %v468 = vpop.f32.mrf.mxu0
  %v469 = vadd.f32 %v416, %v468
  %470 = vdwg.mxu0
  %471 = vst [vmem:[#allocation5] sm:$0xff] %v441
  %472 = vst [vmem:[#allocation5 + $0x8] sm:$0xff] %v445
  %473 = vst [vmem:[#allocation5 + $0x10] sm:$0xff] %v449
  %474 = vst [vmem:[#allocation5 + $0x18] sm:$0xff] %v453
  %475 = vst [vmem:[#allocation5 + $0x20] sm:$0xff] %v457
  %476 = vst [vmem:[#allocation5 + $0x28] sm:$0xff] %v461
  %477 = vst [vmem:[#allocation5 + $0x30] sm:$0xff] %v465
  %478 = vst [vmem:[#allocation5 + $0x38] sm:$0xff] %v469
  %v479 = vld [vmem:[#allocation2] sm:$0xff]
  %v480 = vld [vmem:[#allocation3] sm:$0xff]
  %v481 = vld [vmem:[#allocation5] sm:$0xff]
  %v482 = vld [vmem:[%s2] sm:$0xff]
  %v483 = vld [vmem:[%s2 + $0x8] sm:$0xff]
  %v484 = vld [vmem:[%s2 + $0x10] sm:$0xff]
  %v485 = vld [vmem:[%s2 + $0x18] sm:$0xff]
  %v487 = vsel %vm44, %v479, 0
  %489 = vmatpush.msra.mxu0 0.0
  %490 = vmatpush.msra.mxu0 0.0
  %491 = vmatpush.msra.mxu0 0.0
  %492 = vmatpush.msra.mxu0 0.0
  %493 = vmatpush.msra.mxu0 0.0
  %494 = vmatpush.msra.mxu0 0.0
  %495 = vmatpush.msra.mxu0 0.0
  %496 = vmatpush.msra.mxu0 0.0
  %497 = vmatpush.msra.mxu0 0.0
  %498 = vmatpush.msra.mxu0 0.0
  %499 = vmatpush.msra.mxu0 0.0
  %500 = vmatpush.msra.mxu0 0.0
  %v501 = vand.u32 %v485, 4294901760
  %502 = vmatpush.msra.mxu0 %v501
  %v503 = vand.u32 %v484, 4294901760
  %504 = vmatpush.msra.mxu0 %v503
  %v505 = vand.u32 %v483, 4294901760
  %506 = vmatpush.msra.mxu0 %v505
  %v507 = vand.u32 %v482, 4294901760
  %508 = vmatpush.msra.mxu0 %v507
  %v509 = vand.u32 %v487, 4294901760
  %v510 = vsub.f32 %v487, %v509
  %v511 = vand.u32 %v510, 4294901760
  %v512 = vsub.f32 %v510, %v511
  %v513 = vand.u32 %v512, 4294901760
  %514 = vmatmul.f32.gmra.mxu0 %v513
  %v515 = vpop.f32.mrf.mxu0
  %v516 = vadd.f32 0.0, %v515
  %517 = vdwg.mxu0
  %518 = vmatpush.msra.mxu0 0.0
  %519 = vmatpush.msra.mxu0 0.0
  %520 = vmatpush.msra.mxu0 0.0
  %521 = vmatpush.msra.mxu0 0.0
  %522 = vmatpush.msra.mxu0 0.0
  %523 = vmatpush.msra.mxu0 0.0
  %524 = vmatpush.msra.mxu0 0.0
  %525 = vmatpush.msra.mxu0 0.0
  %526 = vmatpush.msra.mxu0 0.0
  %527 = vmatpush.msra.mxu0 0.0
  %528 = vmatpush.msra.mxu0 0.0
  %529 = vmatpush.msra.mxu0 0.0
  %v530 = vand.u32 %v485, 4294901760
  %v531 = vsub.f32 %v485, %v530
  %v532 = vand.u32 %v531, 4294901760
  %v533 = vsub.f32 %v531, %v532
  %v534 = vand.u32 %v533, 4294901760
  %535 = vmatpush.msra.mxu0 %v534
  %v536 = vand.u32 %v484, 4294901760
  %v537 = vsub.f32 %v484, %v536
  %v538 = vand.u32 %v537, 4294901760
  %v539 = vsub.f32 %v537, %v538
  %v540 = vand.u32 %v539, 4294901760
  %541 = vmatpush.msra.mxu0 %v540
  %v542 = vand.u32 %v483, 4294901760
  %v543 = vsub.f32 %v483, %v542
  %v544 = vand.u32 %v543, 4294901760
  %v545 = vsub.f32 %v543, %v544
  %v546 = vand.u32 %v545, 4294901760
  %547 = vmatpush.msra.mxu0 %v546
  %v548 = vand.u32 %v482, 4294901760
  %v549 = vsub.f32 %v482, %v548
  %v550 = vand.u32 %v549, 4294901760
  %v551 = vsub.f32 %v549, %v550
  %v552 = vand.u32 %v551, 4294901760
  %553 = vmatpush.msra.mxu0 %v552
  %v554 = vand.u32 %v487, 4294901760
  %555 = vmatmul.f32.gmra.mxu0 %v554
  %v556 = vpop.f32.mrf.mxu0
  %v557 = vadd.f32 %v516, %v556
  %558 = vdwg.mxu0
  %559 = vmatpush.msra.mxu0 0.0
  %560 = vmatpush.msra.mxu0 0.0
  %561 = vmatpush.msra.mxu0 0.0
  %562 = vmatpush.msra.mxu0 0.0
  %563 = vmatpush.msra.mxu0 0.0
  %564 = vmatpush.msra.mxu0 0.0
  %565 = vmatpush.msra.mxu0 0.0
  %566 = vmatpush.msra.mxu0 0.0
  %567 = vmatpush.msra.mxu0 0.0
  %568 = vmatpush.msra.mxu0 0.0
  %569 = vmatpush.msra.mxu0 0.0
  %570 = vmatpush.msra.mxu0 0.0
  %v571 = vand.u32 %v485, 4294901760
  %v572 = vsub.f32 %v485, %v571
  %573 = vmatpush.msra.mxu0 %v572
  %v574 = vand.u32 %v484, 4294901760
  %v575 = vsub.f32 %v484, %v574
  %576 = vmatpush.msra.mxu0 %v575
  %v577 = vand.u32 %v483, 4294901760
  %v578 = vsub.f32 %v483, %v577
  %579 = vmatpush.msra.mxu0 %v578
  %v580 = vand.u32 %v482, 4294901760
  %v581 = vsub.f32 %v482, %v580
  %582 = vmatpush.msra.mxu0 %v581
  %v583 = vand.u32 %v487, 4294901760
  %v584 = vsub.f32 %v487, %v583
  %585 = vmatmul.f32.gmra.mxu0 %v584
  %v586 = vpop.f32.mrf.mxu0
  %v587 = vadd.f32 %v557, %v586
  %588 = vdwg.mxu0
  %589 = vmatpush.msra.mxu0 0.0
  %590 = vmatpush.msra.mxu0 0.0
  %591 = vmatpush.msra.mxu0 0.0
  %592 = vmatpush.msra.mxu0 0.0
  %593 = vmatpush.msra.mxu0 0.0
  %594 = vmatpush.msra.mxu0 0.0
  %595 = vmatpush.msra.mxu0 0.0
  %596 = vmatpush.msra.mxu0 0.0
  %597 = vmatpush.msra.mxu0 0.0
  %598 = vmatpush.msra.mxu0 0.0
  %599 = vmatpush.msra.mxu0 0.0
  %600 = vmatpush.msra.mxu0 0.0
  %v601 = vand.u32 %v485, 4294901760
  %602 = vmatpush.msra.mxu0 %v601
  %v603 = vand.u32 %v484, 4294901760
  %604 = vmatpush.msra.mxu0 %v603
  %v605 = vand.u32 %v483, 4294901760
  %606 = vmatpush.msra.mxu0 %v605
  %v607 = vand.u32 %v482, 4294901760
  %608 = vmatpush.msra.mxu0 %v607
  %v609 = vand.u32 %v487, 4294901760
  %v610 = vsub.f32 %v487, %v609
  %v611 = vand.u32 %v610, 4294901760
  %612 = vmatmul.f32.gmra.mxu0 %v611
  %v613 = vpop.f32.mrf.mxu0
  %v614 = vadd.f32 %v587, %v613
  %615 = vdwg.mxu0
  %616 = vmatpush.msra.mxu0 0.0
  %617 = vmatpush.msra.mxu0 0.0
  %618 = vmatpush.msra.mxu0 0.0
  %619 = vmatpush.msra.mxu0 0.0
  %620 = vmatpush.msra.mxu0 0.0
  %621 = vmatpush.msra.mxu0 0.0
  %622 = vmatpush.msra.mxu0 0.0
  %623 = vmatpush.msra.mxu0 0.0
  %624 = vmatpush.msra.mxu0 0.0
  %625 = vmatpush.msra.mxu0 0.0
  %626 = vmatpush.msra.mxu0 0.0
  %627 = vmatpush.msra.mxu0 0.0
  %v628 = vand.u32 %v485, 4294901760
  %v629 = vsub.f32 %v485, %v628
  %v630 = vand.u32 %v629, 4294901760
  %631 = vmatpush.msra.mxu0 %v630
  %v632 = vand.u32 %v484, 4294901760
  %v633 = vsub.f32 %v484, %v632
  %v634 = vand.u32 %v633, 4294901760
  %635 = vmatpush.msra.mxu0 %v634
  %v636 = vand.u32 %v483, 4294901760
  %v637 = vsub.f32 %v483, %v636
  %v638 = vand.u32 %v637, 4294901760
  %639 = vmatpush.msra.mxu0 %v638
  %v640 = vand.u32 %v482, 4294901760
  %v641 = vsub.f32 %v482, %v640
  %v642 = vand.u32 %v641, 4294901760
  %643 = vmatpush.msra.mxu0 %v642
  %v644 = vand.u32 %v487, 4294901760
  %645 = vmatmul.f32.gmra.mxu0 %v644
  %v646 = vpop.f32.mrf.mxu0
  %v647 = vadd.f32 %v614, %v646
  %648 = vdwg.mxu0
  %649 = vmatpush.msra.mxu0 0.0
  %650 = vmatpush.msra.mxu0 0.0
  %651 = vmatpush.msra.mxu0 0.0
  %652 = vmatpush.msra.mxu0 0.0
  %653 = vmatpush.msra.mxu0 0.0
  %654 = vmatpush.msra.mxu0 0.0
  %655 = vmatpush.msra.mxu0 0.0
  %656 = vmatpush.msra.mxu0 0.0
  %657 = vmatpush.msra.mxu0 0.0
  %658 = vmatpush.msra.mxu0 0.0
  %659 = vmatpush.msra.mxu0 0.0
  %660 = vmatpush.msra.mxu0 0.0
  %v661 = vand.u32 %v485, 4294901760
  %662 = vmatpush.msra.mxu0 %v661
  %v663 = vand.u32 %v484, 4294901760
  %664 = vmatpush.msra.mxu0 %v663
  %v665 = vand.u32 %v483, 4294901760
  %666 = vmatpush.msra.mxu0 %v665
  %v667 = vand.u32 %v482, 4294901760
  %668 = vmatpush.msra.mxu0 %v667
  %v669 = vand.u32 %v487, 4294901760
  %670 = vmatmul.f32.gmra.mxu0 %v669
  %v671 = vpop.f32.mrf.mxu0
  %v672 = vadd.f32 %v647, %v671
  %673 = vdwg.mxu0
  %v674 = vadd.f32 %v481, %v672
  %v675 = vxor.u32 %v674, 2147483648
  %v676 = vmul.f32 %v675, 1.442695
  %v677 = vpow.pop %v676
  %v678 = vadd.f32 %v677, 1.0
  %v679 = vrcp.pop %v678
  %v680 = vmul.f32 %v678, %v679
  %v681 = vsub.f32 1.0, %v680
  %v682 = vmul.f32 %v679, %v681
  %v683 = vadd.f32 %v679, %v682
  %vm684 = vweird.f32 %v678
  %vm685 = vweird.f32 %v679
  %vm686 = vmor %vm684, %vm685
  %v687 = vsel %vm686, %v679, %v683
  %v688 = vand.u32 2147483647, %v678
  %vm689 = vcmp.eq.f32.partialorder %v688, 8.507059e+37
  %v690 = vand.u32 %v678, 2147483648
  %v691 = vor.u32 1.1754944e-38, %v690
  %v692 = vsel %vm689, %v691, %v687
  %v693 = vmul.f32 1.0, %v692
  %v694 = vtanh.pop %v674
  %696 = vrot.lane.b32.xlu0 %v480, 32
  %v697 = vpop.permute.xlu0 %696
  %v699 = vmul.f32 %v693, %v697
  %701 = vrot.lane.b32.xlu0 %v694, 64
  %v702 = vpop.permute.xlu0 %701
  %v704 = vmul.f32 %v693, %v702
  %706 = vrot.lane.b32.xlu0 %v704, 32
  %v707 = vpop.permute.xlu0 %706
  %v709 = vadd.f32 %v699, %v707
  %v710 = vtanh.pop %v709
  %712 = vrot.lane.b32.xlu0 %v710, 64
  %v713 = vpop.permute.xlu0 %712
  %v715 = vmul.f32 %v693, %v713
  %717 = vrot.lane.b32.xlu0 %v715, 32
  %v718 = vpop.permute.xlu0 %717
  %720 = vst.msk [vmem:[#allocation4] sm:$0xff] %vm44, %v718
  %s721 = scalar_lea.vmem [#allocation5], 8
  %v722 = vld [vmem:[%s721] sm:$0xff]
  %v723 = vld [vmem:[%s2] sm:$0xff]
  %v724 = vld [vmem:[%s2 + $0x8] sm:$0xff]
  %v725 = vld [vmem:[%s2 + $0x10] sm:$0xff]
  %v726 = vld [vmem:[%s2 + $0x18] sm:$0xff]
  %v727 = vsel %vm44, %v718, 0
  %729 = vmatpush.msra.mxu0 0.0
  %730 = vmatpush.msra.mxu0 0.0
  %731 = vmatpush.msra.mxu0 0.0
  %732 = vmatpush.msra.mxu0 0.0
  %733 = vmatpush.msra.mxu0 0.0
  %734 = vmatpush.msra.mxu0 0.0
  %735 = vmatpush.msra.mxu0 0.0
  %736 = vmatpush.msra.mxu0 0.0
  %737 = vmatpush.msra.mxu0 0.0
  %738 = vmatpush.msra.mxu0 0.0
  %739 = vmatpush.msra.mxu0 0.0
  %740 = vmatpush.msra.mxu0 0.0
  %v741 = vand.u32 %v726, 4294901760
  %742 = vmatpush.msra.mxu0 %v741
  %v743 = vand.u32 %v725, 4294901760
  %744 = vmatpush.msra.mxu0 %v743
  %v745 = vand.u32 %v724, 4294901760
  %746 = vmatpush.msra.mxu0 %v745
  %v747 = vand.u32 %v723, 4294901760
  %748 = vmatpush.msra.mxu0 %v747
  %v749 = vand.u32 %v727, 4294901760
  %v750 = vsub.f32 %v727, %v749
  %v751 = vand.u32 %v750, 4294901760
  %v752 = vsub.f32 %v750, %v751
  %v753 = vand.u32 %v752, 4294901760
  %754 = vmatmul.f32.gmra.mxu0 %v753
  %v755 = vpop.f32.mrf.mxu0
  %v756 = vadd.f32 0.0, %v755
  %757 = vdwg.mxu0
  %758 = vmatpush.msra.mxu0 0.0
  %759 = vmatpush.msra.mxu0 0.0
  %760 = vmatpush.msra.mxu0 0.0
  %761 = vmatpush.msra.mxu0 0.0
  %762 = vmatpush.msra.mxu0 0.0
  %763 = vmatpush.msra.mxu0 0.0
  %764 = vmatpush.msra.mxu0 0.0
  %765 = vmatpush.msra.mxu0 0.0
  %766 = vmatpush.msra.mxu0 0.0
  %767 = vmatpush.msra.mxu0 0.0
  %768 = vmatpush.msra.mxu0 0.0
  %769 = vmatpush.msra.mxu0 0.0
  %v770 = vand.u32 %v726, 4294901760
  %v771 = vsub.f32 %v726, %v770
  %v772 = vand.u32 %v771, 4294901760
  %v773 = vsub.f32 %v771, %v772
  %v774 = vand.u32 %v773, 4294901760
  %775 = vmatpush.msra.mxu0 %v774
  %v776 = vand.u32 %v725, 4294901760
  %v777 = vsub.f32 %v725, %v776
  %v778 = vand.u32 %v777, 4294901760
  %v779 = vsub.f32 %v777, %v778
  %v780 = vand.u32 %v779, 4294901760
  %781 = vmatpush.msra.mxu0 %v780
  %v782 = vand.u32 %v724, 4294901760
  %v783 = vsub.f32 %v724, %v782
  %v784 = vand.u32 %v783, 4294901760
  %v785 = vsub.f32 %v783, %v784
  %v786 = vand.u32 %v785, 4294901760
  %787 = vmatpush.msra.mxu0 %v786
  %v788 = vand.u32 %v723, 4294901760
  %v789 = vsub.f32 %v723, %v788
  %v790 = vand.u32 %v789, 4294901760
  %v791 = vsub.f32 %v789, %v790
  %v792 = vand.u32 %v791, 4294901760
  %793 = vmatpush.msra.mxu0 %v792
  %v794 = vand.u32 %v727, 4294901760
  %795 = vmatmul.f32.gmra.mxu0 %v794
  %v796 = vpop.f32.mrf.mxu0
  %v797 = vadd.f32 %v756, %v796
  %798 = vdwg.mxu0
  %799 = vmatpush.msra.mxu0 0.0
  %800 = vmatpush.msra.mxu0 0.0
  %801 = vmatpush.msra.mxu0 0.0
  %802 = vmatpush.msra.mxu0 0.0
  %803 = vmatpush.msra.mxu0 0.0
  %804 = vmatpush.msra.mxu0 0.0
  %805 = vmatpush.msra.mxu0 0.0
  %806 = vmatpush.msra.mxu0 0.0
  %807 = vmatpush.msra.mxu0 0.0
  %808 = vmatpush.msra.mxu0 0.0
  %809 = vmatpush.msra.mxu0 0.0
  %810 = vmatpush.msra.mxu0 0.0
  %v811 = vand.u32 %v726, 4294901760
  %v812 = vsub.f32 %v726, %v811
  %813 = vmatpush.msra.mxu0 %v812
  %v814 = vand.u32 %v725, 4294901760
  %v815 = vsub.f32 %v725, %v814
  %816 = vmatpush.msra.mxu0 %v815
  %v817 = vand.u32 %v724, 4294901760
  %v818 = vsub.f32 %v724, %v817
  %819 = vmatpush.msra.mxu0 %v818
  %v820 = vand.u32 %v723, 4294901760
  %v821 = vsub.f32 %v723, %v820
  %822 = vmatpush.msra.mxu0 %v821
  %v823 = vand.u32 %v727, 4294901760
  %v824 = vsub.f32 %v727, %v823
  %825 = vmatmul.f32.gmra.mxu0 %v824
  %v826 = vpop.f32.mrf.mxu0
  %v827 = vadd.f32 %v797, %v826
  %828 = vdwg.mxu0
  %829 = vmatpush.msra.mxu0 0.0
  %830 = vmatpush.msra.mxu0 0.0
  %831 = vmatpush.msra.mxu0 0.0
  %832 = vmatpush.msra.mxu0 0.0
  %833 = vmatpush.msra.mxu0 0.0
  %834 = vmatpush.msra.mxu0 0.0
  %835 = vmatpush.msra.mxu0 0.0
  %836 = vmatpush.msra.mxu0 0.0
  %837 = vmatpush.msra.mxu0 0.0
  %838 = vmatpush.msra.mxu0 0.0
  %839 = vmatpush.msra.mxu0 0.0
  %840 = vmatpush.msra.mxu0 0.0
  %v841 = vand.u32 %v726, 4294901760
  %842 = vmatpush.msra.mxu0 %v841
  %v843 = vand.u32 %v725, 4294901760
  %844 = vmatpush.msra.mxu0 %v843
  %v845 = vand.u32 %v724, 4294901760
  %846 = vmatpush.msra.mxu0 %v845
  %v847 = vand.u32 %v723, 4294901760
  %848 = vmatpush.msra.mxu0 %v847
  %v849 = vand.u32 %v727, 4294901760
  %v850 = vsub.f32 %v727, %v849
  %v851 = vand.u32 %v850, 4294901760
  %852 = vmatmul.f32.gmra.mxu0 %v851
  %v853 = vpop.f32.mrf.mxu0
  %v854 = vadd.f32 %v827, %v853
  %855 = vdwg.mxu0
  %856 = vmatpush.msra.mxu0 0.0
  %857 = vmatpush.msra.mxu0 0.0
  %858 = vmatpush.msra.mxu0 0.0
  %859 = vmatpush.msra.mxu0 0.0
  %860 = vmatpush.msra.mxu0 0.0
  %861 = vmatpush.msra.mxu0 0.0
  %862 = vmatpush.msra.mxu0 0.0
  %863 = vmatpush.msra.mxu0 0.0
  %864 = vmatpush.msra.mxu0 0.0
  %865 = vmatpush.msra.mxu0 0.0
  %866 = vmatpush.msra.mxu0 0.0
  %867 = vmatpush.msra.mxu0 0.0
  %v868 = vand.u32 %v726, 4294901760
  %v869 = vsub.f32 %v726, %v868
  %v870 = vand.u32 %v869, 4294901760
  %871 = vmatpush.msra.mxu0 %v870
  %v872 = vand.u32 %v725, 4294901760
  %v873 = vsub.f32 %v725, %v872
  %v874 = vand.u32 %v873, 4294901760
  %875 = vmatpush.msra.mxu0 %v874
  %v876 = vand.u32 %v724, 4294901760
  %v877 = vsub.f32 %v724, %v876
  %v878 = vand.u32 %v877, 4294901760
  %879 = vmatpush.msra.mxu0 %v878
  %v880 = vand.u32 %v723, 4294901760
  %v881 = vsub.f32 %v723, %v880
  %v882 = vand.u32 %v881, 4294901760
  %883 = vmatpush.msra.mxu0 %v882
  %v884 = vand.u32 %v727, 4294901760
  %885 = vmatmul.f32.gmra.mxu0 %v884
  %v886 = vpop.f32.mrf.mxu0
  %v887 = vadd.f32 %v854, %v886
  %888 = vdwg.mxu0
  %889 = vmatpush.msra.mxu0 0.0
  %890 = vmatpush.msra.mxu0 0.0
  %891 = vmatpush.msra.mxu0 0.0
  %892 = vmatpush.msra.mxu0 0.0
  %893 = vmatpush.msra.mxu0 0.0
  %894 = vmatpush.msra.mxu0 0.0
  %895 = vmatpush.msra.mxu0 0.0
  %896 = vmatpush.msra.mxu0 0.0
  %897 = vmatpush.msra.mxu0 0.0
  %898 = vmatpush.msra.mxu0 0.0
  %899 = vmatpush.msra.mxu0 0.0
  %900 = vmatpush.msra.mxu0 0.0
  %v901 = vand.u32 %v726, 4294901760
  %902 = vmatpush.msra.mxu0 %v901
  %v903 = vand.u32 %v725, 4294901760
  %904 = vmatpush.msra.mxu0 %v903
  %v905 = vand.u32 %v724, 4294901760
  %906 = vmatpush.msra.mxu0 %v905
  %v907 = vand.u32 %v723, 4294901760
  %908 = vmatpush.msra.mxu0 %v907
  %v909 = vand.u32 %v727, 4294901760
  %910 = vmatmul.f32.gmra.mxu0 %v909
  %v911 = vpop.f32.mrf.mxu0
  %v912 = vadd.f32 %v887, %v911
  %913 = vdwg.mxu0
  %v914 = vadd.f32 %v722, %v912
  %v915 = vxor.u32 %v914, 2147483648
  %v916 = vmul.f32 %v915, 1.442695
  %v917 = vpow.pop %v916
  %v918 = vadd.f32 %v917, 1.0
  %v919 = vrcp.pop %v918
  %v920 = vmul.f32 %v918, %v919
  %v921 = vsub.f32 1.0, %v920
  %v922 = vmul.f32 %v919, %v921
  %v923 = vadd.f32 %v919, %v922
  %vm924 = vweird.f32 %v918
  %vm925 = vweird.f32 %v919
  %vm926 = vmor %vm924, %vm925
  %v927 = vsel %vm926, %v919, %v923
  %v928 = vand.u32 2147483647, %v918
  %vm929 = vcmp.eq.f32.partialorder %v928, 8.507059e+37
  %v930 = vand.u32 %v918, 2147483648
  %v931 = vor.u32 1.1754944e-38, %v930
  %v932 = vsel %vm929, %v931, %v927
  %v933 = vmul.f32 1.0, %v932
  %v934 = vtanh.pop %v914
  %v935 = vmul.f32 %v933, %v709
  %937 = vrot.lane.b32.xlu0 %v934, 64
  %v938 = vpop.permute.xlu0 %937
  %v940 = vmul.f32 %v933, %v938
  %942 = vrot.lane.b32.xlu0 %v940, 32
  %v943 = vpop.permute.xlu0 %942
  %v945 = vadd.f32 %v935, %v943
  %v946 = vtanh.pop %v945
  %948 = vrot.lane.b32.xlu0 %v946, 64
  %v949 = vpop.permute.xlu0 %948
  %v951 = vmul.f32 %v933, %v949
  %953 = vrot.lane.b32.xlu0 %v951, 32
  %v954 = vpop.permute.xlu0 %953
  %s956 = scalar_lea.vmem [#allocation4], 8
  %957 = vst.msk [vmem:[%s956] sm:$0xff] %vm44, %v954
  %s958 = scalar_lea.vmem [#allocation5], 16
  %v959 = vld [vmem:[%s958] sm:$0xff]
  %v960 = vld [vmem:[%s2] sm:$0xff]
  %v961 = vld [vmem:[%s2 + $0x8] sm:$0xff]
  %v962 = vld [vmem:[%s2 + $0x10] sm:$0xff]
  %v963 = vld [vmem:[%s2 + $0x18] sm:$0xff]
  %v964 = vsel %vm44, %v954, 0
  %966 = vmatpush.msra.mxu0 0.0
  %967 = vmatpush.msra.mxu0 0.0
  %968 = vmatpush.msra.mxu0 0.0
  %969 = vmatpush.msra.mxu0 0.0
  %970 = vmatpush.msra.mxu0 0.0
  %971 = vmatpush.msra.mxu0 0.0
  %972 = vmatpush.msra.mxu0 0.0
  %973 = vmatpush.msra.mxu0 0.0
  %974 = vmatpush.msra.mxu0 0.0
  %975 = vmatpush.msra.mxu0 0.0
  %976 = vmatpush.msra.mxu0 0.0
  %977 = vmatpush.msra.mxu0 0.0
  %v978 = vand.u32 %v963, 4294901760
  %979 = vmatpush.msra.mxu0 %v978
  %v980 = vand.u32 %v962, 4294901760
  %981 = vmatpush.msra.mxu0 %v980
  %v982 = vand.u32 %v961, 4294901760
  %983 = vmatpush.msra.mxu0 %v982
  %v984 = vand.u32 %v960, 4294901760
  %985 = vmatpush.msra.mxu0 %v984
  %v986 = vand.u32 %v964, 4294901760
  %v987 = vsub.f32 %v964, %v986
  %v988 = vand.u32 %v987, 4294901760
  %v989 = vsub.f32 %v987, %v988
  %v990 = vand.u32 %v989, 4294901760
  %991 = vmatmul.f32.gmra.mxu0 %v990
  %v992 = vpop.f32.mrf.mxu0
  %v993 = vadd.f32 0.0, %v992
  %994 = vdwg.mxu0
  %995 = vmatpush.msra.mxu0 0.0
  %996 = vmatpush.msra.mxu0 0.0
  %997 = vmatpush.msra.mxu0 0.0
  %998 = vmatpush.msra.mxu0 0.0
  %999 = vmatpush.msra.mxu0 0.0
  %1000 = vmatpush.msra.mxu0 0.0
  %1001 = vmatpush.msra.mxu0 0.0
  %1002 = vmatpush.msra.mxu0 0.0
  %1003 = vmatpush.msra.mxu0 0.0
  %1004 = vmatpush.msra.mxu0 0.0
  %1005 = vmatpush.msra.mxu0 0.0
  %1006 = vmatpush.msra.mxu0 0.0
  %v1007 = vand.u32 %v963, 4294901760
  %v1008 = vsub.f32 %v963, %v1007
  %v1009 = vand.u32 %v1008, 4294901760
  %v1010 = vsub.f32 %v1008, %v1009
  %v1011 = vand.u32 %v1010, 4294901760
  %1012 = vmatpush.msra.mxu0 %v1011
  %v1013 = vand.u32 %v962, 4294901760
  %v1014 = vsub.f32 %v962, %v1013
  %v1015 = vand.u32 %v1014, 4294901760
  %v1016 = vsub.f32 %v1014, %v1015
  %v1017 = vand.u32 %v1016, 4294901760
  %1018 = vmatpush.msra.mxu0 %v1017
  %v1019 = vand.u32 %v961, 4294901760
  %v1020 = vsub.f32 %v961, %v1019
  %v1021 = vand.u32 %v1020, 4294901760
  %v1022 = vsub.f32 %v1020, %v1021
  %v1023 = vand.u32 %v1022, 4294901760
  %1024 = vmatpush.msra.mxu0 %v1023
  %v1025 = vand.u32 %v960, 4294901760
  %v1026 = vsub.f32 %v960, %v1025
  %v1027 = vand.u32 %v1026, 4294901760
  %v1028 = vsub.f32 %v1026, %v1027
  %v1029 = vand.u32 %v1028, 4294901760
  %1030 = vmatpush.msra.mxu0 %v1029
  %v1031 = vand.u32 %v964, 4294901760
  %1032 = vmatmul.f32.gmra.mxu0 %v1031
  %v1033 = vpop.f32.mrf.mxu0
  %v1034 = vadd.f32 %v993, %v1033
  %1035 = vdwg.mxu0
  %1036 = vmatpush.msra.mxu0 0.0
  %1037 = vmatpush.msra.mxu0 0.0
  %1038 = vmatpush.msra.mxu0 0.0
  %1039 = vmatpush.msra.mxu0 0.0
  %1040 = vmatpush.msra.mxu0 0.0
  %1041 = vmatpush.msra.mxu0 0.0
  %1042 = vmatpush.msra.mxu0 0.0
  %1043 = vmatpush.msra.mxu0 0.0
  %1044 = vmatpush.msra.mxu0 0.0
  %1045 = vmatpush.msra.mxu0 0.0
  %1046 = vmatpush.msra.mxu0 0.0
  %1047 = vmatpush.msra.mxu0 0.0
  %v1048 = vand.u32 %v963, 4294901760
  %v1049 = vsub.f32 %v963, %v1048
  %1050 = vmatpush.msra.mxu0 %v1049
  %v1051 = vand.u32 %v962, 4294901760
  %v1052 = vsub.f32 %v962, %v1051
  %1053 = vmatpush.msra.mxu0 %v1052
  %v1054 = vand.u32 %v961, 4294901760
  %v1055 = vsub.f32 %v961, %v1054
  %1056 = vmatpush.msra.mxu0 %v1055
  %v1057 = vand.u32 %v960, 4294901760
  %v1058 = vsub.f32 %v960, %v1057
  %1059 = vmatpush.msra.mxu0 %v1058
  %v1060 = vand.u32 %v964, 4294901760
  %v1061 = vsub.f32 %v964, %v1060
  %1062 = vmatmul.f32.gmra.mxu0 %v1061
  %v1063 = vpop.f32.mrf.mxu0
  %v1064 = vadd.f32 %v1034, %v1063
  %1065 = vdwg.mxu0
  %1066 = vmatpush.msra.mxu0 0.0
  %1067 = vmatpush.msra.mxu0 0.0
  %1068 = vmatpush.msra.mxu0 0.0
  %1069 = vmatpush.msra.mxu0 0.0
  %1070 = vmatpush.msra.mxu0 0.0
  %1071 = vmatpush.msra.mxu0 0.0
  %1072 = vmatpush.msra.mxu0 0.0
  %1073 = vmatpush.msra.mxu0 0.0
  %1074 = vmatpush.msra.mxu0 0.0
  %1075 = vmatpush.msra.mxu0 0.0
  %1076 = vmatpush.msra.mxu0 0.0
  %1077 = vmatpush.msra.mxu0 0.0
  %v1078 = vand.u32 %v963, 4294901760
  %1079 = vmatpush.msra.mxu0 %v1078
  %v1080 = vand.u32 %v962, 4294901760
  %1081 = vmatpush.msra.mxu0 %v1080
  %v1082 = vand.u32 %v961, 4294901760
  %1083 = vmatpush.msra.mxu0 %v1082
  %v1084 = vand.u32 %v960, 4294901760
  %1085 = vmatpush.msra.mxu0 %v1084
  %v1086 = vand.u32 %v964, 4294901760
  %v1087 = vsub.f32 %v964, %v1086
  %v1088 = vand.u32 %v1087, 4294901760
  %1089 = vmatmul.f32.gmra.mxu0 %v1088
  %v1090 = vpop.f32.mrf.mxu0
  %v1091 = vadd.f32 %v1064, %v1090
  %1092 = vdwg.mxu0
  %1093 = vmatpush.msra.mxu0 0.0
  %1094 = vmatpush.msra.mxu0 0.0
  %1095 = vmatpush.msra.mxu0 0.0
  %1096 = vmatpush.msra.mxu0 0.0
  %1097 = vmatpush.msra.mxu0 0.0
  %1098 = vmatpush.msra.mxu0 0.0
  %1099 = vmatpush.msra.mxu0 0.0
  %1100 = vmatpush.msra.mxu0 0.0
  %1101 = vmatpush.msra.mxu0 0.0
  %1102 = vmatpush.msra.mxu0 0.0
  %1103 = vmatpush.msra.mxu0 0.0
  %1104 = vmatpush.msra.mxu0 0.0
  %v1105 = vand.u32 %v963, 4294901760
  %v1106 = vsub.f32 %v963, %v1105
  %v1107 = vand.u32 %v1106, 4294901760
  %1108 = vmatpush.msra.mxu0 %v1107
  %v1109 = vand.u32 %v962, 4294901760
  %v1110 = vsub.f32 %v962, %v1109
  %v1111 = vand.u32 %v1110, 4294901760
  %1112 = vmatpush.msra.mxu0 %v1111
  %v1113 = vand.u32 %v961, 4294901760
  %v1114 = vsub.f32 %v961, %v1113
  %v1115 = vand.u32 %v1114, 4294901760
  %1116 = vmatpush.msra.mxu0 %v1115
  %v1117 = vand.u32 %v960, 4294901760
  %v1118 = vsub.f32 %v960, %v1117
  %v1119 = vand.u32 %v1118, 4294901760
  %1120 = vmatpush.msra.mxu0 %v1119
  %v1121 = vand.u32 %v964, 4294901760
  %1122 = vmatmul.f32.gmra.mxu0 %v1121
  %v1123 = vpop.f32.mrf.mxu0
  %v1124 = vadd.f32 %v1091, %v1123
  %1125 = vdwg.mxu0
  %1126 = vmatpush.msra.mxu0 0.0
  %1127 = vmatpush.msra.mxu0 0.0
  %1128 = vmatpush.msra.mxu0 0.0
  %1129 = vmatpush.msra.mxu0 0.0
  %1130 = vmatpush.msra.mxu0 0.0
  %1131 = vmatpush.msra.mxu0 0.0
  %1132 = vmatpush.msra.mxu0 0.0
  %1133 = vmatpush.msra.mxu0 0.0
  %1134 = vmatpush.msra.mxu0 0.0
  %1135 = vmatpush.msra.mxu0 0.0
  %1136 = vmatpush.msra.mxu0 0.0
  %1137 = vmatpush.msra.mxu0 0.0
  %v1138 = vand.u32 %v963, 4294901760
  %1139 = vmatpush.msra.mxu0 %v1138
  %v1140 = vand.u32 %v962, 4294901760
  %1141 = vmatpush.msra.mxu0 %v1140
  %v1142 = vand.u32 %v961, 4294901760
  %1143 = vmatpush.msra.mxu0 %v1142
  %v1144 = vand.u32 %v960, 4294901760
  %1145 = vmatpush.msra.mxu0 %v1144
  %v1146 = vand.u32 %v964, 4294901760
  %1147 = vmatmul.f32.gmra.mxu0 %v1146
  %v1148 = vpop.f32.mrf.mxu0
  %v1149 = vadd.f32 %v1124, %v1148
  %1150 = vdwg.mxu0
  %v1151 = vadd.f32 %v959, %v1149
  %v1152 = vxor.u32 %v1151, 2147483648
  %v1153 = vmul.f32 %v1152, 1.442695
  %v1154 = vpow.pop %v1153
  %v1155 = vadd.f32 %v1154, 1.0
  %v1156 = vrcp.pop %v1155
  %v1157 = vmul.f32 %v1155, %v1156
  %v1158 = vsub.f32 1.0, %v1157
  %v1159 = vmul.f32 %v1156, %v1158
  %v1160 = vadd.f32 %v1156, %v1159
  %vm1161 = vweird.f32 %v1155
  %vm1162 = vweird.f32 %v1156
  %vm1163 = vmor %vm1161, %vm1162
  %v1164 = vsel %vm1163, %v1156, %v1160
  %v1165 = vand.u32 2147483647, %v1155
  %vm1166 = vcmp.eq.f32.partialorder %v1165, 8.507059e+37
  %v1167 = vand.u32 %v1155, 2147483648
  %v1168 = vor.u32 1.1754944e-38, %v1167
  %v1169 = vsel %vm1166, %v1168, %v1164
  %v1170 = vmul.f32 1.0, %v1169
  %v1171 = vtanh.pop %v1151
  %v1172 = vmul.f32 %v1170, %v945
  %1174 = vrot.lane.b32.xlu0 %v1171, 64
  %v1175 = vpop.permute.xlu0 %1174
  %v1177 = vmul.f32 %v1170, %v1175
  %1179 = vrot.lane.b32.xlu0 %v1177, 32
  %v1180 = vpop.permute.xlu0 %1179
  %v1182 = vadd.f32 %v1172, %v1180
  %v1183 = vtanh.pop %v1182
  %1185 = vrot.lane.b32.xlu0 %v1183, 64
  %v1186 = vpop.permute.xlu0 %1185
  %v1188 = vmul.f32 %v1170, %v1186
  %1190 = vrot.lane.b32.xlu0 %v1188, 32
  %v1191 = vpop.permute.xlu0 %1190
  %s1193 = scalar_lea.vmem [#allocation4], 16
  %1194 = vst.msk [vmem:[%s1193] sm:$0xff] %vm44, %v1191
  %s1195 = scalar_lea.vmem [#allocation5], 24
  %v1196 = vld [vmem:[%s1195] sm:$0xff]
  %v1197 = vld [vmem:[%s2] sm:$0xff]
  %v1198 = vld [vmem:[%s2 + $0x8] sm:$0xff]
  %v1199 = vld [vmem:[%s2 + $0x10] sm:$0xff]
  %v1200 = vld [vmem:[%s2 + $0x18] sm:$0xff]
  %v1201 = vsel %vm44, %v1191, 0
  %1203 = vmatpush.msra.mxu0 0.0
  %1204 = vmatpush.msra.mxu0 0.0
  %1205 = vmatpush.msra.mxu0 0.0
  %1206 = vmatpush.msra.mxu0 0.0
  %1207 = vmatpush.msra.mxu0 0.0
  %1208 = vmatpush.msra.mxu0 0.0
  %1209 = vmatpush.msra.mxu0 0.0
  %1210 = vmatpush.msra.mxu0 0.0
  %1211 = vmatpush.msra.mxu0 0.0
  %1212 = vmatpush.msra.mxu0 0.0
  %1213 = vmatpush.msra.mxu0 0.0
  %1214 = vmatpush.msra.mxu0 0.0
  %v1215 = vand.u32 %v1200, 4294901760
  %1216 = vmatpush.msra.mxu0 %v1215
  %v1217 = vand.u32 %v1199, 4294901760
  %1218 = vmatpush.msra.mxu0 %v1217
  %v1219 = vand.u32 %v1198, 4294901760
  %1220 = vmatpush.msra.mxu0 %v1219
  %v1221 = vand.u32 %v1197, 4294901760
  %1222 = vmatpush.msra.mxu0 %v1221
  %v1223 = vand.u32 %v1201, 4294901760
  %v1224 = vsub.f32 %v1201, %v1223
  %v1225 = vand.u32 %v1224, 4294901760
  %v1226 = vsub.f32 %v1224, %v1225
  %v1227 = vand.u32 %v1226, 4294901760
  %1228 = vmatmul.f32.gmra.mxu0 %v1227
  %v1229 = vpop.f32.mrf.mxu0
  %v1230 = vadd.f32 0.0, %v1229
  %1231 = vdwg.mxu0
  %1232 = vmatpush.msra.mxu0 0.0
  %1233 = vmatpush.msra.mxu0 0.0
  %1234 = vmatpush.msra.mxu0 0.0
  %1235 = vmatpush.msra.mxu0 0.0
  %1236 = vmatpush.msra.mxu0 0.0
  %1237 = vmatpush.msra.mxu0 0.0
  %1238 = vmatpush.msra.mxu0 0.0
  %1239 = vmatpush.msra.mxu0 0.0
  %1240 = vmatpush.msra.mxu0 0.0
  %1241 = vmatpush.msra.mxu0 0.0
  %1242 = vmatpush.msra.mxu0 0.0
  %1243 = vmatpush.msra.mxu0 0.0
  %v1244 = vand.u32 %v1200, 4294901760
  %v1245 = vsub.f32 %v1200, %v1244
  %v1246 = vand.u32 %v1245, 4294901760
  %v1247 = vsub.f32 %v1245, %v1246
  %v1248 = vand.u32 %v1247, 4294901760
  %1249 = vmatpush.msra.mxu0 %v1248
  %v1250 = vand.u32 %v1199, 4294901760
  %v1251 = vsub.f32 %v1199, %v1250
  %v1252 = vand.u32 %v1251, 4294901760
  %v1253 = vsub.f32 %v1251, %v1252
  %v1254 = vand.u32 %v1253, 4294901760
  %1255 = vmatpush.msra.mxu0 %v1254
  %v1256 = vand.u32 %v1198, 4294901760
  %v1257 = vsub.f32 %v1198, %v1256
  %v1258 = vand.u32 %v1257, 4294901760
  %v1259 = vsub.f32 %v1257, %v1258
  %v1260 = vand.u32 %v1259, 4294901760
  %1261 = vmatpush.msra.mxu0 %v1260
  %v1262 = vand.u32 %v1197, 4294901760
  %v1263 = vsub.f32 %v1197, %v1262
  %v1264 = vand.u32 %v1263, 4294901760
  %v1265 = vsub.f32 %v1263, %v1264
  %v1266 = vand.u32 %v1265, 4294901760
  %1267 = vmatpush.msra.mxu0 %v1266
  %v1268 = vand.u32 %v1201, 4294901760
  %1269 = vmatmul.f32.gmra.mxu0 %v1268
  %v1270 = vpop.f32.mrf.mxu0
  %v1271 = vadd.f32 %v1230, %v1270
  %1272 = vdwg.mxu0
  %1273 = vmatpush.msra.mxu0 0.0
  %1274 = vmatpush.msra.mxu0 0.0
  %1275 = vmatpush.msra.mxu0 0.0
  %1276 = vmatpush.msra.mxu0 0.0
  %1277 = vmatpush.msra.mxu0 0.0
  %1278 = vmatpush.msra.mxu0 0.0
  %1279 = vmatpush.msra.mxu0 0.0
  %1280 = vmatpush.msra.mxu0 0.0
  %1281 = vmatpush.msra.mxu0 0.0
  %1282 = vmatpush.msra.mxu0 0.0
  %1283 = vmatpush.msra.mxu0 0.0
  %1284 = vmatpush.msra.mxu0 0.0
  %v1285 = vand.u32 %v1200, 4294901760
  %v1286 = vsub.f32 %v1200, %v1285
  %1287 = vmatpush.msra.mxu0 %v1286
  %v1288 = vand.u32 %v1199, 4294901760
  %v1289 = vsub.f32 %v1199, %v1288
  %1290 = vmatpush.msra.mxu0 %v1289
  %v1291 = vand.u32 %v1198, 4294901760
  %v1292 = vsub.f32 %v1198, %v1291
  %1293 = vmatpush.msra.mxu0 %v1292
  %v1294 = vand.u32 %v1197, 4294901760
  %v1295 = vsub.f32 %v1197, %v1294
  %1296 = vmatpush.msra.mxu0 %v1295
  %v1297 = vand.u32 %v1201, 4294901760
  %v1298 = vsub.f32 %v1201, %v1297
  %1299 = vmatmul.f32.gmra.mxu0 %v1298
  %v1300 = vpop.f32.mrf.mxu0
  %v1301 = vadd.f32 %v1271, %v1300
  %1302 = vdwg.mxu0
  %1303 = vmatpush.msra.mxu0 0.0
  %1304 = vmatpush.msra.mxu0 0.0
  %1305 = vmatpush.msra.mxu0 0.0
  %1306 = vmatpush.msra.mxu0 0.0
  %1307 = vmatpush.msra.mxu0 0.0
  %1308 = vmatpush.msra.mxu0 0.0
  %1309 = vmatpush.msra.mxu0 0.0
  %1310 = vmatpush.msra.mxu0 0.0
  %1311 = vmatpush.msra.mxu0 0.0
  %1312 = vmatpush.msra.mxu0 0.0
  %1313 = vmatpush.msra.mxu0 0.0
  %1314 = vmatpush.msra.mxu0 0.0
  %v1315 = vand.u32 %v1200, 4294901760
  %1316 = vmatpush.msra.mxu0 %v1315
  %v1317 = vand.u32 %v1199, 4294901760
  %1318 = vmatpush.msra.mxu0 %v1317
  %v1319 = vand.u32 %v1198, 4294901760
  %1320 = vmatpush.msra.mxu0 %v1319
  %v1321 = vand.u32 %v1197, 4294901760
  %1322 = vmatpush.msra.mxu0 %v1321
  %v1323 = vand.u32 %v1201, 4294901760
  %v1324 = vsub.f32 %v1201, %v1323
  %v1325 = vand.u32 %v1324, 4294901760
  %1326 = vmatmul.f32.gmra.mxu0 %v1325
  %v1327 = vpop.f32.mrf.mxu0
  %v1328 = vadd.f32 %v1301, %v1327
  %1329 = vdwg.mxu0
  %1330 = vmatpush.msra.mxu0 0.0
  %1331 = vmatpush.msra.mxu0 0.0
  %1332 = vmatpush.msra.mxu0 0.0
  %1333 = vmatpush.msra.mxu0 0.0
  %1334 = vmatpush.msra.mxu0 0.0
  %1335 = vmatpush.msra.mxu0 0.0
  %1336 = vmatpush.msra.mxu0 0.0
  %1337 = vmatpush.msra.mxu0 0.0
  %1338 = vmatpush.msra.mxu0 0.0
  %1339 = vmatpush.msra.mxu0 0.0
  %1340 = vmatpush.msra.mxu0 0.0
  %1341 = vmatpush.msra.mxu0 0.0
  %v1342 = vand.u32 %v1200, 4294901760
  %v1343 = vsub.f32 %v1200, %v1342
  %v1344 = vand.u32 %v1343, 4294901760
  %1345 = vmatpush.msra.mxu0 %v1344
  %v1346 = vand.u32 %v1199, 4294901760
  %v1347 = vsub.f32 %v1199, %v1346
  %v1348 = vand.u32 %v1347, 4294901760
  %1349 = vmatpush.msra.mxu0 %v1348
  %v1350 = vand.u32 %v1198, 4294901760
  %v1351 = vsub.f32 %v1198, %v1350
  %v1352 = vand.u32 %v1351, 4294901760
  %1353 = vmatpush.msra.mxu0 %v1352
  %v1354 = vand.u32 %v1197, 4294901760
  %v1355 = vsub.f32 %v1197, %v1354
  %v1356 = vand.u32 %v1355, 4294901760
  %1357 = vmatpush.msra.mxu0 %v1356
  %v1358 = vand.u32 %v1201, 4294901760
  %1359 = vmatmul.f32.gmra.mxu0 %v1358
  %v1360 = vpop.f32.mrf.mxu0
  %v1361 = vadd.f32 %v1328, %v1360
  %1362 = vdwg.mxu0
  %1363 = vmatpush.msra.mxu0 0.0
  %1364 = vmatpush.msra.mxu0 0.0
  %1365 = vmatpush.msra.mxu0 0.0
  %1366 = vmatpush.msra.mxu0 0.0
  %1367 = vmatpush.msra.mxu0 0.0
  %1368 = vmatpush.msra.mxu0 0.0
  %1369 = vmatpush.msra.mxu0 0.0
  %1370 = vmatpush.msra.mxu0 0.0
  %1371 = vmatpush.msra.mxu0 0.0
  %1372 = vmatpush.msra.mxu0 0.0
  %1373 = vmatpush.msra.mxu0 0.0
  %1374 = vmatpush.msra.mxu0 0.0
  %v1375 = vand.u32 %v1200, 4294901760
  %1376 = vmatpush.msra.mxu0 %v1375
  %v1377 = vand.u32 %v1199, 4294901760
  %1378 = vmatpush.msra.mxu0 %v1377
  %v1379 = vand.u32 %v1198, 4294901760
  %1380 = vmatpush.msra.mxu0 %v1379
  %v1381 = vand.u32 %v1197, 4294901760
  %1382 = vmatpush.msra.mxu0 %v1381
  %v1383 = vand.u32 %v1201, 4294901760
  %1384 = vmatmul.f32.gmra.mxu0 %v1383
  %v1385 = vpop.f32.mrf.mxu0
  %v1386 = vadd.f32 %v1361, %v1385
  %1387 = vdwg.mxu0
  %v1388 = vadd.f32 %v1196, %v1386
  %v1389 = vxor.u32 %v1388, 2147483648
  %v1390 = vmul.f32 %v1389, 1.442695
  %v1391 = vpow.pop %v1390
  %v1392 = vadd.f32 %v1391, 1.0
  %v1393 = vrcp.pop %v1392
  %v1394 = vmul.f32 %v1392, %v1393
  %v1395 = vsub.f32 1.0, %v1394
  %v1396 = vmul.f32 %v1393, %v1395
  %v1397 = vadd.f32 %v1393, %v1396
  %vm1398 = vweird.f32 %v1392
  %vm1399 = vweird.f32 %v1393
  %vm1400 = vmor %vm1398, %vm1399
  %v1401 = vsel %vm1400, %v1393, %v1397
  %v1402 = vand.u32 2147483647, %v1392
  %vm1403 = vcmp.eq.f32.partialorder %v1402, 8.507059e+37
  %v1404 = vand.u32 %v1392, 2147483648
  %v1405 = vor.u32 1.1754944e-38, %v1404
  %v1406 = vsel %vm1403, %v1405, %v1401
  %v1407 = vmul.f32 1.0, %v1406
  %v1408 = vtanh.pop %v1388
  %v1409 = vmul.f32 %v1407, %v1182
  %1411 = vrot.lane.b32.xlu0 %v1408, 64
  %v1412 = vpop.permute.xlu0 %1411
  %v1414 = vmul.f32 %v1407, %v1412
  %1416 = vrot.lane.b32.xlu0 %v1414, 32
  %v1417 = vpop.permute.xlu0 %1416
  %v1419 = vadd.f32 %v1409, %v1417
  %v1420 = vtanh.pop %v1419
  %1422 = vrot.lane.b32.xlu0 %v1420, 64
  %v1423 = vpop.permute.xlu0 %1422
  %v1425 = vmul.f32 %v1407, %v1423
  %1427 = vrot.lane.b32.xlu0 %v1425, 32
  %v1428 = vpop.permute.xlu0 %1427
  %s1430 = scalar_lea.vmem [#allocation4], 24
  %1431 = vst.msk [vmem:[%s1430] sm:$0xff] %vm44, %v1428
  %s1432 = scalar_lea.vmem [#allocation5], 32
  %v1433 = vld [vmem:[%s1432] sm:$0xff]
  %v1434 = vld [vmem:[%s2] sm:$0xff]
  %v1435 = vld [vmem:[%s2 + $0x8] sm:$0xff]
  %v1436 = vld [vmem:[%s2 + $0x10] sm:$0xff]
  %v1437 = vld [vmem:[%s2 + $0x18] sm:$0xff]
  %v1438 = vsel %vm44, %v1428, 0
  %1440 = vmatpush.msra.mxu0 0.0
  %1441 = vmatpush.msra.mxu0 0.0
  %1442 = vmatpush.msra.mxu0 0.0
  %1443 = vmatpush.msra.mxu0 0.0
  %1444 = vmatpush.msra.mxu0 0.0
  %1445 = vmatpush.msra.mxu0 0.0
  %1446 = vmatpush.msra.mxu0 0.0
  %1447 = vmatpush.msra.mxu0 0.0
  %1448 = vmatpush.msra.mxu0 0.0
  %1449 = vmatpush.msra.mxu0 0.0
  %1450 = vmatpush.msra.mxu0 0.0
  %1451 = vmatpush.msra.mxu0 0.0
  %v1452 = vand.u32 %v1437, 4294901760
  %1453 = vmatpush.msra.mxu0 %v1452
  %v1454 = vand.u32 %v1436, 4294901760
  %1455 = vmatpush.msra.mxu0 %v1454
  %v1456 = vand.u32 %v1435, 4294901760
  %1457 = vmatpush.msra.mxu0 %v1456
  %v1458 = vand.u32 %v1434, 4294901760
  %1459 = vmatpush.msra.mxu0 %v1458
  %v1460 = vand.u32 %v1438, 4294901760
  %v1461 = vsub.f32 %v1438, %v1460
  %v1462 = vand.u32 %v1461, 4294901760
  %v1463 = vsub.f32 %v1461, %v1462
  %v1464 = vand.u32 %v1463, 4294901760
  %1465 = vmatmul.f32.gmra.mxu0 %v1464
  %v1466 = vpop.f32.mrf.mxu0
  %v1467 = vadd.f32 0.0, %v1466
  %1468 = vdwg.mxu0
  %1469 = vmatpush.msra.mxu0 0.0
  %1470 = vmatpush.msra.mxu0 0.0
  %1471 = vmatpush.msra.mxu0 0.0
  %1472 = vmatpush.msra.mxu0 0.0
  %1473 = vmatpush.msra.mxu0 0.0
  %1474 = vmatpush.msra.mxu0 0.0
  %1475 = vmatpush.msra.mxu0 0.0
  %1476 = vmatpush.msra.mxu0 0.0
  %1477 = vmatpush.msra.mxu0 0.0
  %1478 = vmatpush.msra.mxu0 0.0
  %1479 = vmatpush.msra.mxu0 0.0
  %1480 = vmatpush.msra.mxu0 0.0
  %v1481 = vand.u32 %v1437, 4294901760
  %v1482 = vsub.f32 %v1437, %v1481
  %v1483 = vand.u32 %v1482, 4294901760
  %v1484 = vsub.f32 %v1482, %v1483
  %v1485 = vand.u32 %v1484, 4294901760
  %1486 = vmatpush.msra.mxu0 %v1485
  %v1487 = vand.u32 %v1436, 4294901760
  %v1488 = vsub.f32 %v1436, %v1487
  %v1489 = vand.u32 %v1488, 4294901760
  %v1490 = vsub.f32 %v1488, %v1489
  %v1491 = vand.u32 %v1490, 4294901760
  %1492 = vmatpush.msra.mxu0 %v1491
  %v1493 = vand.u32 %v1435, 4294901760
  %v1494 = vsub.f32 %v1435, %v1493
  %v1495 = vand.u32 %v1494, 4294901760
  %v1496 = vsub.f32 %v1494, %v1495
  %v1497 = vand.u32 %v1496, 4294901760
  %1498 = vmatpush.msra.mxu0 %v1497
  %v1499 = vand.u32 %v1434, 4294901760
  %v1500 = vsub.f32 %v1434, %v1499
  %v1501 = vand.u32 %v1500, 4294901760
  %v1502 = vsub.f32 %v1500, %v1501
  %v1503 = vand.u32 %v1502, 4294901760
  %1504 = vmatpush.msra.mxu0 %v1503
  %v1505 = vand.u32 %v1438, 4294901760
  %1506 = vmatmul.f32.gmra.mxu0 %v1505
  %v1507 = vpop.f32.mrf.mxu0
  %v1508 = vadd.f32 %v1467, %v1507
  %1509 = vdwg.mxu0
  %1510 = vmatpush.msra.mxu0 0.0
  %1511 = vmatpush.msra.mxu0 0.0
  %1512 = vmatpush.msra.mxu0 0.0
  %1513 = vmatpush.msra.mxu0 0.0
  %1514 = vmatpush.msra.mxu0 0.0
  %1515 = vmatpush.msra.mxu0 0.0
  %1516 = vmatpush.msra.mxu0 0.0
  %1517 = vmatpush.msra.mxu0 0.0
  %1518 = vmatpush.msra.mxu0 0.0
  %1519 = vmatpush.msra.mxu0 0.0
  %1520 = vmatpush.msra.mxu0 0.0
  %1521 = vmatpush.msra.mxu0 0.0
  %v1522 = vand.u32 %v1437, 4294901760
  %v1523 = vsub.f32 %v1437, %v1522
  %1524 = vmatpush.msra.mxu0 %v1523
  %v1525 = vand.u32 %v1436, 4294901760
  %v1526 = vsub.f32 %v1436, %v1525
  %1527 = vmatpush.msra.mxu0 %v1526
  %v1528 = vand.u32 %v1435, 4294901760
  %v1529 = vsub.f32 %v1435, %v1528
  %1530 = vmatpush.msra.mxu0 %v1529
  %v1531 = vand.u32 %v1434, 4294901760
  %v1532 = vsub.f32 %v1434, %v1531
  %1533 = vmatpush.msra.mxu0 %v1532
  %v1534 = vand.u32 %v1438, 4294901760
  %v1535 = vsub.f32 %v1438, %v1534
  %1536 = vmatmul.f32.gmra.mxu0 %v1535
  %v1537 = vpop.f32.mrf.mxu0
  %v1538 = vadd.f32 %v1508, %v1537
  %1539 = vdwg.mxu0
  %1540 = vmatpush.msra.mxu0 0.0
  %1541 = vmatpush.msra.mxu0 0.0
  %1542 = vmatpush.msra.mxu0 0.0
  %1543 = vmatpush.msra.mxu0 0.0
  %1544 = vmatpush.msra.mxu0 0.0
  %1545 = vmatpush.msra.mxu0 0.0
  %1546 = vmatpush.msra.mxu0 0.0
  %1547 = vmatpush.msra.mxu0 0.0
  %1548 = vmatpush.msra.mxu0 0.0
  %1549 = vmatpush.msra.mxu0 0.0
  %1550 = vmatpush.msra.mxu0 0.0
  %1551 = vmatpush.msra.mxu0 0.0
  %v1552 = vand.u32 %v1437, 4294901760
  %1553 = vmatpush.msra.mxu0 %v1552
  %v1554 = vand.u32 %v1436, 4294901760
  %1555 = vmatpush.msra.mxu0 %v1554
  %v1556 = vand.u32 %v1435, 4294901760
  %1557 = vmatpush.msra.mxu0 %v1556
  %v1558 = vand.u32 %v1434, 4294901760
  %1559 = vmatpush.msra.mxu0 %v1558
  %v1560 = vand.u32 %v1438, 4294901760
  %v1561 = vsub.f32 %v1438, %v1560
  %v1562 = vand.u32 %v1561, 4294901760
  %1563 = vmatmul.f32.gmra.mxu0 %v1562
  %v1564 = vpop.f32.mrf.mxu0
  %v1565 = vadd.f32 %v1538, %v1564
  %1566 = vdwg.mxu0
  %1567 = vmatpush.msra.mxu0 0.0
  %1568 = vmatpush.msra.mxu0 0.0
  %1569 = vmatpush.msra.mxu0 0.0
  %1570 = vmatpush.msra.mxu0 0.0
  %1571 = vmatpush.msra.mxu0 0.0
  %1572 = vmatpush.msra.mxu0 0.0
  %1573 = vmatpush.msra.mxu0 0.0
  %1574 = vmatpush.msra.mxu0 0.0
  %1575 = vmatpush.msra.mxu0 0.0
  %1576 = vmatpush.msra.mxu0 0.0
  %1577 = vmatpush.msra.mxu0 0.0
  %1578 = vmatpush.msra.mxu0 0.0
  %v1579 = vand.u32 %v1437, 4294901760
  %v1580 = vsub.f32 %v1437, %v1579
  %v1581 = vand.u32 %v1580, 4294901760
  %1582 = vmatpush.msra.mxu0 %v1581
  %v1583 = vand.u32 %v1436, 4294901760
  %v1584 = vsub.f32 %v1436, %v1583
  %v1585 = vand.u32 %v1584, 4294901760
  %1586 = vmatpush.msra.mxu0 %v1585
  %v1587 = vand.u32 %v1435, 4294901760
  %v1588 = vsub.f32 %v1435, %v1587
  %v1589 = vand.u32 %v1588, 4294901760
  %1590 = vmatpush.msra.mxu0 %v1589
  %v1591 = vand.u32 %v1434, 4294901760
  %v1592 = vsub.f32 %v1434, %v1591
  %v1593 = vand.u32 %v1592, 4294901760
  %1594 = vmatpush.msra.mxu0 %v1593
  %v1595 = vand.u32 %v1438, 4294901760
  %1596 = vmatmul.f32.gmra.mxu0 %v1595
  %v1597 = vpop.f32.mrf.mxu0
  %v1598 = vadd.f32 %v1565, %v1597
  %1599 = vdwg.mxu0
  %1600 = vmatpush.msra.mxu0 0.0
  %1601 = vmatpush.msra.mxu0 0.0
  %1602 = vmatpush.msra.mxu0 0.0
  %1603 = vmatpush.msra.mxu0 0.0
  %1604 = vmatpush.msra.mxu0 0.0
  %1605 = vmatpush.msra.mxu0 0.0
  %1606 = vmatpush.msra.mxu0 0.0
  %1607 = vmatpush.msra.mxu0 0.0
  %1608 = vmatpush.msra.mxu0 0.0
  %1609 = vmatpush.msra.mxu0 0.0
  %1610 = vmatpush.msra.mxu0 0.0
  %1611 = vmatpush.msra.mxu0 0.0
  %v1612 = vand.u32 %v1437, 4294901760
  %1613 = vmatpush.msra.mxu0 %v1612
  %v1614 = vand.u32 %v1436, 4294901760
  %1615 = vmatpush.msra.mxu0 %v1614
  %v1616 = vand.u32 %v1435, 4294901760
  %1617 = vmatpush.msra.mxu0 %v1616
  %v1618 = vand.u32 %v1434, 4294901760
  %1619 = vmatpush.msra.mxu0 %v1618
  %v1620 = vand.u32 %v1438, 4294901760
  %1621 = vmatmul.f32.gmra.mxu0 %v1620
  %v1622 = vpop.f32.mrf.mxu0
  %v1623 = vadd.f32 %v1598, %v1622
  %1624 = vdwg.mxu0
  %v1625 = vadd.f32 %v1433, %v1623
  %v1626 = vxor.u32 %v1625, 2147483648
  %v1627 = vmul.f32 %v1626, 1.442695
  %v1628 = vpow.pop %v1627
  %v1629 = vadd.f32 %v1628, 1.0
  %v1630 = vrcp.pop %v1629
  %v1631 = vmul.f32 %v1629, %v1630
  %v1632 = vsub.f32 1.0, %v1631
  %v1633 = vmul.f32 %v1630, %v1632
  %v1634 = vadd.f32 %v1630, %v1633
  %vm1635 = vweird.f32 %v1629
  %vm1636 = vweird.f32 %v1630
  %vm1637 = vmor %vm1635, %vm1636
  %v1638 = vsel %vm1637, %v1630, %v1634
  %v1639 = vand.u32 2147483647, %v1629
  %vm1640 = vcmp.eq.f32.partialorder %v1639, 8.507059e+37
  %v1641 = vand.u32 %v1629, 2147483648
  %v1642 = vor.u32 1.1754944e-38, %v1641
  %v1643 = vsel %vm1640, %v1642, %v1638
  %v1644 = vmul.f32 1.0, %v1643
  %v1645 = vtanh.pop %v1625
  %v1646 = vmul.f32 %v1644, %v1419
  %1648 = vrot.lane.b32.xlu0 %v1645, 64
  %v1649 = vpop.permute.xlu0 %1648
  %v1651 = vmul.f32 %v1644, %v1649
  %1653 = vrot.lane.b32.xlu0 %v1651, 32
  %v1654 = vpop.permute.xlu0 %1653
  %v1656 = vadd.f32 %v1646, %v1654
  %v1657 = vtanh.pop %v1656
  %1659 = vrot.lane.b32.xlu0 %v1657, 64
  %v1660 = vpop.permute.xlu0 %1659
  %v1662 = vmul.f32 %v1644, %v1660
  %1664 = vrot.lane.b32.xlu0 %v1662, 32
  %v1665 = vpop.permute.xlu0 %1664
  %s1667 = scalar_lea.vmem [#allocation4], 32
  %1668 = vst.msk [vmem:[%s1667] sm:$0xff] %vm44, %v1665
  %s1669 = scalar_lea.vmem [#allocation5], 40
  %v1670 = vld [vmem:[%s1669] sm:$0xff]
  %v1671 = vld [vmem:[%s2] sm:$0xff]
  %v1672 = vld [vmem:[%s2 + $0x8] sm:$0xff]
  %v1673 = vld [vmem:[%s2 + $0x10] sm:$0xff]
  %v1674 = vld [vmem:[%s2 + $0x18] sm:$0xff]
  %v1675 = vsel %vm44, %v1665, 0
  %1677 = vmatpush.msra.mxu0 0.0
  %1678 = vmatpush.msra.mxu0 0.0
  %1679 = vmatpush.msra.mxu0 0.0
  %1680 = vmatpush.msra.mxu0 0.0
  %1681 = vmatpush.msra.mxu0 0.0
  %1682 = vmatpush.msra.mxu0 0.0
  %1683 = vmatpush.msra.mxu0 0.0
  %1684 = vmatpush.msra.mxu0 0.0
  %1685 = vmatpush.msra.mxu0 0.0
  %1686 = vmatpush.msra.mxu0 0.0
  %1687 = vmatpush.msra.mxu0 0.0
  %1688 = vmatpush.msra.mxu0 0.0
  %v1689 = vand.u32 %v1674, 4294901760
  %1690 = vmatpush.msra.mxu0 %v1689
  %v1691 = vand.u32 %v1673, 4294901760
  %1692 = vmatpush.msra.mxu0 %v1691
  %v1693 = vand.u32 %v1672, 4294901760
  %1694 = vmatpush.msra.mxu0 %v1693
  %v1695 = vand.u32 %v1671, 4294901760
  %1696 = vmatpush.msra.mxu0 %v1695
  %v1697 = vand.u32 %v1675, 4294901760
  %v1698 = vsub.f32 %v1675, %v1697
  %v1699 = vand.u32 %v1698, 4294901760
  %v1700 = vsub.f32 %v1698, %v1699
  %v1701 = vand.u32 %v1700, 4294901760
  %1702 = vmatmul.f32.gmra.mxu0 %v1701
  %v1703 = vpop.f32.mrf.mxu0
  %v1704 = vadd.f32 0.0, %v1703
  %1705 = vdwg.mxu0
  %1706 = vmatpush.msra.mxu0 0.0
  %1707 = vmatpush.msra.mxu0 0.0
  %1708 = vmatpush.msra.mxu0 0.0
  %1709 = vmatpush.msra.mxu0 0.0
  %1710 = vmatpush.msra.mxu0 0.0
  %1711 = vmatpush.msra.mxu0 0.0
  %1712 = vmatpush.msra.mxu0 0.0
  %1713 = vmatpush.msra.mxu0 0.0
  %1714 = vmatpush.msra.mxu0 0.0
  %1715 = vmatpush.msra.mxu0 0.0
  %1716 = vmatpush.msra.mxu0 0.0
  %1717 = vmatpush.msra.mxu0 0.0
  %v1718 = vand.u32 %v1674, 4294901760
  %v1719 = vsub.f32 %v1674, %v1718
  %v1720 = vand.u32 %v1719, 4294901760
  %v1721 = vsub.f32 %v1719, %v1720
  %v1722 = vand.u32 %v1721, 4294901760
  %1723 = vmatpush.msra.mxu0 %v1722
  %v1724 = vand.u32 %v1673, 4294901760
  %v1725 = vsub.f32 %v1673, %v1724
  %v1726 = vand.u32 %v1725, 4294901760
  %v1727 = vsub.f32 %v1725, %v1726
  %v1728 = vand.u32 %v1727, 4294901760
  %1729 = vmatpush.msra.mxu0 %v1728
  %v1730 = vand.u32 %v1672, 4294901760
  %v1731 = vsub.f32 %v1672, %v1730
  %v1732 = vand.u32 %v1731, 4294901760
  %v1733 = vsub.f32 %v1731, %v1732
  %v1734 = vand.u32 %v1733, 4294901760
  %1735 = vmatpush.msra.mxu0 %v1734
  %v1736 = vand.u32 %v1671, 4294901760
  %v1737 = vsub.f32 %v1671, %v1736
  %v1738 = vand.u32 %v1737, 4294901760
  %v1739 = vsub.f32 %v1737, %v1738
  %v1740 = vand.u32 %v1739, 4294901760
  %1741 = vmatpush.msra.mxu0 %v1740
  %v1742 = vand.u32 %v1675, 4294901760
  %1743 = vmatmul.f32.gmra.mxu0 %v1742
  %v1744 = vpop.f32.mrf.mxu0
  %v1745 = vadd.f32 %v1704, %v1744
  %1746 = vdwg.mxu0
  %1747 = vmatpush.msra.mxu0 0.0
  %1748 = vmatpush.msra.mxu0 0.0
  %1749 = vmatpush.msra.mxu0 0.0
  %1750 = vmatpush.msra.mxu0 0.0
  %1751 = vmatpush.msra.mxu0 0.0
  %1752 = vmatpush.msra.mxu0 0.0
  %1753 = vmatpush.msra.mxu0 0.0
  %1754 = vmatpush.msra.mxu0 0.0
  %1755 = vmatpush.msra.mxu0 0.0
  %1756 = vmatpush.msra.mxu0 0.0
  %1757 = vmatpush.msra.mxu0 0.0
  %1758 = vmatpush.msra.mxu0 0.0
  %v1759 = vand.u32 %v1674, 4294901760
  %v1760 = vsub.f32 %v1674, %v1759
  %1761 = vmatpush.msra.mxu0 %v1760
  %v1762 = vand.u32 %v1673, 4294901760
  %v1763 = vsub.f32 %v1673, %v1762
  %1764 = vmatpush.msra.mxu0 %v1763
  %v1765 = vand.u32 %v1672, 4294901760
  %v1766 = vsub.f32 %v1672, %v1765
  %1767 = vmatpush.msra.mxu0 %v1766
  %v1768 = vand.u32 %v1671, 4294901760
  %v1769 = vsub.f32 %v1671, %v1768
  %1770 = vmatpush.msra.mxu0 %v1769
  %v1771 = vand.u32 %v1675, 4294901760
  %v1772 = vsub.f32 %v1675, %v1771
  %1773 = vmatmul.f32.gmra.mxu0 %v1772
  %v1774 = vpop.f32.mrf.mxu0
  %v1775 = vadd.f32 %v1745, %v1774
  %1776 = vdwg.mxu0
  %1777 = vmatpush.msra.mxu0 0.0
  %1778 = vmatpush.msra.mxu0 0.0
  %1779 = vmatpush.msra.mxu0 0.0
  %1780 = vmatpush.msra.mxu0 0.0
  %1781 = vmatpush.msra.mxu0 0.0
  %1782 = vmatpush.msra.mxu0 0.0
  %1783 = vmatpush.msra.mxu0 0.0
  %1784 = vmatpush.msra.mxu0 0.0
  %1785 = vmatpush.msra.mxu0 0.0
  %1786 = vmatpush.msra.mxu0 0.0
  %1787 = vmatpush.msra.mxu0 0.0
  %1788 = vmatpush.msra.mxu0 0.0
  %v1789 = vand.u32 %v1674, 4294901760
  %1790 = vmatpush.msra.mxu0 %v1789
  %v1791 = vand.u32 %v1673, 4294901760
  %1792 = vmatpush.msra.mxu0 %v1791
  %v1793 = vand.u32 %v1672, 4294901760
  %1794 = vmatpush.msra.mxu0 %v1793
  %v1795 = vand.u32 %v1671, 4294901760
  %1796 = vmatpush.msra.mxu0 %v1795
  %v1797 = vand.u32 %v1675, 4294901760
  %v1798 = vsub.f32 %v1675, %v1797
  %v1799 = vand.u32 %v1798, 4294901760
  %1800 = vmatmul.f32.gmra.mxu0 %v1799
  %v1801 = vpop.f32.mrf.mxu0
  %v1802 = vadd.f32 %v1775, %v1801
  %1803 = vdwg.mxu0
  %1804 = vmatpush.msra.mxu0 0.0
  %1805 = vmatpush.msra.mxu0 0.0
  %1806 = vmatpush.msra.mxu0 0.0
  %1807 = vmatpush.msra.mxu0 0.0
  %1808 = vmatpush.msra.mxu0 0.0
  %1809 = vmatpush.msra.mxu0 0.0
  %1810 = vmatpush.msra.mxu0 0.0
  %1811 = vmatpush.msra.mxu0 0.0
  %1812 = vmatpush.msra.mxu0 0.0
  %1813 = vmatpush.msra.mxu0 0.0
  %1814 = vmatpush.msra.mxu0 0.0
  %1815 = vmatpush.msra.mxu0 0.0
  %v1816 = vand.u32 %v1674, 4294901760
  %v1817 = vsub.f32 %v1674, %v1816
  %v1818 = vand.u32 %v1817, 4294901760
  %1819 = vmatpush.msra.mxu0 %v1818
  %v1820 = vand.u32 %v1673, 4294901760
  %v1821 = vsub.f32 %v1673, %v1820
  %v1822 = vand.u32 %v1821, 4294901760
  %1823 = vmatpush.msra.mxu0 %v1822
  %v1824 = vand.u32 %v1672, 4294901760
  %v1825 = vsub.f32 %v1672, %v1824
  %v1826 = vand.u32 %v1825, 4294901760
  %1827 = vmatpush.msra.mxu0 %v1826
  %v1828 = vand.u32 %v1671, 4294901760
  %v1829 = vsub.f32 %v1671, %v1828
  %v1830 = vand.u32 %v1829, 4294901760
  %1831 = vmatpush.msra.mxu0 %v1830
  %v1832 = vand.u32 %v1675, 4294901760
  %1833 = vmatmul.f32.gmra.mxu0 %v1832
  %v1834 = vpop.f32.mrf.mxu0
  %v1835 = vadd.f32 %v1802, %v1834
  %1836 = vdwg.mxu0
  %1837 = vmatpush.msra.mxu0 0.0
  %1838 = vmatpush.msra.mxu0 0.0
  %1839 = vmatpush.msra.mxu0 0.0
  %1840 = vmatpush.msra.mxu0 0.0
  %1841 = vmatpush.msra.mxu0 0.0
  %1842 = vmatpush.msra.mxu0 0.0
  %1843 = vmatpush.msra.mxu0 0.0
  %1844 = vmatpush.msra.mxu0 0.0
  %1845 = vmatpush.msra.mxu0 0.0
  %1846 = vmatpush.msra.mxu0 0.0
  %1847 = vmatpush.msra.mxu0 0.0
  %1848 = vmatpush.msra.mxu0 0.0
  %v1849 = vand.u32 %v1674, 4294901760
  %1850 = vmatpush.msra.mxu0 %v1849
  %v1851 = vand.u32 %v1673, 4294901760
  %1852 = vmatpush.msra.mxu0 %v1851
  %v1853 = vand.u32 %v1672, 4294901760
  %1854 = vmatpush.msra.mxu0 %v1853
  %v1855 = vand.u32 %v1671, 4294901760
  %1856 = vmatpush.msra.mxu0 %v1855
  %v1857 = vand.u32 %v1675, 4294901760
  %1858 = vmatmul.f32.gmra.mxu0 %v1857
  %v1859 = vpop.f32.mrf.mxu0
  %v1860 = vadd.f32 %v1835, %v1859
  %1861 = vdwg.mxu0
  %v1862 = vadd.f32 %v1670, %v1860
  %v1863 = vxor.u32 %v1862, 2147483648
  %v1864 = vmul.f32 %v1863, 1.442695
  %v1865 = vpow.pop %v1864
  %v1866 = vadd.f32 %v1865, 1.0
  %v1867 = vrcp.pop %v1866
  %v1868 = vmul.f32 %v1866, %v1867
  %v1869 = vsub.f32 1.0, %v1868
  %v1870 = vmul.f32 %v1867, %v1869
  %v1871 = vadd.f32 %v1867, %v1870
  %vm1872 = vweird.f32 %v1866
  %vm1873 = vweird.f32 %v1867
  %vm1874 = vmor %vm1872, %vm1873
  %v1875 = vsel %vm1874, %v1867, %v1871
  %v1876 = vand.u32 2147483647, %v1866
  %vm1877 = vcmp.eq.f32.partialorder %v1876, 8.507059e+37
  %v1878 = vand.u32 %v1866, 2147483648
  %v1879 = vor.u32 1.1754944e-38, %v1878
  %v1880 = vsel %vm1877, %v1879, %v1875
  %v1881 = vmul.f32 1.0, %v1880
  %v1882 = vtanh.pop %v1862
  %v1883 = vmul.f32 %v1881, %v1656
  %1885 = vrot.lane.b32.xlu0 %v1882, 64
  %v1886 = vpop.permute.xlu0 %1885
  %v1888 = vmul.f32 %v1881, %v1886
  %1890 = vrot.lane.b32.xlu0 %v1888, 32
  %v1891 = vpop.permute.xlu0 %1890
  %v1893 = vadd.f32 %v1883, %v1891
  %v1894 = vtanh.pop %v1893
  %1896 = vrot.lane.b32.xlu0 %v1894, 64
  %v1897 = vpop.permute.xlu0 %1896
  %v1899 = vmul.f32 %v1881, %v1897
  %1901 = vrot.lane.b32.xlu0 %v1899, 32
  %v1902 = vpop.permute.xlu0 %1901
  %s1904 = scalar_lea.vmem [#allocation4], 40
  %1905 = vst.msk [vmem:[%s1904] sm:$0xff] %vm44, %v1902
  %s1906 = scalar_lea.vmem [#allocation5], 48
  %v1907 = vld [vmem:[%s1906] sm:$0xff]
  %v1908 = vld [vmem:[%s2] sm:$0xff]
  %v1909 = vld [vmem:[%s2 + $0x8] sm:$0xff]
  %v1910 = vld [vmem:[%s2 + $0x10] sm:$0xff]
  %v1911 = vld [vmem:[%s2 + $0x18] sm:$0xff]
  %v1912 = vsel %vm44, %v1902, 0
  %1914 = vmatpush.msra.mxu0 0.0
  %1915 = vmatpush.msra.mxu0 0.0
  %1916 = vmatpush.msra.mxu0 0.0
  %1917 = vmatpush.msra.mxu0 0.0
  %1918 = vmatpush.msra.mxu0 0.0
  %1919 = vmatpush.msra.mxu0 0.0
  %1920 = vmatpush.msra.mxu0 0.0
  %1921 = vmatpush.msra.mxu0 0.0
  %1922 = vmatpush.msra.mxu0 0.0
  %1923 = vmatpush.msra.mxu0 0.0
  %1924 = vmatpush.msra.mxu0 0.0
  %1925 = vmatpush.msra.mxu0 0.0
  %v1926 = vand.u32 %v1911, 4294901760
  %1927 = vmatpush.msra.mxu0 %v1926
  %v1928 = vand.u32 %v1910, 4294901760
  %1929 = vmatpush.msra.mxu0 %v1928
  %v1930 = vand.u32 %v1909, 4294901760
  %1931 = vmatpush.msra.mxu0 %v1930
  %v1932 = vand.u32 %v1908, 4294901760
  %1933 = vmatpush.msra.mxu0 %v1932
  %v1934 = vand.u32 %v1912, 4294901760
  %v1935 = vsub.f32 %v1912, %v1934
  %v1936 = vand.u32 %v1935, 4294901760
  %v1937 = vsub.f32 %v1935, %v1936
  %v1938 = vand.u32 %v1937, 4294901760
  %1939 = vmatmul.f32.gmra.mxu0 %v1938
  %v1940 = vpop.f32.mrf.mxu0
  %v1941 = vadd.f32 0.0, %v1940
  %1942 = vdwg.mxu0
  %1943 = vmatpush.msra.mxu0 0.0
  %1944 = vmatpush.msra.mxu0 0.0
  %1945 = vmatpush.msra.mxu0 0.0
  %1946 = vmatpush.msra.mxu0 0.0
  %1947 = vmatpush.msra.mxu0 0.0
  %1948 = vmatpush.msra.mxu0 0.0
  %1949 = vmatpush.msra.mxu0 0.0
  %1950 = vmatpush.msra.mxu0 0.0
  %1951 = vmatpush.msra.mxu0 0.0
  %1952 = vmatpush.msra.mxu0 0.0
  %1953 = vmatpush.msra.mxu0 0.0
  %1954 = vmatpush.msra.mxu0 0.0
  %v1955 = vand.u32 %v1911, 4294901760
  %v1956 = vsub.f32 %v1911, %v1955
  %v1957 = vand.u32 %v1956, 4294901760
  %v1958 = vsub.f32 %v1956, %v1957
  %v1959 = vand.u32 %v1958, 4294901760
  %1960 = vmatpush.msra.mxu0 %v1959
  %v1961 = vand.u32 %v1910, 4294901760
  %v1962 = vsub.f32 %v1910, %v1961
  %v1963 = vand.u32 %v1962, 4294901760
  %v1964 = vsub.f32 %v1962, %v1963
  %v1965 = vand.u32 %v1964, 4294901760
  %1966 = vmatpush.msra.mxu0 %v1965
  %v1967 = vand.u32 %v1909, 4294901760
  %v1968 = vsub.f32 %v1909, %v1967
  %v1969 = vand.u32 %v1968, 4294901760
  %v1970 = vsub.f32 %v1968, %v1969
  %v1971 = vand.u32 %v1970, 4294901760
  %1972 = vmatpush.msra.mxu0 %v1971
  %v1973 = vand.u32 %v1908, 4294901760
  %v1974 = vsub.f32 %v1908, %v1973
  %v1975 = vand.u32 %v1974, 4294901760
  %v1976 = vsub.f32 %v1974, %v1975
  %v1977 = vand.u32 %v1976, 4294901760
  %1978 = vmatpush.msra.mxu0 %v1977
  %v1979 = vand.u32 %v1912, 4294901760
  %1980 = vmatmul.f32.gmra.mxu0 %v1979
  %v1981 = vpop.f32.mrf.mxu0
  %v1982 = vadd.f32 %v1941, %v1981
  %1983 = vdwg.mxu0
  %1984 = vmatpush.msra.mxu0 0.0
  %1985 = vmatpush.msra.mxu0 0.0
  %1986 = vmatpush.msra.mxu0 0.0
  %1987 = vmatpush.msra.mxu0 0.0
  %1988 = vmatpush.msra.mxu0 0.0
  %1989 = vmatpush.msra.mxu0 0.0
  %1990 = vmatpush.msra.mxu0 0.0
  %1991 = vmatpush.msra.mxu0 0.0
  %1992 = vmatpush.msra.mxu0 0.0
  %1993 = vmatpush.msra.mxu0 0.0
  %1994 = vmatpush.msra.mxu0 0.0
  %1995 = vmatpush.msra.mxu0 0.0
  %v1996 = vand.u32 %v1911, 4294901760
  %v1997 = vsub.f32 %v1911, %v1996
  %1998 = vmatpush.msra.mxu0 %v1997
  %v1999 = vand.u32 %v1910, 4294901760
  %v2000 = vsub.f32 %v1910, %v1999
  %2001 = vmatpush.msra.mxu0 %v2000
  %v2002 = vand.u32 %v1909, 4294901760
  %v2003 = vsub.f32 %v1909, %v2002
  %2004 = vmatpush.msra.mxu0 %v2003
  %v2005 = vand.u32 %v1908, 4294901760
  %v2006 = vsub.f32 %v1908, %v2005
  %2007 = vmatpush.msra.mxu0 %v2006
  %v2008 = vand.u32 %v1912, 4294901760
  %v2009 = vsub.f32 %v1912, %v2008
  %2010 = vmatmul.f32.gmra.mxu0 %v2009
  %v2011 = vpop.f32.mrf.mxu0
  %v2012 = vadd.f32 %v1982, %v2011
  %2013 = vdwg.mxu0
  %2014 = vmatpush.msra.mxu0 0.0
  %2015 = vmatpush.msra.mxu0 0.0
  %2016 = vmatpush.msra.mxu0 0.0
  %2017 = vmatpush.msra.mxu0 0.0
  %2018 = vmatpush.msra.mxu0 0.0
  %2019 = vmatpush.msra.mxu0 0.0
  %2020 = vmatpush.msra.mxu0 0.0
  %2021 = vmatpush.msra.mxu0 0.0
  %2022 = vmatpush.msra.mxu0 0.0
  %2023 = vmatpush.msra.mxu0 0.0
  %2024 = vmatpush.msra.mxu0 0.0
  %2025 = vmatpush.msra.mxu0 0.0
  %v2026 = vand.u32 %v1911, 4294901760
  %2027 = vmatpush.msra.mxu0 %v2026
  %v2028 = vand.u32 %v1910, 4294901760
  %2029 = vmatpush.msra.mxu0 %v2028
  %v2030 = vand.u32 %v1909, 4294901760
  %2031 = vmatpush.msra.mxu0 %v2030
  %v2032 = vand.u32 %v1908, 4294901760
  %2033 = vmatpush.msra.mxu0 %v2032
  %v2034 = vand.u32 %v1912, 4294901760
  %v2035 = vsub.f32 %v1912, %v2034
  %v2036 = vand.u32 %v2035, 4294901760
  %2037 = vmatmul.f32.gmra.mxu0 %v2036
  %v2038 = vpop.f32.mrf.mxu0
  %v2039 = vadd.f32 %v2012, %v2038
  %2040 = vdwg.mxu0
  %2041 = vmatpush.msra.mxu0 0.0
  %2042 = vmatpush.msra.mxu0 0.0
  %2043 = vmatpush.msra.mxu0 0.0
  %2044 = vmatpush.msra.mxu0 0.0
  %2045 = vmatpush.msra.mxu0 0.0
  %2046 = vmatpush.msra.mxu0 0.0
  %2047 = vmatpush.msra.mxu0 0.0
  %2048 = vmatpush.msra.mxu0 0.0
  %2049 = vmatpush.msra.mxu0 0.0
  %2050 = vmatpush.msra.mxu0 0.0
  %2051 = vmatpush.msra.mxu0 0.0
  %2052 = vmatpush.msra.mxu0 0.0
  %v2053 = vand.u32 %v1911, 4294901760
  %v2054 = vsub.f32 %v1911, %v2053
  %v2055 = vand.u32 %v2054, 4294901760
  %2056 = vmatpush.msra.mxu0 %v2055
  %v2057 = vand.u32 %v1910, 4294901760
  %v2058 = vsub.f32 %v1910, %v2057
  %v2059 = vand.u32 %v2058, 4294901760
  %2060 = vmatpush.msra.mxu0 %v2059
  %v2061 = vand.u32 %v1909, 4294901760
  %v2062 = vsub.f32 %v1909, %v2061
  %v2063 = vand.u32 %v2062, 4294901760
  %2064 = vmatpush.msra.mxu0 %v2063
  %v2065 = vand.u32 %v1908, 4294901760
  %v2066 = vsub.f32 %v1908, %v2065
  %v2067 = vand.u32 %v2066, 4294901760
  %2068 = vmatpush.msra.mxu0 %v2067
  %v2069 = vand.u32 %v1912, 4294901760
  %2070 = vmatmul.f32.gmra.mxu0 %v2069
  %v2071 = vpop.f32.mrf.mxu0
  %v2072 = vadd.f32 %v2039, %v2071
  %2073 = vdwg.mxu0
  %2074 = vmatpush.msra.mxu0 0.0
  %2075 = vmatpush.msra.mxu0 0.0
  %2076 = vmatpush.msra.mxu0 0.0
  %2077 = vmatpush.msra.mxu0 0.0
  %2078 = vmatpush.msra.mxu0 0.0
  %2079 = vmatpush.msra.mxu0 0.0
  %2080 = vmatpush.msra.mxu0 0.0
  %2081 = vmatpush.msra.mxu0 0.0
  %2082 = vmatpush.msra.mxu0 0.0
  %2083 = vmatpush.msra.mxu0 0.0
  %2084 = vmatpush.msra.mxu0 0.0
  %2085 = vmatpush.msra.mxu0 0.0
  %v2086 = vand.u32 %v1911, 4294901760
  %2087 = vmatpush.msra.mxu0 %v2086
  %v2088 = vand.u32 %v1910, 4294901760
  %2089 = vmatpush.msra.mxu0 %v2088
  %v2090 = vand.u32 %v1909, 4294901760
  %2091 = vmatpush.msra.mxu0 %v2090
  %v2092 = vand.u32 %v1908, 4294901760
  %2093 = vmatpush.msra.mxu0 %v2092
  %v2094 = vand.u32 %v1912, 4294901760
  %2095 = vmatmul.f32.gmra.mxu0 %v2094
  %v2096 = vpop.f32.mrf.mxu0
  %v2097 = vadd.f32 %v2072, %v2096
  %2098 = vdwg.mxu0
  %v2099 = vadd.f32 %v1907, %v2097
  %v2100 = vxor.u32 %v2099, 2147483648
  %v2101 = vmul.f32 %v2100, 1.442695
  %v2102 = vpow.pop %v2101
  %v2103 = vadd.f32 %v2102, 1.0
  %v2104 = vrcp.pop %v2103
  %v2105 = vmul.f32 %v2103, %v2104
  %v2106 = vsub.f32 1.0, %v2105
  %v2107 = vmul.f32 %v2104, %v2106
  %v2108 = vadd.f32 %v2104, %v2107
  %vm2109 = vweird.f32 %v2103
  %vm2110 = vweird.f32 %v2104
  %vm2111 = vmor %vm2109, %vm2110
  %v2112 = vsel %vm2111, %v2104, %v2108
  %v2113 = vand.u32 2147483647, %v2103
  %vm2114 = vcmp.eq.f32.partialorder %v2113, 8.507059e+37
  %v2115 = vand.u32 %v2103, 2147483648
  %v2116 = vor.u32 1.1754944e-38, %v2115
  %v2117 = vsel %vm2114, %v2116, %v2112
  %v2118 = vmul.f32 1.0, %v2117
  %v2119 = vtanh.pop %v2099
  %v2120 = vmul.f32 %v2118, %v1893
  %2122 = vrot.lane.b32.xlu0 %v2119, 64
  %v2123 = vpop.permute.xlu0 %2122
  %v2125 = vmul.f32 %v2118, %v2123
  %2127 = vrot.lane.b32.xlu0 %v2125, 32
  %v2128 = vpop.permute.xlu0 %2127
  %v2130 = vadd.f32 %v2120, %v2128
  %v2131 = vtanh.pop %v2130
  %2133 = vrot.lane.b32.xlu0 %v2131, 64
  %v2134 = vpop.permute.xlu0 %2133
  %v2136 = vmul.f32 %v2118, %v2134
  %2138 = vrot.lane.b32.xlu0 %v2136, 32
  %v2139 = vpop.permute.xlu0 %2138
  %s2141 = scalar_lea.vmem [#allocation4], 48
  %2142 = vst.msk [vmem:[%s2141] sm:$0xff] %vm44, %v2139
  %s2143 = scalar_lea.vmem [#allocation5], 56
  %v2144 = vld [vmem:[%s2143] sm:$0xff]
  %v2145 = vld [vmem:[%s2] sm:$0xff]
  %v2146 = vld [vmem:[%s2 + $0x8] sm:$0xff]
  %v2147 = vld [vmem:[%s2 + $0x10] sm:$0xff]
  %v2148 = vld [vmem:[%s2 + $0x18] sm:$0xff]
  %v2149 = vsel %vm44, %v2139, 0
  %2151 = vmatpush.msra.mxu0 0.0
  %2152 = vmatpush.msra.mxu0 0.0
  %2153 = vmatpush.msra.mxu0 0.0
  %2154 = vmatpush.msra.mxu0 0.0
  %2155 = vmatpush.msra.mxu0 0.0
  %2156 = vmatpush.msra.mxu0 0.0
  %2157 = vmatpush.msra.mxu0 0.0
  %2158 = vmatpush.msra.mxu0 0.0
  %2159 = vmatpush.msra.mxu0 0.0
  %2160 = vmatpush.msra.mxu0 0.0
  %2161 = vmatpush.msra.mxu0 0.0
  %2162 = vmatpush.msra.mxu0 0.0
  %v2163 = vand.u32 %v2148, 4294901760
  %2164 = vmatpush.msra.mxu0 %v2163
  %v2165 = vand.u32 %v2147, 4294901760
  %2166 = vmatpush.msra.mxu0 %v2165
  %v2167 = vand.u32 %v2146, 4294901760
  %2168 = vmatpush.msra.mxu0 %v2167
  %v2169 = vand.u32 %v2145, 4294901760
  %2170 = vmatpush.msra.mxu0 %v2169
  %v2171 = vand.u32 %v2149, 4294901760
  %v2172 = vsub.f32 %v2149, %v2171
  %v2173 = vand.u32 %v2172, 4294901760
  %v2174 = vsub.f32 %v2172, %v2173
  %v2175 = vand.u32 %v2174, 4294901760
  %2176 = vmatmul.f32.gmra.mxu0 %v2175
  %v2177 = vpop.f32.mrf.mxu0
  %v2178 = vadd.f32 0.0, %v2177
  %2179 = vdwg.mxu0
  %2180 = vmatpush.msra.mxu0 0.0
  %2181 = vmatpush.msra.mxu0 0.0
  %2182 = vmatpush.msra.mxu0 0.0
  %2183 = vmatpush.msra.mxu0 0.0
  %2184 = vmatpush.msra.mxu0 0.0
  %2185 = vmatpush.msra.mxu0 0.0
  %2186 = vmatpush.msra.mxu0 0.0
  %2187 = vmatpush.msra.mxu0 0.0
  %2188 = vmatpush.msra.mxu0 0.0
  %2189 = vmatpush.msra.mxu0 0.0
  %2190 = vmatpush.msra.mxu0 0.0
  %2191 = vmatpush.msra.mxu0 0.0
  %v2192 = vand.u32 %v2148, 4294901760
  %v2193 = vsub.f32 %v2148, %v2192
  %v2194 = vand.u32 %v2193, 4294901760
  %v2195 = vsub.f32 %v2193, %v2194
  %v2196 = vand.u32 %v2195, 4294901760
  %2197 = vmatpush.msra.mxu0 %v2196
  %v2198 = vand.u32 %v2147, 4294901760
  %v2199 = vsub.f32 %v2147, %v2198
  %v2200 = vand.u32 %v2199, 4294901760
  %v2201 = vsub.f32 %v2199, %v2200
  %v2202 = vand.u32 %v2201, 4294901760
  %2203 = vmatpush.msra.mxu0 %v2202
  %v2204 = vand.u32 %v2146, 4294901760
  %v2205 = vsub.f32 %v2146, %v2204
  %v2206 = vand.u32 %v2205, 4294901760
  %v2207 = vsub.f32 %v2205, %v2206
  %v2208 = vand.u32 %v2207, 4294901760
  %2209 = vmatpush.msra.mxu0 %v2208
  %v2210 = vand.u32 %v2145, 4294901760
  %v2211 = vsub.f32 %v2145, %v2210
  %v2212 = vand.u32 %v2211, 4294901760
  %v2213 = vsub.f32 %v2211, %v2212
  %v2214 = vand.u32 %v2213, 4294901760
  %2215 = vmatpush.msra.mxu0 %v2214
  %v2216 = vand.u32 %v2149, 4294901760
  %2217 = vmatmul.f32.gmra.mxu0 %v2216
  %v2218 = vpop.f32.mrf.mxu0
  %v2219 = vadd.f32 %v2178, %v2218
  %2220 = vdwg.mxu0
  %2221 = vmatpush.msra.mxu0 0.0
  %2222 = vmatpush.msra.mxu0 0.0
  %2223 = vmatpush.msra.mxu0 0.0
  %2224 = vmatpush.msra.mxu0 0.0
  %2225 = vmatpush.msra.mxu0 0.0
  %2226 = vmatpush.msra.mxu0 0.0
  %2227 = vmatpush.msra.mxu0 0.0
  %2228 = vmatpush.msra.mxu0 0.0
  %2229 = vmatpush.msra.mxu0 0.0
  %2230 = vmatpush.msra.mxu0 0.0
  %2231 = vmatpush.msra.mxu0 0.0
  %2232 = vmatpush.msra.mxu0 0.0
  %v2233 = vand.u32 %v2148, 4294901760
  %v2234 = vsub.f32 %v2148, %v2233
  %2235 = vmatpush.msra.mxu0 %v2234
  %v2236 = vand.u32 %v2147, 4294901760
  %v2237 = vsub.f32 %v2147, %v2236
  %2238 = vmatpush.msra.mxu0 %v2237
  %v2239 = vand.u32 %v2146, 4294901760
  %v2240 = vsub.f32 %v2146, %v2239
  %2241 = vmatpush.msra.mxu0 %v2240
  %v2242 = vand.u32 %v2145, 4294901760
  %v2243 = vsub.f32 %v2145, %v2242
  %2244 = vmatpush.msra.mxu0 %v2243
  %v2245 = vand.u32 %v2149, 4294901760
  %v2246 = vsub.f32 %v2149, %v2245
  %2247 = vmatmul.f32.gmra.mxu0 %v2246
  %v2248 = vpop.f32.mrf.mxu0
  %v2249 = vadd.f32 %v2219, %v2248
  %2250 = vdwg.mxu0
  %2251 = vmatpush.msra.mxu0 0.0
  %2252 = vmatpush.msra.mxu0 0.0
  %2253 = vmatpush.msra.mxu0 0.0
  %2254 = vmatpush.msra.mxu0 0.0
  %2255 = vmatpush.msra.mxu0 0.0
  %2256 = vmatpush.msra.mxu0 0.0
  %2257 = vmatpush.msra.mxu0 0.0
  %2258 = vmatpush.msra.mxu0 0.0
  %2259 = vmatpush.msra.mxu0 0.0
  %2260 = vmatpush.msra.mxu0 0.0
  %2261 = vmatpush.msra.mxu0 0.0
  %2262 = vmatpush.msra.mxu0 0.0
  %v2263 = vand.u32 %v2148, 4294901760
  %2264 = vmatpush.msra.mxu0 %v2263
  %v2265 = vand.u32 %v2147, 4294901760
  %2266 = vmatpush.msra.mxu0 %v2265
  %v2267 = vand.u32 %v2146, 4294901760
  %2268 = vmatpush.msra.mxu0 %v2267
  %v2269 = vand.u32 %v2145, 4294901760
  %2270 = vmatpush.msra.mxu0 %v2269
  %v2271 = vand.u32 %v2149, 4294901760
  %v2272 = vsub.f32 %v2149, %v2271
  %v2273 = vand.u32 %v2272, 4294901760
  %2274 = vmatmul.f32.gmra.mxu0 %v2273
  %v2275 = vpop.f32.mrf.mxu0
  %v2276 = vadd.f32 %v2249, %v2275
  %2277 = vdwg.mxu0
  %2278 = vmatpush.msra.mxu0 0.0
  %2279 = vmatpush.msra.mxu0 0.0
  %2280 = vmatpush.msra.mxu0 0.0
  %2281 = vmatpush.msra.mxu0 0.0
  %2282 = vmatpush.msra.mxu0 0.0
  %2283 = vmatpush.msra.mxu0 0.0
  %2284 = vmatpush.msra.mxu0 0.0
  %2285 = vmatpush.msra.mxu0 0.0
  %2286 = vmatpush.msra.mxu0 0.0
  %2287 = vmatpush.msra.mxu0 0.0
  %2288 = vmatpush.msra.mxu0 0.0
  %2289 = vmatpush.msra.mxu0 0.0
  %v2290 = vand.u32 %v2148, 4294901760
  %v2291 = vsub.f32 %v2148, %v2290
  %v2292 = vand.u32 %v2291, 4294901760
  %2293 = vmatpush.msra.mxu0 %v2292
  %v2294 = vand.u32 %v2147, 4294901760
  %v2295 = vsub.f32 %v2147, %v2294
  %v2296 = vand.u32 %v2295, 4294901760
  %2297 = vmatpush.msra.mxu0 %v2296
  %v2298 = vand.u32 %v2146, 4294901760
  %v2299 = vsub.f32 %v2146, %v2298
  %v2300 = vand.u32 %v2299, 4294901760
  %2301 = vmatpush.msra.mxu0 %v2300
  %v2302 = vand.u32 %v2145, 4294901760
  %v2303 = vsub.f32 %v2145, %v2302
  %v2304 = vand.u32 %v2303, 4294901760
  %2305 = vmatpush.msra.mxu0 %v2304
  %v2306 = vand.u32 %v2149, 4294901760
  %2307 = vmatmul.f32.gmra.mxu0 %v2306
  %v2308 = vpop.f32.mrf.mxu0
  %v2309 = vadd.f32 %v2276, %v2308
  %2310 = vdwg.mxu0
  %2311 = vmatpush.msra.mxu0 0.0
  %2312 = vmatpush.msra.mxu0 0.0
  %2313 = vmatpush.msra.mxu0 0.0
  %2314 = vmatpush.msra.mxu0 0.0
  %2315 = vmatpush.msra.mxu0 0.0
  %2316 = vmatpush.msra.mxu0 0.0
  %2317 = vmatpush.msra.mxu0 0.0
  %2318 = vmatpush.msra.mxu0 0.0
  %2319 = vmatpush.msra.mxu0 0.0
  %2320 = vmatpush.msra.mxu0 0.0
  %2321 = vmatpush.msra.mxu0 0.0
  %2322 = vmatpush.msra.mxu0 0.0
  %v2323 = vand.u32 %v2148, 4294901760
  %2324 = vmatpush.msra.mxu0 %v2323
  %v2325 = vand.u32 %v2147, 4294901760
  %2326 = vmatpush.msra.mxu0 %v2325
  %v2327 = vand.u32 %v2146, 4294901760
  %2328 = vmatpush.msra.mxu0 %v2327
  %v2329 = vand.u32 %v2145, 4294901760
  %2330 = vmatpush.msra.mxu0 %v2329
  %v2331 = vand.u32 %v2149, 4294901760
  %2332 = vmatmul.f32.gmra.mxu0 %v2331
  %v2333 = vpop.f32.mrf.mxu0
  %v2334 = vadd.f32 %v2309, %v2333
  %2335 = vdwg.mxu0
  %v2336 = vadd.f32 %v2144, %v2334
  %v2337 = vxor.u32 %v2336, 2147483648
  %v2338 = vmul.f32 %v2337, 1.442695
  %v2339 = vpow.pop %v2338
  %v2340 = vadd.f32 %v2339, 1.0
  %v2341 = vrcp.pop %v2340
  %v2342 = vmul.f32 %v2340, %v2341
  %v2343 = vsub.f32 1.0, %v2342
  %v2344 = vmul.f32 %v2341, %v2343
  %v2345 = vadd.f32 %v2341, %v2344
  %vm2346 = vweird.f32 %v2340
  %vm2347 = vweird.f32 %v2341
  %vm2348 = vmor %vm2346, %vm2347
  %v2349 = vsel %vm2348, %v2341, %v2345
  %v2350 = vand.u32 2147483647, %v2340
  %vm2351 = vcmp.eq.f32.partialorder %v2350, 8.507059e+37
  %v2352 = vand.u32 %v2340, 2147483648
  %v2353 = vor.u32 1.1754944e-38, %v2352
  %v2354 = vsel %vm2351, %v2353, %v2349
  %v2355 = vmul.f32 1.0, %v2354
  %v2356 = vtanh.pop %v2336
  %v2357 = vmul.f32 %v2355, %v2130
  %2359 = vrot.lane.b32.xlu0 %v2356, 64
  %v2360 = vpop.permute.xlu0 %2359
  %v2362 = vmul.f32 %v2355, %v2360
  %2364 = vrot.lane.b32.xlu0 %v2362, 32
  %v2365 = vpop.permute.xlu0 %2364
  %v2367 = vadd.f32 %v2357, %v2365
  %v2368 = vtanh.pop %v2367
  %2370 = vrot.lane.b32.xlu0 %v2368, 64
  %v2371 = vpop.permute.xlu0 %2370
  %v2373 = vmul.f32 %v2355, %v2371
  %2375 = vrot.lane.b32.xlu0 %v2373, 32
  %v2376 = vpop.permute.xlu0 %2375
  %s2378 = scalar_lea.vmem [#allocation4], 56
  %2379 = vst.msk [vmem:[%s2378] sm:$0xff] %vm44, %v2376
  %2380 = vst.msk [vmem:[#allocation2] sm:$0xff] %vm44, %v2376
  %2382 = vrot.lane.b32.xlu0 %v2367, 96
  %v2383 = vpop.permute.xlu0 %2382
  %2385 = vst.msk [vmem:[#allocation3] sm:$0xff] %vm44, %v2383
  %v2386 = vld [vmem:[#allocation4] sm:$0xff]
  %v2387 = vld [vmem:[#allocation4 + $0x8] sm:$0xff]
  %v2388 = vld [vmem:[#allocation4 + $0x10] sm:$0xff]
  %v2389 = vld [vmem:[#allocation4 + $0x18] sm:$0xff]
  %v2390 = vld [vmem:[#allocation4 + $0x20] sm:$0xff]
  %v2391 = vld [vmem:[#allocation4 + $0x28] sm:$0xff]
  %v2392 = vld [vmem:[#allocation4 + $0x30] sm:$0xff]
  %v2393 = vld [vmem:[#allocation4 + $0x38] sm:$0xff]
  %s2394 = scalar_lea.vmem %s1, 32
  %v2395 = vld [vmem:[%s2394] sm:$0xff]
  %v2396 = vld [vmem:[%s2394 + $0x8] sm:$0xff]
  %v2397 = vld [vmem:[%s2394 + $0x10] sm:$0xff]
  %v2398 = vld [vmem:[%s2394 + $0x18] sm:$0xff]
  %s2399 = scalar_lea.vmem %s3, 1
  %v2400 = vld [vmem:[%s2399] sm:$0x1]
  %v2402 = vperm.slane %v2400, 0
  %v2405 = vsel %vm44, %v2386, 0
  %v2408 = vsel %vm44, %v2387, 0
  %v2411 = vsel %vm44, %v2388, 0
  %v2414 = vsel %vm44, %v2389, 0
  %v2417 = vsel %vm44, %v2390, 0
  %v2420 = vsel %vm44, %v2391, 0
  %v2423 = vsel %vm44, %v2392, 0
  %v2426 = vsel %vm44, %v2393, 0
  %2428 = vmatpush.msra.mxu0 0.0
  %2429 = vmatpush.msra.mxu0 0.0
  %2430 = vmatpush.msra.mxu0 0.0
  %2431 = vmatpush.msra.mxu0 0.0
  %2432 = vmatpush.msra.mxu0 0.0
  %2433 = vmatpush.msra.mxu0 0.0
  %2434 = vmatpush.msra.mxu0 0.0
  %2435 = vmatpush.msra.mxu0 0.0
  %2436 = vmatpush.msra.mxu0 0.0
  %2437 = vmatpush.msra.mxu0 0.0
  %2438 = vmatpush.msra.mxu0 0.0
  %2439 = vmatpush.msra.mxu0 0.0
  %v2440 = vand.u32 %v2398, 4294901760
  %2441 = vmatpush.msra.mxu0 %v2440
  %v2442 = vand.u32 %v2397, 4294901760
  %2443 = vmatpush.msra.mxu0 %v2442
  %v2444 = vand.u32 %v2396, 4294901760
  %2445 = vmatpush.msra.mxu0 %v2444
  %v2446 = vand.u32 %v2395, 4294901760
  %2447 = vmatpush.msra.mxu0 %v2446
  %v2448 = vand.u32 %v2405, 4294901760
  %v2449 = vsub.f32 %v2405, %v2448
  %v2450 = vand.u32 %v2449, 4294901760
  %v2451 = vsub.f32 %v2449, %v2450
  %v2452 = vand.u32 %v2451, 4294901760
  %2453 = vmatmul.f32.gmra.mxu0 %v2452
  %v2454 = vpop.f32.mrf.mxu0
  %v2455 = vadd.f32 %v2402, %v2454
  %v2456 = vand.u32 %v2408, 4294901760
  %v2457 = vsub.f32 %v2408, %v2456
  %v2458 = vand.u32 %v2457, 4294901760
  %v2459 = vsub.f32 %v2457, %v2458
  %v2460 = vand.u32 %v2459, 4294901760
  %2461 = vmatmul.f32.gmra.mxu0 %v2460
  %v2462 = vpop.f32.mrf.mxu0
  %v2463 = vadd.f32 %v2402, %v2462
  %v2464 = vand.u32 %v2411, 4294901760
  %v2465 = vsub.f32 %v2411, %v2464
  %v2466 = vand.u32 %v2465, 4294901760
  %v2467 = vsub.f32 %v2465, %v2466
  %v2468 = vand.u32 %v2467, 4294901760
  %2469 = vmatmul.f32.gmra.mxu0 %v2468
  %v2470 = vpop.f32.mrf.mxu0
  %v2471 = vadd.f32 %v2402, %v2470
  %v2472 = vand.u32 %v2414, 4294901760
  %v2473 = vsub.f32 %v2414, %v2472
  %v2474 = vand.u32 %v2473, 4294901760
  %v2475 = vsub.f32 %v2473, %v2474
  %v2476 = vand.u32 %v2475, 4294901760
  %2477 = vmatmul.f32.gmra.mxu0 %v2476
  %v2478 = vpop.f32.mrf.mxu0
  %v2479 = vadd.f32 %v2402, %v2478
  %v2480 = vand.u32 %v2417, 4294901760
  %v2481 = vsub.f32 %v2417, %v2480
  %v2482 = vand.u32 %v2481, 4294901760
  %v2483 = vsub.f32 %v2481, %v2482
  %v2484 = vand.u32 %v2483, 4294901760
  %2485 = vmatmul.f32.gmra.mxu0 %v2484
  %v2486 = vpop.f32.mrf.mxu0
  %v2487 = vadd.f32 %v2402, %v2486
  %v2488 = vand.u32 %v2420, 4294901760
  %v2489 = vsub.f32 %v2420, %v2488
  %v2490 = vand.u32 %v2489, 4294901760
  %v2491 = vsub.f32 %v2489, %v2490
  %v2492 = vand.u32 %v2491, 4294901760
  %2493 = vmatmul.f32.gmra.mxu0 %v2492
  %v2494 = vpop.f32.mrf.mxu0
  %v2495 = vadd.f32 %v2402, %v2494
  %v2496 = vand.u32 %v2423, 4294901760
  %v2497 = vsub.f32 %v2423, %v2496
  %v2498 = vand.u32 %v2497, 4294901760
  %v2499 = vsub.f32 %v2497, %v2498
  %v2500 = vand.u32 %v2499, 4294901760
  %2501 = vmatmul.f32.gmra.mxu0 %v2500
  %v2502 = vpop.f32.mrf.mxu0
  %v2503 = vadd.f32 %v2402, %v2502
  %v2504 = vand.u32 %v2426, 4294901760
  %v2505 = vsub.f32 %v2426, %v2504
  %v2506 = vand.u32 %v2505, 4294901760
  %v2507 = vsub.f32 %v2505, %v2506
  %v2508 = vand.u32 %v2507, 4294901760
  %2509 = vmatmul.f32.gmra.mxu0 %v2508
  %v2510 = vpop.f32.mrf.mxu0
  %v2511 = vadd.f32 %v2402, %v2510
  %2512 = vdwg.mxu0
  %2513 = vmatpush.msra.mxu0 0.0
  %2514 = vmatpush.msra.mxu0 0.0
  %2515 = vmatpush.msra.mxu0 0.0
  %2516 = vmatpush.msra.mxu0 0.0
  %2517 = vmatpush.msra.mxu0 0.0
  %2518 = vmatpush.msra.mxu0 0.0
  %2519 = vmatpush.msra.mxu0 0.0
  %2520 = vmatpush.msra.mxu0 0.0
  %2521 = vmatpush.msra.mxu0 0.0
  %2522 = vmatpush.msra.mxu0 0.0
  %2523 = vmatpush.msra.mxu0 0.0
  %2524 = vmatpush.msra.mxu0 0.0
  %v2525 = vand.u32 %v2398, 4294901760
  %v2526 = vsub.f32 %v2398, %v2525
  %v2527 = vand.u32 %v2526, 4294901760
  %v2528 = vsub.f32 %v2526, %v2527
  %v2529 = vand.u32 %v2528, 4294901760
  %2530 = vmatpush.msra.mxu0 %v2529
  %v2531 = vand.u32 %v2397, 4294901760
  %v2532 = vsub.f32 %v2397, %v2531
  %v2533 = vand.u32 %v2532, 4294901760
  %v2534 = vsub.f32 %v2532, %v2533
  %v2535 = vand.u32 %v2534, 4294901760
  %2536 = vmatpush.msra.mxu0 %v2535
  %v2537 = vand.u32 %v2396, 4294901760
  %v2538 = vsub.f32 %v2396, %v2537
  %v2539 = vand.u32 %v2538, 4294901760
  %v2540 = vsub.f32 %v2538, %v2539
  %v2541 = vand.u32 %v2540, 4294901760
  %2542 = vmatpush.msra.mxu0 %v2541
  %v2543 = vand.u32 %v2395, 4294901760
  %v2544 = vsub.f32 %v2395, %v2543
  %v2545 = vand.u32 %v2544, 4294901760
  %v2546 = vsub.f32 %v2544, %v2545
  %v2547 = vand.u32 %v2546, 4294901760
  %2548 = vmatpush.msra.mxu0 %v2547
  %v2549 = vand.u32 %v2405, 4294901760
  %2550 = vmatmul.f32.gmra.mxu0 %v2549
  %v2551 = vpop.f32.mrf.mxu0
  %v2552 = vadd.f32 %v2455, %v2551
  %v2553 = vand.u32 %v2408, 4294901760
  %2554 = vmatmul.f32.gmra.mxu0 %v2553
  %v2555 = vpop.f32.mrf.mxu0
  %v2556 = vadd.f32 %v2463, %v2555
  %v2557 = vand.u32 %v2411, 4294901760
  %2558 = vmatmul.f32.gmra.mxu0 %v2557
  %v2559 = vpop.f32.mrf.mxu0
  %v2560 = vadd.f32 %v2471, %v2559
  %v2561 = vand.u32 %v2414, 4294901760
  %2562 = vmatmul.f32.gmra.mxu0 %v2561
  %v2563 = vpop.f32.mrf.mxu0
  %v2564 = vadd.f32 %v2479, %v2563
  %v2565 = vand.u32 %v2417, 4294901760
  %2566 = vmatmul.f32.gmra.mxu0 %v2565
  %v2567 = vpop.f32.mrf.mxu0
  %v2568 = vadd.f32 %v2487, %v2567
  %v2569 = vand.u32 %v2420, 4294901760
  %2570 = vmatmul.f32.gmra.mxu0 %v2569
  %v2571 = vpop.f32.mrf.mxu0
  %v2572 = vadd.f32 %v2495, %v2571
  %v2573 = vand.u32 %v2423, 4294901760
  %2574 = vmatmul.f32.gmra.mxu0 %v2573
  %v2575 = vpop.f32.mrf.mxu0
  %v2576 = vadd.f32 %v2503, %v2575
  %v2577 = vand.u32 %v2426, 4294901760
  %2578 = vmatmul.f32.gmra.mxu0 %v2577
  %v2579 = vpop.f32.mrf.mxu0
  %v2580 = vadd.f32 %v2511, %v2579
  %2581 = vdwg.mxu0
  %2582 = vmatpush.msra.mxu0 0.0
  %2583 = vmatpush.msra.mxu0 0.0
  %2584 = vmatpush.msra.mxu0 0.0
  %2585 = vmatpush.msra.mxu0 0.0
  %2586 = vmatpush.msra.mxu0 0.0
  %2587 = vmatpush.msra.mxu0 0.0
  %2588 = vmatpush.msra.mxu0 0.0
  %2589 = vmatpush.msra.mxu0 0.0
  %2590 = vmatpush.msra.mxu0 0.0
  %2591 = vmatpush.msra.mxu0 0.0
  %2592 = vmatpush.msra.mxu0 0.0
  %2593 = vmatpush.msra.mxu0 0.0
  %v2594 = vand.u32 %v2398, 4294901760
  %v2595 = vsub.f32 %v2398, %v2594
  %2596 = vmatpush.msra.mxu0 %v2595
  %v2597 = vand.u32 %v2397, 4294901760
  %v2598 = vsub.f32 %v2397, %v2597
  %2599 = vmatpush.msra.mxu0 %v2598
  %v2600 = vand.u32 %v2396, 4294901760
  %v2601 = vsub.f32 %v2396, %v2600
  %2602 = vmatpush.msra.mxu0 %v2601
  %v2603 = vand.u32 %v2395, 4294901760
  %v2604 = vsub.f32 %v2395, %v2603
  %2605 = vmatpush.msra.mxu0 %v2604
  %v2606 = vand.u32 %v2405, 4294901760
  %v2607 = vsub.f32 %v2405, %v2606
  %2608 = vmatmul.f32.gmra.mxu0 %v2607
  %v2609 = vpop.f32.mrf.mxu0
  %v2610 = vadd.f32 %v2552, %v2609
  %v2611 = vand.u32 %v2408, 4294901760
  %v2612 = vsub.f32 %v2408, %v2611
  %2613 = vmatmul.f32.gmra.mxu0 %v2612
  %v2614 = vpop.f32.mrf.mxu0
  %v2615 = vadd.f32 %v2556, %v2614
  %v2616 = vand.u32 %v2411, 4294901760
  %v2617 = vsub.f32 %v2411, %v2616
  %2618 = vmatmul.f32.gmra.mxu0 %v2617
  %v2619 = vpop.f32.mrf.mxu0
  %v2620 = vadd.f32 %v2560, %v2619
  %v2621 = vand.u32 %v2414, 4294901760
  %v2622 = vsub.f32 %v2414, %v2621
  %2623 = vmatmul.f32.gmra.mxu0 %v2622
  %v2624 = vpop.f32.mrf.mxu0
  %v2625 = vadd.f32 %v2564, %v2624
  %v2626 = vand.u32 %v2417, 4294901760
  %v2627 = vsub.f32 %v2417, %v2626
  %2628 = vmatmul.f32.gmra.mxu0 %v2627
  %v2629 = vpop.f32.mrf.mxu0
  %v2630 = vadd.f32 %v2568, %v2629
  %v2631 = vand.u32 %v2420, 4294901760
  %v2632 = vsub.f32 %v2420, %v2631
  %2633 = vmatmul.f32.gmra.mxu0 %v2632
  %v2634 = vpop.f32.mrf.mxu0
  %v2635 = vadd.f32 %v2572, %v2634
  %v2636 = vand.u32 %v2423, 4294901760
  %v2637 = vsub.f32 %v2423, %v2636
  %2638 = vmatmul.f32.gmra.mxu0 %v2637
  %v2639 = vpop.f32.mrf.mxu0
  %v2640 = vadd.f32 %v2576, %v2639
  %v2641 = vand.u32 %v2426, 4294901760
  %v2642 = vsub.f32 %v2426, %v2641
  %2643 = vmatmul.f32.gmra.mxu0 %v2642
  %v2644 = vpop.f32.mrf.mxu0
  %v2645 = vadd.f32 %v2580, %v2644
  %2646 = vdwg.mxu0
  %2647 = vmatpush.msra.mxu0 0.0
  %2648 = vmatpush.msra.mxu0 0.0
  %2649 = vmatpush.msra.mxu0 0.0
  %2650 = vmatpush.msra.mxu0 0.0
  %2651 = vmatpush.msra.mxu0 0.0
  %2652 = vmatpush.msra.mxu0 0.0
  %2653 = vmatpush.msra.mxu0 0.0
  %2654 = vmatpush.msra.mxu0 0.0
  %2655 = vmatpush.msra.mxu0 0.0
  %2656 = vmatpush.msra.mxu0 0.0
  %2657 = vmatpush.msra.mxu0 0.0
  %2658 = vmatpush.msra.mxu0 0.0
  %v2659 = vand.u32 %v2398, 4294901760
  %2660 = vmatpush.msra.mxu0 %v2659
  %v2661 = vand.u32 %v2397, 4294901760
  %2662 = vmatpush.msra.mxu0 %v2661
  %v2663 = vand.u32 %v2396, 4294901760
  %2664 = vmatpush.msra.mxu0 %v2663
  %v2665 = vand.u32 %v2395, 4294901760
  %2666 = vmatpush.msra.mxu0 %v2665
  %v2667 = vand.u32 %v2405, 4294901760
  %v2668 = vsub.f32 %v2405, %v2667
  %v2669 = vand.u32 %v2668, 4294901760
  %2670 = vmatmul.f32.gmra.mxu0 %v2669
  %v2671 = vpop.f32.mrf.mxu0
  %v2672 = vadd.f32 %v2610, %v2671
  %v2673 = vand.u32 %v2408, 4294901760
  %v2674 = vsub.f32 %v2408, %v2673
  %v2675 = vand.u32 %v2674, 4294901760
  %2676 = vmatmul.f32.gmra.mxu0 %v2675
  %v2677 = vpop.f32.mrf.mxu0
  %v2678 = vadd.f32 %v2615, %v2677
  %v2679 = vand.u32 %v2411, 4294901760
  %v2680 = vsub.f32 %v2411, %v2679
  %v2681 = vand.u32 %v2680, 4294901760
  %2682 = vmatmul.f32.gmra.mxu0 %v2681
  %v2683 = vpop.f32.mrf.mxu0
  %v2684 = vadd.f32 %v2620, %v2683
  %v2685 = vand.u32 %v2414, 4294901760
  %v2686 = vsub.f32 %v2414, %v2685
  %v2687 = vand.u32 %v2686, 4294901760
  %2688 = vmatmul.f32.gmra.mxu0 %v2687
  %v2689 = vpop.f32.mrf.mxu0
  %v2690 = vadd.f32 %v2625, %v2689
  %v2691 = vand.u32 %v2417, 4294901760
  %v2692 = vsub.f32 %v2417, %v2691
  %v2693 = vand.u32 %v2692, 4294901760
  %2694 = vmatmul.f32.gmra.mxu0 %v2693
  %v2695 = vpop.f32.mrf.mxu0
  %v2696 = vadd.f32 %v2630, %v2695
  %v2697 = vand.u32 %v2420, 4294901760
  %v2698 = vsub.f32 %v2420, %v2697
  %v2699 = vand.u32 %v2698, 4294901760
  %2700 = vmatmul.f32.gmra.mxu0 %v2699
  %v2701 = vpop.f32.mrf.mxu0
  %v2702 = vadd.f32 %v2635, %v2701
  %v2703 = vand.u32 %v2423, 4294901760
  %v2704 = vsub.f32 %v2423, %v2703
  %v2705 = vand.u32 %v2704, 4294901760
  %2706 = vmatmul.f32.gmra.mxu0 %v2705
  %v2707 = vpop.f32.mrf.mxu0
  %v2708 = vadd.f32 %v2640, %v2707
  %v2709 = vand.u32 %v2426, 4294901760
  %v2710 = vsub.f32 %v2426, %v2709
  %v2711 = vand.u32 %v2710, 4294901760
  %2712 = vmatmul.f32.gmra.mxu0 %v2711
  %v2713 = vpop.f32.mrf.mxu0
  %v2714 = vadd.f32 %v2645, %v2713
  %2715 = vdwg.mxu0
  %2716 = vmatpush.msra.mxu0 0.0
  %2717 = vmatpush.msra.mxu0 0.0
  %2718 = vmatpush.msra.mxu0 0.0
  %2719 = vmatpush.msra.mxu0 0.0
  %2720 = vmatpush.msra.mxu0 0.0
  %2721 = vmatpush.msra.mxu0 0.0
  %2722 = vmatpush.msra.mxu0 0.0
  %2723 = vmatpush.msra.mxu0 0.0
  %2724 = vmatpush.msra.mxu0 0.0
  %2725 = vmatpush.msra.mxu0 0.0
  %2726 = vmatpush.msra.mxu0 0.0
  %2727 = vmatpush.msra.mxu0 0.0
  %v2728 = vand.u32 %v2398, 4294901760
  %v2729 = vsub.f32 %v2398, %v2728
  %v2730 = vand.u32 %v2729, 4294901760
  %2731 = vmatpush.msra.mxu0 %v2730
  %v2732 = vand.u32 %v2397, 4294901760
  %v2733 = vsub.f32 %v2397, %v2732
  %v2734 = vand.u32 %v2733, 4294901760
  %2735 = vmatpush.msra.mxu0 %v2734
  %v2736 = vand.u32 %v2396, 4294901760
  %v2737 = vsub.f32 %v2396, %v2736
  %v2738 = vand.u32 %v2737, 4294901760
  %2739 = vmatpush.msra.mxu0 %v2738
  %v2740 = vand.u32 %v2395, 4294901760
  %v2741 = vsub.f32 %v2395, %v2740
  %v2742 = vand.u32 %v2741, 4294901760
  %2743 = vmatpush.msra.mxu0 %v2742
  %v2744 = vand.u32 %v2405, 4294901760
  %2745 = vmatmul.f32.gmra.mxu0 %v2744
  %v2746 = vpop.f32.mrf.mxu0
  %v2747 = vadd.f32 %v2672, %v2746
  %v2748 = vand.u32 %v2408, 4294901760
  %2749 = vmatmul.f32.gmra.mxu0 %v2748
  %v2750 = vpop.f32.mrf.mxu0
  %v2751 = vadd.f32 %v2678, %v2750
  %v2752 = vand.u32 %v2411, 4294901760
  %2753 = vmatmul.f32.gmra.mxu0 %v2752
  %v2754 = vpop.f32.mrf.mxu0
  %v2755 = vadd.f32 %v2684, %v2754
  %v2756 = vand.u32 %v2414, 4294901760
  %2757 = vmatmul.f32.gmra.mxu0 %v2756
  %v2758 = vpop.f32.mrf.mxu0
  %v2759 = vadd.f32 %v2690, %v2758
  %v2760 = vand.u32 %v2417, 4294901760
  %2761 = vmatmul.f32.gmra.mxu0 %v2760
  %v2762 = vpop.f32.mrf.mxu0
  %v2763 = vadd.f32 %v2696, %v2762
  %v2764 = vand.u32 %v2420, 4294901760
  %2765 = vmatmul.f32.gmra.mxu0 %v2764
  %v2766 = vpop.f32.mrf.mxu0
  %v2767 = vadd.f32 %v2702, %v2766
  %v2768 = vand.u32 %v2423, 4294901760
  %2769 = vmatmul.f32.gmra.mxu0 %v2768
  %v2770 = vpop.f32.mrf.mxu0
  %v2771 = vadd.f32 %v2708, %v2770
  %v2772 = vand.u32 %v2426, 4294901760
  %2773 = vmatmul.f32.gmra.mxu0 %v2772
  %v2774 = vpop.f32.mrf.mxu0
  %v2775 = vadd.f32 %v2714, %v2774
  %2776 = vdwg.mxu0
  %2777 = vmatpush.msra.mxu0 0.0
  %2778 = vmatpush.msra.mxu0 0.0
  %2779 = vmatpush.msra.mxu0 0.0
  %2780 = vmatpush.msra.mxu0 0.0
  %2781 = vmatpush.msra.mxu0 0.0
  %2782 = vmatpush.msra.mxu0 0.0
  %2783 = vmatpush.msra.mxu0 0.0
  %2784 = vmatpush.msra.mxu0 0.0
  %2785 = vmatpush.msra.mxu0 0.0
  %2786 = vmatpush.msra.mxu0 0.0
  %2787 = vmatpush.msra.mxu0 0.0
  %2788 = vmatpush.msra.mxu0 0.0
  %v2789 = vand.u32 %v2398, 4294901760
  %2790 = vmatpush.msra.mxu0 %v2789
  %v2791 = vand.u32 %v2397, 4294901760
  %2792 = vmatpush.msra.mxu0 %v2791
  %v2793 = vand.u32 %v2396, 4294901760
  %2794 = vmatpush.msra.mxu0 %v2793
  %v2795 = vand.u32 %v2395, 4294901760
  %2796 = vmatpush.msra.mxu0 %v2795
  %v2797 = vand.u32 %v2405, 4294901760
  %2798 = vmatmul.f32.gmra.mxu0 %v2797
  %v2799 = vpop.f32.mrf.mxu0
  %v2800 = vadd.f32 %v2747, %v2799
  %v2801 = vand.u32 %v2408, 4294901760
  %2802 = vmatmul.f32.gmra.mxu0 %v2801
  %v2803 = vpop.f32.mrf.mxu0
  %v2804 = vadd.f32 %v2751, %v2803
  %v2805 = vand.u32 %v2411, 4294901760
  %2806 = vmatmul.f32.gmra.mxu0 %v2805
  %v2807 = vpop.f32.mrf.mxu0
  %v2808 = vadd.f32 %v2755, %v2807
  %v2809 = vand.u32 %v2414, 4294901760
  %2810 = vmatmul.f32.gmra.mxu0 %v2809
  %v2811 = vpop.f32.mrf.mxu0
  %v2812 = vadd.f32 %v2759, %v2811
  %v2813 = vand.u32 %v2417, 4294901760
  %2814 = vmatmul.f32.gmra.mxu0 %v2813
  %v2815 = vpop.f32.mrf.mxu0
  %v2816 = vadd.f32 %v2763, %v2815
  %v2817 = vand.u32 %v2420, 4294901760
  %2818 = vmatmul.f32.gmra.mxu0 %v2817
  %v2819 = vpop.f32.mrf.mxu0
  %v2820 = vadd.f32 %v2767, %v2819
  %v2821 = vand.u32 %v2423, 4294901760
  %2822 = vmatmul.f32.gmra.mxu0 %v2821
  %v2823 = vpop.f32.mrf.mxu0
  %v2824 = vadd.f32 %v2771, %v2823
  %v2825 = vand.u32 %v2426, 4294901760
  %2826 = vmatmul.f32.gmra.mxu0 %v2825
  %v2827 = vpop.f32.mrf.mxu0
  %v2828 = vadd.f32 %v2775, %v2827
  %2829 = vdwg.mxu0
  %2830 = vst [vmem:[#allocation5] sm:$0xff] %v2800
  %2831 = vst [vmem:[#allocation5 + $0x8] sm:$0xff] %v2804
  %2832 = vst [vmem:[#allocation5 + $0x10] sm:$0xff] %v2808
  %2833 = vst [vmem:[#allocation5 + $0x18] sm:$0xff] %v2812
  %2834 = vst [vmem:[#allocation5 + $0x20] sm:$0xff] %v2816
  %2835 = vst [vmem:[#allocation5 + $0x28] sm:$0xff] %v2820
  %2836 = vst [vmem:[#allocation5 + $0x30] sm:$0xff] %v2824
  %2837 = vst [vmem:[#allocation5 + $0x38] sm:$0xff] %v2828
  %s2838 = scalar_lea.vmem [#allocation2], 8
  %v2839 = vld [vmem:[%s2838] sm:$0xff]
  %s2840 = scalar_lea.vmem [#allocation3], 8
  %v2841 = vld [vmem:[%s2840] sm:$0xff]
  %v2842 = vld [vmem:[#allocation5] sm:$0xff]
  %s2843 = scalar_lea.vmem %s2, 32
  %v2844 = vld [vmem:[%s2843] sm:$0xff]
  %v2845 = vld [vmem:[%s2843 + $0x8] sm:$0xff]
  %v2846 = vld [vmem:[%s2843 + $0x10] sm:$0xff]
  %v2847 = vld [vmem:[%s2843 + $0x18] sm:$0xff]
  %v2849 = vsel %vm44, %v2839, 0
  %2851 = vmatpush.msra.mxu0 0.0
  %2852 = vmatpush.msra.mxu0 0.0
  %2853 = vmatpush.msra.mxu0 0.0
  %2854 = vmatpush.msra.mxu0 0.0
  %2855 = vmatpush.msra.mxu0 0.0
  %2856 = vmatpush.msra.mxu0 0.0
  %2857 = vmatpush.msra.mxu0 0.0
  %2858 = vmatpush.msra.mxu0 0.0
  %2859 = vmatpush.msra.mxu0 0.0
  %2860 = vmatpush.msra.mxu0 0.0
  %2861 = vmatpush.msra.mxu0 0.0
  %2862 = vmatpush.msra.mxu0 0.0
  %v2863 = vand.u32 %v2847, 4294901760
  %2864 = vmatpush.msra.mxu0 %v2863
  %v2865 = vand.u32 %v2846, 4294901760
  %2866 = vmatpush.msra.mxu0 %v2865
  %v2867 = vand.u32 %v2845, 4294901760
  %2868 = vmatpush.msra.mxu0 %v2867
  %v2869 = vand.u32 %v2844, 4294901760
  %2870 = vmatpush.msra.mxu0 %v2869
  %v2871 = vand.u32 %v2849, 4294901760
  %v2872 = vsub.f32 %v2849, %v2871
  %v2873 = vand.u32 %v2872, 4294901760
  %v2874 = vsub.f32 %v2872, %v2873
  %v2875 = vand.u32 %v2874, 4294901760
  %2876 = vmatmul.f32.gmra.mxu0 %v2875
  %v2877 = vpop.f32.mrf.mxu0
  %v2878 = vadd.f32 0.0, %v2877
  %2879 = vdwg.mxu0
  %2880 = vmatpush.msra.mxu0 0.0
  %2881 = vmatpush.msra.mxu0 0.0
  %2882 = vmatpush.msra.mxu0 0.0
  %2883 = vmatpush.msra.mxu0 0.0
  %2884 = vmatpush.msra.mxu0 0.0
  %2885 = vmatpush.msra.mxu0 0.0
  %2886 = vmatpush.msra.mxu0 0.0
  %2887 = vmatpush.msra.mxu0 0.0
  %2888 = vmatpush.msra.mxu0 0.0
  %2889 = vmatpush.msra.mxu0 0.0
  %2890 = vmatpush.msra.mxu0 0.0
  %2891 = vmatpush.msra.mxu0 0.0
  %v2892 = vand.u32 %v2847, 4294901760
  %v2893 = vsub.f32 %v2847, %v2892
  %v2894 = vand.u32 %v2893, 4294901760
  %v2895 = vsub.f32 %v2893, %v2894
  %v2896 = vand.u32 %v2895, 4294901760
  %2897 = vmatpush.msra.mxu0 %v2896
  %v2898 = vand.u32 %v2846, 4294901760
  %v2899 = vsub.f32 %v2846, %v2898
  %v2900 = vand.u32 %v2899, 4294901760
  %v2901 = vsub.f32 %v2899, %v2900
  %v2902 = vand.u32 %v2901, 4294901760
  %2903 = vmatpush.msra.mxu0 %v2902
  %v2904 = vand.u32 %v2845, 4294901760
  %v2905 = vsub.f32 %v2845, %v2904
  %v2906 = vand.u32 %v2905, 4294901760
  %v2907 = vsub.f32 %v2905, %v2906
  %v2908 = vand.u32 %v2907, 4294901760
  %2909 = vmatpush.msra.mxu0 %v2908
  %v2910 = vand.u32 %v2844, 4294901760
  %v2911 = vsub.f32 %v2844, %v2910
  %v2912 = vand.u32 %v2911, 4294901760
  %v2913 = vsub.f32 %v2911, %v2912
  %v2914 = vand.u32 %v2913, 4294901760
  %2915 = vmatpush.msra.mxu0 %v2914
  %v2916 = vand.u32 %v2849, 4294901760
  %2917 = vmatmul.f32.gmra.mxu0 %v2916
  %v2918 = vpop.f32.mrf.mxu0
  %v2919 = vadd.f32 %v2878, %v2918
  %2920 = vdwg.mxu0
  %2921 = vmatpush.msra.mxu0 0.0
  %2922 = vmatpush.msra.mxu0 0.0
  %2923 = vmatpush.msra.mxu0 0.0
  %2924 = vmatpush.msra.mxu0 0.0
  %2925 = vmatpush.msra.mxu0 0.0
  %2926 = vmatpush.msra.mxu0 0.0
  %2927 = vmatpush.msra.mxu0 0.0
  %2928 = vmatpush.msra.mxu0 0.0
  %2929 = vmatpush.msra.mxu0 0.0
  %2930 = vmatpush.msra.mxu0 0.0
  %2931 = vmatpush.msra.mxu0 0.0
  %2932 = vmatpush.msra.mxu0 0.0
  %v2933 = vand.u32 %v2847, 4294901760
  %v2934 = vsub.f32 %v2847, %v2933
  %2935 = vmatpush.msra.mxu0 %v2934
  %v2936 = vand.u32 %v2846, 4294901760
  %v2937 = vsub.f32 %v2846, %v2936
  %2938 = vmatpush.msra.mxu0 %v2937
  %v2939 = vand.u32 %v2845, 4294901760
  %v2940 = vsub.f32 %v2845, %v2939
  %2941 = vmatpush.msra.mxu0 %v2940
  %v2942 = vand.u32 %v2844, 4294901760
  %v2943 = vsub.f32 %v2844, %v2942
  %2944 = vmatpush.msra.mxu0 %v2943
  %v2945 = vand.u32 %v2849, 4294901760
  %v2946 = vsub.f32 %v2849, %v2945
  %2947 = vmatmul.f32.gmra.mxu0 %v2946
  %v2948 = vpop.f32.mrf.mxu0
  %v2949 = vadd.f32 %v2919, %v2948
  %2950 = vdwg.mxu0
  %2951 = vmatpush.msra.mxu0 0.0
  %2952 = vmatpush.msra.mxu0 0.0
  %2953 = vmatpush.msra.mxu0 0.0
  %2954 = vmatpush.msra.mxu0 0.0
  %2955 = vmatpush.msra.mxu0 0.0
  %2956 = vmatpush.msra.mxu0 0.0
  %2957 = vmatpush.msra.mxu0 0.0
  %2958 = vmatpush.msra.mxu0 0.0
  %2959 = vmatpush.msra.mxu0 0.0
  %2960 = vmatpush.msra.mxu0 0.0
  %2961 = vmatpush.msra.mxu0 0.0
  %2962 = vmatpush.msra.mxu0 0.0
  %v2963 = vand.u32 %v2847, 4294901760
  %2964 = vmatpush.msra.mxu0 %v2963
  %v2965 = vand.u32 %v2846, 4294901760
  %2966 = vmatpush.msra.mxu0 %v2965
  %v2967 = vand.u32 %v2845, 4294901760
  %2968 = vmatpush.msra.mxu0 %v2967
  %v2969 = vand.u32 %v2844, 4294901760
  %2970 = vmatpush.msra.mxu0 %v2969
  %v2971 = vand.u32 %v2849, 4294901760
  %v2972 = vsub.f32 %v2849, %v2971
  %v2973 = vand.u32 %v2972, 4294901760
  %2974 = vmatmul.f32.gmra.mxu0 %v2973
  %v2975 = vpop.f32.mrf.mxu0
  %v2976 = vadd.f32 %v2949, %v2975
  %2977 = vdwg.mxu0
  %2978 = vmatpush.msra.mxu0 0.0
  %2979 = vmatpush.msra.mxu0 0.0
  %2980 = vmatpush.msra.mxu0 0.0
  %2981 = vmatpush.msra.mxu0 0.0
  %2982 = vmatpush.msra.mxu0 0.0
  %2983 = vmatpush.msra.mxu0 0.0
  %2984 = vmatpush.msra.mxu0 0.0
  %2985 = vmatpush.msra.mxu0 0.0
  %2986 = vmatpush.msra.mxu0 0.0
  %2987 = vmatpush.msra.mxu0 0.0
  %2988 = vmatpush.msra.mxu0 0.0
  %2989 = vmatpush.msra.mxu0 0.0
  %v2990 = vand.u32 %v2847, 4294901760
  %v2991 = vsub.f32 %v2847, %v2990
  %v2992 = vand.u32 %v2991, 4294901760
  %2993 = vmatpush.msra.mxu0 %v2992
  %v2994 = vand.u32 %v2846, 4294901760
  %v2995 = vsub.f32 %v2846, %v2994
  %v2996 = vand.u32 %v2995, 4294901760
  %2997 = vmatpush.msra.mxu0 %v2996
  %v2998 = vand.u32 %v2845, 4294901760
  %v2999 = vsub.f32 %v2845, %v2998
  %v3000 = vand.u32 %v2999, 4294901760
  %3001 = vmatpush.msra.mxu0 %v3000
  %v3002 = vand.u32 %v2844, 4294901760
  %v3003 = vsub.f32 %v2844, %v3002
  %v3004 = vand.u32 %v3003, 4294901760
  %3005 = vmatpush.msra.mxu0 %v3004
  %v3006 = vand.u32 %v2849, 4294901760
  %3007 = vmatmul.f32.gmra.mxu0 %v3006
  %v3008 = vpop.f32.mrf.mxu0
  %v3009 = vadd.f32 %v2976, %v3008
  %3010 = vdwg.mxu0
  %3011 = vmatpush.msra.mxu0 0.0
  %3012 = vmatpush.msra.mxu0 0.0
  %3013 = vmatpush.msra.mxu0 0.0
  %3014 = vmatpush.msra.mxu0 0.0
  %3015 = vmatpush.msra.mxu0 0.0
  %3016 = vmatpush.msra.mxu0 0.0
  %3017 = vmatpush.msra.mxu0 0.0
  %3018 = vmatpush.msra.mxu0 0.0
  %3019 = vmatpush.msra.mxu0 0.0
  %3020 = vmatpush.msra.mxu0 0.0
  %3021 = vmatpush.msra.mxu0 0.0
  %3022 = vmatpush.msra.mxu0 0.0
  %v3023 = vand.u32 %v2847, 4294901760
  %3024 = vmatpush.msra.mxu0 %v3023
  %v3025 = vand.u32 %v2846, 4294901760
  %3026 = vmatpush.msra.mxu0 %v3025
  %v3027 = vand.u32 %v2845, 4294901760
  %3028 = vmatpush.msra.mxu0 %v3027
  %v3029 = vand.u32 %v2844, 4294901760
  %3030 = vmatpush.msra.mxu0 %v3029
  %v3031 = vand.u32 %v2849, 4294901760
  %3032 = vmatmul.f32.gmra.mxu0 %v3031
  %v3033 = vpop.f32.mrf.mxu0
  %v3034 = vadd.f32 %v3009, %v3033
  %3035 = vdwg.mxu0
  %v3036 = vadd.f32 %v2842, %v3034
  %v3037 = vxor.u32 %v3036, 2147483648
  %v3038 = vmul.f32 %v3037, 1.442695
  %v3039 = vpow.pop %v3038
  %v3040 = vadd.f32 %v3039, 1.0
  %v3041 = vrcp.pop %v3040
  %v3042 = vmul.f32 %v3040, %v3041
  %v3043 = vsub.f32 1.0, %v3042
  %v3044 = vmul.f32 %v3041, %v3043
  %v3045 = vadd.f32 %v3041, %v3044
  %vm3046 = vweird.f32 %v3040
  %vm3047 = vweird.f32 %v3041
  %vm3048 = vmor %vm3046, %vm3047
  %v3049 = vsel %vm3048, %v3041, %v3045
  %v3050 = vand.u32 2147483647, %v3040
  %vm3051 = vcmp.eq.f32.partialorder %v3050, 8.507059e+37
  %v3052 = vand.u32 %v3040, 2147483648
  %v3053 = vor.u32 1.1754944e-38, %v3052
  %v3054 = vsel %vm3051, %v3053, %v3049
  %v3055 = vmul.f32 1.0, %v3054
  %v3056 = vtanh.pop %v3036
  %3058 = vrot.lane.b32.xlu0 %v2841, 32
  %v3059 = vpop.permute.xlu0 %3058
  %v3061 = vmul.f32 %v3055, %v3059
  %3063 = vrot.lane.b32.xlu0 %v3056, 64
  %v3064 = vpop.permute.xlu0 %3063
  %v3066 = vmul.f32 %v3055, %v3064
  %3068 = vrot.lane.b32.xlu0 %v3066, 32
  %v3069 = vpop.permute.xlu0 %3068
  %v3071 = vadd.f32 %v3061, %v3069
  %v3072 = vtanh.pop %v3071
  %3074 = vrot.lane.b32.xlu0 %v3072, 64
  %v3075 = vpop.permute.xlu0 %3074
  %v3077 = vmul.f32 %v3055, %v3075
  %3079 = vrot.lane.b32.xlu0 %v3077, 32
  %v3080 = vpop.permute.xlu0 %3079
  %3082 = vst.msk [vmem:[#allocation4] sm:$0xff] %vm44, %v3080
  %v3083 = vld [vmem:[%s721] sm:$0xff]
  %v3084 = vld [vmem:[%s2843] sm:$0xff]
  %v3085 = vld [vmem:[%s2843 + $0x8] sm:$0xff]
  %v3086 = vld [vmem:[%s2843 + $0x10] sm:$0xff]
  %v3087 = vld [vmem:[%s2843 + $0x18] sm:$0xff]
  %v3088 = vsel %vm44, %v3080, 0
  %3090 = vmatpush.msra.mxu0 0.0
  %3091 = vmatpush.msra.mxu0 0.0
  %3092 = vmatpush.msra.mxu0 0.0
  %3093 = vmatpush.msra.mxu0 0.0
  %3094 = vmatpush.msra.mxu0 0.0
  %3095 = vmatpush.msra.mxu0 0.0
  %3096 = vmatpush.msra.mxu0 0.0
  %3097 = vmatpush.msra.mxu0 0.0
  %3098 = vmatpush.msra.mxu0 0.0
  %3099 = vmatpush.msra.mxu0 0.0
  %3100 = vmatpush.msra.mxu0 0.0
  %3101 = vmatpush.msra.mxu0 0.0
  %v3102 = vand.u32 %v3087, 4294901760
  %3103 = vmatpush.msra.mxu0 %v3102
  %v3104 = vand.u32 %v3086, 4294901760
  %3105 = vmatpush.msra.mxu0 %v3104
  %v3106 = vand.u32 %v3085, 4294901760
  %3107 = vmatpush.msra.mxu0 %v3106
  %v3108 = vand.u32 %v3084, 4294901760
  %3109 = vmatpush.msra.mxu0 %v3108
  %v3110 = vand.u32 %v3088, 4294901760
  %v3111 = vsub.f32 %v3088, %v3110
  %v3112 = vand.u32 %v3111, 4294901760
  %v3113 = vsub.f32 %v3111, %v3112
  %v3114 = vand.u32 %v3113, 4294901760
  %3115 = vmatmul.f32.gmra.mxu0 %v3114
  %v3116 = vpop.f32.mrf.mxu0
  %v3117 = vadd.f32 0.0, %v3116
  %3118 = vdwg.mxu0
  %3119 = vmatpush.msra.mxu0 0.0
  %3120 = vmatpush.msra.mxu0 0.0
  %3121 = vmatpush.msra.mxu0 0.0
  %3122 = vmatpush.msra.mxu0 0.0
  %3123 = vmatpush.msra.mxu0 0.0
  %3124 = vmatpush.msra.mxu0 0.0
  %3125 = vmatpush.msra.mxu0 0.0
  %3126 = vmatpush.msra.mxu0 0.0
  %3127 = vmatpush.msra.mxu0 0.0
  %3128 = vmatpush.msra.mxu0 0.0
  %3129 = vmatpush.msra.mxu0 0.0
  %3130 = vmatpush.msra.mxu0 0.0
  %v3131 = vand.u32 %v3087, 4294901760
  %v3132 = vsub.f32 %v3087, %v3131
  %v3133 = vand.u32 %v3132, 4294901760
  %v3134 = vsub.f32 %v3132, %v3133
  %v3135 = vand.u32 %v3134, 4294901760
  %3136 = vmatpush.msra.mxu0 %v3135
  %v3137 = vand.u32 %v3086, 4294901760
  %v3138 = vsub.f32 %v3086, %v3137
  %v3139 = vand.u32 %v3138, 4294901760
  %v3140 = vsub.f32 %v3138, %v3139
  %v3141 = vand.u32 %v3140, 4294901760
  %3142 = vmatpush.msra.mxu0 %v3141
  %v3143 = vand.u32 %v3085, 4294901760
  %v3144 = vsub.f32 %v3085, %v3143
  %v3145 = vand.u32 %v3144, 4294901760
  %v3146 = vsub.f32 %v3144, %v3145
  %v3147 = vand.u32 %v3146, 4294901760
  %3148 = vmatpush.msra.mxu0 %v3147
  %v3149 = vand.u32 %v3084, 4294901760
  %v3150 = vsub.f32 %v3084, %v3149
  %v3151 = vand.u32 %v3150, 4294901760
  %v3152 = vsub.f32 %v3150, %v3151
  %v3153 = vand.u32 %v3152, 4294901760
  %3154 = vmatpush.msra.mxu0 %v3153
  %v3155 = vand.u32 %v3088, 4294901760
  %3156 = vmatmul.f32.gmra.mxu0 %v3155
  %v3157 = vpop.f32.mrf.mxu0
  %v3158 = vadd.f32 %v3117, %v3157
  %3159 = vdwg.mxu0
  %3160 = vmatpush.msra.mxu0 0.0
  %3161 = vmatpush.msra.mxu0 0.0
  %3162 = vmatpush.msra.mxu0 0.0
  %3163 = vmatpush.msra.mxu0 0.0
  %3164 = vmatpush.msra.mxu0 0.0
  %3165 = vmatpush.msra.mxu0 0.0
  %3166 = vmatpush.msra.mxu0 0.0
  %3167 = vmatpush.msra.mxu0 0.0
  %3168 = vmatpush.msra.mxu0 0.0
  %3169 = vmatpush.msra.mxu0 0.0
  %3170 = vmatpush.msra.mxu0 0.0
  %3171 = vmatpush.msra.mxu0 0.0
  %v3172 = vand.u32 %v3087, 4294901760
  %v3173 = vsub.f32 %v3087, %v3172
  %3174 = vmatpush.msra.mxu0 %v3173
  %v3175 = vand.u32 %v3086, 4294901760
  %v3176 = vsub.f32 %v3086, %v3175
  %3177 = vmatpush.msra.mxu0 %v3176
  %v3178 = vand.u32 %v3085, 4294901760
  %v3179 = vsub.f32 %v3085, %v3178
  %3180 = vmatpush.msra.mxu0 %v3179
  %v3181 = vand.u32 %v3084, 4294901760
  %v3182 = vsub.f32 %v3084, %v3181
  %3183 = vmatpush.msra.mxu0 %v3182
  %v3184 = vand.u32 %v3088, 4294901760
  %v3185 = vsub.f32 %v3088, %v3184
  %3186 = vmatmul.f32.gmra.mxu0 %v3185
  %v3187 = vpop.f32.mrf.mxu0
  %v3188 = vadd.f32 %v3158, %v3187
  %3189 = vdwg.mxu0
  %3190 = vmatpush.msra.mxu0 0.0
  %3191 = vmatpush.msra.mxu0 0.0
  %3192 = vmatpush.msra.mxu0 0.0
  %3193 = vmatpush.msra.mxu0 0.0
  %3194 = vmatpush.msra.mxu0 0.0
  %3195 = vmatpush.msra.mxu0 0.0
  %3196 = vmatpush.msra.mxu0 0.0
  %3197 = vmatpush.msra.mxu0 0.0
  %3198 = vmatpush.msra.mxu0 0.0
  %3199 = vmatpush.msra.mxu0 0.0
  %3200 = vmatpush.msra.mxu0 0.0
  %3201 = vmatpush.msra.mxu0 0.0
  %v3202 = vand.u32 %v3087, 4294901760
  %3203 = vmatpush.msra.mxu0 %v3202
  %v3204 = vand.u32 %v3086, 4294901760
  %3205 = vmatpush.msra.mxu0 %v3204
  %v3206 = vand.u32 %v3085, 4294901760
  %3207 = vmatpush.msra.mxu0 %v3206
  %v3208 = vand.u32 %v3084, 4294901760
  %3209 = vmatpush.msra.mxu0 %v3208
  %v3210 = vand.u32 %v3088, 4294901760
  %v3211 = vsub.f32 %v3088, %v3210
  %v3212 = vand.u32 %v3211, 4294901760
  %3213 = vmatmul.f32.gmra.mxu0 %v3212
  %v3214 = vpop.f32.mrf.mxu0
  %v3215 = vadd.f32 %v3188, %v3214
  %3216 = vdwg.mxu0
  %3217 = vmatpush.msra.mxu0 0.0
  %3218 = vmatpush.msra.mxu0 0.0
  %3219 = vmatpush.msra.mxu0 0.0
  %3220 = vmatpush.msra.mxu0 0.0
  %3221 = vmatpush.msra.mxu0 0.0
  %3222 = vmatpush.msra.mxu0 0.0
  %3223 = vmatpush.msra.mxu0 0.0
  %3224 = vmatpush.msra.mxu0 0.0
  %3225 = vmatpush.msra.mxu0 0.0
  %3226 = vmatpush.msra.mxu0 0.0
  %3227 = vmatpush.msra.mxu0 0.0
  %3228 = vmatpush.msra.mxu0 0.0
  %v3229 = vand.u32 %v3087, 4294901760
  %v3230 = vsub.f32 %v3087, %v3229
  %v3231 = vand.u32 %v3230, 4294901760
  %3232 = vmatpush.msra.mxu0 %v3231
  %v3233 = vand.u32 %v3086, 4294901760
  %v3234 = vsub.f32 %v3086, %v3233
  %v3235 = vand.u32 %v3234, 4294901760
  %3236 = vmatpush.msra.mxu0 %v3235
  %v3237 = vand.u32 %v3085, 4294901760
  %v3238 = vsub.f32 %v3085, %v3237
  %v3239 = vand.u32 %v3238, 4294901760
  %3240 = vmatpush.msra.mxu0 %v3239
  %v3241 = vand.u32 %v3084, 4294901760
  %v3242 = vsub.f32 %v3084, %v3241
  %v3243 = vand.u32 %v3242, 4294901760
  %3244 = vmatpush.msra.mxu0 %v3243
  %v3245 = vand.u32 %v3088, 4294901760
  %3246 = vmatmul.f32.gmra.mxu0 %v3245
  %v3247 = vpop.f32.mrf.mxu0
  %v3248 = vadd.f32 %v3215, %v3247
  %3249 = vdwg.mxu0
  %3250 = vmatpush.msra.mxu0 0.0
  %3251 = vmatpush.msra.mxu0 0.0
  %3252 = vmatpush.msra.mxu0 0.0
  %3253 = vmatpush.msra.mxu0 0.0
  %3254 = vmatpush.msra.mxu0 0.0
  %3255 = vmatpush.msra.mxu0 0.0
  %3256 = vmatpush.msra.mxu0 0.0
  %3257 = vmatpush.msra.mxu0 0.0
  %3258 = vmatpush.msra.mxu0 0.0
  %3259 = vmatpush.msra.mxu0 0.0
  %3260 = vmatpush.msra.mxu0 0.0
  %3261 = vmatpush.msra.mxu0 0.0
  %v3262 = vand.u32 %v3087, 4294901760
  %3263 = vmatpush.msra.mxu0 %v3262
  %v3264 = vand.u32 %v3086, 4294901760
  %3265 = vmatpush.msra.mxu0 %v3264
  %v3266 = vand.u32 %v3085, 4294901760
  %3267 = vmatpush.msra.mxu0 %v3266
  %v3268 = vand.u32 %v3084, 4294901760
  %3269 = vmatpush.msra.mxu0 %v3268
  %v3270 = vand.u32 %v3088, 4294901760
  %3271 = vmatmul.f32.gmra.mxu0 %v3270
  %v3272 = vpop.f32.mrf.mxu0
  %v3273 = vadd.f32 %v3248, %v3272
  %3274 = vdwg.mxu0
  %v3275 = vadd.f32 %v3083, %v3273
  %v3276 = vxor.u32 %v3275, 2147483648
  %v3277 = vmul.f32 %v3276, 1.442695
  %v3278 = vpow.pop %v3277
  %v3279 = vadd.f32 %v3278, 1.0
  %v3280 = vrcp.pop %v3279
  %v3281 = vmul.f32 %v3279, %v3280
  %v3282 = vsub.f32 1.0, %v3281
  %v3283 = vmul.f32 %v3280, %v3282
  %v3284 = vadd.f32 %v3280, %v3283
  %vm3285 = vweird.f32 %v3279
  %vm3286 = vweird.f32 %v3280
  %vm3287 = vmor %vm3285, %vm3286
  %v3288 = vsel %vm3287, %v3280, %v3284
  %v3289 = vand.u32 2147483647, %v3279
  %vm3290 = vcmp.eq.f32.partialorder %v3289, 8.507059e+37
  %v3291 = vand.u32 %v3279, 2147483648
  %v3292 = vor.u32 1.1754944e-38, %v3291
  %v3293 = vsel %vm3290, %v3292, %v3288
  %v3294 = vmul.f32 1.0, %v3293
  %v3295 = vtanh.pop %v3275
  %v3296 = vmul.f32 %v3294, %v3071
  %3298 = vrot.lane.b32.xlu0 %v3295, 64
  %v3299 = vpop.permute.xlu0 %3298
  %v3301 = vmul.f32 %v3294, %v3299
  %3303 = vrot.lane.b32.xlu0 %v3301, 32
  %v3304 = vpop.permute.xlu0 %3303
  %v3306 = vadd.f32 %v3296, %v3304
  %v3307 = vtanh.pop %v3306
  %3309 = vrot.lane.b32.xlu0 %v3307, 64
  %v3310 = vpop.permute.xlu0 %3309
  %v3312 = vmul.f32 %v3294, %v3310
  %3314 = vrot.lane.b32.xlu0 %v3312, 32
  %v3315 = vpop.permute.xlu0 %3314
  %3317 = vst.msk [vmem:[%s956] sm:$0xff] %vm44, %v3315
  %v3318 = vld [vmem:[%s958] sm:$0xff]
  %v3319 = vld [vmem:[%s2843] sm:$0xff]
  %v3320 = vld [vmem:[%s2843 + $0x8] sm:$0xff]
  %v3321 = vld [vmem:[%s2843 + $0x10] sm:$0xff]
  %v3322 = vld [vmem:[%s2843 + $0x18] sm:$0xff]
  %v3323 = vsel %vm44, %v3315, 0
  %3325 = vmatpush.msra.mxu0 0.0
  %3326 = vmatpush.msra.mxu0 0.0
  %3327 = vmatpush.msra.mxu0 0.0
  %3328 = vmatpush.msra.mxu0 0.0
  %3329 = vmatpush.msra.mxu0 0.0
  %3330 = vmatpush.msra.mxu0 0.0
  %3331 = vmatpush.msra.mxu0 0.0
  %3332 = vmatpush.msra.mxu0 0.0
  %3333 = vmatpush.msra.mxu0 0.0
  %3334 = vmatpush.msra.mxu0 0.0
  %3335 = vmatpush.msra.mxu0 0.0
  %3336 = vmatpush.msra.mxu0 0.0
  %v3337 = vand.u32 %v3322, 4294901760
  %3338 = vmatpush.msra.mxu0 %v3337
  %v3339 = vand.u32 %v3321, 4294901760
  %3340 = vmatpush.msra.mxu0 %v3339
  %v3341 = vand.u32 %v3320, 4294901760
  %3342 = vmatpush.msra.mxu0 %v3341
  %v3343 = vand.u32 %v3319, 4294901760
  %3344 = vmatpush.msra.mxu0 %v3343
  %v3345 = vand.u32 %v3323, 4294901760
  %v3346 = vsub.f32 %v3323, %v3345
  %v3347 = vand.u32 %v3346, 4294901760
  %v3348 = vsub.f32 %v3346, %v3347
  %v3349 = vand.u32 %v3348, 4294901760
  %3350 = vmatmul.f32.gmra.mxu0 %v3349
  %v3351 = vpop.f32.mrf.mxu0
  %v3352 = vadd.f32 0.0, %v3351
  %3353 = vdwg.mxu0
  %3354 = vmatpush.msra.mxu0 0.0
  %3355 = vmatpush.msra.mxu0 0.0
  %3356 = vmatpush.msra.mxu0 0.0
  %3357 = vmatpush.msra.mxu0 0.0
  %3358 = vmatpush.msra.mxu0 0.0
  %3359 = vmatpush.msra.mxu0 0.0
  %3360 = vmatpush.msra.mxu0 0.0
  %3361 = vmatpush.msra.mxu0 0.0
  %3362 = vmatpush.msra.mxu0 0.0
  %3363 = vmatpush.msra.mxu0 0.0
  %3364 = vmatpush.msra.mxu0 0.0
  %3365 = vmatpush.msra.mxu0 0.0
  %v3366 = vand.u32 %v3322, 4294901760
  %v3367 = vsub.f32 %v3322, %v3366
  %v3368 = vand.u32 %v3367, 4294901760
  %v3369 = vsub.f32 %v3367, %v3368
  %v3370 = vand.u32 %v3369, 4294901760
  %3371 = vmatpush.msra.mxu0 %v3370
  %v3372 = vand.u32 %v3321, 4294901760
  %v3373 = vsub.f32 %v3321, %v3372
  %v3374 = vand.u32 %v3373, 4294901760
  %v3375 = vsub.f32 %v3373, %v3374
  %v3376 = vand.u32 %v3375, 4294901760
  %3377 = vmatpush.msra.mxu0 %v3376
  %v3378 = vand.u32 %v3320, 4294901760
  %v3379 = vsub.f32 %v3320, %v3378
  %v3380 = vand.u32 %v3379, 4294901760
  %v3381 = vsub.f32 %v3379, %v3380
  %v3382 = vand.u32 %v3381, 4294901760
  %3383 = vmatpush.msra.mxu0 %v3382
  %v3384 = vand.u32 %v3319, 4294901760
  %v3385 = vsub.f32 %v3319, %v3384
  %v3386 = vand.u32 %v3385, 4294901760
  %v3387 = vsub.f32 %v3385, %v3386
  %v3388 = vand.u32 %v3387, 4294901760
  %3389 = vmatpush.msra.mxu0 %v3388
  %v3390 = vand.u32 %v3323, 4294901760
  %3391 = vmatmul.f32.gmra.mxu0 %v3390
  %v3392 = vpop.f32.mrf.mxu0
  %v3393 = vadd.f32 %v3352, %v3392
  %3394 = vdwg.mxu0
  %3395 = vmatpush.msra.mxu0 0.0
  %3396 = vmatpush.msra.mxu0 0.0
  %3397 = vmatpush.msra.mxu0 0.0
  %3398 = vmatpush.msra.mxu0 0.0
  %3399 = vmatpush.msra.mxu0 0.0
  %3400 = vmatpush.msra.mxu0 0.0
  %3401 = vmatpush.msra.mxu0 0.0
  %3402 = vmatpush.msra.mxu0 0.0
  %3403 = vmatpush.msra.mxu0 0.0
  %3404 = vmatpush.msra.mxu0 0.0
  %3405 = vmatpush.msra.mxu0 0.0
  %3406 = vmatpush.msra.mxu0 0.0
  %v3407 = vand.u32 %v3322, 4294901760
  %v3408 = vsub.f32 %v3322, %v3407
  %3409 = vmatpush.msra.mxu0 %v3408
  %v3410 = vand.u32 %v3321, 4294901760
  %v3411 = vsub.f32 %v3321, %v3410
  %3412 = vmatpush.msra.mxu0 %v3411
  %v3413 = vand.u32 %v3320, 4294901760
  %v3414 = vsub.f32 %v3320, %v3413
  %3415 = vmatpush.msra.mxu0 %v3414
  %v3416 = vand.u32 %v3319, 4294901760
  %v3417 = vsub.f32 %v3319, %v3416
  %3418 = vmatpush.msra.mxu0 %v3417
  %v3419 = vand.u32 %v3323, 4294901760
  %v3420 = vsub.f32 %v3323, %v3419
  %3421 = vmatmul.f32.gmra.mxu0 %v3420
  %v3422 = vpop.f32.mrf.mxu0
  %v3423 = vadd.f32 %v3393, %v3422
  %3424 = vdwg.mxu0
  %3425 = vmatpush.msra.mxu0 0.0
  %3426 = vmatpush.msra.mxu0 0.0
  %3427 = vmatpush.msra.mxu0 0.0
  %3428 = vmatpush.msra.mxu0 0.0
  %3429 = vmatpush.msra.mxu0 0.0
  %3430 = vmatpush.msra.mxu0 0.0
  %3431 = vmatpush.msra.mxu0 0.0
  %3432 = vmatpush.msra.mxu0 0.0
  %3433 = vmatpush.msra.mxu0 0.0
  %3434 = vmatpush.msra.mxu0 0.0
  %3435 = vmatpush.msra.mxu0 0.0
  %3436 = vmatpush.msra.mxu0 0.0
  %v3437 = vand.u32 %v3322, 4294901760
  %3438 = vmatpush.msra.mxu0 %v3437
  %v3439 = vand.u32 %v3321, 4294901760
  %3440 = vmatpush.msra.mxu0 %v3439
  %v3441 = vand.u32 %v3320, 4294901760
  %3442 = vmatpush.msra.mxu0 %v3441
  %v3443 = vand.u32 %v3319, 4294901760
  %3444 = vmatpush.msra.mxu0 %v3443
  %v3445 = vand.u32 %v3323, 4294901760
  %v3446 = vsub.f32 %v3323, %v3445
  %v3447 = vand.u32 %v3446, 4294901760
  %3448 = vmatmul.f32.gmra.mxu0 %v3447
  %v3449 = vpop.f32.mrf.mxu0
  %v3450 = vadd.f32 %v3423, %v3449
  %3451 = vdwg.mxu0
  %3452 = vmatpush.msra.mxu0 0.0
  %3453 = vmatpush.msra.mxu0 0.0
  %3454 = vmatpush.msra.mxu0 0.0
  %3455 = vmatpush.msra.mxu0 0.0
  %3456 = vmatpush.msra.mxu0 0.0
  %3457 = vmatpush.msra.mxu0 0.0
  %3458 = vmatpush.msra.mxu0 0.0
  %3459 = vmatpush.msra.mxu0 0.0
  %3460 = vmatpush.msra.mxu0 0.0
  %3461 = vmatpush.msra.mxu0 0.0
  %3462 = vmatpush.msra.mxu0 0.0
  %3463 = vmatpush.msra.mxu0 0.0
  %v3464 = vand.u32 %v3322, 4294901760
  %v3465 = vsub.f32 %v3322, %v3464
  %v3466 = vand.u32 %v3465, 4294901760
  %3467 = vmatpush.msra.mxu0 %v3466
  %v3468 = vand.u32 %v3321, 4294901760
  %v3469 = vsub.f32 %v3321, %v3468
  %v3470 = vand.u32 %v3469, 4294901760
  %3471 = vmatpush.msra.mxu0 %v3470
  %v3472 = vand.u32 %v3320, 4294901760
  %v3473 = vsub.f32 %v3320, %v3472
  %v3474 = vand.u32 %v3473, 4294901760
  %3475 = vmatpush.msra.mxu0 %v3474
  %v3476 = vand.u32 %v3319, 4294901760
  %v3477 = vsub.f32 %v3319, %v3476
  %v3478 = vand.u32 %v3477, 4294901760
  %3479 = vmatpush.msra.mxu0 %v3478
  %v3480 = vand.u32 %v3323, 4294901760
  %3481 = vmatmul.f32.gmra.mxu0 %v3480
  %v3482 = vpop.f32.mrf.mxu0
  %v3483 = vadd.f32 %v3450, %v3482
  %3484 = vdwg.mxu0
  %3485 = vmatpush.msra.mxu0 0.0
  %3486 = vmatpush.msra.mxu0 0.0
  %3487 = vmatpush.msra.mxu0 0.0
  %3488 = vmatpush.msra.mxu0 0.0
  %3489 = vmatpush.msra.mxu0 0.0
  %3490 = vmatpush.msra.mxu0 0.0
  %3491 = vmatpush.msra.mxu0 0.0
  %3492 = vmatpush.msra.mxu0 0.0
  %3493 = vmatpush.msra.mxu0 0.0
  %3494 = vmatpush.msra.mxu0 0.0
  %3495 = vmatpush.msra.mxu0 0.0
  %3496 = vmatpush.msra.mxu0 0.0
  %v3497 = vand.u32 %v3322, 4294901760
  %3498 = vmatpush.msra.mxu0 %v3497
  %v3499 = vand.u32 %v3321, 4294901760
  %3500 = vmatpush.msra.mxu0 %v3499
  %v3501 = vand.u32 %v3320, 4294901760
  %3502 = vmatpush.msra.mxu0 %v3501
  %v3503 = vand.u32 %v3319, 4294901760
  %3504 = vmatpush.msra.mxu0 %v3503
  %v3505 = vand.u32 %v3323, 4294901760
  %3506 = vmatmul.f32.gmra.mxu0 %v3505
  %v3507 = vpop.f32.mrf.mxu0
  %v3508 = vadd.f32 %v3483, %v3507
  %3509 = vdwg.mxu0
  %v3510 = vadd.f32 %v3318, %v3508
  %v3511 = vxor.u32 %v3510, 2147483648
  %v3512 = vmul.f32 %v3511, 1.442695
  %v3513 = vpow.pop %v3512
  %v3514 = vadd.f32 %v3513, 1.0
  %v3515 = vrcp.pop %v3514
  %v3516 = vmul.f32 %v3514, %v3515
  %v3517 = vsub.f32 1.0, %v3516
  %v3518 = vmul.f32 %v3515, %v3517
  %v3519 = vadd.f32 %v3515, %v3518
  %vm3520 = vweird.f32 %v3514
  %vm3521 = vweird.f32 %v3515
  %vm3522 = vmor %vm3520, %vm3521
  %v3523 = vsel %vm3522, %v3515, %v3519
  %v3524 = vand.u32 2147483647, %v3514
  %vm3525 = vcmp.eq.f32.partialorder %v3524, 8.507059e+37
  %v3526 = vand.u32 %v3514, 2147483648
  %v3527 = vor.u32 1.1754944e-38, %v3526
  %v3528 = vsel %vm3525, %v3527, %v3523
  %v3529 = vmul.f32 1.0, %v3528
  %v3530 = vtanh.pop %v3510
  %v3531 = vmul.f32 %v3529, %v3306
  %3533 = vrot.lane.b32.xlu0 %v3530, 64
  %v3534 = vpop.permute.xlu0 %3533
  %v3536 = vmul.f32 %v3529, %v3534
  %3538 = vrot.lane.b32.xlu0 %v3536, 32
  %v3539 = vpop.permute.xlu0 %3538
  %v3541 = vadd.f32 %v3531, %v3539
  %v3542 = vtanh.pop %v3541
  %3544 = vrot.lane.b32.xlu0 %v3542, 64
  %v3545 = vpop.permute.xlu0 %3544
  %v3547 = vmul.f32 %v3529, %v3545
  %3549 = vrot.lane.b32.xlu0 %v3547, 32
  %v3550 = vpop.permute.xlu0 %3549
  %3552 = vst.msk [vmem:[%s1193] sm:$0xff] %vm44, %v3550
  %v3553 = vld [vmem:[%s1195] sm:$0xff]
  %v3554 = vld [vmem:[%s2843] sm:$0xff]
  %v3555 = vld [vmem:[%s2843 + $0x8] sm:$0xff]
  %v3556 = vld [vmem:[%s2843 + $0x10] sm:$0xff]
  %v3557 = vld [vmem:[%s2843 + $0x18] sm:$0xff]
  %v3558 = vsel %vm44, %v3550, 0
  %3560 = vmatpush.msra.mxu0 0.0
  %3561 = vmatpush.msra.mxu0 0.0
  %3562 = vmatpush.msra.mxu0 0.0
  %3563 = vmatpush.msra.mxu0 0.0
  %3564 = vmatpush.msra.mxu0 0.0
  %3565 = vmatpush.msra.mxu0 0.0
  %3566 = vmatpush.msra.mxu0 0.0
  %3567 = vmatpush.msra.mxu0 0.0
  %3568 = vmatpush.msra.mxu0 0.0
  %3569 = vmatpush.msra.mxu0 0.0
  %3570 = vmatpush.msra.mxu0 0.0
  %3571 = vmatpush.msra.mxu0 0.0
  %v3572 = vand.u32 %v3557, 4294901760
  %3573 = vmatpush.msra.mxu0 %v3572
  %v3574 = vand.u32 %v3556, 4294901760
  %3575 = vmatpush.msra.mxu0 %v3574
  %v3576 = vand.u32 %v3555, 4294901760
  %3577 = vmatpush.msra.mxu0 %v3576
  %v3578 = vand.u32 %v3554, 4294901760
  %3579 = vmatpush.msra.mxu0 %v3578
  %v3580 = vand.u32 %v3558, 4294901760
  %v3581 = vsub.f32 %v3558, %v3580
  %v3582 = vand.u32 %v3581, 4294901760
  %v3583 = vsub.f32 %v3581, %v3582
  %v3584 = vand.u32 %v3583, 4294901760
  %3585 = vmatmul.f32.gmra.mxu0 %v3584
  %v3586 = vpop.f32.mrf.mxu0
  %v3587 = vadd.f32 0.0, %v3586
  %3588 = vdwg.mxu0
  %3589 = vmatpush.msra.mxu0 0.0
  %3590 = vmatpush.msra.mxu0 0.0
  %3591 = vmatpush.msra.mxu0 0.0
  %3592 = vmatpush.msra.mxu0 0.0
  %3593 = vmatpush.msra.mxu0 0.0
  %3594 = vmatpush.msra.mxu0 0.0
  %3595 = vmatpush.msra.mxu0 0.0
  %3596 = vmatpush.msra.mxu0 0.0
  %3597 = vmatpush.msra.mxu0 0.0
  %3598 = vmatpush.msra.mxu0 0.0
  %3599 = vmatpush.msra.mxu0 0.0
  %3600 = vmatpush.msra.mxu0 0.0
  %v3601 = vand.u32 %v3557, 4294901760
  %v3602 = vsub.f32 %v3557, %v3601
  %v3603 = vand.u32 %v3602, 4294901760
  %v3604 = vsub.f32 %v3602, %v3603
  %v3605 = vand.u32 %v3604, 4294901760
  %3606 = vmatpush.msra.mxu0 %v3605
  %v3607 = vand.u32 %v3556, 4294901760
  %v3608 = vsub.f32 %v3556, %v3607
  %v3609 = vand.u32 %v3608, 4294901760
  %v3610 = vsub.f32 %v3608, %v3609
  %v3611 = vand.u32 %v3610, 4294901760
  %3612 = vmatpush.msra.mxu0 %v3611
  %v3613 = vand.u32 %v3555, 4294901760
  %v3614 = vsub.f32 %v3555, %v3613
  %v3615 = vand.u32 %v3614, 4294901760
  %v3616 = vsub.f32 %v3614, %v3615
  %v3617 = vand.u32 %v3616, 4294901760
  %3618 = vmatpush.msra.mxu0 %v3617
  %v3619 = vand.u32 %v3554, 4294901760
  %v3620 = vsub.f32 %v3554, %v3619
  %v3621 = vand.u32 %v3620, 4294901760
  %v3622 = vsub.f32 %v3620, %v3621
  %v3623 = vand.u32 %v3622, 4294901760
  %3624 = vmatpush.msra.mxu0 %v3623
  %v3625 = vand.u32 %v3558, 4294901760
  %3626 = vmatmul.f32.gmra.mxu0 %v3625
  %v3627 = vpop.f32.mrf.mxu0
  %v3628 = vadd.f32 %v3587, %v3627
  %3629 = vdwg.mxu0
  %3630 = vmatpush.msra.mxu0 0.0
  %3631 = vmatpush.msra.mxu0 0.0
  %3632 = vmatpush.msra.mxu0 0.0
  %3633 = vmatpush.msra.mxu0 0.0
  %3634 = vmatpush.msra.mxu0 0.0
  %3635 = vmatpush.msra.mxu0 0.0
  %3636 = vmatpush.msra.mxu0 0.0
  %3637 = vmatpush.msra.mxu0 0.0
  %3638 = vmatpush.msra.mxu0 0.0
  %3639 = vmatpush.msra.mxu0 0.0
  %3640 = vmatpush.msra.mxu0 0.0
  %3641 = vmatpush.msra.mxu0 0.0
  %v3642 = vand.u32 %v3557, 4294901760
  %v3643 = vsub.f32 %v3557, %v3642
  %3644 = vmatpush.msra.mxu0 %v3643
  %v3645 = vand.u32 %v3556, 4294901760
  %v3646 = vsub.f32 %v3556, %v3645
  %3647 = vmatpush.msra.mxu0 %v3646
  %v3648 = vand.u32 %v3555, 4294901760
  %v3649 = vsub.f32 %v3555, %v3648
  %3650 = vmatpush.msra.mxu0 %v3649
  %v3651 = vand.u32 %v3554, 4294901760
  %v3652 = vsub.f32 %v3554, %v3651
  %3653 = vmatpush.msra.mxu0 %v3652
  %v3654 = vand.u32 %v3558, 4294901760
  %v3655 = vsub.f32 %v3558, %v3654
  %3656 = vmatmul.f32.gmra.mxu0 %v3655
  %v3657 = vpop.f32.mrf.mxu0
  %v3658 = vadd.f32 %v3628, %v3657
  %3659 = vdwg.mxu0
  %3660 = vmatpush.msra.mxu0 0.0
  %3661 = vmatpush.msra.mxu0 0.0
  %3662 = vmatpush.msra.mxu0 0.0
  %3663 = vmatpush.msra.mxu0 0.0
  %3664 = vmatpush.msra.mxu0 0.0
  %3665 = vmatpush.msra.mxu0 0.0
  %3666 = vmatpush.msra.mxu0 0.0
  %3667 = vmatpush.msra.mxu0 0.0
  %3668 = vmatpush.msra.mxu0 0.0
  %3669 = vmatpush.msra.mxu0 0.0
  %3670 = vmatpush.msra.mxu0 0.0
  %3671 = vmatpush.msra.mxu0 0.0
  %v3672 = vand.u32 %v3557, 4294901760
  %3673 = vmatpush.msra.mxu0 %v3672
  %v3674 = vand.u32 %v3556, 4294901760
  %3675 = vmatpush.msra.mxu0 %v3674
  %v3676 = vand.u32 %v3555, 4294901760
  %3677 = vmatpush.msra.mxu0 %v3676
  %v3678 = vand.u32 %v3554, 4294901760
  %3679 = vmatpush.msra.mxu0 %v3678
  %v3680 = vand.u32 %v3558, 4294901760
  %v3681 = vsub.f32 %v3558, %v3680
  %v3682 = vand.u32 %v3681, 4294901760
  %3683 = vmatmul.f32.gmra.mxu0 %v3682
  %v3684 = vpop.f32.mrf.mxu0
  %v3685 = vadd.f32 %v3658, %v3684
  %3686 = vdwg.mxu0
  %3687 = vmatpush.msra.mxu0 0.0
  %3688 = vmatpush.msra.mxu0 0.0
  %3689 = vmatpush.msra.mxu0 0.0
  %3690 = vmatpush.msra.mxu0 0.0
  %3691 = vmatpush.msra.mxu0 0.0
  %3692 = vmatpush.msra.mxu0 0.0
  %3693 = vmatpush.msra.mxu0 0.0
  %3694 = vmatpush.msra.mxu0 0.0
  %3695 = vmatpush.msra.mxu0 0.0
  %3696 = vmatpush.msra.mxu0 0.0
  %3697 = vmatpush.msra.mxu0 0.0
  %3698 = vmatpush.msra.mxu0 0.0
  %v3699 = vand.u32 %v3557, 4294901760
  %v3700 = vsub.f32 %v3557, %v3699
  %v3701 = vand.u32 %v3700, 4294901760
  %3702 = vmatpush.msra.mxu0 %v3701
  %v3703 = vand.u32 %v3556, 4294901760
  %v3704 = vsub.f32 %v3556, %v3703
  %v3705 = vand.u32 %v3704, 4294901760
  %3706 = vmatpush.msra.mxu0 %v3705
  %v3707 = vand.u32 %v3555, 4294901760
  %v3708 = vsub.f32 %v3555, %v3707
  %v3709 = vand.u32 %v3708, 4294901760
  %3710 = vmatpush.msra.mxu0 %v3709
  %v3711 = vand.u32 %v3554, 4294901760
  %v3712 = vsub.f32 %v3554, %v3711
  %v3713 = vand.u32 %v3712, 4294901760
  %3714 = vmatpush.msra.mxu0 %v3713
  %v3715 = vand.u32 %v3558, 4294901760
  %3716 = vmatmul.f32.gmra.mxu0 %v3715
  %v3717 = vpop.f32.mrf.mxu0
  %v3718 = vadd.f32 %v3685, %v3717
  %3719 = vdwg.mxu0
  %3720 = vmatpush.msra.mxu0 0.0
  %3721 = vmatpush.msra.mxu0 0.0
  %3722 = vmatpush.msra.mxu0 0.0
  %3723 = vmatpush.msra.mxu0 0.0
  %3724 = vmatpush.msra.mxu0 0.0
  %3725 = vmatpush.msra.mxu0 0.0
  %3726 = vmatpush.msra.mxu0 0.0
  %3727 = vmatpush.msra.mxu0 0.0
  %3728 = vmatpush.msra.mxu0 0.0
  %3729 = vmatpush.msra.mxu0 0.0
  %3730 = vmatpush.msra.mxu0 0.0
  %3731 = vmatpush.msra.mxu0 0.0
  %v3732 = vand.u32 %v3557, 4294901760
  %3733 = vmatpush.msra.mxu0 %v3732
  %v3734 = vand.u32 %v3556, 4294901760
  %3735 = vmatpush.msra.mxu0 %v3734
  %v3736 = vand.u32 %v3555, 4294901760
  %3737 = vmatpush.msra.mxu0 %v3736
  %v3738 = vand.u32 %v3554, 4294901760
  %3739 = vmatpush.msra.mxu0 %v3738
  %v3740 = vand.u32 %v3558, 4294901760
  %3741 = vmatmul.f32.gmra.mxu0 %v3740
  %v3742 = vpop.f32.mrf.mxu0
  %v3743 = vadd.f32 %v3718, %v3742
  %3744 = vdwg.mxu0
  %v3745 = vadd.f32 %v3553, %v3743
  %v3746 = vxor.u32 %v3745, 2147483648
  %v3747 = vmul.f32 %v3746, 1.442695
  %v3748 = vpow.pop %v3747
  %v3749 = vadd.f32 %v3748, 1.0
  %v3750 = vrcp.pop %v3749
  %v3751 = vmul.f32 %v3749, %v3750
  %v3752 = vsub.f32 1.0, %v3751
  %v3753 = vmul.f32 %v3750, %v3752
  %v3754 = vadd.f32 %v3750, %v3753
  %vm3755 = vweird.f32 %v3749
  %vm3756 = vweird.f32 %v3750
  %vm3757 = vmor %vm3755, %vm3756
  %v3758 = vsel %vm3757, %v3750, %v3754
  %v3759 = vand.u32 2147483647, %v3749
  %vm3760 = vcmp.eq.f32.partialorder %v3759, 8.507059e+37
  %v3761 = vand.u32 %v3749, 2147483648
  %v3762 = vor.u32 1.1754944e-38, %v3761
  %v3763 = vsel %vm3760, %v3762, %v3758
  %v3764 = vmul.f32 1.0, %v3763
  %v3765 = vtanh.pop %v3745
  %v3766 = vmul.f32 %v3764, %v3541
  %3768 = vrot.lane.b32.xlu0 %v3765, 64
  %v3769 = vpop.permute.xlu0 %3768
  %v3771 = vmul.f32 %v3764, %v3769
  %3773 = vrot.lane.b32.xlu0 %v3771, 32
  %v3774 = vpop.permute.xlu0 %3773
  %v3776 = vadd.f32 %v3766, %v3774
  %v3777 = vtanh.pop %v3776
  %3779 = vrot.lane.b32.xlu0 %v3777, 64
  %v3780 = vpop.permute.xlu0 %3779
  %v3782 = vmul.f32 %v3764, %v3780
  %3784 = vrot.lane.b32.xlu0 %v3782, 32
  %v3785 = vpop.permute.xlu0 %3784
  %3787 = vst.msk [vmem:[%s1430] sm:$0xff] %vm44, %v3785
  %v3788 = vld [vmem:[%s1432] sm:$0xff]
  %v3789 = vld [vmem:[%s2843] sm:$0xff]
  %v3790 = vld [vmem:[%s2843 + $0x8] sm:$0xff]
  %v3791 = vld [vmem:[%s2843 + $0x10] sm:$0xff]
  %v3792 = vld [vmem:[%s2843 + $0x18] sm:$0xff]
  %v3793 = vsel %vm44, %v3785, 0
  %3795 = vmatpush.msra.mxu0 0.0
  %3796 = vmatpush.msra.mxu0 0.0
  %3797 = vmatpush.msra.mxu0 0.0
  %3798 = vmatpush.msra.mxu0 0.0
  %3799 = vmatpush.msra.mxu0 0.0
  %3800 = vmatpush.msra.mxu0 0.0
  %3801 = vmatpush.msra.mxu0 0.0
  %3802 = vmatpush.msra.mxu0 0.0
  %3803 = vmatpush.msra.mxu0 0.0
  %3804 = vmatpush.msra.mxu0 0.0
  %3805 = vmatpush.msra.mxu0 0.0
  %3806 = vmatpush.msra.mxu0 0.0
  %v3807 = vand.u32 %v3792, 4294901760
  %3808 = vmatpush.msra.mxu0 %v3807
  %v3809 = vand.u32 %v3791, 4294901760
  %3810 = vmatpush.msra.mxu0 %v3809
  %v3811 = vand.u32 %v3790, 4294901760
  %3812 = vmatpush.msra.mxu0 %v3811
  %v3813 = vand.u32 %v3789, 4294901760
  %3814 = vmatpush.msra.mxu0 %v3813
  %v3815 = vand.u32 %v3793, 4294901760
  %v3816 = vsub.f32 %v3793, %v3815
  %v3817 = vand.u32 %v3816, 4294901760
  %v3818 = vsub.f32 %v3816, %v3817
  %v3819 = vand.u32 %v3818, 4294901760
  %3820 = vmatmul.f32.gmra.mxu0 %v3819
  %v3821 = vpop.f32.mrf.mxu0
  %v3822 = vadd.f32 0.0, %v3821
  %3823 = vdwg.mxu0
  %3824 = vmatpush.msra.mxu0 0.0
  %3825 = vmatpush.msra.mxu0 0.0
  %3826 = vmatpush.msra.mxu0 0.0
  %3827 = vmatpush.msra.mxu0 0.0
  %3828 = vmatpush.msra.mxu0 0.0
  %3829 = vmatpush.msra.mxu0 0.0
  %3830 = vmatpush.msra.mxu0 0.0
  %3831 = vmatpush.msra.mxu0 0.0
  %3832 = vmatpush.msra.mxu0 0.0
  %3833 = vmatpush.msra.mxu0 0.0
  %3834 = vmatpush.msra.mxu0 0.0
  %3835 = vmatpush.msra.mxu0 0.0
  %v3836 = vand.u32 %v3792, 4294901760
  %v3837 = vsub.f32 %v3792, %v3836
  %v3838 = vand.u32 %v3837, 4294901760
  %v3839 = vsub.f32 %v3837, %v3838
  %v3840 = vand.u32 %v3839, 4294901760
  %3841 = vmatpush.msra.mxu0 %v3840
  %v3842 = vand.u32 %v3791, 4294901760
  %v3843 = vsub.f32 %v3791, %v3842
  %v3844 = vand.u32 %v3843, 4294901760
  %v3845 = vsub.f32 %v3843, %v3844
  %v3846 = vand.u32 %v3845, 4294901760
  %3847 = vmatpush.msra.mxu0 %v3846
  %v3848 = vand.u32 %v3790, 4294901760
  %v3849 = vsub.f32 %v3790, %v3848
  %v3850 = vand.u32 %v3849, 4294901760
  %v3851 = vsub.f32 %v3849, %v3850
  %v3852 = vand.u32 %v3851, 4294901760
  %3853 = vmatpush.msra.mxu0 %v3852
  %v3854 = vand.u32 %v3789, 4294901760
  %v3855 = vsub.f32 %v3789, %v3854
  %v3856 = vand.u32 %v3855, 4294901760
  %v3857 = vsub.f32 %v3855, %v3856
  %v3858 = vand.u32 %v3857, 4294901760
  %3859 = vmatpush.msra.mxu0 %v3858
  %v3860 = vand.u32 %v3793, 4294901760
  %3861 = vmatmul.f32.gmra.mxu0 %v3860
  %v3862 = vpop.f32.mrf.mxu0
  %v3863 = vadd.f32 %v3822, %v3862
  %3864 = vdwg.mxu0
  %3865 = vmatpush.msra.mxu0 0.0
  %3866 = vmatpush.msra.mxu0 0.0
  %3867 = vmatpush.msra.mxu0 0.0
  %3868 = vmatpush.msra.mxu0 0.0
  %3869 = vmatpush.msra.mxu0 0.0
  %3870 = vmatpush.msra.mxu0 0.0
  %3871 = vmatpush.msra.mxu0 0.0
  %3872 = vmatpush.msra.mxu0 0.0
  %3873 = vmatpush.msra.mxu0 0.0
  %3874 = vmatpush.msra.mxu0 0.0
  %3875 = vmatpush.msra.mxu0 0.0
  %3876 = vmatpush.msra.mxu0 0.0
  %v3877 = vand.u32 %v3792, 4294901760
  %v3878 = vsub.f32 %v3792, %v3877
  %3879 = vmatpush.msra.mxu0 %v3878
  %v3880 = vand.u32 %v3791, 4294901760
  %v3881 = vsub.f32 %v3791, %v3880
  %3882 = vmatpush.msra.mxu0 %v3881
  %v3883 = vand.u32 %v3790, 4294901760
  %v3884 = vsub.f32 %v3790, %v3883
  %3885 = vmatpush.msra.mxu0 %v3884
  %v3886 = vand.u32 %v3789, 4294901760
  %v3887 = vsub.f32 %v3789, %v3886
  %3888 = vmatpush.msra.mxu0 %v3887
  %v3889 = vand.u32 %v3793, 4294901760
  %v3890 = vsub.f32 %v3793, %v3889
  %3891 = vmatmul.f32.gmra.mxu0 %v3890
  %v3892 = vpop.f32.mrf.mxu0
  %v3893 = vadd.f32 %v3863, %v3892
  %3894 = vdwg.mxu0
  %3895 = vmatpush.msra.mxu0 0.0
  %3896 = vmatpush.msra.mxu0 0.0
  %3897 = vmatpush.msra.mxu0 0.0
  %3898 = vmatpush.msra.mxu0 0.0
  %3899 = vmatpush.msra.mxu0 0.0
  %3900 = vmatpush.msra.mxu0 0.0
  %3901 = vmatpush.msra.mxu0 0.0
  %3902 = vmatpush.msra.mxu0 0.0
  %3903 = vmatpush.msra.mxu0 0.0
  %3904 = vmatpush.msra.mxu0 0.0
  %3905 = vmatpush.msra.mxu0 0.0
  %3906 = vmatpush.msra.mxu0 0.0
  %v3907 = vand.u32 %v3792, 4294901760
  %3908 = vmatpush.msra.mxu0 %v3907
  %v3909 = vand.u32 %v3791, 4294901760
  %3910 = vmatpush.msra.mxu0 %v3909
  %v3911 = vand.u32 %v3790, 4294901760
  %3912 = vmatpush.msra.mxu0 %v3911
  %v3913 = vand.u32 %v3789, 4294901760
  %3914 = vmatpush.msra.mxu0 %v3913
  %v3915 = vand.u32 %v3793, 4294901760
  %v3916 = vsub.f32 %v3793, %v3915
  %v3917 = vand.u32 %v3916, 4294901760
  %3918 = vmatmul.f32.gmra.mxu0 %v3917
  %v3919 = vpop.f32.mrf.mxu0
  %v3920 = vadd.f32 %v3893, %v3919
  %3921 = vdwg.mxu0
  %3922 = vmatpush.msra.mxu0 0.0
  %3923 = vmatpush.msra.mxu0 0.0
  %3924 = vmatpush.msra.mxu0 0.0
  %3925 = vmatpush.msra.mxu0 0.0
  %3926 = vmatpush.msra.mxu0 0.0
  %3927 = vmatpush.msra.mxu0 0.0
  %3928 = vmatpush.msra.mxu0 0.0
  %3929 = vmatpush.msra.mxu0 0.0
  %3930 = vmatpush.msra.mxu0 0.0
  %3931 = vmatpush.msra.mxu0 0.0
  %3932 = vmatpush.msra.mxu0 0.0
  %3933 = vmatpush.msra.mxu0 0.0
  %v3934 = vand.u32 %v3792, 4294901760
  %v3935 = vsub.f32 %v3792, %v3934
  %v3936 = vand.u32 %v3935, 4294901760
  %3937 = vmatpush.msra.mxu0 %v3936
  %v3938 = vand.u32 %v3791, 4294901760
  %v3939 = vsub.f32 %v3791, %v3938
  %v3940 = vand.u32 %v3939, 4294901760
  %3941 = vmatpush.msra.mxu0 %v3940
  %v3942 = vand.u32 %v3790, 4294901760
  %v3943 = vsub.f32 %v3790, %v3942
  %v3944 = vand.u32 %v3943, 4294901760
  %3945 = vmatpush.msra.mxu0 %v3944
  %v3946 = vand.u32 %v3789, 4294901760
  %v3947 = vsub.f32 %v3789, %v3946
  %v3948 = vand.u32 %v3947, 4294901760
  %3949 = vmatpush.msra.mxu0 %v3948
  %v3950 = vand.u32 %v3793, 4294901760
  %3951 = vmatmul.f32.gmra.mxu0 %v3950
  %v3952 = vpop.f32.mrf.mxu0
  %v3953 = vadd.f32 %v3920, %v3952
  %3954 = vdwg.mxu0
  %3955 = vmatpush.msra.mxu0 0.0
  %3956 = vmatpush.msra.mxu0 0.0
  %3957 = vmatpush.msra.mxu0 0.0
  %3958 = vmatpush.msra.mxu0 0.0
  %3959 = vmatpush.msra.mxu0 0.0
  %3960 = vmatpush.msra.mxu0 0.0
  %3961 = vmatpush.msra.mxu0 0.0
  %3962 = vmatpush.msra.mxu0 0.0
  %3963 = vmatpush.msra.mxu0 0.0
  %3964 = vmatpush.msra.mxu0 0.0
  %3965 = vmatpush.msra.mxu0 0.0
  %3966 = vmatpush.msra.mxu0 0.0
  %v3967 = vand.u32 %v3792, 4294901760
  %3968 = vmatpush.msra.mxu0 %v3967
  %v3969 = vand.u32 %v3791, 4294901760
  %3970 = vmatpush.msra.mxu0 %v3969
  %v3971 = vand.u32 %v3790, 4294901760
  %3972 = vmatpush.msra.mxu0 %v3971
  %v3973 = vand.u32 %v3789, 4294901760
  %3974 = vmatpush.msra.mxu0 %v3973
  %v3975 = vand.u32 %v3793, 4294901760
  %3976 = vmatmul.f32.gmra.mxu0 %v3975
  %v3977 = vpop.f32.mrf.mxu0
  %v3978 = vadd.f32 %v3953, %v3977
  %3979 = vdwg.mxu0
  %v3980 = vadd.f32 %v3788, %v3978
  %v3981 = vxor.u32 %v3980, 2147483648
  %v3982 = vmul.f32 %v3981, 1.442695
  %v3983 = vpow.pop %v3982
  %v3984 = vadd.f32 %v3983, 1.0
  %v3985 = vrcp.pop %v3984
  %v3986 = vmul.f32 %v3984, %v3985
  %v3987 = vsub.f32 1.0, %v3986
  %v3988 = vmul.f32 %v3985, %v3987
  %v3989 = vadd.f32 %v3985, %v3988
  %vm3990 = vweird.f32 %v3984
  %vm3991 = vweird.f32 %v3985
  %vm3992 = vmor %vm3990, %vm3991
  %v3993 = vsel %vm3992, %v3985, %v3989
  %v3994 = vand.u32 2147483647, %v3984
  %vm3995 = vcmp.eq.f32.partialorder %v3994, 8.507059e+37
  %v3996 = vand.u32 %v3984, 2147483648
  %v3997 = vor.u32 1.1754944e-38, %v3996
  %v3998 = vsel %vm3995, %v3997, %v3993
  %v3999 = vmul.f32 1.0, %v3998
  %v4000 = vtanh.pop %v3980
  %v4001 = vmul.f32 %v3999, %v3776
  %4003 = vrot.lane.b32.xlu0 %v4000, 64
  %v4004 = vpop.permute.xlu0 %4003
  %v4006 = vmul.f32 %v3999, %v4004
  %4008 = vrot.lane.b32.xlu0 %v4006, 32
  %v4009 = vpop.permute.xlu0 %4008
  %v4011 = vadd.f32 %v4001, %v4009
  %v4012 = vtanh.pop %v4011
  %4014 = vrot.lane.b32.xlu0 %v4012, 64
  %v4015 = vpop.permute.xlu0 %4014
  %v4017 = vmul.f32 %v3999, %v4015
  %4019 = vrot.lane.b32.xlu0 %v4017, 32
  %v4020 = vpop.permute.xlu0 %4019
  %4022 = vst.msk [vmem:[%s1667] sm:$0xff] %vm44, %v4020
  %v4023 = vld [vmem:[%s1669] sm:$0xff]
  %v4024 = vld [vmem:[%s2843] sm:$0xff]
  %v4025 = vld [vmem:[%s2843 + $0x8] sm:$0xff]
  %v4026 = vld [vmem:[%s2843 + $0x10] sm:$0xff]
  %v4027 = vld [vmem:[%s2843 + $0x18] sm:$0xff]
  %v4028 = vsel %vm44, %v4020, 0
  %4030 = vmatpush.msra.mxu0 0.0
  %4031 = vmatpush.msra.mxu0 0.0
  %4032 = vmatpush.msra.mxu0 0.0
  %4033 = vmatpush.msra.mxu0 0.0
  %4034 = vmatpush.msra.mxu0 0.0
  %4035 = vmatpush.msra.mxu0 0.0
  %4036 = vmatpush.msra.mxu0 0.0
  %4037 = vmatpush.msra.mxu0 0.0
  %4038 = vmatpush.msra.mxu0 0.0
  %4039 = vmatpush.msra.mxu0 0.0
  %4040 = vmatpush.msra.mxu0 0.0
  %4041 = vmatpush.msra.mxu0 0.0
  %v4042 = vand.u32 %v4027, 4294901760
  %4043 = vmatpush.msra.mxu0 %v4042
  %v4044 = vand.u32 %v4026, 4294901760
  %4045 = vmatpush.msra.mxu0 %v4044
  %v4046 = vand.u32 %v4025, 4294901760
  %4047 = vmatpush.msra.mxu0 %v4046
  %v4048 = vand.u32 %v4024, 4294901760
  %4049 = vmatpush.msra.mxu0 %v4048
  %v4050 = vand.u32 %v4028, 4294901760
  %v4051 = vsub.f32 %v4028, %v4050
  %v4052 = vand.u32 %v4051, 4294901760
  %v4053 = vsub.f32 %v4051, %v4052
  %v4054 = vand.u32 %v4053, 4294901760
  %4055 = vmatmul.f32.gmra.mxu0 %v4054
  %v4056 = vpop.f32.mrf.mxu0
  %v4057 = vadd.f32 0.0, %v4056
  %4058 = vdwg.mxu0
  %4059 = vmatpush.msra.mxu0 0.0
  %4060 = vmatpush.msra.mxu0 0.0
  %4061 = vmatpush.msra.mxu0 0.0
  %4062 = vmatpush.msra.mxu0 0.0
  %4063 = vmatpush.msra.mxu0 0.0
  %4064 = vmatpush.msra.mxu0 0.0
  %4065 = vmatpush.msra.mxu0 0.0
  %4066 = vmatpush.msra.mxu0 0.0
  %4067 = vmatpush.msra.mxu0 0.0
  %4068 = vmatpush.msra.mxu0 0.0
  %4069 = vmatpush.msra.mxu0 0.0
  %4070 = vmatpush.msra.mxu0 0.0
  %v4071 = vand.u32 %v4027, 4294901760
  %v4072 = vsub.f32 %v4027, %v4071
  %v4073 = vand.u32 %v4072, 4294901760
  %v4074 = vsub.f32 %v4072, %v4073
  %v4075 = vand.u32 %v4074, 4294901760
  %4076 = vmatpush.msra.mxu0 %v4075
  %v4077 = vand.u32 %v4026, 4294901760
  %v4078 = vsub.f32 %v4026, %v4077
  %v4079 = vand.u32 %v4078, 4294901760
  %v4080 = vsub.f32 %v4078, %v4079
  %v4081 = vand.u32 %v4080, 4294901760
  %4082 = vmatpush.msra.mxu0 %v4081
  %v4083 = vand.u32 %v4025, 4294901760
  %v4084 = vsub.f32 %v4025, %v4083
  %v4085 = vand.u32 %v4084, 4294901760
  %v4086 = vsub.f32 %v4084, %v4085
  %v4087 = vand.u32 %v4086, 4294901760
  %4088 = vmatpush.msra.mxu0 %v4087
  %v4089 = vand.u32 %v4024, 4294901760
  %v4090 = vsub.f32 %v4024, %v4089
  %v4091 = vand.u32 %v4090, 4294901760
  %v4092 = vsub.f32 %v4090, %v4091
  %v4093 = vand.u32 %v4092, 4294901760
  %4094 = vmatpush.msra.mxu0 %v4093
  %v4095 = vand.u32 %v4028, 4294901760
  %4096 = vmatmul.f32.gmra.mxu0 %v4095
  %v4097 = vpop.f32.mrf.mxu0
  %v4098 = vadd.f32 %v4057, %v4097
  %4099 = vdwg.mxu0
  %4100 = vmatpush.msra.mxu0 0.0
  %4101 = vmatpush.msra.mxu0 0.0
  %4102 = vmatpush.msra.mxu0 0.0
  %4103 = vmatpush.msra.mxu0 0.0
  %4104 = vmatpush.msra.mxu0 0.0
  %4105 = vmatpush.msra.mxu0 0.0
  %4106 = vmatpush.msra.mxu0 0.0
  %4107 = vmatpush.msra.mxu0 0.0
  %4108 = vmatpush.msra.mxu0 0.0
  %4109 = vmatpush.msra.mxu0 0.0
  %4110 = vmatpush.msra.mxu0 0.0
  %4111 = vmatpush.msra.mxu0 0.0
  %v4112 = vand.u32 %v4027, 4294901760
  %v4113 = vsub.f32 %v4027, %v4112
  %4114 = vmatpush.msra.mxu0 %v4113
  %v4115 = vand.u32 %v4026, 4294901760
  %v4116 = vsub.f32 %v4026, %v4115
  %4117 = vmatpush.msra.mxu0 %v4116
  %v4118 = vand.u32 %v4025, 4294901760
  %v4119 = vsub.f32 %v4025, %v4118
  %4120 = vmatpush.msra.mxu0 %v4119
  %v4121 = vand.u32 %v4024, 4294901760
  %v4122 = vsub.f32 %v4024, %v4121
  %4123 = vmatpush.msra.mxu0 %v4122
  %v4124 = vand.u32 %v4028, 4294901760
  %v4125 = vsub.f32 %v4028, %v4124
  %4126 = vmatmul.f32.gmra.mxu0 %v4125
  %v4127 = vpop.f32.mrf.mxu0
  %v4128 = vadd.f32 %v4098, %v4127
  %4129 = vdwg.mxu0
  %4130 = vmatpush.msra.mxu0 0.0
  %4131 = vmatpush.msra.mxu0 0.0
  %4132 = vmatpush.msra.mxu0 0.0
  %4133 = vmatpush.msra.mxu0 0.0
  %4134 = vmatpush.msra.mxu0 0.0
  %4135 = vmatpush.msra.mxu0 0.0
  %4136 = vmatpush.msra.mxu0 0.0
  %4137 = vmatpush.msra.mxu0 0.0
  %4138 = vmatpush.msra.mxu0 0.0
  %4139 = vmatpush.msra.mxu0 0.0
  %4140 = vmatpush.msra.mxu0 0.0
  %4141 = vmatpush.msra.mxu0 0.0
  %v4142 = vand.u32 %v4027, 4294901760
  %4143 = vmatpush.msra.mxu0 %v4142
  %v4144 = vand.u32 %v4026, 4294901760
  %4145 = vmatpush.msra.mxu0 %v4144
  %v4146 = vand.u32 %v4025, 4294901760
  %4147 = vmatpush.msra.mxu0 %v4146
  %v4148 = vand.u32 %v4024, 4294901760
  %4149 = vmatpush.msra.mxu0 %v4148
  %v4150 = vand.u32 %v4028, 4294901760
  %v4151 = vsub.f32 %v4028, %v4150
  %v4152 = vand.u32 %v4151, 4294901760
  %4153 = vmatmul.f32.gmra.mxu0 %v4152
  %v4154 = vpop.f32.mrf.mxu0
  %v4155 = vadd.f32 %v4128, %v4154
  %4156 = vdwg.mxu0
  %4157 = vmatpush.msra.mxu0 0.0
  %4158 = vmatpush.msra.mxu0 0.0
  %4159 = vmatpush.msra.mxu0 0.0
  %4160 = vmatpush.msra.mxu0 0.0
  %4161 = vmatpush.msra.mxu0 0.0
  %4162 = vmatpush.msra.mxu0 0.0
  %4163 = vmatpush.msra.mxu0 0.0
  %4164 = vmatpush.msra.mxu0 0.0
  %4165 = vmatpush.msra.mxu0 0.0
  %4166 = vmatpush.msra.mxu0 0.0
  %4167 = vmatpush.msra.mxu0 0.0
  %4168 = vmatpush.msra.mxu0 0.0
  %v4169 = vand.u32 %v4027, 4294901760
  %v4170 = vsub.f32 %v4027, %v4169
  %v4171 = vand.u32 %v4170, 4294901760
  %4172 = vmatpush.msra.mxu0 %v4171
  %v4173 = vand.u32 %v4026, 4294901760
  %v4174 = vsub.f32 %v4026, %v4173
  %v4175 = vand.u32 %v4174, 4294901760
  %4176 = vmatpush.msra.mxu0 %v4175
  %v4177 = vand.u32 %v4025, 4294901760
  %v4178 = vsub.f32 %v4025, %v4177
  %v4179 = vand.u32 %v4178, 4294901760
  %4180 = vmatpush.msra.mxu0 %v4179
  %v4181 = vand.u32 %v4024, 4294901760
  %v4182 = vsub.f32 %v4024, %v4181
  %v4183 = vand.u32 %v4182, 4294901760
  %4184 = vmatpush.msra.mxu0 %v4183
  %v4185 = vand.u32 %v4028, 4294901760
  %4186 = vmatmul.f32.gmra.mxu0 %v4185
  %v4187 = vpop.f32.mrf.mxu0
  %v4188 = vadd.f32 %v4155, %v4187
  %4189 = vdwg.mxu0
  %4190 = vmatpush.msra.mxu0 0.0
  %4191 = vmatpush.msra.mxu0 0.0
  %4192 = vmatpush.msra.mxu0 0.0
  %4193 = vmatpush.msra.mxu0 0.0
  %4194 = vmatpush.msra.mxu0 0.0
  %4195 = vmatpush.msra.mxu0 0.0
  %4196 = vmatpush.msra.mxu0 0.0
  %4197 = vmatpush.msra.mxu0 0.0
  %4198 = vmatpush.msra.mxu0 0.0
  %4199 = vmatpush.msra.mxu0 0.0
  %4200 = vmatpush.msra.mxu0 0.0
  %4201 = vmatpush.msra.mxu0 0.0
  %v4202 = vand.u32 %v4027, 4294901760
  %4203 = vmatpush.msra.mxu0 %v4202
  %v4204 = vand.u32 %v4026, 4294901760
  %4205 = vmatpush.msra.mxu0 %v4204
  %v4206 = vand.u32 %v4025, 4294901760
  %4207 = vmatpush.msra.mxu0 %v4206
  %v4208 = vand.u32 %v4024, 4294901760
  %4209 = vmatpush.msra.mxu0 %v4208
  %v4210 = vand.u32 %v4028, 4294901760
  %4211 = vmatmul.f32.gmra.mxu0 %v4210
  %v4212 = vpop.f32.mrf.mxu0
  %v4213 = vadd.f32 %v4188, %v4212
  %4214 = vdwg.mxu0
  %v4215 = vadd.f32 %v4023, %v4213
  %v4216 = vxor.u32 %v4215, 2147483648
  %v4217 = vmul.f32 %v4216, 1.442695
  %v4218 = vpow.pop %v4217
  %v4219 = vadd.f32 %v4218, 1.0
  %v4220 = vrcp.pop %v4219
  %v4221 = vmul.f32 %v4219, %v4220
  %v4222 = vsub.f32 1.0, %v4221
  %v4223 = vmul.f32 %v4220, %v4222
  %v4224 = vadd.f32 %v4220, %v4223
  %vm4225 = vweird.f32 %v4219
  %vm4226 = vweird.f32 %v4220
  %vm4227 = vmor %vm4225, %vm4226
  %v4228 = vsel %vm4227, %v4220, %v4224
  %v4229 = vand.u32 2147483647, %v4219
  %vm4230 = vcmp.eq.f32.partialorder %v4229, 8.507059e+37
  %v4231 = vand.u32 %v4219, 2147483648
  %v4232 = vor.u32 1.1754944e-38, %v4231
  %v4233 = vsel %vm4230, %v4232, %v4228
  %v4234 = vmul.f32 1.0, %v4233
  %v4235 = vtanh.pop %v4215
  %v4236 = vmul.f32 %v4234, %v4011
  %4238 = vrot.lane.b32.xlu0 %v4235, 64
  %v4239 = vpop.permute.xlu0 %4238
  %v4241 = vmul.f32 %v4234, %v4239
  %4243 = vrot.lane.b32.xlu0 %v4241, 32
  %v4244 = vpop.permute.xlu0 %4243
  %v4246 = vadd.f32 %v4236, %v4244
  %v4247 = vtanh.pop %v4246
  %4249 = vrot.lane.b32.xlu0 %v4247, 64
  %v4250 = vpop.permute.xlu0 %4249
  %v4252 = vmul.f32 %v4234, %v4250
  %4254 = vrot.lane.b32.xlu0 %v4252, 32
  %v4255 = vpop.permute.xlu0 %4254
  %4257 = vst.msk [vmem:[%s1904] sm:$0xff] %vm44, %v4255
  %v4258 = vld [vmem:[%s1906] sm:$0xff]
  %v4259 = vld [vmem:[%s2843] sm:$0xff]
  %v4260 = vld [vmem:[%s2843 + $0x8] sm:$0xff]
  %v4261 = vld [vmem:[%s2843 + $0x10] sm:$0xff]
  %v4262 = vld [vmem:[%s2843 + $0x18] sm:$0xff]
  %v4263 = vsel %vm44, %v4255, 0
  %4265 = vmatpush.msra.mxu0 0.0
  %4266 = vmatpush.msra.mxu0 0.0
  %4267 = vmatpush.msra.mxu0 0.0
  %4268 = vmatpush.msra.mxu0 0.0
  %4269 = vmatpush.msra.mxu0 0.0
  %4270 = vmatpush.msra.mxu0 0.0
  %4271 = vmatpush.msra.mxu0 0.0
  %4272 = vmatpush.msra.mxu0 0.0
  %4273 = vmatpush.msra.mxu0 0.0
  %4274 = vmatpush.msra.mxu0 0.0
  %4275 = vmatpush.msra.mxu0 0.0
  %4276 = vmatpush.msra.mxu0 0.0
  %v4277 = vand.u32 %v4262, 4294901760
  %4278 = vmatpush.msra.mxu0 %v4277
  %v4279 = vand.u32 %v4261, 4294901760
  %4280 = vmatpush.msra.mxu0 %v4279
  %v4281 = vand.u32 %v4260, 4294901760
  %4282 = vmatpush.msra.mxu0 %v4281
  %v4283 = vand.u32 %v4259, 4294901760
  %4284 = vmatpush.msra.mxu0 %v4283
  %v4285 = vand.u32 %v4263, 4294901760
  %v4286 = vsub.f32 %v4263, %v4285
  %v4287 = vand.u32 %v4286, 4294901760
  %v4288 = vsub.f32 %v4286, %v4287
  %v4289 = vand.u32 %v4288, 4294901760
  %4290 = vmatmul.f32.gmra.mxu0 %v4289
  %v4291 = vpop.f32.mrf.mxu0
  %v4292 = vadd.f32 0.0, %v4291
  %4293 = vdwg.mxu0
  %4294 = vmatpush.msra.mxu0 0.0
  %4295 = vmatpush.msra.mxu0 0.0
  %4296 = vmatpush.msra.mxu0 0.0
  %4297 = vmatpush.msra.mxu0 0.0
  %4298 = vmatpush.msra.mxu0 0.0
  %4299 = vmatpush.msra.mxu0 0.0
  %4300 = vmatpush.msra.mxu0 0.0
  %4301 = vmatpush.msra.mxu0 0.0
  %4302 = vmatpush.msra.mxu0 0.0
  %4303 = vmatpush.msra.mxu0 0.0
  %4304 = vmatpush.msra.mxu0 0.0
  %4305 = vmatpush.msra.mxu0 0.0
  %v4306 = vand.u32 %v4262, 4294901760
  %v4307 = vsub.f32 %v4262, %v4306
  %v4308 = vand.u32 %v4307, 4294901760
  %v4309 = vsub.f32 %v4307, %v4308
  %v4310 = vand.u32 %v4309, 4294901760
  %4311 = vmatpush.msra.mxu0 %v4310
  %v4312 = vand.u32 %v4261, 4294901760
  %v4313 = vsub.f32 %v4261, %v4312
  %v4314 = vand.u32 %v4313, 4294901760
  %v4315 = vsub.f32 %v4313, %v4314
  %v4316 = vand.u32 %v4315, 4294901760
  %4317 = vmatpush.msra.mxu0 %v4316
  %v4318 = vand.u32 %v4260, 4294901760
  %v4319 = vsub.f32 %v4260, %v4318
  %v4320 = vand.u32 %v4319, 4294901760
  %v4321 = vsub.f32 %v4319, %v4320
  %v4322 = vand.u32 %v4321, 4294901760
  %4323 = vmatpush.msra.mxu0 %v4322
  %v4324 = vand.u32 %v4259, 4294901760
  %v4325 = vsub.f32 %v4259, %v4324
  %v4326 = vand.u32 %v4325, 4294901760
  %v4327 = vsub.f32 %v4325, %v4326
  %v4328 = vand.u32 %v4327, 4294901760
  %4329 = vmatpush.msra.mxu0 %v4328
  %v4330 = vand.u32 %v4263, 4294901760
  %4331 = vmatmul.f32.gmra.mxu0 %v4330
  %v4332 = vpop.f32.mrf.mxu0
  %v4333 = vadd.f32 %v4292, %v4332
  %4334 = vdwg.mxu0
  %4335 = vmatpush.msra.mxu0 0.0
  %4336 = vmatpush.msra.mxu0 0.0
  %4337 = vmatpush.msra.mxu0 0.0
  %4338 = vmatpush.msra.mxu0 0.0
  %4339 = vmatpush.msra.mxu0 0.0
  %4340 = vmatpush.msra.mxu0 0.0
  %4341 = vmatpush.msra.mxu0 0.0
  %4342 = vmatpush.msra.mxu0 0.0
  %4343 = vmatpush.msra.mxu0 0.0
  %4344 = vmatpush.msra.mxu0 0.0
  %4345 = vmatpush.msra.mxu0 0.0
  %4346 = vmatpush.msra.mxu0 0.0
  %v4347 = vand.u32 %v4262, 4294901760
  %v4348 = vsub.f32 %v4262, %v4347
  %4349 = vmatpush.msra.mxu0 %v4348
  %v4350 = vand.u32 %v4261, 4294901760
  %v4351 = vsub.f32 %v4261, %v4350
  %4352 = vmatpush.msra.mxu0 %v4351
  %v4353 = vand.u32 %v4260, 4294901760
  %v4354 = vsub.f32 %v4260, %v4353
  %4355 = vmatpush.msra.mxu0 %v4354
  %v4356 = vand.u32 %v4259, 4294901760
  %v4357 = vsub.f32 %v4259, %v4356
  %4358 = vmatpush.msra.mxu0 %v4357
  %v4359 = vand.u32 %v4263, 4294901760
  %v4360 = vsub.f32 %v4263, %v4359
  %4361 = vmatmul.f32.gmra.mxu0 %v4360
  %v4362 = vpop.f32.mrf.mxu0
  %v4363 = vadd.f32 %v4333, %v4362
  %4364 = vdwg.mxu0
  %4365 = vmatpush.msra.mxu0 0.0
  %4366 = vmatpush.msra.mxu0 0.0
  %4367 = vmatpush.msra.mxu0 0.0
  %4368 = vmatpush.msra.mxu0 0.0
  %4369 = vmatpush.msra.mxu0 0.0
  %4370 = vmatpush.msra.mxu0 0.0
  %4371 = vmatpush.msra.mxu0 0.0
  %4372 = vmatpush.msra.mxu0 0.0
  %4373 = vmatpush.msra.mxu0 0.0
  %4374 = vmatpush.msra.mxu0 0.0
  %4375 = vmatpush.msra.mxu0 0.0
  %4376 = vmatpush.msra.mxu0 0.0
  %v4377 = vand.u32 %v4262, 4294901760
  %4378 = vmatpush.msra.mxu0 %v4377
  %v4379 = vand.u32 %v4261, 4294901760
  %4380 = vmatpush.msra.mxu0 %v4379
  %v4381 = vand.u32 %v4260, 4294901760
  %4382 = vmatpush.msra.mxu0 %v4381
  %v4383 = vand.u32 %v4259, 4294901760
  %4384 = vmatpush.msra.mxu0 %v4383
  %v4385 = vand.u32 %v4263, 4294901760
  %v4386 = vsub.f32 %v4263, %v4385
  %v4387 = vand.u32 %v4386, 4294901760
  %4388 = vmatmul.f32.gmra.mxu0 %v4387
  %v4389 = vpop.f32.mrf.mxu0
  %v4390 = vadd.f32 %v4363, %v4389
  %4391 = vdwg.mxu0
  %4392 = vmatpush.msra.mxu0 0.0
  %4393 = vmatpush.msra.mxu0 0.0
  %4394 = vmatpush.msra.mxu0 0.0
  %4395 = vmatpush.msra.mxu0 0.0
  %4396 = vmatpush.msra.mxu0 0.0
  %4397 = vmatpush.msra.mxu0 0.0
  %4398 = vmatpush.msra.mxu0 0.0
  %4399 = vmatpush.msra.mxu0 0.0
  %4400 = vmatpush.msra.mxu0 0.0
  %4401 = vmatpush.msra.mxu0 0.0
  %4402 = vmatpush.msra.mxu0 0.0
  %4403 = vmatpush.msra.mxu0 0.0
  %v4404 = vand.u32 %v4262, 4294901760
  %v4405 = vsub.f32 %v4262, %v4404
  %v4406 = vand.u32 %v4405, 4294901760
  %4407 = vmatpush.msra.mxu0 %v4406
  %v4408 = vand.u32 %v4261, 4294901760
  %v4409 = vsub.f32 %v4261, %v4408
  %v4410 = vand.u32 %v4409, 4294901760
  %4411 = vmatpush.msra.mxu0 %v4410
  %v4412 = vand.u32 %v4260, 4294901760
  %v4413 = vsub.f32 %v4260, %v4412
  %v4414 = vand.u32 %v4413, 4294901760
  %4415 = vmatpush.msra.mxu0 %v4414
  %v4416 = vand.u32 %v4259, 4294901760
  %v4417 = vsub.f32 %v4259, %v4416
  %v4418 = vand.u32 %v4417, 4294901760
  %4419 = vmatpush.msra.mxu0 %v4418
  %v4420 = vand.u32 %v4263, 4294901760
  %4421 = vmatmul.f32.gmra.mxu0 %v4420
  %v4422 = vpop.f32.mrf.mxu0
  %v4423 = vadd.f32 %v4390, %v4422
  %4424 = vdwg.mxu0
  %4425 = vmatpush.msra.mxu0 0.0
  %4426 = vmatpush.msra.mxu0 0.0
  %4427 = vmatpush.msra.mxu0 0.0
  %4428 = vmatpush.msra.mxu0 0.0
  %4429 = vmatpush.msra.mxu0 0.0
  %4430 = vmatpush.msra.mxu0 0.0
  %4431 = vmatpush.msra.mxu0 0.0
  %4432 = vmatpush.msra.mxu0 0.0
  %4433 = vmatpush.msra.mxu0 0.0
  %4434 = vmatpush.msra.mxu0 0.0
  %4435 = vmatpush.msra.mxu0 0.0
  %4436 = vmatpush.msra.mxu0 0.0
  %v4437 = vand.u32 %v4262, 4294901760
  %4438 = vmatpush.msra.mxu0 %v4437
  %v4439 = vand.u32 %v4261, 4294901760
  %4440 = vmatpush.msra.mxu0 %v4439
  %v4441 = vand.u32 %v4260, 4294901760
  %4442 = vmatpush.msra.mxu0 %v4441
  %v4443 = vand.u32 %v4259, 4294901760
  %4444 = vmatpush.msra.mxu0 %v4443
  %v4445 = vand.u32 %v4263, 4294901760
  %4446 = vmatmul.f32.gmra.mxu0 %v4445
  %v4447 = vpop.f32.mrf.mxu0
  %v4448 = vadd.f32 %v4423, %v4447
  %4449 = vdwg.mxu0
  %v4450 = vadd.f32 %v4258, %v4448
  %v4451 = vxor.u32 %v4450, 2147483648
  %v4452 = vmul.f32 %v4451, 1.442695
  %v4453 = vpow.pop %v4452
  %v4454 = vadd.f32 %v4453, 1.0
  %v4455 = vrcp.pop %v4454
  %v4456 = vmul.f32 %v4454, %v4455
  %v4457 = vsub.f32 1.0, %v4456
  %v4458 = vmul.f32 %v4455, %v4457
  %v4459 = vadd.f32 %v4455, %v4458
  %vm4460 = vweird.f32 %v4454
  %vm4461 = vweird.f32 %v4455
  %vm4462 = vmor %vm4460, %vm4461
  %v4463 = vsel %vm4462, %v4455, %v4459
  %v4464 = vand.u32 2147483647, %v4454
  %vm4465 = vcmp.eq.f32.partialorder %v4464, 8.507059e+37
  %v4466 = vand.u32 %v4454, 2147483648
  %v4467 = vor.u32 1.1754944e-38, %v4466
  %v4468 = vsel %vm4465, %v4467, %v4463
  %v4469 = vmul.f32 1.0, %v4468
  %v4470 = vtanh.pop %v4450
  %v4471 = vmul.f32 %v4469, %v4246
  %4473 = vrot.lane.b32.xlu0 %v4470, 64
  %v4474 = vpop.permute.xlu0 %4473
  %v4476 = vmul.f32 %v4469, %v4474
  %4478 = vrot.lane.b32.xlu0 %v4476, 32
  %v4479 = vpop.permute.xlu0 %4478
  %v4481 = vadd.f32 %v4471, %v4479
  %v4482 = vtanh.pop %v4481
  %4484 = vrot.lane.b32.xlu0 %v4482, 64
  %v4485 = vpop.permute.xlu0 %4484
  %v4487 = vmul.f32 %v4469, %v4485
  %4489 = vrot.lane.b32.xlu0 %v4487, 32
  %v4490 = vpop.permute.xlu0 %4489
  %4492 = vst.msk [vmem:[%s2141] sm:$0xff] %vm44, %v4490
  %v4493 = vld [vmem:[%s2143] sm:$0xff]
  %v4494 = vld [vmem:[%s2843] sm:$0xff]
  %v4495 = vld [vmem:[%s2843 + $0x8] sm:$0xff]
  %v4496 = vld [vmem:[%s2843 + $0x10] sm:$0xff]
  %v4497 = vld [vmem:[%s2843 + $0x18] sm:$0xff]
  %v4498 = vsel %vm44, %v4490, 0
  %4500 = vmatpush.msra.mxu0 0.0
  %4501 = vmatpush.msra.mxu0 0.0
  %4502 = vmatpush.msra.mxu0 0.0
  %4503 = vmatpush.msra.mxu0 0.0
  %4504 = vmatpush.msra.mxu0 0.0
  %4505 = vmatpush.msra.mxu0 0.0
  %4506 = vmatpush.msra.mxu0 0.0
  %4507 = vmatpush.msra.mxu0 0.0
  %4508 = vmatpush.msra.mxu0 0.0
  %4509 = vmatpush.msra.mxu0 0.0
  %4510 = vmatpush.msra.mxu0 0.0
  %4511 = vmatpush.msra.mxu0 0.0
  %v4512 = vand.u32 %v4497, 4294901760
  %4513 = vmatpush.msra.mxu0 %v4512
  %v4514 = vand.u32 %v4496, 4294901760
  %4515 = vmatpush.msra.mxu0 %v4514
  %v4516 = vand.u32 %v4495, 4294901760
  %4517 = vmatpush.msra.mxu0 %v4516
  %v4518 = vand.u32 %v4494, 4294901760
  %4519 = vmatpush.msra.mxu0 %v4518
  %v4520 = vand.u32 %v4498, 4294901760
  %v4521 = vsub.f32 %v4498, %v4520
  %v4522 = vand.u32 %v4521, 4294901760
  %v4523 = vsub.f32 %v4521, %v4522
  %v4524 = vand.u32 %v4523, 4294901760
  %4525 = vmatmul.f32.gmra.mxu0 %v4524
  %v4526 = vpop.f32.mrf.mxu0
  %v4527 = vadd.f32 0.0, %v4526
  %4528 = vdwg.mxu0
  %4529 = vmatpush.msra.mxu0 0.0
  %4530 = vmatpush.msra.mxu0 0.0
  %4531 = vmatpush.msra.mxu0 0.0
  %4532 = vmatpush.msra.mxu0 0.0
  %4533 = vmatpush.msra.mxu0 0.0
  %4534 = vmatpush.msra.mxu0 0.0
  %4535 = vmatpush.msra.mxu0 0.0
  %4536 = vmatpush.msra.mxu0 0.0
  %4537 = vmatpush.msra.mxu0 0.0
  %4538 = vmatpush.msra.mxu0 0.0
  %4539 = vmatpush.msra.mxu0 0.0
  %4540 = vmatpush.msra.mxu0 0.0
  %v4541 = vand.u32 %v4497, 4294901760
  %v4542 = vsub.f32 %v4497, %v4541
  %v4543 = vand.u32 %v4542, 4294901760
  %v4544 = vsub.f32 %v4542, %v4543
  %v4545 = vand.u32 %v4544, 4294901760
  %4546 = vmatpush.msra.mxu0 %v4545
  %v4547 = vand.u32 %v4496, 4294901760
  %v4548 = vsub.f32 %v4496, %v4547
  %v4549 = vand.u32 %v4548, 4294901760
  %v4550 = vsub.f32 %v4548, %v4549
  %v4551 = vand.u32 %v4550, 4294901760
  %4552 = vmatpush.msra.mxu0 %v4551
  %v4553 = vand.u32 %v4495, 4294901760
  %v4554 = vsub.f32 %v4495, %v4553
  %v4555 = vand.u32 %v4554, 4294901760
  %v4556 = vsub.f32 %v4554, %v4555
  %v4557 = vand.u32 %v4556, 4294901760
  %4558 = vmatpush.msra.mxu0 %v4557
  %v4559 = vand.u32 %v4494, 4294901760
  %v4560 = vsub.f32 %v4494, %v4559
  %v4561 = vand.u32 %v4560, 4294901760
  %v4562 = vsub.f32 %v4560, %v4561
  %v4563 = vand.u32 %v4562, 4294901760
  %4564 = vmatpush.msra.mxu0 %v4563
  %v4565 = vand.u32 %v4498, 4294901760
  %4566 = vmatmul.f32.gmra.mxu0 %v4565
  %v4567 = vpop.f32.mrf.mxu0
  %v4568 = vadd.f32 %v4527, %v4567
  %4569 = vdwg.mxu0
  %4570 = vmatpush.msra.mxu0 0.0
  %4571 = vmatpush.msra.mxu0 0.0
  %4572 = vmatpush.msra.mxu0 0.0
  %4573 = vmatpush.msra.mxu0 0.0
  %4574 = vmatpush.msra.mxu0 0.0
  %4575 = vmatpush.msra.mxu0 0.0
  %4576 = vmatpush.msra.mxu0 0.0
  %4577 = vmatpush.msra.mxu0 0.0
  %4578 = vmatpush.msra.mxu0 0.0
  %4579 = vmatpush.msra.mxu0 0.0
  %4580 = vmatpush.msra.mxu0 0.0
  %4581 = vmatpush.msra.mxu0 0.0
  %v4582 = vand.u32 %v4497, 4294901760
  %v4583 = vsub.f32 %v4497, %v4582
  %4584 = vmatpush.msra.mxu0 %v4583
  %v4585 = vand.u32 %v4496, 4294901760
  %v4586 = vsub.f32 %v4496, %v4585
  %4587 = vmatpush.msra.mxu0 %v4586
  %v4588 = vand.u32 %v4495, 4294901760
  %v4589 = vsub.f32 %v4495, %v4588
  %4590 = vmatpush.msra.mxu0 %v4589
  %v4591 = vand.u32 %v4494, 4294901760
  %v4592 = vsub.f32 %v4494, %v4591
  %4593 = vmatpush.msra.mxu0 %v4592
  %v4594 = vand.u32 %v4498, 4294901760
  %v4595 = vsub.f32 %v4498, %v4594
  %4596 = vmatmul.f32.gmra.mxu0 %v4595
  %v4597 = vpop.f32.mrf.mxu0
  %v4598 = vadd.f32 %v4568, %v4597
  %4599 = vdwg.mxu0
  %4600 = vmatpush.msra.mxu0 0.0
  %4601 = vmatpush.msra.mxu0 0.0
  %4602 = vmatpush.msra.mxu0 0.0
  %4603 = vmatpush.msra.mxu0 0.0
  %4604 = vmatpush.msra.mxu0 0.0
  %4605 = vmatpush.msra.mxu0 0.0
  %4606 = vmatpush.msra.mxu0 0.0
  %4607 = vmatpush.msra.mxu0 0.0
  %4608 = vmatpush.msra.mxu0 0.0
  %4609 = vmatpush.msra.mxu0 0.0
  %4610 = vmatpush.msra.mxu0 0.0
  %4611 = vmatpush.msra.mxu0 0.0
  %v4612 = vand.u32 %v4497, 4294901760
  %4613 = vmatpush.msra.mxu0 %v4612
  %v4614 = vand.u32 %v4496, 4294901760
  %4615 = vmatpush.msra.mxu0 %v4614
  %v4616 = vand.u32 %v4495, 4294901760
  %4617 = vmatpush.msra.mxu0 %v4616
  %v4618 = vand.u32 %v4494, 4294901760
  %4619 = vmatpush.msra.mxu0 %v4618
  %v4620 = vand.u32 %v4498, 4294901760
  %v4621 = vsub.f32 %v4498, %v4620
  %v4622 = vand.u32 %v4621, 4294901760
  %4623 = vmatmul.f32.gmra.mxu0 %v4622
  %v4624 = vpop.f32.mrf.mxu0
  %v4625 = vadd.f32 %v4598, %v4624
  %4626 = vdwg.mxu0
  %4627 = vmatpush.msra.mxu0 0.0
  %4628 = vmatpush.msra.mxu0 0.0
  %4629 = vmatpush.msra.mxu0 0.0
  %4630 = vmatpush.msra.mxu0 0.0
  %4631 = vmatpush.msra.mxu0 0.0
  %4632 = vmatpush.msra.mxu0 0.0
  %4633 = vmatpush.msra.mxu0 0.0
  %4634 = vmatpush.msra.mxu0 0.0
  %4635 = vmatpush.msra.mxu0 0.0
  %4636 = vmatpush.msra.mxu0 0.0
  %4637 = vmatpush.msra.mxu0 0.0
  %4638 = vmatpush.msra.mxu0 0.0
  %v4639 = vand.u32 %v4497, 4294901760
  %v4640 = vsub.f32 %v4497, %v4639
  %v4641 = vand.u32 %v4640, 4294901760
  %4642 = vmatpush.msra.mxu0 %v4641
  %v4643 = vand.u32 %v4496, 4294901760
  %v4644 = vsub.f32 %v4496, %v4643
  %v4645 = vand.u32 %v4644, 4294901760
  %4646 = vmatpush.msra.mxu0 %v4645
  %v4647 = vand.u32 %v4495, 4294901760
  %v4648 = vsub.f32 %v4495, %v4647
  %v4649 = vand.u32 %v4648, 4294901760
  %4650 = vmatpush.msra.mxu0 %v4649
  %v4651 = vand.u32 %v4494, 4294901760
  %v4652 = vsub.f32 %v4494, %v4651
  %v4653 = vand.u32 %v4652, 4294901760
  %4654 = vmatpush.msra.mxu0 %v4653
  %v4655 = vand.u32 %v4498, 4294901760
  %4656 = vmatmul.f32.gmra.mxu0 %v4655
  %v4657 = vpop.f32.mrf.mxu0
  %v4658 = vadd.f32 %v4625, %v4657
  %4659 = vdwg.mxu0
  %4660 = vmatpush.msra.mxu0 0.0
  %4661 = vmatpush.msra.mxu0 0.0
  %4662 = vmatpush.msra.mxu0 0.0
  %4663 = vmatpush.msra.mxu0 0.0
  %4664 = vmatpush.msra.mxu0 0.0
  %4665 = vmatpush.msra.mxu0 0.0
  %4666 = vmatpush.msra.mxu0 0.0
  %4667 = vmatpush.msra.mxu0 0.0
  %4668 = vmatpush.msra.mxu0 0.0
  %4669 = vmatpush.msra.mxu0 0.0
  %4670 = vmatpush.msra.mxu0 0.0
  %4671 = vmatpush.msra.mxu0 0.0
  %v4672 = vand.u32 %v4497, 4294901760
  %4673 = vmatpush.msra.mxu0 %v4672
  %v4674 = vand.u32 %v4496, 4294901760
  %4675 = vmatpush.msra.mxu0 %v4674
  %v4676 = vand.u32 %v4495, 4294901760
  %4677 = vmatpush.msra.mxu0 %v4676
  %v4678 = vand.u32 %v4494, 4294901760
  %4679 = vmatpush.msra.mxu0 %v4678
  %v4680 = vand.u32 %v4498, 4294901760
  %4681 = vmatmul.f32.gmra.mxu0 %v4680
  %v4682 = vpop.f32.mrf.mxu0
  %v4683 = vadd.f32 %v4658, %v4682
  %4684 = vdwg.mxu0
  %v4685 = vadd.f32 %v4493, %v4683
  %v4686 = vxor.u32 %v4685, 2147483648
  %v4687 = vmul.f32 %v4686, 1.442695
  %v4688 = vpow.pop %v4687
  %v4689 = vadd.f32 %v4688, 1.0
  %v4690 = vrcp.pop %v4689
  %v4691 = vmul.f32 %v4689, %v4690
  %v4692 = vsub.f32 1.0, %v4691
  %v4693 = vmul.f32 %v4690, %v4692
  %v4694 = vadd.f32 %v4690, %v4693
  %vm4695 = vweird.f32 %v4689
  %vm4696 = vweird.f32 %v4690
  %vm4697 = vmor %vm4695, %vm4696
  %v4698 = vsel %vm4697, %v4690, %v4694
  %v4699 = vand.u32 2147483647, %v4689
  %vm4700 = vcmp.eq.f32.partialorder %v4699, 8.507059e+37
  %v4701 = vand.u32 %v4689, 2147483648
  %v4702 = vor.u32 1.1754944e-38, %v4701
  %v4703 = vsel %vm4700, %v4702, %v4698
  %v4704 = vmul.f32 1.0, %v4703
  %v4705 = vtanh.pop %v4685
  %v4706 = vmul.f32 %v4704, %v4481
  %4708 = vrot.lane.b32.xlu0 %v4705, 64
  %v4709 = vpop.permute.xlu0 %4708
  %v4711 = vmul.f32 %v4704, %v4709
  %4713 = vrot.lane.b32.xlu0 %v4711, 32
  %v4714 = vpop.permute.xlu0 %4713
  %v4716 = vadd.f32 %v4706, %v4714
  %v4717 = vtanh.pop %v4716
  %4719 = vrot.lane.b32.xlu0 %v4717, 64
  %v4720 = vpop.permute.xlu0 %4719
  %v4722 = vmul.f32 %v4704, %v4720
  %4724 = vrot.lane.b32.xlu0 %v4722, 32
  %v4725 = vpop.permute.xlu0 %4724
  %4727 = vst.msk [vmem:[%s2378] sm:$0xff] %vm44, %v4725
  %4728 = vst.msk [vmem:[%s2838] sm:$0xff] %vm44, %v4725
  %4730 = vrot.lane.b32.xlu0 %v4716, 96
  %v4731 = vpop.permute.xlu0 %4730
  %4733 = vst.msk [vmem:[%s2840] sm:$0xff] %vm44, %v4731
  %v4734 = vld [vmem:[#allocation4] sm:$0xff]
  %v4735 = vld [vmem:[#allocation4 + $0x8] sm:$0xff]
  %v4736 = vld [vmem:[#allocation4 + $0x10] sm:$0xff]
  %v4737 = vld [vmem:[#allocation4 + $0x18] sm:$0xff]
  %v4738 = vld [vmem:[#allocation4 + $0x20] sm:$0xff]
  %v4739 = vld [vmem:[#allocation4 + $0x28] sm:$0xff]
  %v4740 = vld [vmem:[#allocation4 + $0x30] sm:$0xff]
  %v4741 = vld [vmem:[#allocation4 + $0x38] sm:$0xff]
  %s4742 = scalar_lea.vmem %s1, 64
  %v4743 = vld [vmem:[%s4742] sm:$0xff]
  %v4744 = vld [vmem:[%s4742 + $0x8] sm:$0xff]
  %v4745 = vld [vmem:[%s4742 + $0x10] sm:$0xff]
  %v4746 = vld [vmem:[%s4742 + $0x18] sm:$0xff]
  %s4747 = scalar_lea.vmem %s3, 2
  %v4748 = vld [vmem:[%s4747] sm:$0x1]
  %v4750 = vperm.slane %v4748, 0
  %v4753 = vsel %vm44, %v4734, 0
  %v4756 = vsel %vm44, %v4735, 0
  %v4759 = vsel %vm44, %v4736, 0
  %v4762 = vsel %vm44, %v4737, 0
  %v4765 = vsel %vm44, %v4738, 0
  %v4768 = vsel %vm44, %v4739, 0
  %v4771 = vsel %vm44, %v4740, 0
  %v4774 = vsel %vm44, %v4741, 0
  %4776 = vmatpush.msra.mxu0 0.0
  %4777 = vmatpush.msra.mxu0 0.0
  %4778 = vmatpush.msra.mxu0 0.0
  %4779 = vmatpush.msra.mxu0 0.0
  %4780 = vmatpush.msra.mxu0 0.0
  %4781 = vmatpush.msra.mxu0 0.0
  %4782 = vmatpush.msra.mxu0 0.0
  %4783 = vmatpush.msra.mxu0 0.0
  %4784 = vmatpush.msra.mxu0 0.0
  %4785 = vmatpush.msra.mxu0 0.0
  %4786 = vmatpush.msra.mxu0 0.0
  %4787 = vmatpush.msra.mxu0 0.0
  %v4788 = vand.u32 %v4746, 4294901760
  %4789 = vmatpush.msra.mxu0 %v4788
  %v4790 = vand.u32 %v4745, 4294901760
  %4791 = vmatpush.msra.mxu0 %v4790
  %v4792 = vand.u32 %v4744, 4294901760
  %4793 = vmatpush.msra.mxu0 %v4792
  %v4794 = vand.u32 %v4743, 4294901760
  %4795 = vmatpush.msra.mxu0 %v4794
  %v4796 = vand.u32 %v4753, 4294901760
  %v4797 = vsub.f32 %v4753, %v4796
  %v4798 = vand.u32 %v4797, 4294901760
  %v4799 = vsub.f32 %v4797, %v4798
  %v4800 = vand.u32 %v4799, 4294901760
  %4801 = vmatmul.f32.gmra.mxu0 %v4800
  %v4802 = vpop.f32.mrf.mxu0
  %v4803 = vadd.f32 %v4750, %v4802
  %v4804 = vand.u32 %v4756, 4294901760
  %v4805 = vsub.f32 %v4756, %v4804
  %v4806 = vand.u32 %v4805, 4294901760
  %v4807 = vsub.f32 %v4805, %v4806
  %v4808 = vand.u32 %v4807, 4294901760
  %4809 = vmatmul.f32.gmra.mxu0 %v4808
  %v4810 = vpop.f32.mrf.mxu0
  %v4811 = vadd.f32 %v4750, %v4810
  %v4812 = vand.u32 %v4759, 4294901760
  %v4813 = vsub.f32 %v4759, %v4812
  %v4814 = vand.u32 %v4813, 4294901760
  %v4815 = vsub.f32 %v4813, %v4814
  %v4816 = vand.u32 %v4815, 4294901760
  %4817 = vmatmul.f32.gmra.mxu0 %v4816
  %v4818 = vpop.f32.mrf.mxu0
  %v4819 = vadd.f32 %v4750, %v4818
  %v4820 = vand.u32 %v4762, 4294901760
  %v4821 = vsub.f32 %v4762, %v4820
  %v4822 = vand.u32 %v4821, 4294901760
  %v4823 = vsub.f32 %v4821, %v4822
  %v4824 = vand.u32 %v4823, 4294901760
  %4825 = vmatmul.f32.gmra.mxu0 %v4824
  %v4826 = vpop.f32.mrf.mxu0
  %v4827 = vadd.f32 %v4750, %v4826
  %v4828 = vand.u32 %v4765, 4294901760
  %v4829 = vsub.f32 %v4765, %v4828
  %v4830 = vand.u32 %v4829, 4294901760
  %v4831 = vsub.f32 %v4829, %v4830
  %v4832 = vand.u32 %v4831, 4294901760
  %4833 = vmatmul.f32.gmra.mxu0 %v4832
  %v4834 = vpop.f32.mrf.mxu0
  %v4835 = vadd.f32 %v4750, %v4834
  %v4836 = vand.u32 %v4768, 4294901760
  %v4837 = vsub.f32 %v4768, %v4836
  %v4838 = vand.u32 %v4837, 4294901760
  %v4839 = vsub.f32 %v4837, %v4838
  %v4840 = vand.u32 %v4839, 4294901760
  %4841 = vmatmul.f32.gmra.mxu0 %v4840
  %v4842 = vpop.f32.mrf.mxu0
  %v4843 = vadd.f32 %v4750, %v4842
  %v4844 = vand.u32 %v4771, 4294901760
  %v4845 = vsub.f32 %v4771, %v4844
  %v4846 = vand.u32 %v4845, 4294901760
  %v4847 = vsub.f32 %v4845, %v4846
  %v4848 = vand.u32 %v4847, 4294901760
  %4849 = vmatmul.f32.gmra.mxu0 %v4848
  %v4850 = vpop.f32.mrf.mxu0
  %v4851 = vadd.f32 %v4750, %v4850
  %v4852 = vand.u32 %v4774, 4294901760
  %v4853 = vsub.f32 %v4774, %v4852
  %v4854 = vand.u32 %v4853, 4294901760
  %v4855 = vsub.f32 %v4853, %v4854
  %v4856 = vand.u32 %v4855, 4294901760
  %4857 = vmatmul.f32.gmra.mxu0 %v4856
  %v4858 = vpop.f32.mrf.mxu0
  %v4859 = vadd.f32 %v4750, %v4858
  %4860 = vdwg.mxu0
  %4861 = vmatpush.msra.mxu0 0.0
  %4862 = vmatpush.msra.mxu0 0.0
  %4863 = vmatpush.msra.mxu0 0.0
  %4864 = vmatpush.msra.mxu0 0.0
  %4865 = vmatpush.msra.mxu0 0.0
  %4866 = vmatpush.msra.mxu0 0.0
  %4867 = vmatpush.msra.mxu0 0.0
  %4868 = vmatpush.msra.mxu0 0.0
  %4869 = vmatpush.msra.mxu0 0.0
  %4870 = vmatpush.msra.mxu0 0.0
  %4871 = vmatpush.msra.mxu0 0.0
  %4872 = vmatpush.msra.mxu0 0.0
  %v4873 = vand.u32 %v4746, 4294901760
  %v4874 = vsub.f32 %v4746, %v4873
  %v4875 = vand.u32 %v4874, 4294901760
  %v4876 = vsub.f32 %v4874, %v4875
  %v4877 = vand.u32 %v4876, 4294901760
  %4878 = vmatpush.msra.mxu0 %v4877
  %v4879 = vand.u32 %v4745, 4294901760
  %v4880 = vsub.f32 %v4745, %v4879
  %v4881 = vand.u32 %v4880, 4294901760
  %v4882 = vsub.f32 %v4880, %v4881
  %v4883 = vand.u32 %v4882, 4294901760
  %4884 = vmatpush.msra.mxu0 %v4883
  %v4885 = vand.u32 %v4744, 4294901760
  %v4886 = vsub.f32 %v4744, %v4885
  %v4887 = vand.u32 %v4886, 4294901760
  %v4888 = vsub.f32 %v4886, %v4887
  %v4889 = vand.u32 %v4888, 4294901760
  %4890 = vmatpush.msra.mxu0 %v4889
  %v4891 = vand.u32 %v4743, 4294901760
  %v4892 = vsub.f32 %v4743, %v4891
  %v4893 = vand.u32 %v4892, 4294901760
  %v4894 = vsub.f32 %v4892, %v4893
  %v4895 = vand.u32 %v4894, 4294901760
  %4896 = vmatpush.msra.mxu0 %v4895
  %v4897 = vand.u32 %v4753, 4294901760
  %4898 = vmatmul.f32.gmra.mxu0 %v4897
  %v4899 = vpop.f32.mrf.mxu0
  %v4900 = vadd.f32 %v4803, %v4899
  %v4901 = vand.u32 %v4756, 4294901760
  %4902 = vmatmul.f32.gmra.mxu0 %v4901
  %v4903 = vpop.f32.mrf.mxu0
  %v4904 = vadd.f32 %v4811, %v4903
  %v4905 = vand.u32 %v4759, 4294901760
  %4906 = vmatmul.f32.gmra.mxu0 %v4905
  %v4907 = vpop.f32.mrf.mxu0
  %v4908 = vadd.f32 %v4819, %v4907
  %v4909 = vand.u32 %v4762, 4294901760
  %4910 = vmatmul.f32.gmra.mxu0 %v4909
  %v4911 = vpop.f32.mrf.mxu0
  %v4912 = vadd.f32 %v4827, %v4911
  %v4913 = vand.u32 %v4765, 4294901760
  %4914 = vmatmul.f32.gmra.mxu0 %v4913
  %v4915 = vpop.f32.mrf.mxu0
  %v4916 = vadd.f32 %v4835, %v4915
  %v4917 = vand.u32 %v4768, 4294901760
  %4918 = vmatmul.f32.gmra.mxu0 %v4917
  %v4919 = vpop.f32.mrf.mxu0
  %v4920 = vadd.f32 %v4843, %v4919
  %v4921 = vand.u32 %v4771, 4294901760
  %4922 = vmatmul.f32.gmra.mxu0 %v4921
  %v4923 = vpop.f32.mrf.mxu0
  %v4924 = vadd.f32 %v4851, %v4923
  %v4925 = vand.u32 %v4774, 4294901760
  %4926 = vmatmul.f32.gmra.mxu0 %v4925
  %v4927 = vpop.f32.mrf.mxu0
  %v4928 = vadd.f32 %v4859, %v4927
  %4929 = vdwg.mxu0
  %4930 = vmatpush.msra.mxu0 0.0
  %4931 = vmatpush.msra.mxu0 0.0
  %4932 = vmatpush.msra.mxu0 0.0
  %4933 = vmatpush.msra.mxu0 0.0
  %4934 = vmatpush.msra.mxu0 0.0
  %4935 = vmatpush.msra.mxu0 0.0
  %4936 = vmatpush.msra.mxu0 0.0
  %4937 = vmatpush.msra.mxu0 0.0
  %4938 = vmatpush.msra.mxu0 0.0
  %4939 = vmatpush.msra.mxu0 0.0
  %4940 = vmatpush.msra.mxu0 0.0
  %4941 = vmatpush.msra.mxu0 0.0
  %v4942 = vand.u32 %v4746, 4294901760
  %v4943 = vsub.f32 %v4746, %v4942
  %4944 = vmatpush.msra.mxu0 %v4943
  %v4945 = vand.u32 %v4745, 4294901760
  %v4946 = vsub.f32 %v4745, %v4945
  %4947 = vmatpush.msra.mxu0 %v4946
  %v4948 = vand.u32 %v4744, 4294901760
  %v4949 = vsub.f32 %v4744, %v4948
  %4950 = vmatpush.msra.mxu0 %v4949
  %v4951 = vand.u32 %v4743, 4294901760
  %v4952 = vsub.f32 %v4743, %v4951
  %4953 = vmatpush.msra.mxu0 %v4952
  %v4954 = vand.u32 %v4753, 4294901760
  %v4955 = vsub.f32 %v4753, %v4954
  %4956 = vmatmul.f32.gmra.mxu0 %v4955
  %v4957 = vpop.f32.mrf.mxu0
  %v4958 = vadd.f32 %v4900, %v4957
  %v4959 = vand.u32 %v4756, 4294901760
  %v4960 = vsub.f32 %v4756, %v4959
  %4961 = vmatmul.f32.gmra.mxu0 %v4960
  %v4962 = vpop.f32.mrf.mxu0
  %v4963 = vadd.f32 %v4904, %v4962
  %v4964 = vand.u32 %v4759, 4294901760
  %v4965 = vsub.f32 %v4759, %v4964
  %4966 = vmatmul.f32.gmra.mxu0 %v4965
  %v4967 = vpop.f32.mrf.mxu0
  %v4968 = vadd.f32 %v4908, %v4967
  %v4969 = vand.u32 %v4762, 4294901760
  %v4970 = vsub.f32 %v4762, %v4969
  %4971 = vmatmul.f32.gmra.mxu0 %v4970
  %v4972 = vpop.f32.mrf.mxu0
  %v4973 = vadd.f32 %v4912, %v4972
  %v4974 = vand.u32 %v4765, 4294901760
  %v4975 = vsub.f32 %v4765, %v4974
  %4976 = vmatmul.f32.gmra.mxu0 %v4975
  %v4977 = vpop.f32.mrf.mxu0
  %v4978 = vadd.f32 %v4916, %v4977
  %v4979 = vand.u32 %v4768, 4294901760
  %v4980 = vsub.f32 %v4768, %v4979
  %4981 = vmatmul.f32.gmra.mxu0 %v4980
  %v4982 = vpop.f32.mrf.mxu0
  %v4983 = vadd.f32 %v4920, %v4982
  %v4984 = vand.u32 %v4771, 4294901760
  %v4985 = vsub.f32 %v4771, %v4984
  %4986 = vmatmul.f32.gmra.mxu0 %v4985
  %v4987 = vpop.f32.mrf.mxu0
  %v4988 = vadd.f32 %v4924, %v4987
  %v4989 = vand.u32 %v4774, 4294901760
  %v4990 = vsub.f32 %v4774, %v4989
  %4991 = vmatmul.f32.gmra.mxu0 %v4990
  %v4992 = vpop.f32.mrf.mxu0
  %v4993 = vadd.f32 %v4928, %v4992
  %4994 = vdwg.mxu0
  %4995 = vmatpush.msra.mxu0 0.0
  %4996 = vmatpush.msra.mxu0 0.0
  %4997 = vmatpush.msra.mxu0 0.0
  %4998 = vmatpush.msra.mxu0 0.0
  %4999 = vmatpush.msra.mxu0 0.0
  %5000 = vmatpush.msra.mxu0 0.0
  %5001 = vmatpush.msra.mxu0 0.0
  %5002 = vmatpush.msra.mxu0 0.0
  %5003 = vmatpush.msra.mxu0 0.0
  %5004 = vmatpush.msra.mxu0 0.0
  %5005 = vmatpush.msra.mxu0 0.0
  %5006 = vmatpush.msra.mxu0 0.0
  %v5007 = vand.u32 %v4746, 4294901760
  %5008 = vmatpush.msra.mxu0 %v5007
  %v5009 = vand.u32 %v4745, 4294901760
  %5010 = vmatpush.msra.mxu0 %v5009
  %v5011 = vand.u32 %v4744, 4294901760
  %5012 = vmatpush.msra.mxu0 %v5011
  %v5013 = vand.u32 %v4743, 4294901760
  %5014 = vmatpush.msra.mxu0 %v5013
  %v5015 = vand.u32 %v4753, 4294901760
  %v5016 = vsub.f32 %v4753, %v5015
  %v5017 = vand.u32 %v5016, 4294901760
  %5018 = vmatmul.f32.gmra.mxu0 %v5017
  %v5019 = vpop.f32.mrf.mxu0
  %v5020 = vadd.f32 %v4958, %v5019
  %v5021 = vand.u32 %v4756, 4294901760
  %v5022 = vsub.f32 %v4756, %v5021
  %v5023 = vand.u32 %v5022, 4294901760
  %5024 = vmatmul.f32.gmra.mxu0 %v5023
  %v5025 = vpop.f32.mrf.mxu0
  %v5026 = vadd.f32 %v4963, %v5025
  %v5027 = vand.u32 %v4759, 4294901760
  %v5028 = vsub.f32 %v4759, %v5027
  %v5029 = vand.u32 %v5028, 4294901760
  %5030 = vmatmul.f32.gmra.mxu0 %v5029
  %v5031 = vpop.f32.mrf.mxu0
  %v5032 = vadd.f32 %v4968, %v5031
  %v5033 = vand.u32 %v4762, 4294901760
  %v5034 = vsub.f32 %v4762, %v5033
  %v5035 = vand.u32 %v5034, 4294901760
  %5036 = vmatmul.f32.gmra.mxu0 %v5035
  %v5037 = vpop.f32.mrf.mxu0
  %v5038 = vadd.f32 %v4973, %v5037
  %v5039 = vand.u32 %v4765, 4294901760
  %v5040 = vsub.f32 %v4765, %v5039
  %v5041 = vand.u32 %v5040, 4294901760
  %5042 = vmatmul.f32.gmra.mxu0 %v5041
  %v5043 = vpop.f32.mrf.mxu0
  %v5044 = vadd.f32 %v4978, %v5043
  %v5045 = vand.u32 %v4768, 4294901760
  %v5046 = vsub.f32 %v4768, %v5045
  %v5047 = vand.u32 %v5046, 4294901760
  %5048 = vmatmul.f32.gmra.mxu0 %v5047
  %v5049 = vpop.f32.mrf.mxu0
  %v5050 = vadd.f32 %v4983, %v5049
  %v5051 = vand.u32 %v4771, 4294901760
  %v5052 = vsub.f32 %v4771, %v5051
  %v5053 = vand.u32 %v5052, 4294901760
  %5054 = vmatmul.f32.gmra.mxu0 %v5053
  %v5055 = vpop.f32.mrf.mxu0
  %v5056 = vadd.f32 %v4988, %v5055
  %v5057 = vand.u32 %v4774, 4294901760
  %v5058 = vsub.f32 %v4774, %v5057
  %v5059 = vand.u32 %v5058, 4294901760
  %5060 = vmatmul.f32.gmra.mxu0 %v5059
  %v5061 = vpop.f32.mrf.mxu0
  %v5062 = vadd.f32 %v4993, %v5061
  %5063 = vdwg.mxu0
  %5064 = vmatpush.msra.mxu0 0.0
  %5065 = vmatpush.msra.mxu0 0.0
  %5066 = vmatpush.msra.mxu0 0.0
  %5067 = vmatpush.msra.mxu0 0.0
  %5068 = vmatpush.msra.mxu0 0.0
  %5069 = vmatpush.msra.mxu0 0.0
  %5070 = vmatpush.msra.mxu0 0.0
  %5071 = vmatpush.msra.mxu0 0.0
  %5072 = vmatpush.msra.mxu0 0.0
  %5073 = vmatpush.msra.mxu0 0.0
  %5074 = vmatpush.msra.mxu0 0.0
  %5075 = vmatpush.msra.mxu0 0.0
  %v5076 = vand.u32 %v4746, 4294901760
  %v5077 = vsub.f32 %v4746, %v5076
  %v5078 = vand.u32 %v5077, 4294901760
  %5079 = vmatpush.msra.mxu0 %v5078
  %v5080 = vand.u32 %v4745, 4294901760
  %v5081 = vsub.f32 %v4745, %v5080
  %v5082 = vand.u32 %v5081, 4294901760
  %5083 = vmatpush.msra.mxu0 %v5082
  %v5084 = vand.u32 %v4744, 4294901760
  %v5085 = vsub.f32 %v4744, %v5084
  %v5086 = vand.u32 %v5085, 4294901760
  %5087 = vmatpush.msra.mxu0 %v5086
  %v5088 = vand.u32 %v4743, 4294901760
  %v5089 = vsub.f32 %v4743, %v5088
  %v5090 = vand.u32 %v5089, 4294901760
  %5091 = vmatpush.msra.mxu0 %v5090
  %v5092 = vand.u32 %v4753, 4294901760
  %5093 = vmatmul.f32.gmra.mxu0 %v5092
  %v5094 = vpop.f32.mrf.mxu0
  %v5095 = vadd.f32 %v5020, %v5094
  %v5096 = vand.u32 %v4756, 4294901760
  %5097 = vmatmul.f32.gmra.mxu0 %v5096
  %v5098 = vpop.f32.mrf.mxu0
  %v5099 = vadd.f32 %v5026, %v5098
  %v5100 = vand.u32 %v4759, 4294901760
  %5101 = vmatmul.f32.gmra.mxu0 %v5100
  %v5102 = vpop.f32.mrf.mxu0
  %v5103 = vadd.f32 %v5032, %v5102
  %v5104 = vand.u32 %v4762, 4294901760
  %5105 = vmatmul.f32.gmra.mxu0 %v5104
  %v5106 = vpop.f32.mrf.mxu0
  %v5107 = vadd.f32 %v5038, %v5106
  %v5108 = vand.u32 %v4765, 4294901760
  %5109 = vmatmul.f32.gmra.mxu0 %v5108
  %v5110 = vpop.f32.mrf.mxu0
  %v5111 = vadd.f32 %v5044, %v5110
  %v5112 = vand.u32 %v4768, 4294901760
  %5113 = vmatmul.f32.gmra.mxu0 %v5112
  %v5114 = vpop.f32.mrf.mxu0
  %v5115 = vadd.f32 %v5050, %v5114
  %v5116 = vand.u32 %v4771, 4294901760
  %5117 = vmatmul.f32.gmra.mxu0 %v5116
  %v5118 = vpop.f32.mrf.mxu0
  %v5119 = vadd.f32 %v5056, %v5118
  %v5120 = vand.u32 %v4774, 4294901760
  %5121 = vmatmul.f32.gmra.mxu0 %v5120
  %v5122 = vpop.f32.mrf.mxu0
  %v5123 = vadd.f32 %v5062, %v5122
  %5124 = vdwg.mxu0
  %5125 = vmatpush.msra.mxu0 0.0
  %5126 = vmatpush.msra.mxu0 0.0
  %5127 = vmatpush.msra.mxu0 0.0
  %5128 = vmatpush.msra.mxu0 0.0
  %5129 = vmatpush.msra.mxu0 0.0
  %5130 = vmatpush.msra.mxu0 0.0
  %5131 = vmatpush.msra.mxu0 0.0
  %5132 = vmatpush.msra.mxu0 0.0
  %5133 = vmatpush.msra.mxu0 0.0
  %5134 = vmatpush.msra.mxu0 0.0
  %5135 = vmatpush.msra.mxu0 0.0
  %5136 = vmatpush.msra.mxu0 0.0
  %v5137 = vand.u32 %v4746, 4294901760
  %5138 = vmatpush.msra.mxu0 %v5137
  %v5139 = vand.u32 %v4745, 4294901760
  %5140 = vmatpush.msra.mxu0 %v5139
  %v5141 = vand.u32 %v4744, 4294901760
  %5142 = vmatpush.msra.mxu0 %v5141
  %v5143 = vand.u32 %v4743, 4294901760
  %5144 = vmatpush.msra.mxu0 %v5143
  %v5145 = vand.u32 %v4753, 4294901760
  %5146 = vmatmul.f32.gmra.mxu0 %v5145
  %v5147 = vpop.f32.mrf.mxu0
  %v5148 = vadd.f32 %v5095, %v5147
  %v5149 = vand.u32 %v4756, 4294901760
  %5150 = vmatmul.f32.gmra.mxu0 %v5149
  %v5151 = vpop.f32.mrf.mxu0
  %v5152 = vadd.f32 %v5099, %v5151
  %v5153 = vand.u32 %v4759, 4294901760
  %5154 = vmatmul.f32.gmra.mxu0 %v5153
  %v5155 = vpop.f32.mrf.mxu0
  %v5156 = vadd.f32 %v5103, %v5155
  %v5157 = vand.u32 %v4762, 4294901760
  %5158 = vmatmul.f32.gmra.mxu0 %v5157
  %v5159 = vpop.f32.mrf.mxu0
  %v5160 = vadd.f32 %v5107, %v5159
  %v5161 = vand.u32 %v4765, 4294901760
  %5162 = vmatmul.f32.gmra.mxu0 %v5161
  %v5163 = vpop.f32.mrf.mxu0
  %v5164 = vadd.f32 %v5111, %v5163
  %v5165 = vand.u32 %v4768, 4294901760
  %5166 = vmatmul.f32.gmra.mxu0 %v5165
  %v5167 = vpop.f32.mrf.mxu0
  %v5168 = vadd.f32 %v5115, %v5167
  %v5169 = vand.u32 %v4771, 4294901760
  %5170 = vmatmul.f32.gmra.mxu0 %v5169
  %v5171 = vpop.f32.mrf.mxu0
  %v5172 = vadd.f32 %v5119, %v5171
  %v5173 = vand.u32 %v4774, 4294901760
  %5174 = vmatmul.f32.gmra.mxu0 %v5173
  %v5175 = vpop.f32.mrf.mxu0
  %v5176 = vadd.f32 %v5123, %v5175
  %5177 = vdwg.mxu0
  %5178 = vst [vmem:[#allocation5] sm:$0xff] %v5148
  %5179 = vst [vmem:[#allocation5 + $0x8] sm:$0xff] %v5152
  %5180 = vst [vmem:[#allocation5 + $0x10] sm:$0xff] %v5156
  %5181 = vst [vmem:[#allocation5 + $0x18] sm:$0xff] %v5160
  %5182 = vst [vmem:[#allocation5 + $0x20] sm:$0xff] %v5164
  %5183 = vst [vmem:[#allocation5 + $0x28] sm:$0xff] %v5168
  %5184 = vst [vmem:[#allocation5 + $0x30] sm:$0xff] %v5172
  %5185 = vst [vmem:[#allocation5 + $0x38] sm:$0xff] %v5176
  %s5186 = scalar_lea.vmem [#allocation2], 16
  %v5187 = vld [vmem:[%s5186] sm:$0xff]
  %s5188 = scalar_lea.vmem [#allocation3], 16
  %v5189 = vld [vmem:[%s5188] sm:$0xff]
  %v5190 = vld [vmem:[#allocation5] sm:$0xff]
  %s5191 = scalar_lea.vmem %s2, 64
  %v5192 = vld [vmem:[%s5191] sm:$0xff]
  %v5193 = vld [vmem:[%s5191 + $0x8] sm:$0xff]
  %v5194 = vld [vmem:[%s5191 + $0x10] sm:$0xff]
  %v5195 = vld [vmem:[%s5191 + $0x18] sm:$0xff]
  %v5197 = vsel %vm44, %v5187, 0
  %5199 = vmatpush.msra.mxu0 0.0
  %5200 = vmatpush.msra.mxu0 0.0
  %5201 = vmatpush.msra.mxu0 0.0
  %5202 = vmatpush.msra.mxu0 0.0
  %5203 = vmatpush.msra.mxu0 0.0
  %5204 = vmatpush.msra.mxu0 0.0
  %5205 = vmatpush.msra.mxu0 0.0
  %5206 = vmatpush.msra.mxu0 0.0
  %5207 = vmatpush.msra.mxu0 0.0
  %5208 = vmatpush.msra.mxu0 0.0
  %5209 = vmatpush.msra.mxu0 0.0
  %5210 = vmatpush.msra.mxu0 0.0
  %v5211 = vand.u32 %v5195, 4294901760
  %5212 = vmatpush.msra.mxu0 %v5211
  %v5213 = vand.u32 %v5194, 4294901760
  %5214 = vmatpush.msra.mxu0 %v5213
  %v5215 = vand.u32 %v5193, 4294901760
  %5216 = vmatpush.msra.mxu0 %v5215
  %v5217 = vand.u32 %v5192, 4294901760
  %5218 = vmatpush.msra.mxu0 %v5217
  %v5219 = vand.u32 %v5197, 4294901760
  %v5220 = vsub.f32 %v5197, %v5219
  %v5221 = vand.u32 %v5220, 4294901760
  %v5222 = vsub.f32 %v5220, %v5221
  %v5223 = vand.u32 %v5222, 4294901760
  %5224 = vmatmul.f32.gmra.mxu0 %v5223
  %v5225 = vpop.f32.mrf.mxu0
  %v5226 = vadd.f32 0.0, %v5225
  %5227 = vdwg.mxu0
  %5228 = vmatpush.msra.mxu0 0.0
  %5229 = vmatpush.msra.mxu0 0.0
  %5230 = vmatpush.msra.mxu0 0.0
  %5231 = vmatpush.msra.mxu0 0.0
  %5232 = vmatpush.msra.mxu0 0.0
  %5233 = vmatpush.msra.mxu0 0.0
  %5234 = vmatpush.msra.mxu0 0.0
  %5235 = vmatpush.msra.mxu0 0.0
  %5236 = vmatpush.msra.mxu0 0.0
  %5237 = vmatpush.msra.mxu0 0.0
  %5238 = vmatpush.msra.mxu0 0.0
  %5239 = vmatpush.msra.mxu0 0.0
  %v5240 = vand.u32 %v5195, 4294901760
  %v5241 = vsub.f32 %v5195, %v5240
  %v5242 = vand.u32 %v5241, 4294901760
  %v5243 = vsub.f32 %v5241, %v5242
  %v5244 = vand.u32 %v5243, 4294901760
  %5245 = vmatpush.msra.mxu0 %v5244
  %v5246 = vand.u32 %v5194, 4294901760
  %v5247 = vsub.f32 %v5194, %v5246
  %v5248 = vand.u32 %v5247, 4294901760
  %v5249 = vsub.f32 %v5247, %v5248
  %v5250 = vand.u32 %v5249, 4294901760
  %5251 = vmatpush.msra.mxu0 %v5250
  %v5252 = vand.u32 %v5193, 4294901760
  %v5253 = vsub.f32 %v5193, %v5252
  %v5254 = vand.u32 %v5253, 4294901760
  %v5255 = vsub.f32 %v5253, %v5254
  %v5256 = vand.u32 %v5255, 4294901760
  %5257 = vmatpush.msra.mxu0 %v5256
  %v5258 = vand.u32 %v5192, 4294901760
  %v5259 = vsub.f32 %v5192, %v5258
  %v5260 = vand.u32 %v5259, 4294901760
  %v5261 = vsub.f32 %v5259, %v5260
  %v5262 = vand.u32 %v5261, 4294901760
  %5263 = vmatpush.msra.mxu0 %v5262
  %v5264 = vand.u32 %v5197, 4294901760
  %5265 = vmatmul.f32.gmra.mxu0 %v5264
  %v5266 = vpop.f32.mrf.mxu0
  %v5267 = vadd.f32 %v5226, %v5266
  %5268 = vdwg.mxu0
  %5269 = vmatpush.msra.mxu0 0.0
  %5270 = vmatpush.msra.mxu0 0.0
  %5271 = vmatpush.msra.mxu0 0.0
  %5272 = vmatpush.msra.mxu0 0.0
  %5273 = vmatpush.msra.mxu0 0.0
  %5274 = vmatpush.msra.mxu0 0.0
  %5275 = vmatpush.msra.mxu0 0.0
  %5276 = vmatpush.msra.mxu0 0.0
  %5277 = vmatpush.msra.mxu0 0.0
  %5278 = vmatpush.msra.mxu0 0.0
  %5279 = vmatpush.msra.mxu0 0.0
  %5280 = vmatpush.msra.mxu0 0.0
  %v5281 = vand.u32 %v5195, 4294901760
  %v5282 = vsub.f32 %v5195, %v5281
  %5283 = vmatpush.msra.mxu0 %v5282
  %v5284 = vand.u32 %v5194, 4294901760
  %v5285 = vsub.f32 %v5194, %v5284
  %5286 = vmatpush.msra.mxu0 %v5285
  %v5287 = vand.u32 %v5193, 4294901760
  %v5288 = vsub.f32 %v5193, %v5287
  %5289 = vmatpush.msra.mxu0 %v5288
  %v5290 = vand.u32 %v5192, 4294901760
  %v5291 = vsub.f32 %v5192, %v5290
  %5292 = vmatpush.msra.mxu0 %v5291
  %v5293 = vand.u32 %v5197, 4294901760
  %v5294 = vsub.f32 %v5197, %v5293
  %5295 = vmatmul.f32.gmra.mxu0 %v5294
  %v5296 = vpop.f32.mrf.mxu0
  %v5297 = vadd.f32 %v5267, %v5296
  %5298 = vdwg.mxu0
  %5299 = vmatpush.msra.mxu0 0.0
  %5300 = vmatpush.msra.mxu0 0.0
  %5301 = vmatpush.msra.mxu0 0.0
  %5302 = vmatpush.msra.mxu0 0.0
  %5303 = vmatpush.msra.mxu0 0.0
  %5304 = vmatpush.msra.mxu0 0.0
  %5305 = vmatpush.msra.mxu0 0.0
  %5306 = vmatpush.msra.mxu0 0.0
  %5307 = vmatpush.msra.mxu0 0.0
  %5308 = vmatpush.msra.mxu0 0.0
  %5309 = vmatpush.msra.mxu0 0.0
  %5310 = vmatpush.msra.mxu0 0.0
  %v5311 = vand.u32 %v5195, 4294901760
  %5312 = vmatpush.msra.mxu0 %v5311
  %v5313 = vand.u32 %v5194, 4294901760
  %5314 = vmatpush.msra.mxu0 %v5313
  %v5315 = vand.u32 %v5193, 4294901760
  %5316 = vmatpush.msra.mxu0 %v5315
  %v5317 = vand.u32 %v5192, 4294901760
  %5318 = vmatpush.msra.mxu0 %v5317
  %v5319 = vand.u32 %v5197, 4294901760
  %v5320 = vsub.f32 %v5197, %v5319
  %v5321 = vand.u32 %v5320, 4294901760
  %5322 = vmatmul.f32.gmra.mxu0 %v5321
  %v5323 = vpop.f32.mrf.mxu0
  %v5324 = vadd.f32 %v5297, %v5323
  %5325 = vdwg.mxu0
  %5326 = vmatpush.msra.mxu0 0.0
  %5327 = vmatpush.msra.mxu0 0.0
  %5328 = vmatpush.msra.mxu0 0.0
  %5329 = vmatpush.msra.mxu0 0.0
  %5330 = vmatpush.msra.mxu0 0.0
  %5331 = vmatpush.msra.mxu0 0.0
  %5332 = vmatpush.msra.mxu0 0.0
  %5333 = vmatpush.msra.mxu0 0.0
  %5334 = vmatpush.msra.mxu0 0.0
  %5335 = vmatpush.msra.mxu0 0.0
  %5336 = vmatpush.msra.mxu0 0.0
  %5337 = vmatpush.msra.mxu0 0.0
  %v5338 = vand.u32 %v5195, 4294901760
  %v5339 = vsub.f32 %v5195, %v5338
  %v5340 = vand.u32 %v5339, 4294901760
  %5341 = vmatpush.msra.mxu0 %v5340
  %v5342 = vand.u32 %v5194, 4294901760
  %v5343 = vsub.f32 %v5194, %v5342
  %v5344 = vand.u32 %v5343, 4294901760
  %5345 = vmatpush.msra.mxu0 %v5344
  %v5346 = vand.u32 %v5193, 4294901760
  %v5347 = vsub.f32 %v5193, %v5346
  %v5348 = vand.u32 %v5347, 4294901760
  %5349 = vmatpush.msra.mxu0 %v5348
  %v5350 = vand.u32 %v5192, 4294901760
  %v5351 = vsub.f32 %v5192, %v5350
  %v5352 = vand.u32 %v5351, 4294901760
  %5353 = vmatpush.msra.mxu0 %v5352
  %v5354 = vand.u32 %v5197, 4294901760
  %5355 = vmatmul.f32.gmra.mxu0 %v5354
  %v5356 = vpop.f32.mrf.mxu0
  %v5357 = vadd.f32 %v5324, %v5356
  %5358 = vdwg.mxu0
  %5359 = vmatpush.msra.mxu0 0.0
  %5360 = vmatpush.msra.mxu0 0.0
  %5361 = vmatpush.msra.mxu0 0.0
  %5362 = vmatpush.msra.mxu0 0.0
  %5363 = vmatpush.msra.mxu0 0.0
  %5364 = vmatpush.msra.mxu0 0.0
  %5365 = vmatpush.msra.mxu0 0.0
  %5366 = vmatpush.msra.mxu0 0.0
  %5367 = vmatpush.msra.mxu0 0.0
  %5368 = vmatpush.msra.mxu0 0.0
  %5369 = vmatpush.msra.mxu0 0.0
  %5370 = vmatpush.msra.mxu0 0.0
  %v5371 = vand.u32 %v5195, 4294901760
  %5372 = vmatpush.msra.mxu0 %v5371
  %v5373 = vand.u32 %v5194, 4294901760
  %5374 = vmatpush.msra.mxu0 %v5373
  %v5375 = vand.u32 %v5193, 4294901760
  %5376 = vmatpush.msra.mxu0 %v5375
  %v5377 = vand.u32 %v5192, 4294901760
  %5378 = vmatpush.msra.mxu0 %v5377
  %v5379 = vand.u32 %v5197, 4294901760
  %5380 = vmatmul.f32.gmra.mxu0 %v5379
  %v5381 = vpop.f32.mrf.mxu0
  %v5382 = vadd.f32 %v5357, %v5381
  %5383 = vdwg.mxu0
  %v5384 = vadd.f32 %v5190, %v5382
  %v5385 = vxor.u32 %v5384, 2147483648
  %v5386 = vmul.f32 %v5385, 1.442695
  %v5387 = vpow.pop %v5386
  %v5388 = vadd.f32 %v5387, 1.0
  %v5389 = vrcp.pop %v5388
  %v5390 = vmul.f32 %v5388, %v5389
  %v5391 = vsub.f32 1.0, %v5390
  %v5392 = vmul.f32 %v5389, %v5391
  %v5393 = vadd.f32 %v5389, %v5392
  %vm5394 = vweird.f32 %v5388
  %vm5395 = vweird.f32 %v5389
  %vm5396 = vmor %vm5394, %vm5395
  %v5397 = vsel %vm5396, %v5389, %v5393
  %v5398 = vand.u32 2147483647, %v5388
  %vm5399 = vcmp.eq.f32.partialorder %v5398, 8.507059e+37
  %v5400 = vand.u32 %v5388, 2147483648
  %v5401 = vor.u32 1.1754944e-38, %v5400
  %v5402 = vsel %vm5399, %v5401, %v5397
  %v5403 = vmul.f32 1.0, %v5402
  %v5404 = vtanh.pop %v5384
  %5406 = vrot.lane.b32.xlu0 %v5189, 32
  %v5407 = vpop.permute.xlu0 %5406
  %v5409 = vmul.f32 %v5403, %v5407
  %5411 = vrot.lane.b32.xlu0 %v5404, 64
  %v5412 = vpop.permute.xlu0 %5411
  %v5414 = vmul.f32 %v5403, %v5412
  %5416 = vrot.lane.b32.xlu0 %v5414, 32
  %v5417 = vpop.permute.xlu0 %5416
  %v5419 = vadd.f32 %v5409, %v5417
  %v5420 = vtanh.pop %v5419
  %5422 = vrot.lane.b32.xlu0 %v5420, 64
  %v5423 = vpop.permute.xlu0 %5422
  %v5425 = vmul.f32 %v5403, %v5423
  %5427 = vrot.lane.b32.xlu0 %v5425, 32
  %v5428 = vpop.permute.xlu0 %5427
  %5430 = vst.msk [vmem:[%s4] sm:$0xff] %vm44, %v5428
  %v5431 = vld [vmem:[%s721] sm:$0xff]
  %v5432 = vld [vmem:[%s5191] sm:$0xff]
  %v5433 = vld [vmem:[%s5191 + $0x8] sm:$0xff]
  %v5434 = vld [vmem:[%s5191 + $0x10] sm:$0xff]
  %v5435 = vld [vmem:[%s5191 + $0x18] sm:$0xff]
  %v5436 = vsel %vm44, %v5428, 0
  %5438 = vmatpush.msra.mxu0 0.0
  %5439 = vmatpush.msra.mxu0 0.0
  %5440 = vmatpush.msra.mxu0 0.0
  %5441 = vmatpush.msra.mxu0 0.0
  %5442 = vmatpush.msra.mxu0 0.0
  %5443 = vmatpush.msra.mxu0 0.0
  %5444 = vmatpush.msra.mxu0 0.0
  %5445 = vmatpush.msra.mxu0 0.0
  %5446 = vmatpush.msra.mxu0 0.0
  %5447 = vmatpush.msra.mxu0 0.0
  %5448 = vmatpush.msra.mxu0 0.0
  %5449 = vmatpush.msra.mxu0 0.0
  %v5450 = vand.u32 %v5435, 4294901760
  %5451 = vmatpush.msra.mxu0 %v5450
  %v5452 = vand.u32 %v5434, 4294901760
  %5453 = vmatpush.msra.mxu0 %v5452
  %v5454 = vand.u32 %v5433, 4294901760
  %5455 = vmatpush.msra.mxu0 %v5454
  %v5456 = vand.u32 %v5432, 4294901760
  %5457 = vmatpush.msra.mxu0 %v5456
  %v5458 = vand.u32 %v5436, 4294901760
  %v5459 = vsub.f32 %v5436, %v5458
  %v5460 = vand.u32 %v5459, 4294901760
  %v5461 = vsub.f32 %v5459, %v5460
  %v5462 = vand.u32 %v5461, 4294901760
  %5463 = vmatmul.f32.gmra.mxu0 %v5462
  %v5464 = vpop.f32.mrf.mxu0
  %v5465 = vadd.f32 0.0, %v5464
  %5466 = vdwg.mxu0
  %5467 = vmatpush.msra.mxu0 0.0
  %5468 = vmatpush.msra.mxu0 0.0
  %5469 = vmatpush.msra.mxu0 0.0
  %5470 = vmatpush.msra.mxu0 0.0
  %5471 = vmatpush.msra.mxu0 0.0
  %5472 = vmatpush.msra.mxu0 0.0
  %5473 = vmatpush.msra.mxu0 0.0
  %5474 = vmatpush.msra.mxu0 0.0
  %5475 = vmatpush.msra.mxu0 0.0
  %5476 = vmatpush.msra.mxu0 0.0
  %5477 = vmatpush.msra.mxu0 0.0
  %5478 = vmatpush.msra.mxu0 0.0
  %v5479 = vand.u32 %v5435, 4294901760
  %v5480 = vsub.f32 %v5435, %v5479
  %v5481 = vand.u32 %v5480, 4294901760
  %v5482 = vsub.f32 %v5480, %v5481
  %v5483 = vand.u32 %v5482, 4294901760
  %5484 = vmatpush.msra.mxu0 %v5483
  %v5485 = vand.u32 %v5434, 4294901760
  %v5486 = vsub.f32 %v5434, %v5485
  %v5487 = vand.u32 %v5486, 4294901760
  %v5488 = vsub.f32 %v5486, %v5487
  %v5489 = vand.u32 %v5488, 4294901760
  %5490 = vmatpush.msra.mxu0 %v5489
  %v5491 = vand.u32 %v5433, 4294901760
  %v5492 = vsub.f32 %v5433, %v5491
  %v5493 = vand.u32 %v5492, 4294901760
  %v5494 = vsub.f32 %v5492, %v5493
  %v5495 = vand.u32 %v5494, 4294901760
  %5496 = vmatpush.msra.mxu0 %v5495
  %v5497 = vand.u32 %v5432, 4294901760
  %v5498 = vsub.f32 %v5432, %v5497
  %v5499 = vand.u32 %v5498, 4294901760
  %v5500 = vsub.f32 %v5498, %v5499
  %v5501 = vand.u32 %v5500, 4294901760
  %5502 = vmatpush.msra.mxu0 %v5501
  %v5503 = vand.u32 %v5436, 4294901760
  %5504 = vmatmul.f32.gmra.mxu0 %v5503
  %v5505 = vpop.f32.mrf.mxu0
  %v5506 = vadd.f32 %v5465, %v5505
  %5507 = vdwg.mxu0
  %5508 = vmatpush.msra.mxu0 0.0
  %5509 = vmatpush.msra.mxu0 0.0
  %5510 = vmatpush.msra.mxu0 0.0
  %5511 = vmatpush.msra.mxu0 0.0
  %5512 = vmatpush.msra.mxu0 0.0
  %5513 = vmatpush.msra.mxu0 0.0
  %5514 = vmatpush.msra.mxu0 0.0
  %5515 = vmatpush.msra.mxu0 0.0
  %5516 = vmatpush.msra.mxu0 0.0
  %5517 = vmatpush.msra.mxu0 0.0
  %5518 = vmatpush.msra.mxu0 0.0
  %5519 = vmatpush.msra.mxu0 0.0
  %v5520 = vand.u32 %v5435, 4294901760
  %v5521 = vsub.f32 %v5435, %v5520
  %5522 = vmatpush.msra.mxu0 %v5521
  %v5523 = vand.u32 %v5434, 4294901760
  %v5524 = vsub.f32 %v5434, %v5523
  %5525 = vmatpush.msra.mxu0 %v5524
  %v5526 = vand.u32 %v5433, 4294901760
  %v5527 = vsub.f32 %v5433, %v5526
  %5528 = vmatpush.msra.mxu0 %v5527
  %v5529 = vand.u32 %v5432, 4294901760
  %v5530 = vsub.f32 %v5432, %v5529
  %5531 = vmatpush.msra.mxu0 %v5530
  %v5532 = vand.u32 %v5436, 4294901760
  %v5533 = vsub.f32 %v5436, %v5532
  %5534 = vmatmul.f32.gmra.mxu0 %v5533
  %v5535 = vpop.f32.mrf.mxu0
  %v5536 = vadd.f32 %v5506, %v5535
  %5537 = vdwg.mxu0
  %5538 = vmatpush.msra.mxu0 0.0
  %5539 = vmatpush.msra.mxu0 0.0
  %5540 = vmatpush.msra.mxu0 0.0
  %5541 = vmatpush.msra.mxu0 0.0
  %5542 = vmatpush.msra.mxu0 0.0
  %5543 = vmatpush.msra.mxu0 0.0
  %5544 = vmatpush.msra.mxu0 0.0
  %5545 = vmatpush.msra.mxu0 0.0
  %5546 = vmatpush.msra.mxu0 0.0
  %5547 = vmatpush.msra.mxu0 0.0
  %5548 = vmatpush.msra.mxu0 0.0
  %5549 = vmatpush.msra.mxu0 0.0
  %v5550 = vand.u32 %v5435, 4294901760
  %5551 = vmatpush.msra.mxu0 %v5550
  %v5552 = vand.u32 %v5434, 4294901760
  %5553 = vmatpush.msra.mxu0 %v5552
  %v5554 = vand.u32 %v5433, 4294901760
  %5555 = vmatpush.msra.mxu0 %v5554
  %v5556 = vand.u32 %v5432, 4294901760
  %5557 = vmatpush.msra.mxu0 %v5556
  %v5558 = vand.u32 %v5436, 4294901760
  %v5559 = vsub.f32 %v5436, %v5558
  %v5560 = vand.u32 %v5559, 4294901760
  %5561 = vmatmul.f32.gmra.mxu0 %v5560
  %v5562 = vpop.f32.mrf.mxu0
  %v5563 = vadd.f32 %v5536, %v5562
  %5564 = vdwg.mxu0
  %5565 = vmatpush.msra.mxu0 0.0
  %5566 = vmatpush.msra.mxu0 0.0
  %5567 = vmatpush.msra.mxu0 0.0
  %5568 = vmatpush.msra.mxu0 0.0
  %5569 = vmatpush.msra.mxu0 0.0
  %5570 = vmatpush.msra.mxu0 0.0
  %5571 = vmatpush.msra.mxu0 0.0
  %5572 = vmatpush.msra.mxu0 0.0
  %5573 = vmatpush.msra.mxu0 0.0
  %5574 = vmatpush.msra.mxu0 0.0
  %5575 = vmatpush.msra.mxu0 0.0
  %5576 = vmatpush.msra.mxu0 0.0
  %v5577 = vand.u32 %v5435, 4294901760
  %v5578 = vsub.f32 %v5435, %v5577
  %v5579 = vand.u32 %v5578, 4294901760
  %5580 = vmatpush.msra.mxu0 %v5579
  %v5581 = vand.u32 %v5434, 4294901760
  %v5582 = vsub.f32 %v5434, %v5581
  %v5583 = vand.u32 %v5582, 4294901760
  %5584 = vmatpush.msra.mxu0 %v5583
  %v5585 = vand.u32 %v5433, 4294901760
  %v5586 = vsub.f32 %v5433, %v5585
  %v5587 = vand.u32 %v5586, 4294901760
  %5588 = vmatpush.msra.mxu0 %v5587
  %v5589 = vand.u32 %v5432, 4294901760
  %v5590 = vsub.f32 %v5432, %v5589
  %v5591 = vand.u32 %v5590, 4294901760
  %5592 = vmatpush.msra.mxu0 %v5591
  %v5593 = vand.u32 %v5436, 4294901760
  %5594 = vmatmul.f32.gmra.mxu0 %v5593
  %v5595 = vpop.f32.mrf.mxu0
  %v5596 = vadd.f32 %v5563, %v5595
  %5597 = vdwg.mxu0
  %5598 = vmatpush.msra.mxu0 0.0
  %5599 = vmatpush.msra.mxu0 0.0
  %5600 = vmatpush.msra.mxu0 0.0
  %5601 = vmatpush.msra.mxu0 0.0
  %5602 = vmatpush.msra.mxu0 0.0
  %5603 = vmatpush.msra.mxu0 0.0
  %5604 = vmatpush.msra.mxu0 0.0
  %5605 = vmatpush.msra.mxu0 0.0
  %5606 = vmatpush.msra.mxu0 0.0
  %5607 = vmatpush.msra.mxu0 0.0
  %5608 = vmatpush.msra.mxu0 0.0
  %5609 = vmatpush.msra.mxu0 0.0
  %v5610 = vand.u32 %v5435, 4294901760
  %5611 = vmatpush.msra.mxu0 %v5610
  %v5612 = vand.u32 %v5434, 4294901760
  %5613 = vmatpush.msra.mxu0 %v5612
  %v5614 = vand.u32 %v5433, 4294901760
  %5615 = vmatpush.msra.mxu0 %v5614
  %v5616 = vand.u32 %v5432, 4294901760
  %5617 = vmatpush.msra.mxu0 %v5616
  %v5618 = vand.u32 %v5436, 4294901760
  %5619 = vmatmul.f32.gmra.mxu0 %v5618
  %v5620 = vpop.f32.mrf.mxu0
  %v5621 = vadd.f32 %v5596, %v5620
  %5622 = vdwg.mxu0
  %v5623 = vadd.f32 %v5431, %v5621
  %v5624 = vxor.u32 %v5623, 2147483648
  %v5625 = vmul.f32 %v5624, 1.442695
  %v5626 = vpow.pop %v5625
  %v5627 = vadd.f32 %v5626, 1.0
  %v5628 = vrcp.pop %v5627
  %v5629 = vmul.f32 %v5627, %v5628
  %v5630 = vsub.f32 1.0, %v5629
  %v5631 = vmul.f32 %v5628, %v5630
  %v5632 = vadd.f32 %v5628, %v5631
  %vm5633 = vweird.f32 %v5627
  %vm5634 = vweird.f32 %v5628
  %vm5635 = vmor %vm5633, %vm5634
  %v5636 = vsel %vm5635, %v5628, %v5632
  %v5637 = vand.u32 2147483647, %v5627
  %vm5638 = vcmp.eq.f32.partialorder %v5637, 8.507059e+37
  %v5639 = vand.u32 %v5627, 2147483648
  %v5640 = vor.u32 1.1754944e-38, %v5639
  %v5641 = vsel %vm5638, %v5640, %v5636
  %v5642 = vmul.f32 1.0, %v5641
  %v5643 = vtanh.pop %v5623
  %v5644 = vmul.f32 %v5642, %v5419
  %5646 = vrot.lane.b32.xlu0 %v5643, 64
  %v5647 = vpop.permute.xlu0 %5646
  %v5649 = vmul.f32 %v5642, %v5647
  %5651 = vrot.lane.b32.xlu0 %v5649, 32
  %v5652 = vpop.permute.xlu0 %5651
  %v5654 = vadd.f32 %v5644, %v5652
  %v5655 = vtanh.pop %v5654
  %5657 = vrot.lane.b32.xlu0 %v5655, 64
  %v5658 = vpop.permute.xlu0 %5657
  %v5660 = vmul.f32 %v5642, %v5658
  %5662 = vrot.lane.b32.xlu0 %v5660, 32
  %v5663 = vpop.permute.xlu0 %5662
  %s5665 = scalar_lea.vmem %s4, 8
  %5666 = vst.msk [vmem:[%s5665] sm:$0xff] %vm44, %v5663
  %v5667 = vld [vmem:[%s958] sm:$0xff]
  %v5668 = vld [vmem:[%s5191] sm:$0xff]
  %v5669 = vld [vmem:[%s5191 + $0x8] sm:$0xff]
  %v5670 = vld [vmem:[%s5191 + $0x10] sm:$0xff]
  %v5671 = vld [vmem:[%s5191 + $0x18] sm:$0xff]
  %v5672 = vsel %vm44, %v5663, 0
  %5674 = vmatpush.msra.mxu0 0.0
  %5675 = vmatpush.msra.mxu0 0.0
  %5676 = vmatpush.msra.mxu0 0.0
  %5677 = vmatpush.msra.mxu0 0.0
  %5678 = vmatpush.msra.mxu0 0.0
  %5679 = vmatpush.msra.mxu0 0.0
  %5680 = vmatpush.msra.mxu0 0.0
  %5681 = vmatpush.msra.mxu0 0.0
  %5682 = vmatpush.msra.mxu0 0.0
  %5683 = vmatpush.msra.mxu0 0.0
  %5684 = vmatpush.msra.mxu0 0.0
  %5685 = vmatpush.msra.mxu0 0.0
  %v5686 = vand.u32 %v5671, 4294901760
  %5687 = vmatpush.msra.mxu0 %v5686
  %v5688 = vand.u32 %v5670, 4294901760
  %5689 = vmatpush.msra.mxu0 %v5688
  %v5690 = vand.u32 %v5669, 4294901760
  %5691 = vmatpush.msra.mxu0 %v5690
  %v5692 = vand.u32 %v5668, 4294901760
  %5693 = vmatpush.msra.mxu0 %v5692
  %v5694 = vand.u32 %v5672, 4294901760
  %v5695 = vsub.f32 %v5672, %v5694
  %v5696 = vand.u32 %v5695, 4294901760
  %v5697 = vsub.f32 %v5695, %v5696
  %v5698 = vand.u32 %v5697, 4294901760
  %5699 = vmatmul.f32.gmra.mxu0 %v5698
  %v5700 = vpop.f32.mrf.mxu0
  %v5701 = vadd.f32 0.0, %v5700
  %5702 = vdwg.mxu0
  %5703 = vmatpush.msra.mxu0 0.0
  %5704 = vmatpush.msra.mxu0 0.0
  %5705 = vmatpush.msra.mxu0 0.0
  %5706 = vmatpush.msra.mxu0 0.0
  %5707 = vmatpush.msra.mxu0 0.0
  %5708 = vmatpush.msra.mxu0 0.0
  %5709 = vmatpush.msra.mxu0 0.0
  %5710 = vmatpush.msra.mxu0 0.0
  %5711 = vmatpush.msra.mxu0 0.0
  %5712 = vmatpush.msra.mxu0 0.0
  %5713 = vmatpush.msra.mxu0 0.0
  %5714 = vmatpush.msra.mxu0 0.0
  %v5715 = vand.u32 %v5671, 4294901760
  %v5716 = vsub.f32 %v5671, %v5715
  %v5717 = vand.u32 %v5716, 4294901760
  %v5718 = vsub.f32 %v5716, %v5717
  %v5719 = vand.u32 %v5718, 4294901760
  %5720 = vmatpush.msra.mxu0 %v5719
  %v5721 = vand.u32 %v5670, 4294901760
  %v5722 = vsub.f32 %v5670, %v5721
  %v5723 = vand.u32 %v5722, 4294901760
  %v5724 = vsub.f32 %v5722, %v5723
  %v5725 = vand.u32 %v5724, 4294901760
  %5726 = vmatpush.msra.mxu0 %v5725
  %v5727 = vand.u32 %v5669, 4294901760
  %v5728 = vsub.f32 %v5669, %v5727
  %v5729 = vand.u32 %v5728, 4294901760
  %v5730 = vsub.f32 %v5728, %v5729
  %v5731 = vand.u32 %v5730, 4294901760
  %5732 = vmatpush.msra.mxu0 %v5731
  %v5733 = vand.u32 %v5668, 4294901760
  %v5734 = vsub.f32 %v5668, %v5733
  %v5735 = vand.u32 %v5734, 4294901760
  %v5736 = vsub.f32 %v5734, %v5735
  %v5737 = vand.u32 %v5736, 4294901760
  %5738 = vmatpush.msra.mxu0 %v5737
  %v5739 = vand.u32 %v5672, 4294901760
  %5740 = vmatmul.f32.gmra.mxu0 %v5739
  %v5741 = vpop.f32.mrf.mxu0
  %v5742 = vadd.f32 %v5701, %v5741
  %5743 = vdwg.mxu0
  %5744 = vmatpush.msra.mxu0 0.0
  %5745 = vmatpush.msra.mxu0 0.0
  %5746 = vmatpush.msra.mxu0 0.0
  %5747 = vmatpush.msra.mxu0 0.0
  %5748 = vmatpush.msra.mxu0 0.0
  %5749 = vmatpush.msra.mxu0 0.0
  %5750 = vmatpush.msra.mxu0 0.0
  %5751 = vmatpush.msra.mxu0 0.0
  %5752 = vmatpush.msra.mxu0 0.0
  %5753 = vmatpush.msra.mxu0 0.0
  %5754 = vmatpush.msra.mxu0 0.0
  %5755 = vmatpush.msra.mxu0 0.0
  %v5756 = vand.u32 %v5671, 4294901760
  %v5757 = vsub.f32 %v5671, %v5756
  %5758 = vmatpush.msra.mxu0 %v5757
  %v5759 = vand.u32 %v5670, 4294901760
  %v5760 = vsub.f32 %v5670, %v5759
  %5761 = vmatpush.msra.mxu0 %v5760
  %v5762 = vand.u32 %v5669, 4294901760
  %v5763 = vsub.f32 %v5669, %v5762
  %5764 = vmatpush.msra.mxu0 %v5763
  %v5765 = vand.u32 %v5668, 4294901760
  %v5766 = vsub.f32 %v5668, %v5765
  %5767 = vmatpush.msra.mxu0 %v5766
  %v5768 = vand.u32 %v5672, 4294901760
  %v5769 = vsub.f32 %v5672, %v5768
  %5770 = vmatmul.f32.gmra.mxu0 %v5769
  %v5771 = vpop.f32.mrf.mxu0
  %v5772 = vadd.f32 %v5742, %v5771
  %5773 = vdwg.mxu0
  %5774 = vmatpush.msra.mxu0 0.0
  %5775 = vmatpush.msra.mxu0 0.0
  %5776 = vmatpush.msra.mxu0 0.0
  %5777 = vmatpush.msra.mxu0 0.0
  %5778 = vmatpush.msra.mxu0 0.0
  %5779 = vmatpush.msra.mxu0 0.0
  %5780 = vmatpush.msra.mxu0 0.0
  %5781 = vmatpush.msra.mxu0 0.0
  %5782 = vmatpush.msra.mxu0 0.0
  %5783 = vmatpush.msra.mxu0 0.0
  %5784 = vmatpush.msra.mxu0 0.0
  %5785 = vmatpush.msra.mxu0 0.0
  %v5786 = vand.u32 %v5671, 4294901760
  %5787 = vmatpush.msra.mxu0 %v5786
  %v5788 = vand.u32 %v5670, 4294901760
  %5789 = vmatpush.msra.mxu0 %v5788
  %v5790 = vand.u32 %v5669, 4294901760
  %5791 = vmatpush.msra.mxu0 %v5790
  %v5792 = vand.u32 %v5668, 4294901760
  %5793 = vmatpush.msra.mxu0 %v5792
  %v5794 = vand.u32 %v5672, 4294901760
  %v5795 = vsub.f32 %v5672, %v5794
  %v5796 = vand.u32 %v5795, 4294901760
  %5797 = vmatmul.f32.gmra.mxu0 %v5796
  %v5798 = vpop.f32.mrf.mxu0
  %v5799 = vadd.f32 %v5772, %v5798
  %5800 = vdwg.mxu0
  %5801 = vmatpush.msra.mxu0 0.0
  %5802 = vmatpush.msra.mxu0 0.0
  %5803 = vmatpush.msra.mxu0 0.0
  %5804 = vmatpush.msra.mxu0 0.0
  %5805 = vmatpush.msra.mxu0 0.0
  %5806 = vmatpush.msra.mxu0 0.0
  %5807 = vmatpush.msra.mxu0 0.0
  %5808 = vmatpush.msra.mxu0 0.0
  %5809 = vmatpush.msra.mxu0 0.0
  %5810 = vmatpush.msra.mxu0 0.0
  %5811 = vmatpush.msra.mxu0 0.0
  %5812 = vmatpush.msra.mxu0 0.0
  %v5813 = vand.u32 %v5671, 4294901760
  %v5814 = vsub.f32 %v5671, %v5813
  %v5815 = vand.u32 %v5814, 4294901760
  %5816 = vmatpush.msra.mxu0 %v5815
  %v5817 = vand.u32 %v5670, 4294901760
  %v5818 = vsub.f32 %v5670, %v5817
  %v5819 = vand.u32 %v5818, 4294901760
  %5820 = vmatpush.msra.mxu0 %v5819
  %v5821 = vand.u32 %v5669, 4294901760
  %v5822 = vsub.f32 %v5669, %v5821
  %v5823 = vand.u32 %v5822, 4294901760
  %5824 = vmatpush.msra.mxu0 %v5823
  %v5825 = vand.u32 %v5668, 4294901760
  %v5826 = vsub.f32 %v5668, %v5825
  %v5827 = vand.u32 %v5826, 4294901760
  %5828 = vmatpush.msra.mxu0 %v5827
  %v5829 = vand.u32 %v5672, 4294901760
  %5830 = vmatmul.f32.gmra.mxu0 %v5829
  %v5831 = vpop.f32.mrf.mxu0
  %v5832 = vadd.f32 %v5799, %v5831
  %5833 = vdwg.mxu0
  %5834 = vmatpush.msra.mxu0 0.0
  %5835 = vmatpush.msra.mxu0 0.0
  %5836 = vmatpush.msra.mxu0 0.0
  %5837 = vmatpush.msra.mxu0 0.0
  %5838 = vmatpush.msra.mxu0 0.0
  %5839 = vmatpush.msra.mxu0 0.0
  %5840 = vmatpush.msra.mxu0 0.0
  %5841 = vmatpush.msra.mxu0 0.0
  %5842 = vmatpush.msra.mxu0 0.0
  %5843 = vmatpush.msra.mxu0 0.0
  %5844 = vmatpush.msra.mxu0 0.0
  %5845 = vmatpush.msra.mxu0 0.0
  %v5846 = vand.u32 %v5671, 4294901760
  %5847 = vmatpush.msra.mxu0 %v5846
  %v5848 = vand.u32 %v5670, 4294901760
  %5849 = vmatpush.msra.mxu0 %v5848
  %v5850 = vand.u32 %v5669, 4294901760
  %5851 = vmatpush.msra.mxu0 %v5850
  %v5852 = vand.u32 %v5668, 4294901760
  %5853 = vmatpush.msra.mxu0 %v5852
  %v5854 = vand.u32 %v5672, 4294901760
  %5855 = vmatmul.f32.gmra.mxu0 %v5854
  %v5856 = vpop.f32.mrf.mxu0
  %v5857 = vadd.f32 %v5832, %v5856
  %5858 = vdwg.mxu0
  %v5859 = vadd.f32 %v5667, %v5857
  %v5860 = vxor.u32 %v5859, 2147483648
  %v5861 = vmul.f32 %v5860, 1.442695
  %v5862 = vpow.pop %v5861
  %v5863 = vadd.f32 %v5862, 1.0
  %v5864 = vrcp.pop %v5863
  %v5865 = vmul.f32 %v5863, %v5864
  %v5866 = vsub.f32 1.0, %v5865
  %v5867 = vmul.f32 %v5864, %v5866
  %v5868 = vadd.f32 %v5864, %v5867
  %vm5869 = vweird.f32 %v5863
  %vm5870 = vweird.f32 %v5864
  %vm5871 = vmor %vm5869, %vm5870
  %v5872 = vsel %vm5871, %v5864, %v5868
  %v5873 = vand.u32 2147483647, %v5863
  %vm5874 = vcmp.eq.f32.partialorder %v5873, 8.507059e+37
  %v5875 = vand.u32 %v5863, 2147483648
  %v5876 = vor.u32 1.1754944e-38, %v5875
  %v5877 = vsel %vm5874, %v5876, %v5872
  %v5878 = vmul.f32 1.0, %v5877
  %v5879 = vtanh.pop %v5859
  %v5880 = vmul.f32 %v5878, %v5654
  %5882 = vrot.lane.b32.xlu0 %v5879, 64
  %v5883 = vpop.permute.xlu0 %5882
  %v5885 = vmul.f32 %v5878, %v5883
  %5887 = vrot.lane.b32.xlu0 %v5885, 32
  %v5888 = vpop.permute.xlu0 %5887
  %v5890 = vadd.f32 %v5880, %v5888
  %v5891 = vtanh.pop %v5890
  %5893 = vrot.lane.b32.xlu0 %v5891, 64
  %v5894 = vpop.permute.xlu0 %5893
  %v5896 = vmul.f32 %v5878, %v5894
  %5898 = vrot.lane.b32.xlu0 %v5896, 32
  %v5899 = vpop.permute.xlu0 %5898
  %s5901 = scalar_lea.vmem %s4, 16
  %5902 = vst.msk [vmem:[%s5901] sm:$0xff] %vm44, %v5899
  %v5903 = vld [vmem:[%s1195] sm:$0xff]
  %v5904 = vld [vmem:[%s5191] sm:$0xff]
  %v5905 = vld [vmem:[%s5191 + $0x8] sm:$0xff]
  %v5906 = vld [vmem:[%s5191 + $0x10] sm:$0xff]
  %v5907 = vld [vmem:[%s5191 + $0x18] sm:$0xff]
  %v5908 = vsel %vm44, %v5899, 0
  %5910 = vmatpush.msra.mxu0 0.0
  %5911 = vmatpush.msra.mxu0 0.0
  %5912 = vmatpush.msra.mxu0 0.0
  %5913 = vmatpush.msra.mxu0 0.0
  %5914 = vmatpush.msra.mxu0 0.0
  %5915 = vmatpush.msra.mxu0 0.0
  %5916 = vmatpush.msra.mxu0 0.0
  %5917 = vmatpush.msra.mxu0 0.0
  %5918 = vmatpush.msra.mxu0 0.0
  %5919 = vmatpush.msra.mxu0 0.0
  %5920 = vmatpush.msra.mxu0 0.0
  %5921 = vmatpush.msra.mxu0 0.0
  %v5922 = vand.u32 %v5907, 4294901760
  %5923 = vmatpush.msra.mxu0 %v5922
  %v5924 = vand.u32 %v5906, 4294901760
  %5925 = vmatpush.msra.mxu0 %v5924
  %v5926 = vand.u32 %v5905, 4294901760
  %5927 = vmatpush.msra.mxu0 %v5926
  %v5928 = vand.u32 %v5904, 4294901760
  %5929 = vmatpush.msra.mxu0 %v5928
  %v5930 = vand.u32 %v5908, 4294901760
  %v5931 = vsub.f32 %v5908, %v5930
  %v5932 = vand.u32 %v5931, 4294901760
  %v5933 = vsub.f32 %v5931, %v5932
  %v5934 = vand.u32 %v5933, 4294901760
  %5935 = vmatmul.f32.gmra.mxu0 %v5934
  %v5936 = vpop.f32.mrf.mxu0
  %v5937 = vadd.f32 0.0, %v5936
  %5938 = vdwg.mxu0
  %5939 = vmatpush.msra.mxu0 0.0
  %5940 = vmatpush.msra.mxu0 0.0
  %5941 = vmatpush.msra.mxu0 0.0
  %5942 = vmatpush.msra.mxu0 0.0
  %5943 = vmatpush.msra.mxu0 0.0
  %5944 = vmatpush.msra.mxu0 0.0
  %5945 = vmatpush.msra.mxu0 0.0
  %5946 = vmatpush.msra.mxu0 0.0
  %5947 = vmatpush.msra.mxu0 0.0
  %5948 = vmatpush.msra.mxu0 0.0
  %5949 = vmatpush.msra.mxu0 0.0
  %5950 = vmatpush.msra.mxu0 0.0
  %v5951 = vand.u32 %v5907, 4294901760
  %v5952 = vsub.f32 %v5907, %v5951
  %v5953 = vand.u32 %v5952, 4294901760
  %v5954 = vsub.f32 %v5952, %v5953
  %v5955 = vand.u32 %v5954, 4294901760
  %5956 = vmatpush.msra.mxu0 %v5955
  %v5957 = vand.u32 %v5906, 4294901760
  %v5958 = vsub.f32 %v5906, %v5957
  %v5959 = vand.u32 %v5958, 4294901760
  %v5960 = vsub.f32 %v5958, %v5959
  %v5961 = vand.u32 %v5960, 4294901760
  %5962 = vmatpush.msra.mxu0 %v5961
  %v5963 = vand.u32 %v5905, 4294901760
  %v5964 = vsub.f32 %v5905, %v5963
  %v5965 = vand.u32 %v5964, 4294901760
  %v5966 = vsub.f32 %v5964, %v5965
  %v5967 = vand.u32 %v5966, 4294901760
  %5968 = vmatpush.msra.mxu0 %v5967
  %v5969 = vand.u32 %v5904, 4294901760
  %v5970 = vsub.f32 %v5904, %v5969
  %v5971 = vand.u32 %v5970, 4294901760
  %v5972 = vsub.f32 %v5970, %v5971
  %v5973 = vand.u32 %v5972, 4294901760
  %5974 = vmatpush.msra.mxu0 %v5973
  %v5975 = vand.u32 %v5908, 4294901760
  %5976 = vmatmul.f32.gmra.mxu0 %v5975
  %v5977 = vpop.f32.mrf.mxu0
  %v5978 = vadd.f32 %v5937, %v5977
  %5979 = vdwg.mxu0
  %5980 = vmatpush.msra.mxu0 0.0
  %5981 = vmatpush.msra.mxu0 0.0
  %5982 = vmatpush.msra.mxu0 0.0
  %5983 = vmatpush.msra.mxu0 0.0
  %5984 = vmatpush.msra.mxu0 0.0
  %5985 = vmatpush.msra.mxu0 0.0
  %5986 = vmatpush.msra.mxu0 0.0
  %5987 = vmatpush.msra.mxu0 0.0
  %5988 = vmatpush.msra.mxu0 0.0
  %5989 = vmatpush.msra.mxu0 0.0
  %5990 = vmatpush.msra.mxu0 0.0
  %5991 = vmatpush.msra.mxu0 0.0
  %v5992 = vand.u32 %v5907, 4294901760
  %v5993 = vsub.f32 %v5907, %v5992
  %5994 = vmatpush.msra.mxu0 %v5993
  %v5995 = vand.u32 %v5906, 4294901760
  %v5996 = vsub.f32 %v5906, %v5995
  %5997 = vmatpush.msra.mxu0 %v5996
  %v5998 = vand.u32 %v5905, 4294901760
  %v5999 = vsub.f32 %v5905, %v5998
  %6000 = vmatpush.msra.mxu0 %v5999
  %v6001 = vand.u32 %v5904, 4294901760
  %v6002 = vsub.f32 %v5904, %v6001
  %6003 = vmatpush.msra.mxu0 %v6002
  %v6004 = vand.u32 %v5908, 4294901760
  %v6005 = vsub.f32 %v5908, %v6004
  %6006 = vmatmul.f32.gmra.mxu0 %v6005
  %v6007 = vpop.f32.mrf.mxu0
  %v6008 = vadd.f32 %v5978, %v6007
  %6009 = vdwg.mxu0
  %6010 = vmatpush.msra.mxu0 0.0
  %6011 = vmatpush.msra.mxu0 0.0
  %6012 = vmatpush.msra.mxu0 0.0
  %6013 = vmatpush.msra.mxu0 0.0
  %6014 = vmatpush.msra.mxu0 0.0
  %6015 = vmatpush.msra.mxu0 0.0
  %6016 = vmatpush.msra.mxu0 0.0
  %6017 = vmatpush.msra.mxu0 0.0
  %6018 = vmatpush.msra.mxu0 0.0
  %6019 = vmatpush.msra.mxu0 0.0
  %6020 = vmatpush.msra.mxu0 0.0
  %6021 = vmatpush.msra.mxu0 0.0
  %v6022 = vand.u32 %v5907, 4294901760
  %6023 = vmatpush.msra.mxu0 %v6022
  %v6024 = vand.u32 %v5906, 4294901760
  %6025 = vmatpush.msra.mxu0 %v6024
  %v6026 = vand.u32 %v5905, 4294901760
  %6027 = vmatpush.msra.mxu0 %v6026
  %v6028 = vand.u32 %v5904, 4294901760
  %6029 = vmatpush.msra.mxu0 %v6028
  %v6030 = vand.u32 %v5908, 4294901760
  %v6031 = vsub.f32 %v5908, %v6030
  %v6032 = vand.u32 %v6031, 4294901760
  %6033 = vmatmul.f32.gmra.mxu0 %v6032
  %v6034 = vpop.f32.mrf.mxu0
  %v6035 = vadd.f32 %v6008, %v6034
  %6036 = vdwg.mxu0
  %6037 = vmatpush.msra.mxu0 0.0
  %6038 = vmatpush.msra.mxu0 0.0
  %6039 = vmatpush.msra.mxu0 0.0
  %6040 = vmatpush.msra.mxu0 0.0
  %6041 = vmatpush.msra.mxu0 0.0
  %6042 = vmatpush.msra.mxu0 0.0
  %6043 = vmatpush.msra.mxu0 0.0
  %6044 = vmatpush.msra.mxu0 0.0
  %6045 = vmatpush.msra.mxu0 0.0
  %6046 = vmatpush.msra.mxu0 0.0
  %6047 = vmatpush.msra.mxu0 0.0
  %6048 = vmatpush.msra.mxu0 0.0
  %v6049 = vand.u32 %v5907, 4294901760
  %v6050 = vsub.f32 %v5907, %v6049
  %v6051 = vand.u32 %v6050, 4294901760
  %6052 = vmatpush.msra.mxu0 %v6051
  %v6053 = vand.u32 %v5906, 4294901760
  %v6054 = vsub.f32 %v5906, %v6053
  %v6055 = vand.u32 %v6054, 4294901760
  %6056 = vmatpush.msra.mxu0 %v6055
  %v6057 = vand.u32 %v5905, 4294901760
  %v6058 = vsub.f32 %v5905, %v6057
  %v6059 = vand.u32 %v6058, 4294901760
  %6060 = vmatpush.msra.mxu0 %v6059
  %v6061 = vand.u32 %v5904, 4294901760
  %v6062 = vsub.f32 %v5904, %v6061
  %v6063 = vand.u32 %v6062, 4294901760
  %6064 = vmatpush.msra.mxu0 %v6063
  %v6065 = vand.u32 %v5908, 4294901760
  %6066 = vmatmul.f32.gmra.mxu0 %v6065
  %v6067 = vpop.f32.mrf.mxu0
  %v6068 = vadd.f32 %v6035, %v6067
  %6069 = vdwg.mxu0
  %6070 = vmatpush.msra.mxu0 0.0
  %6071 = vmatpush.msra.mxu0 0.0
  %6072 = vmatpush.msra.mxu0 0.0
  %6073 = vmatpush.msra.mxu0 0.0
  %6074 = vmatpush.msra.mxu0 0.0
  %6075 = vmatpush.msra.mxu0 0.0
  %6076 = vmatpush.msra.mxu0 0.0
  %6077 = vmatpush.msra.mxu0 0.0
  %6078 = vmatpush.msra.mxu0 0.0
  %6079 = vmatpush.msra.mxu0 0.0
  %6080 = vmatpush.msra.mxu0 0.0
  %6081 = vmatpush.msra.mxu0 0.0
  %v6082 = vand.u32 %v5907, 4294901760
  %6083 = vmatpush.msra.mxu0 %v6082
  %v6084 = vand.u32 %v5906, 4294901760
  %6085 = vmatpush.msra.mxu0 %v6084
  %v6086 = vand.u32 %v5905, 4294901760
  %6087 = vmatpush.msra.mxu0 %v6086
  %v6088 = vand.u32 %v5904, 4294901760
  %6089 = vmatpush.msra.mxu0 %v6088
  %v6090 = vand.u32 %v5908, 4294901760
  %6091 = vmatmul.f32.gmra.mxu0 %v6090
  %v6092 = vpop.f32.mrf.mxu0
  %v6093 = vadd.f32 %v6068, %v6092
  %6094 = vdwg.mxu0
  %v6095 = vadd.f32 %v5903, %v6093
  %v6096 = vxor.u32 %v6095, 2147483648
  %v6097 = vmul.f32 %v6096, 1.442695
  %v6098 = vpow.pop %v6097
  %v6099 = vadd.f32 %v6098, 1.0
  %v6100 = vrcp.pop %v6099
  %v6101 = vmul.f32 %v6099, %v6100
  %v6102 = vsub.f32 1.0, %v6101
  %v6103 = vmul.f32 %v6100, %v6102
  %v6104 = vadd.f32 %v6100, %v6103
  %vm6105 = vweird.f32 %v6099
  %vm6106 = vweird.f32 %v6100
  %vm6107 = vmor %vm6105, %vm6106
  %v6108 = vsel %vm6107, %v6100, %v6104
  %v6109 = vand.u32 2147483647, %v6099
  %vm6110 = vcmp.eq.f32.partialorder %v6109, 8.507059e+37
  %v6111 = vand.u32 %v6099, 2147483648
  %v6112 = vor.u32 1.1754944e-38, %v6111
  %v6113 = vsel %vm6110, %v6112, %v6108
  %v6114 = vmul.f32 1.0, %v6113
  %v6115 = vtanh.pop %v6095
  %v6116 = vmul.f32 %v6114, %v5890
  %6118 = vrot.lane.b32.xlu0 %v6115, 64
  %v6119 = vpop.permute.xlu0 %6118
  %v6121 = vmul.f32 %v6114, %v6119
  %6123 = vrot.lane.b32.xlu0 %v6121, 32
  %v6124 = vpop.permute.xlu0 %6123
  %v6126 = vadd.f32 %v6116, %v6124
  %v6127 = vtanh.pop %v6126
  %6129 = vrot.lane.b32.xlu0 %v6127, 64
  %v6130 = vpop.permute.xlu0 %6129
  %v6132 = vmul.f32 %v6114, %v6130
  %6134 = vrot.lane.b32.xlu0 %v6132, 32
  %v6135 = vpop.permute.xlu0 %6134
  %s6137 = scalar_lea.vmem %s4, 24
  %6138 = vst.msk [vmem:[%s6137] sm:$0xff] %vm44, %v6135
  %v6139 = vld [vmem:[%s1432] sm:$0xff]
  %v6140 = vld [vmem:[%s5191] sm:$0xff]
  %v6141 = vld [vmem:[%s5191 + $0x8] sm:$0xff]
  %v6142 = vld [vmem:[%s5191 + $0x10] sm:$0xff]
  %v6143 = vld [vmem:[%s5191 + $0x18] sm:$0xff]
  %v6144 = vsel %vm44, %v6135, 0
  %6146 = vmatpush.msra.mxu0 0.0
  %6147 = vmatpush.msra.mxu0 0.0
  %6148 = vmatpush.msra.mxu0 0.0
  %6149 = vmatpush.msra.mxu0 0.0
  %6150 = vmatpush.msra.mxu0 0.0
  %6151 = vmatpush.msra.mxu0 0.0
  %6152 = vmatpush.msra.mxu0 0.0
  %6153 = vmatpush.msra.mxu0 0.0
  %6154 = vmatpush.msra.mxu0 0.0
  %6155 = vmatpush.msra.mxu0 0.0
  %6156 = vmatpush.msra.mxu0 0.0
  %6157 = vmatpush.msra.mxu0 0.0
  %v6158 = vand.u32 %v6143, 4294901760
  %6159 = vmatpush.msra.mxu0 %v6158
  %v6160 = vand.u32 %v6142, 4294901760
  %6161 = vmatpush.msra.mxu0 %v6160
  %v6162 = vand.u32 %v6141, 4294901760
  %6163 = vmatpush.msra.mxu0 %v6162
  %v6164 = vand.u32 %v6140, 4294901760
  %6165 = vmatpush.msra.mxu0 %v6164
  %v6166 = vand.u32 %v6144, 4294901760
  %v6167 = vsub.f32 %v6144, %v6166
  %v6168 = vand.u32 %v6167, 4294901760
  %v6169 = vsub.f32 %v6167, %v6168
  %v6170 = vand.u32 %v6169, 4294901760
  %6171 = vmatmul.f32.gmra.mxu0 %v6170
  %v6172 = vpop.f32.mrf.mxu0
  %v6173 = vadd.f32 0.0, %v6172
  %6174 = vdwg.mxu0
  %6175 = vmatpush.msra.mxu0 0.0
  %6176 = vmatpush.msra.mxu0 0.0
  %6177 = vmatpush.msra.mxu0 0.0
  %6178 = vmatpush.msra.mxu0 0.0
  %6179 = vmatpush.msra.mxu0 0.0
  %6180 = vmatpush.msra.mxu0 0.0
  %6181 = vmatpush.msra.mxu0 0.0
  %6182 = vmatpush.msra.mxu0 0.0
  %6183 = vmatpush.msra.mxu0 0.0
  %6184 = vmatpush.msra.mxu0 0.0
  %6185 = vmatpush.msra.mxu0 0.0
  %6186 = vmatpush.msra.mxu0 0.0
  %v6187 = vand.u32 %v6143, 4294901760
  %v6188 = vsub.f32 %v6143, %v6187
  %v6189 = vand.u32 %v6188, 4294901760
  %v6190 = vsub.f32 %v6188, %v6189
  %v6191 = vand.u32 %v6190, 4294901760
  %6192 = vmatpush.msra.mxu0 %v6191
  %v6193 = vand.u32 %v6142, 4294901760
  %v6194 = vsub.f32 %v6142, %v6193
  %v6195 = vand.u32 %v6194, 4294901760
  %v6196 = vsub.f32 %v6194, %v6195
  %v6197 = vand.u32 %v6196, 4294901760
  %6198 = vmatpush.msra.mxu0 %v6197
  %v6199 = vand.u32 %v6141, 4294901760
  %v6200 = vsub.f32 %v6141, %v6199
  %v6201 = vand.u32 %v6200, 4294901760
  %v6202 = vsub.f32 %v6200, %v6201
  %v6203 = vand.u32 %v6202, 4294901760
  %6204 = vmatpush.msra.mxu0 %v6203
  %v6205 = vand.u32 %v6140, 4294901760
  %v6206 = vsub.f32 %v6140, %v6205
  %v6207 = vand.u32 %v6206, 4294901760
  %v6208 = vsub.f32 %v6206, %v6207
  %v6209 = vand.u32 %v6208, 4294901760
  %6210 = vmatpush.msra.mxu0 %v6209
  %v6211 = vand.u32 %v6144, 4294901760
  %6212 = vmatmul.f32.gmra.mxu0 %v6211
  %v6213 = vpop.f32.mrf.mxu0
  %v6214 = vadd.f32 %v6173, %v6213
  %6215 = vdwg.mxu0
  %6216 = vmatpush.msra.mxu0 0.0
  %6217 = vmatpush.msra.mxu0 0.0
  %6218 = vmatpush.msra.mxu0 0.0
  %6219 = vmatpush.msra.mxu0 0.0
  %6220 = vmatpush.msra.mxu0 0.0
  %6221 = vmatpush.msra.mxu0 0.0
  %6222 = vmatpush.msra.mxu0 0.0
  %6223 = vmatpush.msra.mxu0 0.0
  %6224 = vmatpush.msra.mxu0 0.0
  %6225 = vmatpush.msra.mxu0 0.0
  %6226 = vmatpush.msra.mxu0 0.0
  %6227 = vmatpush.msra.mxu0 0.0
  %v6228 = vand.u32 %v6143, 4294901760
  %v6229 = vsub.f32 %v6143, %v6228
  %6230 = vmatpush.msra.mxu0 %v6229
  %v6231 = vand.u32 %v6142, 4294901760
  %v6232 = vsub.f32 %v6142, %v6231
  %6233 = vmatpush.msra.mxu0 %v6232
  %v6234 = vand.u32 %v6141, 4294901760
  %v6235 = vsub.f32 %v6141, %v6234
  %6236 = vmatpush.msra.mxu0 %v6235
  %v6237 = vand.u32 %v6140, 4294901760
  %v6238 = vsub.f32 %v6140, %v6237
  %6239 = vmatpush.msra.mxu0 %v6238
  %v6240 = vand.u32 %v6144, 4294901760
  %v6241 = vsub.f32 %v6144, %v6240
  %6242 = vmatmul.f32.gmra.mxu0 %v6241
  %v6243 = vpop.f32.mrf.mxu0
  %v6244 = vadd.f32 %v6214, %v6243
  %6245 = vdwg.mxu0
  %6246 = vmatpush.msra.mxu0 0.0
  %6247 = vmatpush.msra.mxu0 0.0
  %6248 = vmatpush.msra.mxu0 0.0
  %6249 = vmatpush.msra.mxu0 0.0
  %6250 = vmatpush.msra.mxu0 0.0
  %6251 = vmatpush.msra.mxu0 0.0
  %6252 = vmatpush.msra.mxu0 0.0
  %6253 = vmatpush.msra.mxu0 0.0
  %6254 = vmatpush.msra.mxu0 0.0
  %6255 = vmatpush.msra.mxu0 0.0
  %6256 = vmatpush.msra.mxu0 0.0
  %6257 = vmatpush.msra.mxu0 0.0
  %v6258 = vand.u32 %v6143, 4294901760
  %6259 = vmatpush.msra.mxu0 %v6258
  %v6260 = vand.u32 %v6142, 4294901760
  %6261 = vmatpush.msra.mxu0 %v6260
  %v6262 = vand.u32 %v6141, 4294901760
  %6263 = vmatpush.msra.mxu0 %v6262
  %v6264 = vand.u32 %v6140, 4294901760
  %6265 = vmatpush.msra.mxu0 %v6264
  %v6266 = vand.u32 %v6144, 4294901760
  %v6267 = vsub.f32 %v6144, %v6266
  %v6268 = vand.u32 %v6267, 4294901760
  %6269 = vmatmul.f32.gmra.mxu0 %v6268
  %v6270 = vpop.f32.mrf.mxu0
  %v6271 = vadd.f32 %v6244, %v6270
  %6272 = vdwg.mxu0
  %6273 = vmatpush.msra.mxu0 0.0
  %6274 = vmatpush.msra.mxu0 0.0
  %6275 = vmatpush.msra.mxu0 0.0
  %6276 = vmatpush.msra.mxu0 0.0
  %6277 = vmatpush.msra.mxu0 0.0
  %6278 = vmatpush.msra.mxu0 0.0
  %6279 = vmatpush.msra.mxu0 0.0
  %6280 = vmatpush.msra.mxu0 0.0
  %6281 = vmatpush.msra.mxu0 0.0
  %6282 = vmatpush.msra.mxu0 0.0
  %6283 = vmatpush.msra.mxu0 0.0
  %6284 = vmatpush.msra.mxu0 0.0
  %v6285 = vand.u32 %v6143, 4294901760
  %v6286 = vsub.f32 %v6143, %v6285
  %v6287 = vand.u32 %v6286, 4294901760
  %6288 = vmatpush.msra.mxu0 %v6287
  %v6289 = vand.u32 %v6142, 4294901760
  %v6290 = vsub.f32 %v6142, %v6289
  %v6291 = vand.u32 %v6290, 4294901760
  %6292 = vmatpush.msra.mxu0 %v6291
  %v6293 = vand.u32 %v6141, 4294901760
  %v6294 = vsub.f32 %v6141, %v6293
  %v6295 = vand.u32 %v6294, 4294901760
  %6296 = vmatpush.msra.mxu0 %v6295
  %v6297 = vand.u32 %v6140, 4294901760
  %v6298 = vsub.f32 %v6140, %v6297
  %v6299 = vand.u32 %v6298, 4294901760
  %6300 = vmatpush.msra.mxu0 %v6299
  %v6301 = vand.u32 %v6144, 4294901760
  %6302 = vmatmul.f32.gmra.mxu0 %v6301
  %v6303 = vpop.f32.mrf.mxu0
  %v6304 = vadd.f32 %v6271, %v6303
  %6305 = vdwg.mxu0
  %6306 = vmatpush.msra.mxu0 0.0
  %6307 = vmatpush.msra.mxu0 0.0
  %6308 = vmatpush.msra.mxu0 0.0
  %6309 = vmatpush.msra.mxu0 0.0
  %6310 = vmatpush.msra.mxu0 0.0
  %6311 = vmatpush.msra.mxu0 0.0
  %6312 = vmatpush.msra.mxu0 0.0
  %6313 = vmatpush.msra.mxu0 0.0
  %6314 = vmatpush.msra.mxu0 0.0
  %6315 = vmatpush.msra.mxu0 0.0
  %6316 = vmatpush.msra.mxu0 0.0
  %6317 = vmatpush.msra.mxu0 0.0
  %v6318 = vand.u32 %v6143, 4294901760
  %6319 = vmatpush.msra.mxu0 %v6318
  %v6320 = vand.u32 %v6142, 4294901760
  %6321 = vmatpush.msra.mxu0 %v6320
  %v6322 = vand.u32 %v6141, 4294901760
  %6323 = vmatpush.msra.mxu0 %v6322
  %v6324 = vand.u32 %v6140, 4294901760
  %6325 = vmatpush.msra.mxu0 %v6324
  %v6326 = vand.u32 %v6144, 4294901760
  %6327 = vmatmul.f32.gmra.mxu0 %v6326
  %v6328 = vpop.f32.mrf.mxu0
  %v6329 = vadd.f32 %v6304, %v6328
  %6330 = vdwg.mxu0
  %v6331 = vadd.f32 %v6139, %v6329
  %v6332 = vxor.u32 %v6331, 2147483648
  %v6333 = vmul.f32 %v6332, 1.442695
  %v6334 = vpow.pop %v6333
  %v6335 = vadd.f32 %v6334, 1.0
  %v6336 = vrcp.pop %v6335
  %v6337 = vmul.f32 %v6335, %v6336
  %v6338 = vsub.f32 1.0, %v6337
  %v6339 = vmul.f32 %v6336, %v6338
  %v6340 = vadd.f32 %v6336, %v6339
  %vm6341 = vweird.f32 %v6335
  %vm6342 = vweird.f32 %v6336
  %vm6343 = vmor %vm6341, %vm6342
  %v6344 = vsel %vm6343, %v6336, %v6340
  %v6345 = vand.u32 2147483647, %v6335
  %vm6346 = vcmp.eq.f32.partialorder %v6345, 8.507059e+37
  %v6347 = vand.u32 %v6335, 2147483648
  %v6348 = vor.u32 1.1754944e-38, %v6347
  %v6349 = vsel %vm6346, %v6348, %v6344
  %v6350 = vmul.f32 1.0, %v6349
  %v6351 = vtanh.pop %v6331
  %v6352 = vmul.f32 %v6350, %v6126
  %6354 = vrot.lane.b32.xlu0 %v6351, 64
  %v6355 = vpop.permute.xlu0 %6354
  %v6357 = vmul.f32 %v6350, %v6355
  %6359 = vrot.lane.b32.xlu0 %v6357, 32
  %v6360 = vpop.permute.xlu0 %6359
  %v6362 = vadd.f32 %v6352, %v6360
  %v6363 = vtanh.pop %v6362
  %6365 = vrot.lane.b32.xlu0 %v6363, 64
  %v6366 = vpop.permute.xlu0 %6365
  %v6368 = vmul.f32 %v6350, %v6366
  %6370 = vrot.lane.b32.xlu0 %v6368, 32
  %v6371 = vpop.permute.xlu0 %6370
  %s6373 = scalar_lea.vmem %s4, 32
  %6374 = vst.msk [vmem:[%s6373] sm:$0xff] %vm44, %v6371
  %v6375 = vld [vmem:[%s1669] sm:$0xff]
  %v6376 = vld [vmem:[%s5191] sm:$0xff]
  %v6377 = vld [vmem:[%s5191 + $0x8] sm:$0xff]
  %v6378 = vld [vmem:[%s5191 + $0x10] sm:$0xff]
  %v6379 = vld [vmem:[%s5191 + $0x18] sm:$0xff]
  %v6380 = vsel %vm44, %v6371, 0
  %6382 = vmatpush.msra.mxu0 0.0
  %6383 = vmatpush.msra.mxu0 0.0
  %6384 = vmatpush.msra.mxu0 0.0
  %6385 = vmatpush.msra.mxu0 0.0
  %6386 = vmatpush.msra.mxu0 0.0
  %6387 = vmatpush.msra.mxu0 0.0
  %6388 = vmatpush.msra.mxu0 0.0
  %6389 = vmatpush.msra.mxu0 0.0
  %6390 = vmatpush.msra.mxu0 0.0
  %6391 = vmatpush.msra.mxu0 0.0
  %6392 = vmatpush.msra.mxu0 0.0
  %6393 = vmatpush.msra.mxu0 0.0
  %v6394 = vand.u32 %v6379, 4294901760
  %6395 = vmatpush.msra.mxu0 %v6394
  %v6396 = vand.u32 %v6378, 4294901760
  %6397 = vmatpush.msra.mxu0 %v6396
  %v6398 = vand.u32 %v6377, 4294901760
  %6399 = vmatpush.msra.mxu0 %v6398
  %v6400 = vand.u32 %v6376, 4294901760
  %6401 = vmatpush.msra.mxu0 %v6400
  %v6402 = vand.u32 %v6380, 4294901760
  %v6403 = vsub.f32 %v6380, %v6402
  %v6404 = vand.u32 %v6403, 4294901760
  %v6405 = vsub.f32 %v6403, %v6404
  %v6406 = vand.u32 %v6405, 4294901760
  %6407 = vmatmul.f32.gmra.mxu0 %v6406
  %v6408 = vpop.f32.mrf.mxu0
  %v6409 = vadd.f32 0.0, %v6408
  %6410 = vdwg.mxu0
  %6411 = vmatpush.msra.mxu0 0.0
  %6412 = vmatpush.msra.mxu0 0.0
  %6413 = vmatpush.msra.mxu0 0.0
  %6414 = vmatpush.msra.mxu0 0.0
  %6415 = vmatpush.msra.mxu0 0.0
  %6416 = vmatpush.msra.mxu0 0.0
  %6417 = vmatpush.msra.mxu0 0.0
  %6418 = vmatpush.msra.mxu0 0.0
  %6419 = vmatpush.msra.mxu0 0.0
  %6420 = vmatpush.msra.mxu0 0.0
  %6421 = vmatpush.msra.mxu0 0.0
  %6422 = vmatpush.msra.mxu0 0.0
  %v6423 = vand.u32 %v6379, 4294901760
  %v6424 = vsub.f32 %v6379, %v6423
  %v6425 = vand.u32 %v6424, 4294901760
  %v6426 = vsub.f32 %v6424, %v6425
  %v6427 = vand.u32 %v6426, 4294901760
  %6428 = vmatpush.msra.mxu0 %v6427
  %v6429 = vand.u32 %v6378, 4294901760
  %v6430 = vsub.f32 %v6378, %v6429
  %v6431 = vand.u32 %v6430, 4294901760
  %v6432 = vsub.f32 %v6430, %v6431
  %v6433 = vand.u32 %v6432, 4294901760
  %6434 = vmatpush.msra.mxu0 %v6433
  %v6435 = vand.u32 %v6377, 4294901760
  %v6436 = vsub.f32 %v6377, %v6435
  %v6437 = vand.u32 %v6436, 4294901760
  %v6438 = vsub.f32 %v6436, %v6437
  %v6439 = vand.u32 %v6438, 4294901760
  %6440 = vmatpush.msra.mxu0 %v6439
  %v6441 = vand.u32 %v6376, 4294901760
  %v6442 = vsub.f32 %v6376, %v6441
  %v6443 = vand.u32 %v6442, 4294901760
  %v6444 = vsub.f32 %v6442, %v6443
  %v6445 = vand.u32 %v6444, 4294901760
  %6446 = vmatpush.msra.mxu0 %v6445
  %v6447 = vand.u32 %v6380, 4294901760
  %6448 = vmatmul.f32.gmra.mxu0 %v6447
  %v6449 = vpop.f32.mrf.mxu0
  %v6450 = vadd.f32 %v6409, %v6449
  %6451 = vdwg.mxu0
  %6452 = vmatpush.msra.mxu0 0.0
  %6453 = vmatpush.msra.mxu0 0.0
  %6454 = vmatpush.msra.mxu0 0.0
  %6455 = vmatpush.msra.mxu0 0.0
  %6456 = vmatpush.msra.mxu0 0.0
  %6457 = vmatpush.msra.mxu0 0.0
  %6458 = vmatpush.msra.mxu0 0.0
  %6459 = vmatpush.msra.mxu0 0.0
  %6460 = vmatpush.msra.mxu0 0.0
  %6461 = vmatpush.msra.mxu0 0.0
  %6462 = vmatpush.msra.mxu0 0.0
  %6463 = vmatpush.msra.mxu0 0.0
  %v6464 = vand.u32 %v6379, 4294901760
  %v6465 = vsub.f32 %v6379, %v6464
  %6466 = vmatpush.msra.mxu0 %v6465
  %v6467 = vand.u32 %v6378, 4294901760
  %v6468 = vsub.f32 %v6378, %v6467
  %6469 = vmatpush.msra.mxu0 %v6468
  %v6470 = vand.u32 %v6377, 4294901760
  %v6471 = vsub.f32 %v6377, %v6470
  %6472 = vmatpush.msra.mxu0 %v6471
  %v6473 = vand.u32 %v6376, 4294901760
  %v6474 = vsub.f32 %v6376, %v6473
  %6475 = vmatpush.msra.mxu0 %v6474
  %v6476 = vand.u32 %v6380, 4294901760
  %v6477 = vsub.f32 %v6380, %v6476
  %6478 = vmatmul.f32.gmra.mxu0 %v6477
  %v6479 = vpop.f32.mrf.mxu0
  %v6480 = vadd.f32 %v6450, %v6479
  %6481 = vdwg.mxu0
  %6482 = vmatpush.msra.mxu0 0.0
  %6483 = vmatpush.msra.mxu0 0.0
  %6484 = vmatpush.msra.mxu0 0.0
  %6485 = vmatpush.msra.mxu0 0.0
  %6486 = vmatpush.msra.mxu0 0.0
  %6487 = vmatpush.msra.mxu0 0.0
  %6488 = vmatpush.msra.mxu0 0.0
  %6489 = vmatpush.msra.mxu0 0.0
  %6490 = vmatpush.msra.mxu0 0.0
  %6491 = vmatpush.msra.mxu0 0.0
  %6492 = vmatpush.msra.mxu0 0.0
  %6493 = vmatpush.msra.mxu0 0.0
  %v6494 = vand.u32 %v6379, 4294901760
  %6495 = vmatpush.msra.mxu0 %v6494
  %v6496 = vand.u32 %v6378, 4294901760
  %6497 = vmatpush.msra.mxu0 %v6496
  %v6498 = vand.u32 %v6377, 4294901760
  %6499 = vmatpush.msra.mxu0 %v6498
  %v6500 = vand.u32 %v6376, 4294901760
  %6501 = vmatpush.msra.mxu0 %v6500
  %v6502 = vand.u32 %v6380, 4294901760
  %v6503 = vsub.f32 %v6380, %v6502
  %v6504 = vand.u32 %v6503, 4294901760
  %6505 = vmatmul.f32.gmra.mxu0 %v6504
  %v6506 = vpop.f32.mrf.mxu0
  %v6507 = vadd.f32 %v6480, %v6506
  %6508 = vdwg.mxu0
  %6509 = vmatpush.msra.mxu0 0.0
  %6510 = vmatpush.msra.mxu0 0.0
  %6511 = vmatpush.msra.mxu0 0.0
  %6512 = vmatpush.msra.mxu0 0.0
  %6513 = vmatpush.msra.mxu0 0.0
  %6514 = vmatpush.msra.mxu0 0.0
  %6515 = vmatpush.msra.mxu0 0.0
  %6516 = vmatpush.msra.mxu0 0.0
  %6517 = vmatpush.msra.mxu0 0.0
  %6518 = vmatpush.msra.mxu0 0.0
  %6519 = vmatpush.msra.mxu0 0.0
  %6520 = vmatpush.msra.mxu0 0.0
  %v6521 = vand.u32 %v6379, 4294901760
  %v6522 = vsub.f32 %v6379, %v6521
  %v6523 = vand.u32 %v6522, 4294901760
  %6524 = vmatpush.msra.mxu0 %v6523
  %v6525 = vand.u32 %v6378, 4294901760
  %v6526 = vsub.f32 %v6378, %v6525
  %v6527 = vand.u32 %v6526, 4294901760
  %6528 = vmatpush.msra.mxu0 %v6527
  %v6529 = vand.u32 %v6377, 4294901760
  %v6530 = vsub.f32 %v6377, %v6529
  %v6531 = vand.u32 %v6530, 4294901760
  %6532 = vmatpush.msra.mxu0 %v6531
  %v6533 = vand.u32 %v6376, 4294901760
  %v6534 = vsub.f32 %v6376, %v6533
  %v6535 = vand.u32 %v6534, 4294901760
  %6536 = vmatpush.msra.mxu0 %v6535
  %v6537 = vand.u32 %v6380, 4294901760
  %6538 = vmatmul.f32.gmra.mxu0 %v6537
  %v6539 = vpop.f32.mrf.mxu0
  %v6540 = vadd.f32 %v6507, %v6539
  %6541 = vdwg.mxu0
  %6542 = vmatpush.msra.mxu0 0.0
  %6543 = vmatpush.msra.mxu0 0.0
  %6544 = vmatpush.msra.mxu0 0.0
  %6545 = vmatpush.msra.mxu0 0.0
  %6546 = vmatpush.msra.mxu0 0.0
  %6547 = vmatpush.msra.mxu0 0.0
  %6548 = vmatpush.msra.mxu0 0.0
  %6549 = vmatpush.msra.mxu0 0.0
  %6550 = vmatpush.msra.mxu0 0.0
  %6551 = vmatpush.msra.mxu0 0.0
  %6552 = vmatpush.msra.mxu0 0.0
  %6553 = vmatpush.msra.mxu0 0.0
  %v6554 = vand.u32 %v6379, 4294901760
  %6555 = vmatpush.msra.mxu0 %v6554
  %v6556 = vand.u32 %v6378, 4294901760
  %6557 = vmatpush.msra.mxu0 %v6556
  %v6558 = vand.u32 %v6377, 4294901760
  %6559 = vmatpush.msra.mxu0 %v6558
  %v6560 = vand.u32 %v6376, 4294901760
  %6561 = vmatpush.msra.mxu0 %v6560
  %v6562 = vand.u32 %v6380, 4294901760
  %6563 = vmatmul.f32.gmra.mxu0 %v6562
  %v6564 = vpop.f32.mrf.mxu0
  %v6565 = vadd.f32 %v6540, %v6564
  %6566 = vdwg.mxu0
  %v6567 = vadd.f32 %v6375, %v6565
  %v6568 = vxor.u32 %v6567, 2147483648
  %v6569 = vmul.f32 %v6568, 1.442695
  %v6570 = vpow.pop %v6569
  %v6571 = vadd.f32 %v6570, 1.0
  %v6572 = vrcp.pop %v6571
  %v6573 = vmul.f32 %v6571, %v6572
  %v6574 = vsub.f32 1.0, %v6573
  %v6575 = vmul.f32 %v6572, %v6574
  %v6576 = vadd.f32 %v6572, %v6575
  %vm6577 = vweird.f32 %v6571
  %vm6578 = vweird.f32 %v6572
  %vm6579 = vmor %vm6577, %vm6578
  %v6580 = vsel %vm6579, %v6572, %v6576
  %v6581 = vand.u32 2147483647, %v6571
  %vm6582 = vcmp.eq.f32.partialorder %v6581, 8.507059e+37
  %v6583 = vand.u32 %v6571, 2147483648
  %v6584 = vor.u32 1.1754944e-38, %v6583
  %v6585 = vsel %vm6582, %v6584, %v6580
  %v6586 = vmul.f32 1.0, %v6585
  %v6587 = vtanh.pop %v6567
  %v6588 = vmul.f32 %v6586, %v6362
  %6590 = vrot.lane.b32.xlu0 %v6587, 64
  %v6591 = vpop.permute.xlu0 %6590
  %v6593 = vmul.f32 %v6586, %v6591
  %6595 = vrot.lane.b32.xlu0 %v6593, 32
  %v6596 = vpop.permute.xlu0 %6595
  %v6598 = vadd.f32 %v6588, %v6596
  %v6599 = vtanh.pop %v6598
  %6601 = vrot.lane.b32.xlu0 %v6599, 64
  %v6602 = vpop.permute.xlu0 %6601
  %v6604 = vmul.f32 %v6586, %v6602
  %6606 = vrot.lane.b32.xlu0 %v6604, 32
  %v6607 = vpop.permute.xlu0 %6606
  %s6609 = scalar_lea.vmem %s4, 40
  %6610 = vst.msk [vmem:[%s6609] sm:$0xff] %vm44, %v6607
  %v6611 = vld [vmem:[%s1906] sm:$0xff]
  %v6612 = vld [vmem:[%s5191] sm:$0xff]
  %v6613 = vld [vmem:[%s5191 + $0x8] sm:$0xff]
  %v6614 = vld [vmem:[%s5191 + $0x10] sm:$0xff]
  %v6615 = vld [vmem:[%s5191 + $0x18] sm:$0xff]
  %v6616 = vsel %vm44, %v6607, 0
  %6618 = vmatpush.msra.mxu0 0.0
  %6619 = vmatpush.msra.mxu0 0.0
  %6620 = vmatpush.msra.mxu0 0.0
  %6621 = vmatpush.msra.mxu0 0.0
  %6622 = vmatpush.msra.mxu0 0.0
  %6623 = vmatpush.msra.mxu0 0.0
  %6624 = vmatpush.msra.mxu0 0.0
  %6625 = vmatpush.msra.mxu0 0.0
  %6626 = vmatpush.msra.mxu0 0.0
  %6627 = vmatpush.msra.mxu0 0.0
  %6628 = vmatpush.msra.mxu0 0.0
  %6629 = vmatpush.msra.mxu0 0.0
  %v6630 = vand.u32 %v6615, 4294901760
  %6631 = vmatpush.msra.mxu0 %v6630
  %v6632 = vand.u32 %v6614, 4294901760
  %6633 = vmatpush.msra.mxu0 %v6632
  %v6634 = vand.u32 %v6613, 4294901760
  %6635 = vmatpush.msra.mxu0 %v6634
  %v6636 = vand.u32 %v6612, 4294901760
  %6637 = vmatpush.msra.mxu0 %v6636
  %v6638 = vand.u32 %v6616, 4294901760
  %v6639 = vsub.f32 %v6616, %v6638
  %v6640 = vand.u32 %v6639, 4294901760
  %v6641 = vsub.f32 %v6639, %v6640
  %v6642 = vand.u32 %v6641, 4294901760
  %6643 = vmatmul.f32.gmra.mxu0 %v6642
  %v6644 = vpop.f32.mrf.mxu0
  %v6645 = vadd.f32 0.0, %v6644
  %6646 = vdwg.mxu0
  %6647 = vmatpush.msra.mxu0 0.0
  %6648 = vmatpush.msra.mxu0 0.0
  %6649 = vmatpush.msra.mxu0 0.0
  %6650 = vmatpush.msra.mxu0 0.0
  %6651 = vmatpush.msra.mxu0 0.0
  %6652 = vmatpush.msra.mxu0 0.0
  %6653 = vmatpush.msra.mxu0 0.0
  %6654 = vmatpush.msra.mxu0 0.0
  %6655 = vmatpush.msra.mxu0 0.0
  %6656 = vmatpush.msra.mxu0 0.0
  %6657 = vmatpush.msra.mxu0 0.0
  %6658 = vmatpush.msra.mxu0 0.0
  %v6659 = vand.u32 %v6615, 4294901760
  %v6660 = vsub.f32 %v6615, %v6659
  %v6661 = vand.u32 %v6660, 4294901760
  %v6662 = vsub.f32 %v6660, %v6661
  %v6663 = vand.u32 %v6662, 4294901760
  %6664 = vmatpush.msra.mxu0 %v6663
  %v6665 = vand.u32 %v6614, 4294901760
  %v6666 = vsub.f32 %v6614, %v6665
  %v6667 = vand.u32 %v6666, 4294901760
  %v6668 = vsub.f32 %v6666, %v6667
  %v6669 = vand.u32 %v6668, 4294901760
  %6670 = vmatpush.msra.mxu0 %v6669
  %v6671 = vand.u32 %v6613, 4294901760
  %v6672 = vsub.f32 %v6613, %v6671
  %v6673 = vand.u32 %v6672, 4294901760
  %v6674 = vsub.f32 %v6672, %v6673
  %v6675 = vand.u32 %v6674, 4294901760
  %6676 = vmatpush.msra.mxu0 %v6675
  %v6677 = vand.u32 %v6612, 4294901760
  %v6678 = vsub.f32 %v6612, %v6677
  %v6679 = vand.u32 %v6678, 4294901760
  %v6680 = vsub.f32 %v6678, %v6679
  %v6681 = vand.u32 %v6680, 4294901760
  %6682 = vmatpush.msra.mxu0 %v6681
  %v6683 = vand.u32 %v6616, 4294901760
  %6684 = vmatmul.f32.gmra.mxu0 %v6683
  %v6685 = vpop.f32.mrf.mxu0
  %v6686 = vadd.f32 %v6645, %v6685
  %6687 = vdwg.mxu0
  %6688 = vmatpush.msra.mxu0 0.0
  %6689 = vmatpush.msra.mxu0 0.0
  %6690 = vmatpush.msra.mxu0 0.0
  %6691 = vmatpush.msra.mxu0 0.0
  %6692 = vmatpush.msra.mxu0 0.0
  %6693 = vmatpush.msra.mxu0 0.0
  %6694 = vmatpush.msra.mxu0 0.0
  %6695 = vmatpush.msra.mxu0 0.0
  %6696 = vmatpush.msra.mxu0 0.0
  %6697 = vmatpush.msra.mxu0 0.0
  %6698 = vmatpush.msra.mxu0 0.0
  %6699 = vmatpush.msra.mxu0 0.0
  %v6700 = vand.u32 %v6615, 4294901760
  %v6701 = vsub.f32 %v6615, %v6700
  %6702 = vmatpush.msra.mxu0 %v6701
  %v6703 = vand.u32 %v6614, 4294901760
  %v6704 = vsub.f32 %v6614, %v6703
  %6705 = vmatpush.msra.mxu0 %v6704
  %v6706 = vand.u32 %v6613, 4294901760
  %v6707 = vsub.f32 %v6613, %v6706
  %6708 = vmatpush.msra.mxu0 %v6707
  %v6709 = vand.u32 %v6612, 4294901760
  %v6710 = vsub.f32 %v6612, %v6709
  %6711 = vmatpush.msra.mxu0 %v6710
  %v6712 = vand.u32 %v6616, 4294901760
  %v6713 = vsub.f32 %v6616, %v6712
  %6714 = vmatmul.f32.gmra.mxu0 %v6713
  %v6715 = vpop.f32.mrf.mxu0
  %v6716 = vadd.f32 %v6686, %v6715
  %6717 = vdwg.mxu0
  %6718 = vmatpush.msra.mxu0 0.0
  %6719 = vmatpush.msra.mxu0 0.0
  %6720 = vmatpush.msra.mxu0 0.0
  %6721 = vmatpush.msra.mxu0 0.0
  %6722 = vmatpush.msra.mxu0 0.0
  %6723 = vmatpush.msra.mxu0 0.0
  %6724 = vmatpush.msra.mxu0 0.0
  %6725 = vmatpush.msra.mxu0 0.0
  %6726 = vmatpush.msra.mxu0 0.0
  %6727 = vmatpush.msra.mxu0 0.0
  %6728 = vmatpush.msra.mxu0 0.0
  %6729 = vmatpush.msra.mxu0 0.0
  %v6730 = vand.u32 %v6615, 4294901760
  %6731 = vmatpush.msra.mxu0 %v6730
  %v6732 = vand.u32 %v6614, 4294901760
  %6733 = vmatpush.msra.mxu0 %v6732
  %v6734 = vand.u32 %v6613, 4294901760
  %6735 = vmatpush.msra.mxu0 %v6734
  %v6736 = vand.u32 %v6612, 4294901760
  %6737 = vmatpush.msra.mxu0 %v6736
  %v6738 = vand.u32 %v6616, 4294901760
  %v6739 = vsub.f32 %v6616, %v6738
  %v6740 = vand.u32 %v6739, 4294901760
  %6741 = vmatmul.f32.gmra.mxu0 %v6740
  %v6742 = vpop.f32.mrf.mxu0
  %v6743 = vadd.f32 %v6716, %v6742
  %6744 = vdwg.mxu0
  %6745 = vmatpush.msra.mxu0 0.0
  %6746 = vmatpush.msra.mxu0 0.0
  %6747 = vmatpush.msra.mxu0 0.0
  %6748 = vmatpush.msra.mxu0 0.0
  %6749 = vmatpush.msra.mxu0 0.0
  %6750 = vmatpush.msra.mxu0 0.0
  %6751 = vmatpush.msra.mxu0 0.0
  %6752 = vmatpush.msra.mxu0 0.0
  %6753 = vmatpush.msra.mxu0 0.0
  %6754 = vmatpush.msra.mxu0 0.0
  %6755 = vmatpush.msra.mxu0 0.0
  %6756 = vmatpush.msra.mxu0 0.0
  %v6757 = vand.u32 %v6615, 4294901760
  %v6758 = vsub.f32 %v6615, %v6757
  %v6759 = vand.u32 %v6758, 4294901760
  %6760 = vmatpush.msra.mxu0 %v6759
  %v6761 = vand.u32 %v6614, 4294901760
  %v6762 = vsub.f32 %v6614, %v6761
  %v6763 = vand.u32 %v6762, 4294901760
  %6764 = vmatpush.msra.mxu0 %v6763
  %v6765 = vand.u32 %v6613, 4294901760
  %v6766 = vsub.f32 %v6613, %v6765
  %v6767 = vand.u32 %v6766, 4294901760
  %6768 = vmatpush.msra.mxu0 %v6767
  %v6769 = vand.u32 %v6612, 4294901760
  %v6770 = vsub.f32 %v6612, %v6769
  %v6771 = vand.u32 %v6770, 4294901760
  %6772 = vmatpush.msra.mxu0 %v6771
  %v6773 = vand.u32 %v6616, 4294901760
  %6774 = vmatmul.f32.gmra.mxu0 %v6773
  %v6775 = vpop.f32.mrf.mxu0
  %v6776 = vadd.f32 %v6743, %v6775
  %6777 = vdwg.mxu0
  %6778 = vmatpush.msra.mxu0 0.0
  %6779 = vmatpush.msra.mxu0 0.0
  %6780 = vmatpush.msra.mxu0 0.0
  %6781 = vmatpush.msra.mxu0 0.0
  %6782 = vmatpush.msra.mxu0 0.0
  %6783 = vmatpush.msra.mxu0 0.0
  %6784 = vmatpush.msra.mxu0 0.0
  %6785 = vmatpush.msra.mxu0 0.0
  %6786 = vmatpush.msra.mxu0 0.0
  %6787 = vmatpush.msra.mxu0 0.0
  %6788 = vmatpush.msra.mxu0 0.0
  %6789 = vmatpush.msra.mxu0 0.0
  %v6790 = vand.u32 %v6615, 4294901760
  %6791 = vmatpush.msra.mxu0 %v6790
  %v6792 = vand.u32 %v6614, 4294901760
  %6793 = vmatpush.msra.mxu0 %v6792
  %v6794 = vand.u32 %v6613, 4294901760
  %6795 = vmatpush.msra.mxu0 %v6794
  %v6796 = vand.u32 %v6612, 4294901760
  %6797 = vmatpush.msra.mxu0 %v6796
  %v6798 = vand.u32 %v6616, 4294901760
  %6799 = vmatmul.f32.gmra.mxu0 %v6798
  %v6800 = vpop.f32.mrf.mxu0
  %v6801 = vadd.f32 %v6776, %v6800
  %6802 = vdwg.mxu0
  %v6803 = vadd.f32 %v6611, %v6801
  %v6804 = vxor.u32 %v6803, 2147483648
  %v6805 = vmul.f32 %v6804, 1.442695
  %v6806 = vpow.pop %v6805
  %v6807 = vadd.f32 %v6806, 1.0
  %v6808 = vrcp.pop %v6807
  %v6809 = vmul.f32 %v6807, %v6808
  %v6810 = vsub.f32 1.0, %v6809
  %v6811 = vmul.f32 %v6808, %v6810
  %v6812 = vadd.f32 %v6808, %v6811
  %vm6813 = vweird.f32 %v6807
  %vm6814 = vweird.f32 %v6808
  %vm6815 = vmor %vm6813, %vm6814
  %v6816 = vsel %vm6815, %v6808, %v6812
  %v6817 = vand.u32 2147483647, %v6807
  %vm6818 = vcmp.eq.f32.partialorder %v6817, 8.507059e+37
  %v6819 = vand.u32 %v6807, 2147483648
  %v6820 = vor.u32 1.1754944e-38, %v6819
  %v6821 = vsel %vm6818, %v6820, %v6816
  %v6822 = vmul.f32 1.0, %v6821
  %v6823 = vtanh.pop %v6803
  %v6824 = vmul.f32 %v6822, %v6598
  %6826 = vrot.lane.b32.xlu0 %v6823, 64
  %v6827 = vpop.permute.xlu0 %6826
  %v6829 = vmul.f32 %v6822, %v6827
  %6831 = vrot.lane.b32.xlu0 %v6829, 32
  %v6832 = vpop.permute.xlu0 %6831
  %v6834 = vadd.f32 %v6824, %v6832
  %v6835 = vtanh.pop %v6834
  %6837 = vrot.lane.b32.xlu0 %v6835, 64
  %v6838 = vpop.permute.xlu0 %6837
  %v6840 = vmul.f32 %v6822, %v6838
  %6842 = vrot.lane.b32.xlu0 %v6840, 32
  %v6843 = vpop.permute.xlu0 %6842
  %s6845 = scalar_lea.vmem %s4, 48
  %6846 = vst.msk [vmem:[%s6845] sm:$0xff] %vm44, %v6843
  %v6847 = vld [vmem:[%s2143] sm:$0xff]
  %v6848 = vld [vmem:[%s5191] sm:$0xff]
  %v6849 = vld [vmem:[%s5191 + $0x8] sm:$0xff]
  %v6850 = vld [vmem:[%s5191 + $0x10] sm:$0xff]
  %v6851 = vld [vmem:[%s5191 + $0x18] sm:$0xff]
  %v6852 = vsel %vm44, %v6843, 0
  %6854 = vmatpush.msra.mxu0 0.0
  %6855 = vmatpush.msra.mxu0 0.0
  %6856 = vmatpush.msra.mxu0 0.0
  %6857 = vmatpush.msra.mxu0 0.0
  %6858 = vmatpush.msra.mxu0 0.0
  %6859 = vmatpush.msra.mxu0 0.0
  %6860 = vmatpush.msra.mxu0 0.0
  %6861 = vmatpush.msra.mxu0 0.0
  %6862 = vmatpush.msra.mxu0 0.0
  %6863 = vmatpush.msra.mxu0 0.0
  %6864 = vmatpush.msra.mxu0 0.0
  %6865 = vmatpush.msra.mxu0 0.0
  %v6866 = vand.u32 %v6851, 4294901760
  %6867 = vmatpush.msra.mxu0 %v6866
  %v6868 = vand.u32 %v6850, 4294901760
  %6869 = vmatpush.msra.mxu0 %v6868
  %v6870 = vand.u32 %v6849, 4294901760
  %6871 = vmatpush.msra.mxu0 %v6870
  %v6872 = vand.u32 %v6848, 4294901760
  %6873 = vmatpush.msra.mxu0 %v6872
  %v6874 = vand.u32 %v6852, 4294901760
  %v6875 = vsub.f32 %v6852, %v6874
  %v6876 = vand.u32 %v6875, 4294901760
  %v6877 = vsub.f32 %v6875, %v6876
  %v6878 = vand.u32 %v6877, 4294901760
  %6879 = vmatmul.f32.gmra.mxu0 %v6878
  %v6880 = vpop.f32.mrf.mxu0
  %v6881 = vadd.f32 0.0, %v6880
  %6882 = vdwg.mxu0
  %6883 = vmatpush.msra.mxu0 0.0
  %6884 = vmatpush.msra.mxu0 0.0
  %6885 = vmatpush.msra.mxu0 0.0
  %6886 = vmatpush.msra.mxu0 0.0
  %6887 = vmatpush.msra.mxu0 0.0
  %6888 = vmatpush.msra.mxu0 0.0
  %6889 = vmatpush.msra.mxu0 0.0
  %6890 = vmatpush.msra.mxu0 0.0
  %6891 = vmatpush.msra.mxu0 0.0
  %6892 = vmatpush.msra.mxu0 0.0
  %6893 = vmatpush.msra.mxu0 0.0
  %6894 = vmatpush.msra.mxu0 0.0
  %v6895 = vand.u32 %v6851, 4294901760
  %v6896 = vsub.f32 %v6851, %v6895
  %v6897 = vand.u32 %v6896, 4294901760
  %v6898 = vsub.f32 %v6896, %v6897
  %v6899 = vand.u32 %v6898, 4294901760
  %6900 = vmatpush.msra.mxu0 %v6899
  %v6901 = vand.u32 %v6850, 4294901760
  %v6902 = vsub.f32 %v6850, %v6901
  %v6903 = vand.u32 %v6902, 4294901760
  %v6904 = vsub.f32 %v6902, %v6903
  %v6905 = vand.u32 %v6904, 4294901760
  %6906 = vmatpush.msra.mxu0 %v6905
  %v6907 = vand.u32 %v6849, 4294901760
  %v6908 = vsub.f32 %v6849, %v6907
  %v6909 = vand.u32 %v6908, 4294901760
  %v6910 = vsub.f32 %v6908, %v6909
  %v6911 = vand.u32 %v6910, 4294901760
  %6912 = vmatpush.msra.mxu0 %v6911
  %v6913 = vand.u32 %v6848, 4294901760
  %v6914 = vsub.f32 %v6848, %v6913
  %v6915 = vand.u32 %v6914, 4294901760
  %v6916 = vsub.f32 %v6914, %v6915
  %v6917 = vand.u32 %v6916, 4294901760
  %6918 = vmatpush.msra.mxu0 %v6917
  %v6919 = vand.u32 %v6852, 4294901760
  %6920 = vmatmul.f32.gmra.mxu0 %v6919
  %v6921 = vpop.f32.mrf.mxu0
  %v6922 = vadd.f32 %v6881, %v6921
  %6923 = vdwg.mxu0
  %6924 = vmatpush.msra.mxu0 0.0
  %6925 = vmatpush.msra.mxu0 0.0
  %6926 = vmatpush.msra.mxu0 0.0
  %6927 = vmatpush.msra.mxu0 0.0
  %6928 = vmatpush.msra.mxu0 0.0
  %6929 = vmatpush.msra.mxu0 0.0
  %6930 = vmatpush.msra.mxu0 0.0
  %6931 = vmatpush.msra.mxu0 0.0
  %6932 = vmatpush.msra.mxu0 0.0
  %6933 = vmatpush.msra.mxu0 0.0
  %6934 = vmatpush.msra.mxu0 0.0
  %6935 = vmatpush.msra.mxu0 0.0
  %v6936 = vand.u32 %v6851, 4294901760
  %v6937 = vsub.f32 %v6851, %v6936
  %6938 = vmatpush.msra.mxu0 %v6937
  %v6939 = vand.u32 %v6850, 4294901760
  %v6940 = vsub.f32 %v6850, %v6939
  %6941 = vmatpush.msra.mxu0 %v6940
  %v6942 = vand.u32 %v6849, 4294901760
  %v6943 = vsub.f32 %v6849, %v6942
  %6944 = vmatpush.msra.mxu0 %v6943
  %v6945 = vand.u32 %v6848, 4294901760
  %v6946 = vsub.f32 %v6848, %v6945
  %6947 = vmatpush.msra.mxu0 %v6946
  %v6948 = vand.u32 %v6852, 4294901760
  %v6949 = vsub.f32 %v6852, %v6948
  %6950 = vmatmul.f32.gmra.mxu0 %v6949
  %v6951 = vpop.f32.mrf.mxu0
  %v6952 = vadd.f32 %v6922, %v6951
  %6953 = vdwg.mxu0
  %6954 = vmatpush.msra.mxu0 0.0
  %6955 = vmatpush.msra.mxu0 0.0
  %6956 = vmatpush.msra.mxu0 0.0
  %6957 = vmatpush.msra.mxu0 0.0
  %6958 = vmatpush.msra.mxu0 0.0
  %6959 = vmatpush.msra.mxu0 0.0
  %6960 = vmatpush.msra.mxu0 0.0
  %6961 = vmatpush.msra.mxu0 0.0
  %6962 = vmatpush.msra.mxu0 0.0
  %6963 = vmatpush.msra.mxu0 0.0
  %6964 = vmatpush.msra.mxu0 0.0
  %6965 = vmatpush.msra.mxu0 0.0
  %v6966 = vand.u32 %v6851, 4294901760
  %6967 = vmatpush.msra.mxu0 %v6966
  %v6968 = vand.u32 %v6850, 4294901760
  %6969 = vmatpush.msra.mxu0 %v6968
  %v6970 = vand.u32 %v6849, 4294901760
  %6971 = vmatpush.msra.mxu0 %v6970
  %v6972 = vand.u32 %v6848, 4294901760
  %6973 = vmatpush.msra.mxu0 %v6972
  %v6974 = vand.u32 %v6852, 4294901760
  %v6975 = vsub.f32 %v6852, %v6974
  %v6976 = vand.u32 %v6975, 4294901760
  %6977 = vmatmul.f32.gmra.mxu0 %v6976
  %v6978 = vpop.f32.mrf.mxu0
  %v6979 = vadd.f32 %v6952, %v6978
  %6980 = vdwg.mxu0
  %6981 = vmatpush.msra.mxu0 0.0
  %6982 = vmatpush.msra.mxu0 0.0
  %6983 = vmatpush.msra.mxu0 0.0
  %6984 = vmatpush.msra.mxu0 0.0
  %6985 = vmatpush.msra.mxu0 0.0
  %6986 = vmatpush.msra.mxu0 0.0
  %6987 = vmatpush.msra.mxu0 0.0
  %6988 = vmatpush.msra.mxu0 0.0
  %6989 = vmatpush.msra.mxu0 0.0
  %6990 = vmatpush.msra.mxu0 0.0
  %6991 = vmatpush.msra.mxu0 0.0
  %6992 = vmatpush.msra.mxu0 0.0
  %v6993 = vand.u32 %v6851, 4294901760
  %v6994 = vsub.f32 %v6851, %v6993
  %v6995 = vand.u32 %v6994, 4294901760
  %6996 = vmatpush.msra.mxu0 %v6995
  %v6997 = vand.u32 %v6850, 4294901760
  %v6998 = vsub.f32 %v6850, %v6997
  %v6999 = vand.u32 %v6998, 4294901760
  %7000 = vmatpush.msra.mxu0 %v6999
  %v7001 = vand.u32 %v6849, 4294901760
  %v7002 = vsub.f32 %v6849, %v7001
  %v7003 = vand.u32 %v7002, 4294901760
  %7004 = vmatpush.msra.mxu0 %v7003
  %v7005 = vand.u32 %v6848, 4294901760
  %v7006 = vsub.f32 %v6848, %v7005
  %v7007 = vand.u32 %v7006, 4294901760
  %7008 = vmatpush.msra.mxu0 %v7007
  %v7009 = vand.u32 %v6852, 4294901760
  %7010 = vmatmul.f32.gmra.mxu0 %v7009
  %v7011 = vpop.f32.mrf.mxu0
  %v7012 = vadd.f32 %v6979, %v7011
  %7013 = vdwg.mxu0
  %7014 = vmatpush.msra.mxu0 0.0
  %7015 = vmatpush.msra.mxu0 0.0
  %7016 = vmatpush.msra.mxu0 0.0
  %7017 = vmatpush.msra.mxu0 0.0
  %7018 = vmatpush.msra.mxu0 0.0
  %7019 = vmatpush.msra.mxu0 0.0
  %7020 = vmatpush.msra.mxu0 0.0
  %7021 = vmatpush.msra.mxu0 0.0
  %7022 = vmatpush.msra.mxu0 0.0
  %7023 = vmatpush.msra.mxu0 0.0
  %7024 = vmatpush.msra.mxu0 0.0
  %7025 = vmatpush.msra.mxu0 0.0
  %v7026 = vand.u32 %v6851, 4294901760
  %7027 = vmatpush.msra.mxu0 %v7026
  %v7028 = vand.u32 %v6850, 4294901760
  %7029 = vmatpush.msra.mxu0 %v7028
  %v7030 = vand.u32 %v6849, 4294901760
  %7031 = vmatpush.msra.mxu0 %v7030
  %v7032 = vand.u32 %v6848, 4294901760
  %7033 = vmatpush.msra.mxu0 %v7032
  %v7034 = vand.u32 %v6852, 4294901760
  %7035 = vmatmul.f32.gmra.mxu0 %v7034
  %v7036 = vpop.f32.mrf.mxu0
  %v7037 = vadd.f32 %v7012, %v7036
  %7038 = vdwg.mxu0
  %v7039 = vadd.f32 %v6847, %v7037
  %v7040 = vxor.u32 %v7039, 2147483648
  %v7041 = vmul.f32 %v7040, 1.442695
  %v7042 = vpow.pop %v7041
  %v7043 = vadd.f32 %v7042, 1.0
  %v7044 = vrcp.pop %v7043
  %v7045 = vmul.f32 %v7043, %v7044
  %v7046 = vsub.f32 1.0, %v7045
  %v7047 = vmul.f32 %v7044, %v7046
  %v7048 = vadd.f32 %v7044, %v7047
  %vm7049 = vweird.f32 %v7043
  %vm7050 = vweird.f32 %v7044
  %vm7051 = vmor %vm7049, %vm7050
  %v7052 = vsel %vm7051, %v7044, %v7048
  %v7053 = vand.u32 2147483647, %v7043
  %vm7054 = vcmp.eq.f32.partialorder %v7053, 8.507059e+37
  %v7055 = vand.u32 %v7043, 2147483648
  %v7056 = vor.u32 1.1754944e-38, %v7055
  %v7057 = vsel %vm7054, %v7056, %v7052
  %v7058 = vmul.f32 1.0, %v7057
  %v7059 = vtanh.pop %v7039
  %v7060 = vmul.f32 %v7058, %v6834
  %7062 = vrot.lane.b32.xlu0 %v7059, 64
  %v7063 = vpop.permute.xlu0 %7062
  %v7065 = vmul.f32 %v7058, %v7063
  %7067 = vrot.lane.b32.xlu0 %v7065, 32
  %v7068 = vpop.permute.xlu0 %7067
  %v7070 = vadd.f32 %v7060, %v7068
  %v7071 = vtanh.pop %v7070
  %7073 = vrot.lane.b32.xlu0 %v7071, 64
  %v7074 = vpop.permute.xlu0 %7073
  %v7076 = vmul.f32 %v7058, %v7074
  %7078 = vrot.lane.b32.xlu0 %v7076, 32
  %v7079 = vpop.permute.xlu0 %7078
  %s7081 = scalar_lea.vmem %s4, 56
  %7082 = vst.msk [vmem:[%s7081] sm:$0xff] %vm44, %v7079
  %7083 = vst.msk [vmem:[%s5186] sm:$0xff] %vm44, %v7079
  %7085 = vrot.lane.b32.xlu0 %v7070, 96
  %v7086 = vpop.permute.xlu0 %7085
  %7088 = vst.msk [vmem:[%s5188] sm:$0xff] %vm44, %v7086
  // Predicated region
  $region22: #{language_model_forward.2} parent=0 // pred_check
    _
  $region23: #{language_model_forward.2} parent=0 // pred_check_branch
    %7090 = sbr.rel (0) target = $region25
  $region24: #{language_model_forward.2} parent=0 // pred_region
    _
  $region25: #{language_model_forward.2} parent=0 // pred_fallthru
    _
  // Predicated region
  $region26: #{language_model_forward.2} parent=0 // pred_check
    _
  $region27: #{language_model_forward.2} parent=0 // pred_check_branch
    %7092 = sbr.rel (0) target = $region29
  $region28: #{language_model_forward.2} parent=0 // pred_region
    _
  $region29: #{language_model_forward.2} parent=0 // pred_fallthru
    _

</llo_original>
